<compile_context>
chip_gen: v7x
topology: tpu7x:2x2x1
jax: 0.10.0
libtpu: 0.0.40
codegen_flags: <defaults>
</compile_context>

<pallas_src>
import numpy as np
import jax
import jax.numpy as jnp
from jax import lax
from jax.experimental import pallas as pl
from jax.experimental.pallas import tpu as pltpu

# ---------------------------------------------------------------------------
# Static layout constants
# ---------------------------------------------------------------------------
B_BLK = 8          # images per grid step (stacked on the matmul M axis)
CIN_P = 4          # conv1 input channels  3 -> 4
C1_P = 8           # conv1 output channels 6 -> 8
WIN = 36           # padded conv1 input height/width (32 + 2*2)
LX = 256           # lanes per conv1 KH slab (36*4 = 144 -> 256)
KX = 5 * LX        # conv1 contraction length (pre-shifted KH slabs) = 1280
H1 = 32            # conv1 output rows (and width) per image
L1 = 256           # conv1 output lanes (32*8)
LP1 = 128          # W-pooled lanes (16*8)
NOI = 12           # conv2 output rows per image
L2 = 256           # conv2 output lanes (12*16 = 192 -> 256)
F1_P = 128         # fc1 features 120 -> 128
F2_P = 128         # fc2 features  84 -> 128
NCLS = 200
NCLS_P = 256       # classes 200 -> 256

MROWS = B_BLK * H1        # 256: conv1 LHS rows per block
CROWS = B_BLK * NOI       # 96:  conv2 output rows per block
QROWS = 5 * CROWS         # 480: pooled + KH-shifted rows per block


def _ksigmoid(x):
    # exp on the EUP; approx reciprocal also lands off the VPU divide path.
    # Not bit-exact vs jax.nn.sigmoid; flip approx=False if tighter accuracy
    # is ever required.
    return pl.reciprocal(1.0 + jnp.exp(-x), approx=True)


# ---------------------------------------------------------------------------
# Fused LeNet forward kernel: B_BLK images per grid step.
# ---------------------------------------------------------------------------
def lenet_kernel(x_ref, m1_ref, b1_ref, pw1_ref, ph_ref, m2_ref, b2_ref,
                 w1f_ref, b1f_ref, w2f_ref, b2f_ref, w3f_ref, b3f_ref,
                 out_ref):
    f32, bf16 = jnp.float32, jnp.bfloat16

    # conv1 (5x5, pad 2): single block-Toeplitz matmul, KH pre-shifted on lanes.
    y1 = jnp.dot(x_ref[...], m1_ref[...], preferred_element_type=f32)  # (256,256)
    a1 = _ksigmoid(y1 + b1_ref[...])

    # avg-pool1, W half (0.5 folded into pw1): lanes 256 -> 128.
    a1w = jnp.dot(a1.astype(bf16), pw1_ref[...],
                  preferred_element_type=f32)                          # (256,128)

    # avg-pool1 H half (0.5) + conv2 KH row-shift gather, block-diagonal over
    # the B_BLK images.  Output rows ordered (di, oi, img).
    q = jnp.dot(ph_ref[...], a1w.astype(bf16),
                preferred_element_type=f32).astype(bf16)               # (480,128)

    # conv2 (5x5, valid): 5 accumulating matmuls over aligned 96-row slabs.
    y2 = jnp.zeros((CROWS, L2), f32)
    for di in range(5):
        y2 = y2 + jnp.dot(q[di * CROWS:(di + 1) * CROWS, :], m2_ref[di],
                          preferred_element_type=f32)
    a2 = _ksigmoid(y2 + b2_ref[...])                                   # (96,256)

    # fc1 (avgpool2 + NCHW flatten folded into weights).  a2 rows are ordered
    # (oi, img), so each oi slab is an aligned (B_BLK, 256) slice.
    h = jnp.zeros((B_BLK, F1_P), f32)
    for oi in range(NOI):
        h = h + jnp.dot(a2[oi * B_BLK:(oi + 1) * B_BLK, :].astype(bf16),
                        w1f_ref[oi], preferred_element_type=f32)
    h1 = _ksigmoid(h + b1f_ref[...]).astype(bf16)                      # (8,128)

    h2 = _ksigmoid(jnp.dot(h1, w2f_ref[...], preferred_element_type=f32)
                   + b2f_ref[...]).astype(bf16)                        # (8,128)

    out_ref[...] = (jnp.dot(h2, w3f_ref[...], preferred_element_type=f32)
                    + b3f_ref[...])                                    # (8,256) f32


def _const_spec(arr):
    nd = arr.ndim
    return pl.BlockSpec(arr.shape, lambda b: (0,) * nd)


def _prep_input(x_nchw, n_pad):
    """NCHW f32 -> (n_pad*32, 1280) bf16; lane = di*256 + w_in*CIN_P + c."""
    n = x_nchw.shape[0]
    xp = jnp.pad(x_nchw, ((0, n_pad - n), (0, 0), (2, 2), (2, 2)))  # (P,3,36,36)
    xh = jnp.transpose(xp, (0, 2, 3, 1))                            # (P,36,36,3)
    xh = jnp.pad(xh, ((0, 0), (0, 0), (0, 0), (0, CIN_P - 3)))      # (P,36,36,4)
    x2 = xh.reshape(n_pad, WIN, WIN * CIN_P)                        # (P,36,144)
    x2 = jnp.pad(x2, ((0, 0), (0, 0), (0, LX - WIN * CIN_P)))       # (P,36,256)
    xs = jnp.stack([x2[:, di:di + H1, :] for di in range(5)], axis=2)  # (P,32,5,256)
    return xs.reshape(n_pad * H1, KX).astype(jnp.bfloat16)


_WEIGHT_NAMES = ("m1", "b1", "pw1", "ph", "m2", "b2",
                 "w1f", "b1f", "w2f", "b2f", "w3f", "b3f")


@jax.jit
def lenet_forward(x_nchw, params):
    n = x_nchw.shape[0]
    n_pad = ((n + B_BLK - 1) // B_BLK) * B_BLK
    # NOTE: on v7x, additionally padding so (n_pad // B_BLK) is even keeps both
    # TensorCores busy via the "parallel" grid axis.
    x = _prep_input(x_nchw, n_pad)
    weights = [params[k] for k in _WEIGHT_NAMES]

    in_specs = [pl.BlockSpec((MROWS, KX), lambda b: (b, 0))]
    in_specs += [_const_spec(w) for w in weights]

    out = pl.pallas_call(
        lenet_kernel,
        out_shape=jax.ShapeDtypeStruct((n_pad, NCLS_P), jnp.float32),
        grid_spec=pltpu.PrefetchScalarGridSpec(
            num_scalar_prefetch=0,
            grid=(n_pad // B_BLK,),
            in_specs=in_specs,
            out_specs=pl.BlockSpec((B_BLK, NCLS_P), lambda b: (b, 0)),
        ),
        compiler_params=pltpu.CompilerParams(
            dimension_semantics=("parallel",)),
    )(x, *weights)

    return out[:n, :NCLS]


# ---------------------------------------------------------------------------
# Host-side parameter packing (block-Toeplitz conv weights, folded pooling/fc1)
# ---------------------------------------------------------------------------
def build_params(raw):
    w1 = np.asarray(raw["conv1_w"], np.float32)    # (6, 3, 5, 5)
    b1 = np.asarray(raw["conv1_b"], np.float32)
    w2 = np.asarray(raw["conv2_w"], np.float32)    # (16, 6, 5, 5)
    b2 = np.asarray(raw["conv2_b"], np.float32)
    fc1w = np.asarray(raw["fc1_w"], np.float32)    # (120, 576)
    fc1b = np.asarray(raw["fc1_b"], np.float32)
    fc2w = np.asarray(raw["fc2_w"], np.float32)    # (84, 120)
    fc2b = np.asarray(raw["fc2_b"], np.float32)
    fc3w = np.asarray(raw["fc3_w"], np.float32)    # (200, 84)
    fc3b = np.asarray(raw["fc3_b"], np.float32)

    # conv1 block-Toeplitz: M1[di*256 + wi*4 + c, wo*8 + o] = w1[o,c,di,wi-wo]
    m1 = np.zeros((5, LX, L1), np.float32)
    for di in range(5):
        for dj in range(5):
            for wo in range(32):
                wi = wo + dj
                for o in range(6):
                    for c in range(3):
                        m1[di, wi * CIN_P + c, wo * C1_P + o] = w1[o, c, di, dj]
    m1 = m1.reshape(5 * LX, L1)
    b1row = np.zeros((1, L1), np.float32)
    for o in range(6):
        b1row[0, np.arange(32) * C1_P + o] = b1[o]

    # avg-pool1, W half (0.5): lanes (w, c) -> (w//2, c).
    pw1 = np.zeros((L1, LP1), np.float32)
    for w in range(32):
        for c in range(C1_P):
            pw1[w * C1_P + c, (w // 2) * C1_P + c] = 0.5

    # avg-pool1 H half (0.5) + conv2 KH row selection, block-diagonal over the
    # B_BLK images of a block.  Output row r = di*96 + oi*8 + img.
    ph = np.zeros((QROWS, MROWS), np.float32)
    for di in range(5):
        for oi in range(NOI):
            for im in range(B_BLK):
                r = di * CROWS + oi * B_BLK + im
                ph[r, im * H1 + 2 * (oi + di)] = 0.5
                ph[r, im * H1 + 2 * (oi + di) + 1] = 0.5

    # conv2 block-Toeplitz: M2[di, wi*8 + c, oj*16 + o] = w2[o,c,di,wi-oj]
    m2 = np.zeros((5, LP1, L2), np.float32)
    for di in range(5):
        for dj in range(5):
            for oj in range(NOI):
                wi = oj + dj
                for o in range(16):
                    for c in range(6):
                        m2[di, wi * C1_P + c, oj * 16 + o] = w2[o, c, di, dj]
    b2row = np.zeros((1, L2), np.float32)
    for o in range(16):
        b2row[0, np.arange(NOI) * 16 + o] = b2[o]

    # fc1 with avgpool(2,2) + NCHW flatten folded in:
    #   W1F[oi, oj*16 + o, f] = 0.25 * fc1_w[f, o*36 + (oi//2)*6 + (oj//2)]
    w1f = np.zeros((NOI, L2, F1_P), np.float32)
    for oi in range(NOI):
        for oj in range(NOI):
            for o in range(16):
                w1f[oi, oj * 16 + o, :120] = (
                    0.25 * fc1w[:, o * 36 + (oi // 2) * 6 + (oj // 2)])
    b1f = np.zeros((1, F1_P), np.float32)
    b1f[0, :120] = fc1b

    w2f = np.zeros((F1_P, F2_P), np.float32)
    w2f[:120, :84] = fc2w.T
    b2f = np.zeros((1, F2_P), np.float32)
    b2f[0, :84] = fc2b

    w3f = np.zeros((F2_P, NCLS_P), np.float32)
    w3f[:84, :NCLS] = fc3w.T
    b3f = np.zeros((1, NCLS_P), np.float32)
    b3f[0, :NCLS] = fc3b

    bf16, f32 = jnp.bfloat16, jnp.float32
    return {
        "m1": jnp.asarray(m1, bf16), "b1": jnp.asarray(b1row, f32),
        "pw1": jnp.asarray(pw1, bf16), "ph": jnp.asarray(ph, bf16),
        "m2": jnp.asarray(m2, bf16), "b2": jnp.asarray(b2row, f32),
        "w1f": jnp.asarray(w1f, bf16), "b1f": jnp.asarray(b1f, f32),
        "w2f": jnp.asarray(w2f, bf16), "b2f": jnp.asarray(b2f, f32),
        "w3f": jnp.asarray(w3f, bf16), "b3f": jnp.asarray(b3f, f32),
    }


# ---------------------------------------------------------------------------
# Pure-JAX reference (for correctness check)
# ---------------------------------------------------------------------------
def lenet_ref(x_nchw, raw):
    sig = jax.nn.sigmoid
    dn = ("NCHW", "OIHW", "NCHW")
    y = lax.conv_general_dilated(x_nchw, raw["conv1_w"], (1, 1), ((2, 2), (2, 2)),
                                 dimension_numbers=dn,
                                 precision=lax.Precision.HIGHEST)
    y = sig(y + raw["conv1_b"][None, :, None, None])
    y = y.reshape(y.shape[0], 6, 16, 2, 16, 2).mean(axis=(3, 5))
    y = lax.conv_general_dilated(y, raw["conv2_w"], (1, 1), ((0, 0), (0, 0)),
                                 dimension_numbers=dn,
                                 precision=lax.Precision.HIGHEST)
    y = sig(y + raw["conv2_b"][None, :, None, None])
    y = y.reshape(y.shape[0], 16, 6, 2, 6, 2).mean(axis=(3, 5))
    y = y.reshape(y.shape[0], 16 * 6 * 6)
    y = sig(y @ raw["fc1_w"].T + raw["fc1_b"])
    y = sig(y @ raw["fc2_w"].T + raw["fc2_b"])
    return y @ raw["fc3_w"].T + raw["fc3_b"]


if __name__ == "__main__":
    num_classes = 200
    key = jax.random.PRNGKey(0)
    ks = jax.random.split(key, 11)

    raw = {
        "conv1_w": 0.2 * jax.random.normal(ks[0], (6, 3, 5, 5), jnp.float32),
        "conv1_b": 0.1 * jax.random.normal(ks[1], (6,), jnp.float32),
        "conv2_w": 0.2 * jax.random.normal(ks[2], (16, 6, 5, 5), jnp.float32),
        "conv2_b": 0.1 * jax.random.normal(ks[3], (16,), jnp.float32),
        "fc1_w": 0.05 * jax.random.normal(ks[4], (120, 576), jnp.float32),
        "fc1_b": 0.1 * jax.random.normal(ks[5], (120,), jnp.float32),
        "fc2_w": 0.05 * jax.random.normal(ks[6], (84, 120), jnp.float32),
        "fc2_b": 0.1 * jax.random.normal(ks[7], (84,), jnp.float32),
        "fc3_w": 0.05 * jax.random.normal(ks[8], (200, 84), jnp.float32),
        "fc3_b": 0.1 * jax.random.normal(ks[9], (200,), jnp.float32),
    }

    params = build_params(raw)
    x = jax.random.normal(ks[10], (2, 3, 32, 32), jnp.float32)

    out = jax.block_until_ready(lenet_forward(x, params))
    assert out.shape == (2, num_classes) and out.dtype == jnp.float32

    ref = jax.block_until_ready(lenet_ref(x, raw))
    np.testing.assert_allclose(np.asarray(out), np.asarray(ref),
                               rtol=2e-2, atol=2e-2)

    print("KERNEL_OK")
</pallas_src>

<mosaic_0001>
module attributes {stable_mosaic.version = 11 : i64} {
  func.func @lenet_kernel(%arg0: i32, %arg1: memref<256x1280xbf16, #tpu.memory_space<vmem>>, %arg2: memref<1280x256xbf16, #tpu.memory_space<vmem>>, %arg3: memref<1x256xf32, #tpu.memory_space<vmem>>, %arg4: memref<256x128xbf16, #tpu.memory_space<vmem>>, %arg5: memref<480x256xbf16, #tpu.memory_space<vmem>>, %arg6: memref<5x128x256xbf16, #tpu.memory_space<vmem>>, %arg7: memref<1x256xf32, #tpu.memory_space<vmem>>, %arg8: memref<12x256x128xbf16, #tpu.memory_space<vmem>>, %arg9: memref<1x128xf32, #tpu.memory_space<vmem>>, %arg10: memref<128x128xbf16, #tpu.memory_space<vmem>>, %arg11: memref<1x128xf32, #tpu.memory_space<vmem>>, %arg12: memref<128x256xbf16, #tpu.memory_space<vmem>>, %arg13: memref<1x256xf32, #tpu.memory_space<vmem>>, %arg14: memref<8x256xf32, #tpu.memory_space<vmem>>) attributes {dimension_semantics = [#tpu.dimension_semantics<parallel>], iteration_bounds = array<i64: 1>, scalar_prefetch = 0 : i64, scratch_operands = 0 : i64, tpu.core_type = #tpu.core_type<tc>, window_params = [{transform_indices = @transform_0, window_bounds = array<i64: 256, 1280>}, {pipeline_mode = #tpu.pipeline_mode<synchronous>, transform_indices = @transform_1, window_bounds = array<i64: 1280, 256>}, {pipeline_mode = #tpu.pipeline_mode<synchronous>, transform_indices = @transform_2, window_bounds = array<i64: 1, 256>}, {pipeline_mode = #tpu.pipeline_mode<synchronous>, transform_indices = @transform_3, window_bounds = array<i64: 256, 128>}, {pipeline_mode = #tpu.pipeline_mode<synchronous>, transform_indices = @transform_4, window_bounds = array<i64: 480, 256>}, {pipeline_mode = #tpu.pipeline_mode<synchronous>, transform_indices = @transform_5, window_bounds = array<i64: 5, 128, 256>}, {pipeline_mode = #tpu.pipeline_mode<synchronous>, transform_indices = @transform_6, window_bounds = array<i64: 1, 256>}, {pipeline_mode = #tpu.pipeline_mode<synchronous>, transform_indices = @transform_7, window_bounds = array<i64: 12, 256, 128>}, {pipeline_mode = #tpu.pipeline_mode<synchronous>, transform_indices = @transform_8, window_bounds = array<i64: 1, 128>}, {pipeline_mode = #tpu.pipeline_mode<synchronous>, transform_indices = @transform_9, window_bounds = array<i64: 128, 128>}, {pipeline_mode = #tpu.pipeline_mode<synchronous>, transform_indices = @transform_10, window_bounds = array<i64: 1, 128>}, {pipeline_mode = #tpu.pipeline_mode<synchronous>, transform_indices = @transform_11, window_bounds = array<i64: 128, 256>}, {pipeline_mode = #tpu.pipeline_mode<synchronous>, transform_indices = @transform_12, window_bounds = array<i64: 1, 256>}, {transform_indices = @transform_13, window_bounds = array<i64: 8, 256>}]} {
    %c0 = arith.constant 0 : index
    %c0_0 = arith.constant 0 : index
    %0 = vector.load %arg1[%c0, %c0_0] : memref<256x1280xbf16, #tpu.memory_space<vmem>>, vector<256x1280xbf16>
    %c0_1 = arith.constant 0 : index
    %c0_2 = arith.constant 0 : index
    %1 = vector.load %arg2[%c0_1, %c0_2] : memref<1280x256xbf16, #tpu.memory_space<vmem>>, vector<1280x256xbf16>
    %cst = arith.constant dense<0.000000e+00> : vector<256x256xf32>
    %2 = tpu.matmul %0, %1, %cst {dimension_numbers = #tpu.dot_dimension_numbers<[1], [0], [0], [1], [0, 0, 1, 1], [], []>} : vector<256x1280xbf16>, vector<1280x256xbf16>, vector<256x256xf32> -> vector<256x256xf32>
    %c0_3 = arith.constant 0 : index
    %c0_4 = arith.constant 0 : index
    %3 = vector.load %arg3[%c0_3, %c0_4] : memref<1x256xf32, #tpu.memory_space<vmem>>, vector<1x256xf32>
    %4 = vector.broadcast %3 : vector<1x256xf32> to vector<256x256xf32>
    %5 = arith.addf %2, %4 : vector<256x256xf32>
    %cst_5 = arith.constant 0.000000e+00 : f32
    %6 = vector.broadcast %cst_5 : f32 to vector<256x256xf32>
    %7 = arith.subf %6, %5 : vector<256x256xf32>
    %8 = math.exp %7 : vector<256x256xf32>
    %cst_6 = arith.constant 1.000000e+00 : f32
    %9 = vector.broadcast %cst_6 : f32 to vector<256x256xf32>
    %10 = arith.addf %9, %8 : vector<256x256xf32>
    %11 = tpu.reciprocal %10 {approx = true} : vector<256x256xf32> -> vector<256x256xf32>
    %12 = arith.truncf %11 : vector<256x256xf32> to vector<256x256xbf16>
    %c0_7 = arith.constant 0 : index
    %c0_8 = arith.constant 0 : index
    %13 = vector.load %arg4[%c0_7, %c0_8] : memref<256x128xbf16, #tpu.memory_space<vmem>>, vector<256x128xbf16>
    %cst_9 = arith.constant dense<0.000000e+00> : vector<256x128xf32>
    %14 = tpu.matmul %12, %13, %cst_9 {dimension_numbers = #tpu.dot_dimension_numbers<[1], [0], [0], [1], [0, 0, 1, 1], [], []>} : vector<256x256xbf16>, vector<256x128xbf16>, vector<256x128xf32> -> vector<256x128xf32>
    %c0_10 = arith.constant 0 : index
    %c0_11 = arith.constant 0 : index
    %15 = vector.load %arg5[%c0_10, %c0_11] : memref<480x256xbf16, #tpu.memory_space<vmem>>, vector<480x256xbf16>
    %16 = arith.truncf %14 : vector<256x128xf32> to vector<256x128xbf16>
    %cst_12 = arith.constant dense<0.000000e+00> : vector<480x128xf32>
    %17 = tpu.matmul %15, %16, %cst_12 {dimension_numbers = #tpu.dot_dimension_numbers<[1], [0], [0], [1], [0, 0, 1, 1], [], []>} : vector<480x256xbf16>, vector<256x128xbf16>, vector<480x128xf32> -> vector<480x128xf32>
    %18 = arith.truncf %17 : vector<480x128xf32> to vector<480x128xbf16>
    %cst_13 = arith.constant 0.000000e+00 : f32
    %19 = vector.broadcast %cst_13 : f32 to vector<96x256xf32>
    %20 = vector.extract_strided_slice %18 {offsets = [0, 0], sizes = [96, 128], strides = [1, 1]} : vector<480x128xbf16> to vector<96x128xbf16>
    %c0_14 = arith.constant 0 : index
    %c0_15 = arith.constant 0 : index
    %c0_16 = arith.constant 0 : index
    %21 = vector.load %arg6[%c0_14, %c0_15, %c0_16] : memref<5x128x256xbf16, #tpu.memory_space<vmem>>, vector<1x128x256xbf16>
    %22 = vector.shape_cast %21 : vector<1x128x256xbf16> to vector<128x256xbf16>
    %cst_17 = arith.constant dense<0.000000e+00> : vector<96x256xf32>
    %23 = tpu.matmul %20, %22, %cst_17 {dimension_numbers = #tpu.dot_dimension_numbers<[1], [0], [0], [1], [0, 0, 1, 1], [], []>} : vector<96x128xbf16>, vector<128x256xbf16>, vector<96x256xf32> -> vector<96x256xf32>
    %24 = arith.addf %19, %23 : vector<96x256xf32>
    %25 = vector.extract_strided_slice %18 {offsets = [96, 0], sizes = [96, 128], strides = [1, 1]} : vector<480x128xbf16> to vector<96x128xbf16>
    %c1 = arith.constant 1 : index
    %c0_18 = arith.constant 0 : index
    %c0_19 = arith.constant 0 : index
    %26 = vector.load %arg6[%c1, %c0_18, %c0_19] : memref<5x128x256xbf16, #tpu.memory_space<vmem>>, vector<1x128x256xbf16>
    %27 = vector.shape_cast %26 : vector<1x128x256xbf16> to vector<128x256xbf16>
    %cst_20 = arith.constant dense<0.000000e+00> : vector<96x256xf32>
    %28 = tpu.matmul %25, %27, %cst_20 {dimension_numbers = #tpu.dot_dimension_numbers<[1], [0], [0], [1], [0, 0, 1, 1], [], []>} : vector<96x128xbf16>, vector<128x256xbf16>, vector<96x256xf32> -> vector<96x256xf32>
    %29 = arith.addf %24, %28 : vector<96x256xf32>
    %30 = vector.extract_strided_slice %18 {offsets = [192, 0], sizes = [96, 128], strides = [1, 1]} : vector<480x128xbf16> to vector<96x128xbf16>
    %c2 = arith.constant 2 : index
    %c0_21 = arith.constant 0 : index
    %c0_22 = arith.constant 0 : index
    %31 = vector.load %arg6[%c2, %c0_21, %c0_22] : memref<5x128x256xbf16, #tpu.memory_space<vmem>>, vector<1x128x256xbf16>
    %32 = vector.shape_cast %31 : vector<1x128x256xbf16> to vector<128x256xbf16>
    %cst_23 = arith.constant dense<0.000000e+00> : vector<96x256xf32>
    %33 = tpu.matmul %30, %32, %cst_23 {dimension_numbers = #tpu.dot_dimension_numbers<[1], [0], [0], [1], [0, 0, 1, 1], [], []>} : vector<96x128xbf16>, vector<128x256xbf16>, vector<96x256xf32> -> vector<96x256xf32>
    %34 = arith.addf %29, %33 : vector<96x256xf32>
    %35 = vector.extract_strided_slice %18 {offsets = [288, 0], sizes = [96, 128], strides = [1, 1]} : vector<480x128xbf16> to vector<96x128xbf16>
    %c3 = arith.constant 3 : index
    %c0_24 = arith.constant 0 : index
    %c0_25 = arith.constant 0 : index
    %36 = vector.load %arg6[%c3, %c0_24, %c0_25] : memref<5x128x256xbf16, #tpu.memory_space<vmem>>, vector<1x128x256xbf16>
    %37 = vector.shape_cast %36 : vector<1x128x256xbf16> to vector<128x256xbf16>
    %cst_26 = arith.constant dense<0.000000e+00> : vector<96x256xf32>
    %38 = tpu.matmul %35, %37, %cst_26 {dimension_numbers = #tpu.dot_dimension_numbers<[1], [0], [0], [1], [0, 0, 1, 1], [], []>} : vector<96x128xbf16>, vector<128x256xbf16>, vector<96x256xf32> -> vector<96x256xf32>
    %39 = arith.addf %34, %38 : vector<96x256xf32>
    %40 = vector.extract_strided_slice %18 {offsets = [384, 0], sizes = [96, 128], strides = [1, 1]} : vector<480x128xbf16> to vector<96x128xbf16>
    %c4 = arith.constant 4 : index
    %c0_27 = arith.constant 0 : index
    %c0_28 = arith.constant 0 : index
    %41 = vector.load %arg6[%c4, %c0_27, %c0_28] : memref<5x128x256xbf16, #tpu.memory_space<vmem>>, vector<1x128x256xbf16>
    %42 = vector.shape_cast %41 : vector<1x128x256xbf16> to vector<128x256xbf16>
    %cst_29 = arith.constant dense<0.000000e+00> : vector<96x256xf32>
    %43 = tpu.matmul %40, %42, %cst_29 {dimension_numbers = #tpu.dot_dimension_numbers<[1], [0], [0], [1], [0, 0, 1, 1], [], []>} : vector<96x128xbf16>, vector<128x256xbf16>, vector<96x256xf32> -> vector<96x256xf32>
    %44 = arith.addf %39, %43 : vector<96x256xf32>
    %c0_30 = arith.constant 0 : index
    %c0_31 = arith.constant 0 : index
    %45 = vector.load %arg7[%c0_30, %c0_31] : memref<1x256xf32, #tpu.memory_space<vmem>>, vector<1x256xf32>
    %46 = vector.broadcast %45 : vector<1x256xf32> to vector<96x256xf32>
    %47 = arith.addf %44, %46 : vector<96x256xf32>
    %cst_32 = arith.constant 0.000000e+00 : f32
    %48 = vector.broadcast %cst_32 : f32 to vector<96x256xf32>
    %49 = arith.subf %48, %47 : vector<96x256xf32>
    %50 = math.exp %49 : vector<96x256xf32>
    %cst_33 = arith.constant 1.000000e+00 : f32
    %51 = vector.broadcast %cst_33 : f32 to vector<96x256xf32>
    %52 = arith.addf %51, %50 : vector<96x256xf32>
    %53 = tpu.reciprocal %52 {approx = true} : vector<96x256xf32> -> vector<96x256xf32>
    %cst_34 = arith.constant 0.000000e+00 : f32
    %54 = vector.broadcast %cst_34 : f32 to vector<8x128xf32>
    %55 = vector.extract_strided_slice %53 {offsets = [0, 0], sizes = [8, 256], strides = [1, 1]} : vector<96x256xf32> to vector<8x256xf32>
    %56 = arith.truncf %55 : vector<8x256xf32> to vector<8x256xbf16>
    %c0_35 = arith.constant 0 : index
    %c0_36 = arith.constant 0 : index
    %c0_37 = arith.constant 0 : index
    %57 = vector.load %arg8[%c0_35, %c0_36, %c0_37] : memref<12x256x128xbf16, #tpu.memory_space<vmem>>, vector<1x256x128xbf16>
    %58 = vector.shape_cast %57 : vector<1x256x128xbf16> to vector<256x128xbf16>
    %cst_38 = arith.constant dense<0.000000e+00> : vector<8x128xf32>
    %59 = tpu.matmul %56, %58, %cst_38 {dimension_numbers = #tpu.dot_dimension_numbers<[1], [0], [0], [1], [0, 0, 1, 1], [], []>} : vector<8x256xbf16>, vector<256x128xbf16>, vector<8x128xf32> -> vector<8x128xf32>
    %60 = arith.addf %54, %59 : vector<8x128xf32>
    %61 = vector.extract_strided_slice %53 {offsets = [8, 0], sizes = [8, 256], strides = [1, 1]} : vector<96x256xf32> to vector<8x256xf32>
    %62 = arith.truncf %61 : vector<8x256xf32> to vector<8x256xbf16>
    %c1_39 = arith.constant 1 : index
    %c0_40 = arith.constant 0 : index
    %c0_41 = arith.constant 0 : index
    %63 = vector.load %arg8[%c1_39, %c0_40, %c0_41] : memref<12x256x128xbf16, #tpu.memory_space<vmem>>, vector<1x256x128xbf16>
    %64 = vector.shape_cast %63 : vector<1x256x128xbf16> to vector<256x128xbf16>
    %cst_42 = arith.constant dense<0.000000e+00> : vector<8x128xf32>
    %65 = tpu.matmul %62, %64, %cst_42 {dimension_numbers = #tpu.dot_dimension_numbers<[1], [0], [0], [1], [0, 0, 1, 1], [], []>} : vector<8x256xbf16>, vector<256x128xbf16>, vector<8x128xf32> -> vector<8x128xf32>
    %66 = arith.addf %60, %65 : vector<8x128xf32>
    %67 = vector.extract_strided_slice %53 {offsets = [16, 0], sizes = [8, 256], strides = [1, 1]} : vector<96x256xf32> to vector<8x256xf32>
    %68 = arith.truncf %67 : vector<8x256xf32> to vector<8x256xbf16>
    %c2_43 = arith.constant 2 : index
    %c0_44 = arith.constant 0 : index
    %c0_45 = arith.constant 0 : index
    %69 = vector.load %arg8[%c2_43, %c0_44, %c0_45] : memref<12x256x128xbf16, #tpu.memory_space<vmem>>, vector<1x256x128xbf16>
    %70 = vector.shape_cast %69 : vector<1x256x128xbf16> to vector<256x128xbf16>
    %cst_46 = arith.constant dense<0.000000e+00> : vector<8x128xf32>
    %71 = tpu.matmul %68, %70, %cst_46 {dimension_numbers = #tpu.dot_dimension_numbers<[1], [0], [0], [1], [0, 0, 1, 1], [], []>} : vector<8x256xbf16>, vector<256x128xbf16>, vector<8x128xf32> -> vector<8x128xf32>
    %72 = arith.addf %66, %71 : vector<8x128xf32>
    %73 = vector.extract_strided_slice %53 {offsets = [24, 0], sizes = [8, 256], strides = [1, 1]} : vector<96x256xf32> to vector<8x256xf32>
    %74 = arith.truncf %73 : vector<8x256xf32> to vector<8x256xbf16>
    %c3_47 = arith.constant 3 : index
    %c0_48 = arith.constant 0 : index
    %c0_49 = arith.constant 0 : index
    %75 = vector.load %arg8[%c3_47, %c0_48, %c0_49] : memref<12x256x128xbf16, #tpu.memory_space<vmem>>, vector<1x256x128xbf16>
    %76 = vector.shape_cast %75 : vector<1x256x128xbf16> to vector<256x128xbf16>
    %cst_50 = arith.constant dense<0.000000e+00> : vector<8x128xf32>
    %77 = tpu.matmul %74, %76, %cst_50 {dimension_numbers = #tpu.dot_dimension_numbers<[1], [0], [0], [1], [0, 0, 1, 1], [], []>} : vector<8x256xbf16>, vector<256x128xbf16>, vector<8x128xf32> -> vector<8x128xf32>
    %78 = arith.addf %72, %77 : vector<8x128xf32>
    %79 = vector.extract_strided_slice %53 {offsets = [32, 0], sizes = [8, 256], strides = [1, 1]} : vector<96x256xf32> to vector<8x256xf32>
    %80 = arith.truncf %79 : vector<8x256xf32> to vector<8x256xbf16>
    %c4_51 = arith.constant 4 : index
    %c0_52 = arith.constant 0 : index
    %c0_53 = arith.constant 0 : index
    %81 = vector.load %arg8[%c4_51, %c0_52, %c0_53] : memref<12x256x128xbf16, #tpu.memory_space<vmem>>, vector<1x256x128xbf16>
    %82 = vector.shape_cast %81 : vector<1x256x128xbf16> to vector<256x128xbf16>
    %cst_54 = arith.constant dense<0.000000e+00> : vector<8x128xf32>
    %83 = tpu.matmul %80, %82, %cst_54 {dimension_numbers = #tpu.dot_dimension_numbers<[1], [0], [0], [1], [0, 0, 1, 1], [], []>} : vector<8x256xbf16>, vector<256x128xbf16>, vector<8x128xf32> -> vector<8x128xf32>
    %84 = arith.addf %78, %83 : vector<8x128xf32>
    %85 = vector.extract_strided_slice %53 {offsets = [40, 0], sizes = [8, 256], strides = [1, 1]} : vector<96x256xf32> to vector<8x256xf32>
    %86 = arith.truncf %85 : vector<8x256xf32> to vector<8x256xbf16>
    %c5 = arith.constant 5 : index
    %c0_55 = arith.constant 0 : index
    %c0_56 = arith.constant 0 : index
    %87 = vector.load %arg8[%c5, %c0_55, %c0_56] : memref<12x256x128xbf16, #tpu.memory_space<vmem>>, vector<1x256x128xbf16>
    %88 = vector.shape_cast %87 : vector<1x256x128xbf16> to vector<256x128xbf16>
    %cst_57 = arith.constant dense<0.000000e+00> : vector<8x128xf32>
    %89 = tpu.matmul %86, %88, %cst_57 {dimension_numbers = #tpu.dot_dimension_numbers<[1], [0], [0], [1], [0, 0, 1, 1], [], []>} : vector<8x256xbf16>, vector<256x128xbf16>, vector<8x128xf32> -> vector<8x128xf32>
    %90 = arith.addf %84, %89 : vector<8x128xf32>
    %91 = vector.extract_strided_slice %53 {offsets = [48, 0], sizes = [8, 256], strides = [1, 1]} : vector<96x256xf32> to vector<8x256xf32>
    %92 = arith.truncf %91 : vector<8x256xf32> to vector<8x256xbf16>
    %c6 = arith.constant 6 : index
    %c0_58 = arith.constant 0 : index
    %c0_59 = arith.constant 0 : index
    %93 = vector.load %arg8[%c6, %c0_58, %c0_59] : memref<12x256x128xbf16, #tpu.memory_space<vmem>>, vector<1x256x128xbf16>
    %94 = vector.shape_cast %93 : vector<1x256x128xbf16> to vector<256x128xbf16>
    %cst_60 = arith.constant dense<0.000000e+00> : vector<8x128xf32>
    %95 = tpu.matmul %92, %94, %cst_60 {dimension_numbers = #tpu.dot_dimension_numbers<[1], [0], [0], [1], [0, 0, 1, 1], [], []>} : vector<8x256xbf16>, vector<256x128xbf16>, vector<8x128xf32> -> vector<8x128xf32>
    %96 = arith.addf %90, %95 : vector<8x128xf32>
    %97 = vector.extract_strided_slice %53 {offsets = [56, 0], sizes = [8, 256], strides = [1, 1]} : vector<96x256xf32> to vector<8x256xf32>
    %98 = arith.truncf %97 : vector<8x256xf32> to vector<8x256xbf16>
    %c7 = arith.constant 7 : index
    %c0_61 = arith.constant 0 : index
    %c0_62 = arith.constant 0 : index
    %99 = vector.load %arg8[%c7, %c0_61, %c0_62] : memref<12x256x128xbf16, #tpu.memory_space<vmem>>, vector<1x256x128xbf16>
    %100 = vector.shape_cast %99 : vector<1x256x128xbf16> to vector<256x128xbf16>
    %cst_63 = arith.constant dense<0.000000e+00> : vector<8x128xf32>
    %101 = tpu.matmul %98, %100, %cst_63 {dimension_numbers = #tpu.dot_dimension_numbers<[1], [0], [0], [1], [0, 0, 1, 1], [], []>} : vector<8x256xbf16>, vector<256x128xbf16>, vector<8x128xf32> -> vector<8x128xf32>
    %102 = arith.addf %96, %101 : vector<8x128xf32>
    %103 = vector.extract_strided_slice %53 {offsets = [64, 0], sizes = [8, 256], strides = [1, 1]} : vector<96x256xf32> to vector<8x256xf32>
    %104 = arith.truncf %103 : vector<8x256xf32> to vector<8x256xbf16>
    %c8 = arith.constant 8 : index
    %c0_64 = arith.constant 0 : index
    %c0_65 = arith.constant 0 : index
    %105 = vector.load %arg8[%c8, %c0_64, %c0_65] : memref<12x256x128xbf16, #tpu.memory_space<vmem>>, vector<1x256x128xbf16>
    %106 = vector.shape_cast %105 : vector<1x256x128xbf16> to vector<256x128xbf16>
    %cst_66 = arith.constant dense<0.000000e+00> : vector<8x128xf32>
    %107 = tpu.matmul %104, %106, %cst_66 {dimension_numbers = #tpu.dot_dimension_numbers<[1], [0], [0], [1], [0, 0, 1, 1], [], []>} : vector<8x256xbf16>, vector<256x128xbf16>, vector<8x128xf32> -> vector<8x128xf32>
    %108 = arith.addf %102, %107 : vector<8x128xf32>
    %109 = vector.extract_strided_slice %53 {offsets = [72, 0], sizes = [8, 256], strides = [1, 1]} : vector<96x256xf32> to vector<8x256xf32>
    %110 = arith.truncf %109 : vector<8x256xf32> to vector<8x256xbf16>
    %c9 = arith.constant 9 : index
    %c0_67 = arith.constant 0 : index
    %c0_68 = arith.constant 0 : index
    %111 = vector.load %arg8[%c9, %c0_67, %c0_68] : memref<12x256x128xbf16, #tpu.memory_space<vmem>>, vector<1x256x128xbf16>
    %112 = vector.shape_cast %111 : vector<1x256x128xbf16> to vector<256x128xbf16>
    %cst_69 = arith.constant dense<0.000000e+00> : vector<8x128xf32>
    %113 = tpu.matmul %110, %112, %cst_69 {dimension_numbers = #tpu.dot_dimension_numbers<[1], [0], [0], [1], [0, 0, 1, 1], [], []>} : vector<8x256xbf16>, vector<256x128xbf16>, vector<8x128xf32> -> vector<8x128xf32>
    %114 = arith.addf %108, %113 : vector<8x128xf32>
    %115 = vector.extract_strided_slice %53 {offsets = [80, 0], sizes = [8, 256], strides = [1, 1]} : vector<96x256xf32> to vector<8x256xf32>
    %116 = arith.truncf %115 : vector<8x256xf32> to vector<8x256xbf16>
    %c10 = arith.constant 10 : index
    %c0_70 = arith.constant 0 : index
    %c0_71 = arith.constant 0 : index
    %117 = vector.load %arg8[%c10, %c0_70, %c0_71] : memref<12x256x128xbf16, #tpu.memory_space<vmem>>, vector<1x256x128xbf16>
    %118 = vector.shape_cast %117 : vector<1x256x128xbf16> to vector<256x128xbf16>
    %cst_72 = arith.constant dense<0.000000e+00> : vector<8x128xf32>
    %119 = tpu.matmul %116, %118, %cst_72 {dimension_numbers = #tpu.dot_dimension_numbers<[1], [0], [0], [1], [0, 0, 1, 1], [], []>} : vector<8x256xbf16>, vector<256x128xbf16>, vector<8x128xf32> -> vector<8x128xf32>
    %120 = arith.addf %114, %119 : vector<8x128xf32>
    %121 = vector.extract_strided_slice %53 {offsets = [88, 0], sizes = [8, 256], strides = [1, 1]} : vector<96x256xf32> to vector<8x256xf32>
    %122 = arith.truncf %121 : vector<8x256xf32> to vector<8x256xbf16>
    %c11 = arith.constant 11 : index
    %c0_73 = arith.constant 0 : index
    %c0_74 = arith.constant 0 : index
    %123 = vector.load %arg8[%c11, %c0_73, %c0_74] : memref<12x256x128xbf16, #tpu.memory_space<vmem>>, vector<1x256x128xbf16>
    %124 = vector.shape_cast %123 : vector<1x256x128xbf16> to vector<256x128xbf16>
    %cst_75 = arith.constant dense<0.000000e+00> : vector<8x128xf32>
    %125 = tpu.matmul %122, %124, %cst_75 {dimension_numbers = #tpu.dot_dimension_numbers<[1], [0], [0], [1], [0, 0, 1, 1], [], []>} : vector<8x256xbf16>, vector<256x128xbf16>, vector<8x128xf32> -> vector<8x128xf32>
    %126 = arith.addf %120, %125 : vector<8x128xf32>
    %c0_76 = arith.constant 0 : index
    %c0_77 = arith.constant 0 : index
    %127 = vector.load %arg9[%c0_76, %c0_77] : memref<1x128xf32, #tpu.memory_space<vmem>>, vector<1x128xf32>
    %128 = vector.broadcast %127 : vector<1x128xf32> to vector<8x128xf32>
    %129 = arith.addf %126, %128 : vector<8x128xf32>
    %cst_78 = arith.constant 0.000000e+00 : f32
    %130 = vector.broadcast %cst_78 : f32 to vector<8x128xf32>
    %131 = arith.subf %130, %129 : vector<8x128xf32>
    %132 = math.exp %131 : vector<8x128xf32>
    %cst_79 = arith.constant 1.000000e+00 : f32
    %133 = vector.broadcast %cst_79 : f32 to vector<8x128xf32>
    %134 = arith.addf %133, %132 : vector<8x128xf32>
    %135 = tpu.reciprocal %134 {approx = true} : vector<8x128xf32> -> vector<8x128xf32>
    %136 = arith.truncf %135 : vector<8x128xf32> to vector<8x128xbf16>
    %c0_80 = arith.constant 0 : index
    %c0_81 = arith.constant 0 : index
    %137 = vector.load %arg10[%c0_80, %c0_81] : memref<128x128xbf16, #tpu.memory_space<vmem>>, vector<128x128xbf16>
    %cst_82 = arith.constant dense<0.000000e+00> : vector<8x128xf32>
    %138 = tpu.matmul %136, %137, %cst_82 {dimension_numbers = #tpu.dot_dimension_numbers<[1], [0], [0], [1], [0, 0, 1, 1], [], []>} : vector<8x128xbf16>, vector<128x128xbf16>, vector<8x128xf32> -> vector<8x128xf32>
    %c0_83 = arith.constant 0 : index
    %c0_84 = arith.constant 0 : index
    %139 = vector.load %arg11[%c0_83, %c0_84] : memref<1x128xf32, #tpu.memory_space<vmem>>, vector<1x128xf32>
    %140 = vector.broadcast %139 : vector<1x128xf32> to vector<8x128xf32>
    %141 = arith.addf %138, %140 : vector<8x128xf32>
    %cst_85 = arith.constant 0.000000e+00 : f32
    %142 = vector.broadcast %cst_85 : f32 to vector<8x128xf32>
    %143 = arith.subf %142, %141 : vector<8x128xf32>
    %144 = math.exp %143 : vector<8x128xf32>
    %cst_86 = arith.constant 1.000000e+00 : f32
    %145 = vector.broadcast %cst_86 : f32 to vector<8x128xf32>
    %146 = arith.addf %145, %144 : vector<8x128xf32>
    %147 = tpu.reciprocal %146 {approx = true} : vector<8x128xf32> -> vector<8x128xf32>
    %148 = arith.truncf %147 : vector<8x128xf32> to vector<8x128xbf16>
    %c0_87 = arith.constant 0 : index
    %c0_88 = arith.constant 0 : index
    %149 = vector.load %arg12[%c0_87, %c0_88] : memref<128x256xbf16, #tpu.memory_space<vmem>>, vector<128x256xbf16>
    %cst_89 = arith.constant dense<0.000000e+00> : vector<8x256xf32>
    %150 = tpu.matmul %148, %149, %cst_89 {dimension_numbers = #tpu.dot_dimension_numbers<[1], [0], [0], [1], [0, 0, 1, 1], [], []>} : vector<8x128xbf16>, vector<128x256xbf16>, vector<8x256xf32> -> vector<8x256xf32>
    %c0_90 = arith.constant 0 : index
    %c0_91 = arith.constant 0 : index
    %151 = vector.load %arg13[%c0_90, %c0_91] : memref<1x256xf32, #tpu.memory_space<vmem>>, vector<1x256xf32>
    %152 = vector.broadcast %151 : vector<1x256xf32> to vector<8x256xf32>
    %153 = arith.addf %150, %152 : vector<8x256xf32>
    %c0_92 = arith.constant 0 : index
    %c0_93 = arith.constant 0 : index
    %154 = vector.load %arg14[%c0_92, %c0_93] : memref<8x256xf32, #tpu.memory_space<vmem>>, vector<8x256xf32>
    tpu.vector_store %arg14[%c0_92, %c0_93], %153 {strides = array<i32>} : memref<8x256xf32, #tpu.memory_space<vmem>>, vector<8x256xf32>,
    return
  }
  func.func @transform_0(%arg0: i32) -> (i32, i32) {
    %c0_i32 = arith.constant 0 : i32
    %c0_i32_0 = arith.constant 0 : i32
    return %arg0, %c0_i32 : i32, i32
  }
  func.func @transform_1(%arg0: i32) -> (i32, i32) {
    %c0_i32 = arith.constant 0 : i32
    %c0_i32_0 = arith.constant 0 : i32
    %c0_i32_1 = arith.constant 0 : i32
    return %c0_i32, %c0_i32_0 : i32, i32
  }
  func.func @transform_2(%arg0: i32) -> (i32, i32) {
    %c0_i32 = arith.constant 0 : i32
    %c0_i32_0 = arith.constant 0 : i32
    %c0_i32_1 = arith.constant 0 : i32
    return %c0_i32, %c0_i32_0 : i32, i32
  }
  func.func @transform_3(%arg0: i32) -> (i32, i32) {
    %c0_i32 = arith.constant 0 : i32
    %c0_i32_0 = arith.constant 0 : i32
    %c0_i32_1 = arith.constant 0 : i32
    return %c0_i32, %c0_i32_0 : i32, i32
  }
  func.func @transform_4(%arg0: i32) -> (i32, i32) {
    %c0_i32 = arith.constant 0 : i32
    %c0_i32_0 = arith.constant 0 : i32
    %c0_i32_1 = arith.constant 0 : i32
    return %c0_i32, %c0_i32_0 : i32, i32
  }
  func.func @transform_5(%arg0: i32) -> (i32, i32, i32) {
    %c0_i32 = arith.constant 0 : i32
    %c0_i32_0 = arith.constant 0 : i32
    %c0_i32_1 = arith.constant 0 : i32
    %c0_i32_2 = arith.constant 0 : i32
    return %c0_i32, %c0_i32_0, %c0_i32_1 : i32, i32, i32
  }
  func.func @transform_6(%arg0: i32) -> (i32, i32) {
    %c0_i32 = arith.constant 0 : i32
    %c0_i32_0 = arith.constant 0 : i32
    %c0_i32_1 = arith.constant 0 : i32
    return %c0_i32, %c0_i32_0 : i32, i32
  }
  func.func @transform_7(%arg0: i32) -> (i32, i32, i32) {
    %c0_i32 = arith.constant 0 : i32
    %c0_i32_0 = arith.constant 0 : i32
    %c0_i32_1 = arith.constant 0 : i32
    %c0_i32_2 = arith.constant 0 : i32
    return %c0_i32, %c0_i32_0, %c0_i32_1 : i32, i32, i32
  }
  func.func @transform_8(%arg0: i32) -> (i32, i32) {
    %c0_i32 = arith.constant 0 : i32
    %c0_i32_0 = arith.constant 0 : i32
    %c0_i32_1 = arith.constant 0 : i32
    return %c0_i32, %c0_i32_0 : i32, i32
  }
  func.func @transform_9(%arg0: i32) -> (i32, i32) {
    %c0_i32 = arith.constant 0 : i32
    %c0_i32_0 = arith.constant 0 : i32
    %c0_i32_1 = arith.constant 0 : i32
    return %c0_i32, %c0_i32_0 : i32, i32
  }
  func.func @transform_10(%arg0: i32) -> (i32, i32) {
    %c0_i32 = arith.constant 0 : i32
    %c0_i32_0 = arith.constant 0 : i32
    %c0_i32_1 = arith.constant 0 : i32
    return %c0_i32, %c0_i32_0 : i32, i32
  }
  func.func @transform_11(%arg0: i32) -> (i32, i32) {
    %c0_i32 = arith.constant 0 : i32
    %c0_i32_0 = arith.constant 0 : i32
    %c0_i32_1 = arith.constant 0 : i32
    return %c0_i32, %c0_i32_0 : i32, i32
  }
  func.func @transform_12(%arg0: i32) -> (i32, i32) {
    %c0_i32 = arith.constant 0 : i32
    %c0_i32_0 = arith.constant 0 : i32
    %c0_i32_1 = arith.constant 0 : i32
    return %c0_i32, %c0_i32_0 : i32, i32
  }
  func.func @transform_13(%arg0: i32) -> (i32, i32) {
    %c0_i32 = arith.constant 0 : i32
    %c0_i32_0 = arith.constant 0 : i32
    return %arg0, %c0_i32 : i32, i32
  }
}

</mosaic_0001>

<llo_original>
// kernel: lenet_forward.1
$region0: #{lenet_forward.1}
  #allocation0 [shape = 'u32[]', space=smem, size = 0x4, offset = 0x4, fixed_abs, tag = 'smem constant byte address 0x4 - core index']
  #allocation1 [shape = 'u32[144,128]{1,0:T(1,128)}', space=vmem, size = 0x12000, scoped, tag = 'internal scratch']
  %s0 = inlined_call_operand.vmem [shape: bf16[256,1280], index: 0, kind: input, shape index: {}]
  %s1 = inlined_call_operand.vmem [shape: bf16[1280,256], index: 1, kind: input, shape index: {}]
  %s2 = inlined_call_operand.vmem [shape: f32[1,256], index: 2, kind: input, shape index: {}]
  %s3 = inlined_call_operand.vmem [shape: bf16[256,128], index: 3, kind: input, shape index: {}]
  %s4 = inlined_call_operand.vmem [shape: bf16[480,256], index: 4, kind: input, shape index: {}]
  %s5 = inlined_call_operand.vmem [shape: bf16[5,128,256], index: 5, kind: input, shape index: {}]
  %s6 = inlined_call_operand.vmem [shape: f32[1,256], index: 6, kind: input, shape index: {}]
  %s7 = inlined_call_operand.vmem [shape: bf16[12,256,128], index: 7, kind: input, shape index: {}]
  %s8 = inlined_call_operand.vmem [shape: f32[1,128], index: 8, kind: input, shape index: {}]
  %s9 = inlined_call_operand.vmem [shape: bf16[128,128], index: 9, kind: input, shape index: {}]
  %s10 = inlined_call_operand.vmem [shape: f32[1,128], index: 10, kind: input, shape index: {}]
  %s11 = inlined_call_operand.vmem [shape: bf16[128,256], index: 11, kind: input, shape index: {}]
  %s12 = inlined_call_operand.vmem [shape: f32[1,256], index: 12, kind: input, shape index: {}]
  %s13 = inlined_call_operand.vmem [shape: f32[8,256], index: 13, kind: output, shape index: {}]
  %s14 = sld [smem:[#allocation0]]
  $region62: #{lenet_forward.1} parent=0
    _
  %s16 = ssub.s32 1, %s14
  %s17 = scalar_select 0, %s16, %s14
  // Predicated region
  $region2: #{lenet_forward.1} parent=0 // pred_check
    _
  $region3: #{lenet_forward.1} parent=0 // pred_check_branch
    %19 = sbr.rel (0) target = $region5
  $region4: #{lenet_forward.1} parent=0 // pred_region
    _
  $region5: #{lenet_forward.1} parent=0 // pred_fallthru
    _
  // Predicated region
  $region6: #{lenet_forward.1} parent=0 // pred_check
    _
  $region7: #{lenet_forward.1} parent=0 // pred_check_branch
    %21 = sbr.rel (0) target = $region9
  $region8: #{lenet_forward.1} parent=0 // pred_region
    _
  $region9: #{lenet_forward.1} parent=0 // pred_fallthru
    _
  // Predicated region
  $region10: #{lenet_forward.1} parent=0 // pred_check
    _
  $region11: #{lenet_forward.1} parent=0 // pred_check_branch
    %23 = sbr.rel (0) target = $region13
  $region12: #{lenet_forward.1} parent=0 // pred_region
    _
  $region13: #{lenet_forward.1} parent=0 // pred_fallthru
    _
  // Predicated region
  $region14: #{lenet_forward.1} parent=0 // pred_check
    _
  $region15: #{lenet_forward.1} parent=0 // pred_check_branch
    %25 = sbr.rel (0) target = $region17
  $region16: #{lenet_forward.1} parent=0 // pred_region
    _
  $region17: #{lenet_forward.1} parent=0 // pred_fallthru
    _
  // Predicated region
  $region18: #{lenet_forward.1} parent=0 // pred_check
    _
  $region19: #{lenet_forward.1} parent=0 // pred_check_branch
    %27 = sbr.rel (0) target = $region21
  $region20: #{lenet_forward.1} parent=0 // pred_region
    _
  $region21: #{lenet_forward.1} parent=0 // pred_fallthru
    _
  // Predicated region
  $region22: #{lenet_forward.1} parent=0 // pred_check
    _
  $region23: #{lenet_forward.1} parent=0 // pred_check_branch
    %29 = sbr.rel (0) target = $region25
  $region24: #{lenet_forward.1} parent=0 // pred_region
    _
  $region25: #{lenet_forward.1} parent=0 // pred_fallthru
    _
  // Predicated region
  $region26: #{lenet_forward.1} parent=0 // pred_check
    _
  $region27: #{lenet_forward.1} parent=0 // pred_check_branch
    %31 = sbr.rel (0) target = $region29
  $region28: #{lenet_forward.1} parent=0 // pred_region
    _
  $region29: #{lenet_forward.1} parent=0 // pred_fallthru
    _
  // Predicated region
  $region30: #{lenet_forward.1} parent=0 // pred_check
    _
  $region31: #{lenet_forward.1} parent=0 // pred_check_branch
    %33 = sbr.rel (0) target = $region33
  $region32: #{lenet_forward.1} parent=0 // pred_region
    _
  $region33: #{lenet_forward.1} parent=0 // pred_fallthru
    _
  // Predicated region
  $region34: #{lenet_forward.1} parent=0 // pred_check
    _
  $region35: #{lenet_forward.1} parent=0 // pred_check_branch
    %35 = sbr.rel (0) target = $region37
  $region36: #{lenet_forward.1} parent=0 // pred_region
    _
  $region37: #{lenet_forward.1} parent=0 // pred_fallthru
    _
  // Predicated region
  $region38: #{lenet_forward.1} parent=0 // pred_check
    _
  $region39: #{lenet_forward.1} parent=0 // pred_check_branch
    %37 = sbr.rel (0) target = $region41
  $region40: #{lenet_forward.1} parent=0 // pred_region
    _
  $region41: #{lenet_forward.1} parent=0 // pred_fallthru
    _
  // Predicated region
  $region42: #{lenet_forward.1} parent=0 // pred_check
    _
  $region43: #{lenet_forward.1} parent=0 // pred_check_branch
    %39 = sbr.rel (0) target = $region45
  $region44: #{lenet_forward.1} parent=0 // pred_region
    _
  $region45: #{lenet_forward.1} parent=0 // pred_fallthru
    _
  // Predicated region
  $region46: #{lenet_forward.1} parent=0 // pred_check
    _
  $region47: #{lenet_forward.1} parent=0 // pred_check_branch
    %41 = sbr.rel (0) target = $region49
  $region48: #{lenet_forward.1} parent=0 // pred_region
    _
  $region49: #{lenet_forward.1} parent=0 // pred_fallthru
    _
  // Predicated region
  $region50: #{lenet_forward.1} parent=0 // pred_check
    _
  $region51: #{lenet_forward.1} parent=0 // pred_check_branch
    %43 = sbr.rel (0) target = $region53
  $region52: #{lenet_forward.1} parent=0 // pred_region
    _
  $region53: #{lenet_forward.1} parent=0 // pred_fallthru
    _
  %v45 = vld [vmem:[%s0] sm:$0xff]
  %v46 = vld [vmem:[%s0 + $0x8] sm:$0xff]
  %v47 = vld [vmem:[%s0 + $0x10] sm:$0xff]
  %v48 = vld [vmem:[%s0 + $0x18] sm:$0xff]
  %v49 = vld [vmem:[%s0 + $0x20] sm:$0xff]
  %v50 = vld [vmem:[%s0 + $0x28] sm:$0xff]
  %v51 = vld [vmem:[%s0 + $0x30] sm:$0xff]
  %v52 = vld [vmem:[%s0 + $0x38] sm:$0xff]
  %v53 = vld [vmem:[%s0 + $0x40] sm:$0xff]
  %v54 = vld [vmem:[%s0 + $0x48] sm:$0xff]
  %v55 = vld [vmem:[%s0 + $0x50] sm:$0xff]
  %v56 = vld [vmem:[%s0 + $0x58] sm:$0xff]
  %v57 = vld [vmem:[%s0 + $0x60] sm:$0xff]
  %v58 = vld [vmem:[%s0 + $0x68] sm:$0xff]
  %v59 = vld [vmem:[%s0 + $0x70] sm:$0xff]
  %v60 = vld [vmem:[%s0 + $0x78] sm:$0xff]
  %v61 = vld [vmem:[%s0 + $0x80] sm:$0xff]
  %v62 = vld [vmem:[%s0 + $0x88] sm:$0xff]
  %v63 = vld [vmem:[%s0 + $0x90] sm:$0xff]
  %v64 = vld [vmem:[%s0 + $0x98] sm:$0xff]
  %v65 = vld [vmem:[%s0 + $0xa0] sm:$0xff]
  %v66 = vld [vmem:[%s0 + $0xa8] sm:$0xff]
  %v67 = vld [vmem:[%s0 + $0xb0] sm:$0xff]
  %v68 = vld [vmem:[%s0 + $0xb8] sm:$0xff]
  %v69 = vld [vmem:[%s0 + $0xc0] sm:$0xff]
  %v70 = vld [vmem:[%s0 + $0xc8] sm:$0xff]
  %v71 = vld [vmem:[%s0 + $0xd0] sm:$0xff]
  %v72 = vld [vmem:[%s0 + $0xd8] sm:$0xff]
  %v73 = vld [vmem:[%s0 + $0xe0] sm:$0xff]
  %v74 = vld [vmem:[%s0 + $0xe8] sm:$0xff]
  %v75 = vld [vmem:[%s0 + $0xf0] sm:$0xff]
  %v76 = vld [vmem:[%s0 + $0xf8] sm:$0xff]
  %v77 = vld [vmem:[%s0 + $0x100] sm:$0xff]
  %v78 = vld [vmem:[%s0 + $0x108] sm:$0xff]
  %v79 = vld [vmem:[%s0 + $0x110] sm:$0xff]
  %v80 = vld [vmem:[%s0 + $0x118] sm:$0xff]
  %v81 = vld [vmem:[%s0 + $0x120] sm:$0xff]
  %v82 = vld [vmem:[%s0 + $0x128] sm:$0xff]
  %v83 = vld [vmem:[%s0 + $0x130] sm:$0xff]
  %v84 = vld [vmem:[%s0 + $0x138] sm:$0xff]
  %v85 = vld [vmem:[%s0 + $0x140] sm:$0xff]
  %v86 = vld [vmem:[%s0 + $0x148] sm:$0xff]
  %v87 = vld [vmem:[%s0 + $0x150] sm:$0xff]
  %v88 = vld [vmem:[%s0 + $0x158] sm:$0xff]
  %v89 = vld [vmem:[%s0 + $0x160] sm:$0xff]
  %v90 = vld [vmem:[%s0 + $0x168] sm:$0xff]
  %v91 = vld [vmem:[%s0 + $0x170] sm:$0xff]
  %v92 = vld [vmem:[%s0 + $0x178] sm:$0xff]
  %v93 = vld [vmem:[%s0 + $0x180] sm:$0xff]
  %v94 = vld [vmem:[%s0 + $0x188] sm:$0xff]
  %v95 = vld [vmem:[%s0 + $0x190] sm:$0xff]
  %v96 = vld [vmem:[%s0 + $0x198] sm:$0xff]
  %v97 = vld [vmem:[%s0 + $0x1a0] sm:$0xff]
  %v98 = vld [vmem:[%s0 + $0x1a8] sm:$0xff]
  %v99 = vld [vmem:[%s0 + $0x1b0] sm:$0xff]
  %v100 = vld [vmem:[%s0 + $0x1b8] sm:$0xff]
  %v101 = vld [vmem:[%s0 + $0x1c0] sm:$0xff]
  %v102 = vld [vmem:[%s0 + $0x1c8] sm:$0xff]
  %v103 = vld [vmem:[%s0 + $0x1d0] sm:$0xff]
  %v104 = vld [vmem:[%s0 + $0x1d8] sm:$0xff]
  %v105 = vld [vmem:[%s0 + $0x1e0] sm:$0xff]
  %v106 = vld [vmem:[%s0 + $0x1e8] sm:$0xff]
  %v107 = vld [vmem:[%s0 + $0x1f0] sm:$0xff]
  %v108 = vld [vmem:[%s0 + $0x1f8] sm:$0xff]
  %v109 = vld [vmem:[%s0 + $0x200] sm:$0xff]
  %v110 = vld [vmem:[%s0 + $0x208] sm:$0xff]
  %v111 = vld [vmem:[%s0 + $0x210] sm:$0xff]
  %v112 = vld [vmem:[%s0 + $0x218] sm:$0xff]
  %v113 = vld [vmem:[%s0 + $0x220] sm:$0xff]
  %v114 = vld [vmem:[%s0 + $0x228] sm:$0xff]
  %v115 = vld [vmem:[%s0 + $0x230] sm:$0xff]
  %v116 = vld [vmem:[%s0 + $0x238] sm:$0xff]
  %v117 = vld [vmem:[%s0 + $0x240] sm:$0xff]
  %v118 = vld [vmem:[%s0 + $0x248] sm:$0xff]
  %v119 = vld [vmem:[%s0 + $0x250] sm:$0xff]
  %v120 = vld [vmem:[%s0 + $0x258] sm:$0xff]
  %v121 = vld [vmem:[%s0 + $0x260] sm:$0xff]
  %v122 = vld [vmem:[%s0 + $0x268] sm:$0xff]
  %v123 = vld [vmem:[%s0 + $0x270] sm:$0xff]
  %v124 = vld [vmem:[%s0 + $0x278] sm:$0xff]
  %v125 = vld [vmem:[%s0 + $0x280] sm:$0xff]
  %v126 = vld [vmem:[%s0 + $0x288] sm:$0xff]
  %v127 = vld [vmem:[%s0 + $0x290] sm:$0xff]
  %v128 = vld [vmem:[%s0 + $0x298] sm:$0xff]
  %v129 = vld [vmem:[%s0 + $0x2a0] sm:$0xff]
  %v130 = vld [vmem:[%s0 + $0x2a8] sm:$0xff]
  %v131 = vld [vmem:[%s0 + $0x2b0] sm:$0xff]
  %v132 = vld [vmem:[%s0 + $0x2b8] sm:$0xff]
  %v133 = vld [vmem:[%s0 + $0x2c0] sm:$0xff]
  %v134 = vld [vmem:[%s0 + $0x2c8] sm:$0xff]
  %v135 = vld [vmem:[%s0 + $0x2d0] sm:$0xff]
  %v136 = vld [vmem:[%s0 + $0x2d8] sm:$0xff]
  %v137 = vld [vmem:[%s0 + $0x2e0] sm:$0xff]
  %v138 = vld [vmem:[%s0 + $0x2e8] sm:$0xff]
  %v139 = vld [vmem:[%s0 + $0x2f0] sm:$0xff]
  %v140 = vld [vmem:[%s0 + $0x2f8] sm:$0xff]
  %v141 = vld [vmem:[%s0 + $0x300] sm:$0xff]
  %v142 = vld [vmem:[%s0 + $0x308] sm:$0xff]
  %v143 = vld [vmem:[%s0 + $0x310] sm:$0xff]
  %v144 = vld [vmem:[%s0 + $0x318] sm:$0xff]
  %v145 = vld [vmem:[%s0 + $0x320] sm:$0xff]
  %v146 = vld [vmem:[%s0 + $0x328] sm:$0xff]
  %v147 = vld [vmem:[%s0 + $0x330] sm:$0xff]
  %v148 = vld [vmem:[%s0 + $0x338] sm:$0xff]
  %v149 = vld [vmem:[%s0 + $0x340] sm:$0xff]
  %v150 = vld [vmem:[%s0 + $0x348] sm:$0xff]
  %v151 = vld [vmem:[%s0 + $0x350] sm:$0xff]
  %v152 = vld [vmem:[%s0 + $0x358] sm:$0xff]
  %v153 = vld [vmem:[%s0 + $0x360] sm:$0xff]
  %v154 = vld [vmem:[%s0 + $0x368] sm:$0xff]
  %v155 = vld [vmem:[%s0 + $0x370] sm:$0xff]
  %v156 = vld [vmem:[%s0 + $0x378] sm:$0xff]
  %v157 = vld [vmem:[%s0 + $0x380] sm:$0xff]
  %v158 = vld [vmem:[%s0 + $0x388] sm:$0xff]
  %v159 = vld [vmem:[%s0 + $0x390] sm:$0xff]
  %v160 = vld [vmem:[%s0 + $0x398] sm:$0xff]
  %v161 = vld [vmem:[%s0 + $0x3a0] sm:$0xff]
  %v162 = vld [vmem:[%s0 + $0x3a8] sm:$0xff]
  %v163 = vld [vmem:[%s0 + $0x3b0] sm:$0xff]
  %v164 = vld [vmem:[%s0 + $0x3b8] sm:$0xff]
  %v165 = vld [vmem:[%s0 + $0x3c0] sm:$0xff]
  %v166 = vld [vmem:[%s0 + $0x3c8] sm:$0xff]
  %v167 = vld [vmem:[%s0 + $0x3d0] sm:$0xff]
  %v168 = vld [vmem:[%s0 + $0x3d8] sm:$0xff]
  %v169 = vld [vmem:[%s0 + $0x3e0] sm:$0xff]
  %v170 = vld [vmem:[%s0 + $0x3e8] sm:$0xff]
  %v171 = vld [vmem:[%s0 + $0x3f0] sm:$0xff]
  %v172 = vld [vmem:[%s0 + $0x3f8] sm:$0xff]
  %v173 = vld [vmem:[%s0 + $0x400] sm:$0xff]
  %v174 = vld [vmem:[%s0 + $0x408] sm:$0xff]
  %v175 = vld [vmem:[%s0 + $0x410] sm:$0xff]
  %v176 = vld [vmem:[%s0 + $0x418] sm:$0xff]
  %v177 = vld [vmem:[%s0 + $0x420] sm:$0xff]
  %v178 = vld [vmem:[%s0 + $0x428] sm:$0xff]
  %v179 = vld [vmem:[%s0 + $0x430] sm:$0xff]
  %v180 = vld [vmem:[%s0 + $0x438] sm:$0xff]
  %v181 = vld [vmem:[%s0 + $0x440] sm:$0xff]
  %v182 = vld [vmem:[%s0 + $0x448] sm:$0xff]
  %v183 = vld [vmem:[%s0 + $0x450] sm:$0xff]
  %v184 = vld [vmem:[%s0 + $0x458] sm:$0xff]
  %v185 = vld [vmem:[%s0 + $0x460] sm:$0xff]
  %v186 = vld [vmem:[%s0 + $0x468] sm:$0xff]
  %v187 = vld [vmem:[%s0 + $0x470] sm:$0xff]
  %v188 = vld [vmem:[%s0 + $0x478] sm:$0xff]
  %v189 = vld [vmem:[%s0 + $0x480] sm:$0xff]
  %v190 = vld [vmem:[%s0 + $0x488] sm:$0xff]
  %v191 = vld [vmem:[%s0 + $0x490] sm:$0xff]
  %v192 = vld [vmem:[%s0 + $0x498] sm:$0xff]
  %v193 = vld [vmem:[%s0 + $0x4a0] sm:$0xff]
  %v194 = vld [vmem:[%s0 + $0x4a8] sm:$0xff]
  %v195 = vld [vmem:[%s0 + $0x4b0] sm:$0xff]
  %v196 = vld [vmem:[%s0 + $0x4b8] sm:$0xff]
  %v197 = vld [vmem:[%s0 + $0x4c0] sm:$0xff]
  %v198 = vld [vmem:[%s0 + $0x4c8] sm:$0xff]
  %v199 = vld [vmem:[%s0 + $0x4d0] sm:$0xff]
  %v200 = vld [vmem:[%s0 + $0x4d8] sm:$0xff]
  %v201 = vld [vmem:[%s0 + $0x4e0] sm:$0xff]
  %v202 = vld [vmem:[%s0 + $0x4e8] sm:$0xff]
  %v203 = vld [vmem:[%s0 + $0x4f0] sm:$0xff]
  %v204 = vld [vmem:[%s0 + $0x4f8] sm:$0xff]
  %v205 = vld [vmem:[%s1] sm:$0xff]
  %v206 = vld [vmem:[%s1 + $0x8] sm:$0xff]
  %v207 = vld [vmem:[%s1 + $0x10] sm:$0xff]
  %v208 = vld [vmem:[%s1 + $0x18] sm:$0xff]
  %v209 = vld [vmem:[%s1 + $0x20] sm:$0xff]
  %v210 = vld [vmem:[%s1 + $0x28] sm:$0xff]
  %v211 = vld [vmem:[%s1 + $0x30] sm:$0xff]
  %v212 = vld [vmem:[%s1 + $0x38] sm:$0xff]
  %v213 = vld [vmem:[%s1 + $0x40] sm:$0xff]
  %v214 = vld [vmem:[%s1 + $0x48] sm:$0xff]
  %v215 = vld [vmem:[%s1 + $0x50] sm:$0xff]
  %v216 = vld [vmem:[%s1 + $0x58] sm:$0xff]
  %v217 = vld [vmem:[%s1 + $0x60] sm:$0xff]
  %v218 = vld [vmem:[%s1 + $0x68] sm:$0xff]
  %v219 = vld [vmem:[%s1 + $0x70] sm:$0xff]
  %v220 = vld [vmem:[%s1 + $0x78] sm:$0xff]
  %v221 = vld [vmem:[%s1 + $0x80] sm:$0xff]
  %v222 = vld [vmem:[%s1 + $0x88] sm:$0xff]
  %v223 = vld [vmem:[%s1 + $0x90] sm:$0xff]
  %v224 = vld [vmem:[%s1 + $0x98] sm:$0xff]
  %v225 = vld [vmem:[%s1 + $0xa0] sm:$0xff]
  %v226 = vld [vmem:[%s1 + $0xa8] sm:$0xff]
  %v227 = vld [vmem:[%s1 + $0xb0] sm:$0xff]
  %v228 = vld [vmem:[%s1 + $0xb8] sm:$0xff]
  %v229 = vld [vmem:[%s1 + $0xc0] sm:$0xff]
  %v230 = vld [vmem:[%s1 + $0xc8] sm:$0xff]
  %v231 = vld [vmem:[%s1 + $0xd0] sm:$0xff]
  %v232 = vld [vmem:[%s1 + $0xd8] sm:$0xff]
  %v233 = vld [vmem:[%s1 + $0xe0] sm:$0xff]
  %v234 = vld [vmem:[%s1 + $0xe8] sm:$0xff]
  %v235 = vld [vmem:[%s1 + $0xf0] sm:$0xff]
  %v236 = vld [vmem:[%s1 + $0xf8] sm:$0xff]
  %v237 = vld [vmem:[%s1 + $0x100] sm:$0xff]
  %v238 = vld [vmem:[%s1 + $0x108] sm:$0xff]
  %v239 = vld [vmem:[%s1 + $0x110] sm:$0xff]
  %v240 = vld [vmem:[%s1 + $0x118] sm:$0xff]
  %v241 = vld [vmem:[%s1 + $0x120] sm:$0xff]
  %v242 = vld [vmem:[%s1 + $0x128] sm:$0xff]
  %v243 = vld [vmem:[%s1 + $0x130] sm:$0xff]
  %v244 = vld [vmem:[%s1 + $0x138] sm:$0xff]
  %v245 = vld [vmem:[%s1 + $0x140] sm:$0xff]
  %v246 = vld [vmem:[%s1 + $0x148] sm:$0xff]
  %v247 = vld [vmem:[%s1 + $0x150] sm:$0xff]
  %v248 = vld [vmem:[%s1 + $0x158] sm:$0xff]
  %v249 = vld [vmem:[%s1 + $0x160] sm:$0xff]
  %v250 = vld [vmem:[%s1 + $0x168] sm:$0xff]
  %v251 = vld [vmem:[%s1 + $0x170] sm:$0xff]
  %v252 = vld [vmem:[%s1 + $0x178] sm:$0xff]
  %v253 = vld [vmem:[%s1 + $0x180] sm:$0xff]
  %v254 = vld [vmem:[%s1 + $0x188] sm:$0xff]
  %v255 = vld [vmem:[%s1 + $0x190] sm:$0xff]
  %v256 = vld [vmem:[%s1 + $0x198] sm:$0xff]
  %v257 = vld [vmem:[%s1 + $0x1a0] sm:$0xff]
  %v258 = vld [vmem:[%s1 + $0x1a8] sm:$0xff]
  %v259 = vld [vmem:[%s1 + $0x1b0] sm:$0xff]
  %v260 = vld [vmem:[%s1 + $0x1b8] sm:$0xff]
  %v261 = vld [vmem:[%s1 + $0x1c0] sm:$0xff]
  %v262 = vld [vmem:[%s1 + $0x1c8] sm:$0xff]
  %v263 = vld [vmem:[%s1 + $0x1d0] sm:$0xff]
  %v264 = vld [vmem:[%s1 + $0x1d8] sm:$0xff]
  %v265 = vld [vmem:[%s1 + $0x1e0] sm:$0xff]
  %v266 = vld [vmem:[%s1 + $0x1e8] sm:$0xff]
  %v267 = vld [vmem:[%s1 + $0x1f0] sm:$0xff]
  %v268 = vld [vmem:[%s1 + $0x1f8] sm:$0xff]
  %v269 = vld [vmem:[%s1 + $0x200] sm:$0xff]
  %v270 = vld [vmem:[%s1 + $0x208] sm:$0xff]
  %v271 = vld [vmem:[%s1 + $0x210] sm:$0xff]
  %v272 = vld [vmem:[%s1 + $0x218] sm:$0xff]
  %v273 = vld [vmem:[%s1 + $0x220] sm:$0xff]
  %v274 = vld [vmem:[%s1 + $0x228] sm:$0xff]
  %v275 = vld [vmem:[%s1 + $0x230] sm:$0xff]
  %v276 = vld [vmem:[%s1 + $0x238] sm:$0xff]
  %v277 = vld [vmem:[%s1 + $0x240] sm:$0xff]
  %v278 = vld [vmem:[%s1 + $0x248] sm:$0xff]
  %v279 = vld [vmem:[%s1 + $0x250] sm:$0xff]
  %v280 = vld [vmem:[%s1 + $0x258] sm:$0xff]
  %v281 = vld [vmem:[%s1 + $0x260] sm:$0xff]
  %v282 = vld [vmem:[%s1 + $0x268] sm:$0xff]
  %v283 = vld [vmem:[%s1 + $0x270] sm:$0xff]
  %v284 = vld [vmem:[%s1 + $0x278] sm:$0xff]
  %v285 = vld [vmem:[%s1 + $0x280] sm:$0xff]
  %v286 = vld [vmem:[%s1 + $0x288] sm:$0xff]
  %v287 = vld [vmem:[%s1 + $0x290] sm:$0xff]
  %v288 = vld [vmem:[%s1 + $0x298] sm:$0xff]
  %v289 = vld [vmem:[%s1 + $0x2a0] sm:$0xff]
  %v290 = vld [vmem:[%s1 + $0x2a8] sm:$0xff]
  %v291 = vld [vmem:[%s1 + $0x2b0] sm:$0xff]
  %v292 = vld [vmem:[%s1 + $0x2b8] sm:$0xff]
  %v293 = vld [vmem:[%s1 + $0x2c0] sm:$0xff]
  %v294 = vld [vmem:[%s1 + $0x2c8] sm:$0xff]
  %v295 = vld [vmem:[%s1 + $0x2d0] sm:$0xff]
  %v296 = vld [vmem:[%s1 + $0x2d8] sm:$0xff]
  %v297 = vld [vmem:[%s1 + $0x2e0] sm:$0xff]
  %v298 = vld [vmem:[%s1 + $0x2e8] sm:$0xff]
  %v299 = vld [vmem:[%s1 + $0x2f0] sm:$0xff]
  %v300 = vld [vmem:[%s1 + $0x2f8] sm:$0xff]
  %v301 = vld [vmem:[%s1 + $0x300] sm:$0xff]
  %v302 = vld [vmem:[%s1 + $0x308] sm:$0xff]
  %v303 = vld [vmem:[%s1 + $0x310] sm:$0xff]
  %v304 = vld [vmem:[%s1 + $0x318] sm:$0xff]
  %v305 = vld [vmem:[%s1 + $0x320] sm:$0xff]
  %v306 = vld [vmem:[%s1 + $0x328] sm:$0xff]
  %v307 = vld [vmem:[%s1 + $0x330] sm:$0xff]
  %v308 = vld [vmem:[%s1 + $0x338] sm:$0xff]
  %v309 = vld [vmem:[%s1 + $0x340] sm:$0xff]
  %v310 = vld [vmem:[%s1 + $0x348] sm:$0xff]
  %v311 = vld [vmem:[%s1 + $0x350] sm:$0xff]
  %v312 = vld [vmem:[%s1 + $0x358] sm:$0xff]
  %v313 = vld [vmem:[%s1 + $0x360] sm:$0xff]
  %v314 = vld [vmem:[%s1 + $0x368] sm:$0xff]
  %v315 = vld [vmem:[%s1 + $0x370] sm:$0xff]
  %v316 = vld [vmem:[%s1 + $0x378] sm:$0xff]
  %v317 = vld [vmem:[%s1 + $0x380] sm:$0xff]
  %v318 = vld [vmem:[%s1 + $0x388] sm:$0xff]
  %v319 = vld [vmem:[%s1 + $0x390] sm:$0xff]
  %v320 = vld [vmem:[%s1 + $0x398] sm:$0xff]
  %v321 = vld [vmem:[%s1 + $0x3a0] sm:$0xff]
  %v322 = vld [vmem:[%s1 + $0x3a8] sm:$0xff]
  %v323 = vld [vmem:[%s1 + $0x3b0] sm:$0xff]
  %v324 = vld [vmem:[%s1 + $0x3b8] sm:$0xff]
  %v325 = vld [vmem:[%s1 + $0x3c0] sm:$0xff]
  %v326 = vld [vmem:[%s1 + $0x3c8] sm:$0xff]
  %v327 = vld [vmem:[%s1 + $0x3d0] sm:$0xff]
  %v328 = vld [vmem:[%s1 + $0x3d8] sm:$0xff]
  %v329 = vld [vmem:[%s1 + $0x3e0] sm:$0xff]
  %v330 = vld [vmem:[%s1 + $0x3e8] sm:$0xff]
  %v331 = vld [vmem:[%s1 + $0x3f0] sm:$0xff]
  %v332 = vld [vmem:[%s1 + $0x3f8] sm:$0xff]
  %v333 = vld [vmem:[%s1 + $0x400] sm:$0xff]
  %v334 = vld [vmem:[%s1 + $0x408] sm:$0xff]
  %v335 = vld [vmem:[%s1 + $0x410] sm:$0xff]
  %v336 = vld [vmem:[%s1 + $0x418] sm:$0xff]
  %v337 = vld [vmem:[%s1 + $0x420] sm:$0xff]
  %v338 = vld [vmem:[%s1 + $0x428] sm:$0xff]
  %v339 = vld [vmem:[%s1 + $0x430] sm:$0xff]
  %v340 = vld [vmem:[%s1 + $0x438] sm:$0xff]
  %v341 = vld [vmem:[%s1 + $0x440] sm:$0xff]
  %v342 = vld [vmem:[%s1 + $0x448] sm:$0xff]
  %v343 = vld [vmem:[%s1 + $0x450] sm:$0xff]
  %v344 = vld [vmem:[%s1 + $0x458] sm:$0xff]
  %v345 = vld [vmem:[%s1 + $0x460] sm:$0xff]
  %v346 = vld [vmem:[%s1 + $0x468] sm:$0xff]
  %v347 = vld [vmem:[%s1 + $0x470] sm:$0xff]
  %v348 = vld [vmem:[%s1 + $0x478] sm:$0xff]
  %v349 = vld [vmem:[%s1 + $0x480] sm:$0xff]
  %v350 = vld [vmem:[%s1 + $0x488] sm:$0xff]
  %v351 = vld [vmem:[%s1 + $0x490] sm:$0xff]
  %v352 = vld [vmem:[%s1 + $0x498] sm:$0xff]
  %v353 = vld [vmem:[%s1 + $0x4a0] sm:$0xff]
  %v354 = vld [vmem:[%s1 + $0x4a8] sm:$0xff]
  %v355 = vld [vmem:[%s1 + $0x4b0] sm:$0xff]
  %v356 = vld [vmem:[%s1 + $0x4b8] sm:$0xff]
  %v357 = vld [vmem:[%s1 + $0x4c0] sm:$0xff]
  %v358 = vld [vmem:[%s1 + $0x4c8] sm:$0xff]
  %v359 = vld [vmem:[%s1 + $0x4d0] sm:$0xff]
  %v360 = vld [vmem:[%s1 + $0x4d8] sm:$0xff]
  %v361 = vld [vmem:[%s1 + $0x4e0] sm:$0xff]
  %v362 = vld [vmem:[%s1 + $0x4e8] sm:$0xff]
  %v363 = vld [vmem:[%s1 + $0x4f0] sm:$0xff]
  %v364 = vld [vmem:[%s1 + $0x4f8] sm:$0xff]
  %v365 = vld [vmem:[%s2] sm:$0x3]
  %v367 = vlaneseq
  %v368 = vshrl.u32 %v367, 7
  %v369 = vsub.s32 0, %v368
  %v370 = vrot.slane %v365, %v369
  %v371 = vlaneseq
  %v372 = vshrl.u32 %v371, 7
  %v373 = vsub.s32 1, %v372
  %v374 = vrot.slane %v365, %v373
  %v537 = vunpack.c.l.b16 %v45
  %v538 = vunpack.c.h.b16 %v45
  %v539 = vunpack.c.l.b16 %v46
  %v540 = vunpack.c.h.b16 %v46
  %v541 = vunpack.c.l.b16 %v47
  %v542 = vunpack.c.h.b16 %v47
  %v543 = vunpack.c.l.b16 %v48
  %v544 = vunpack.c.h.b16 %v48
  %v545 = vunpack.c.l.b16 %v49
  %v546 = vunpack.c.h.b16 %v49
  %v547 = vunpack.c.l.b16 %v50
  %v548 = vunpack.c.h.b16 %v50
  %v549 = vunpack.c.l.b16 %v51
  %v550 = vunpack.c.h.b16 %v51
  %v551 = vunpack.c.l.b16 %v52
  %v552 = vunpack.c.h.b16 %v52
  %v553 = vunpack.c.l.b16 %v53
  %v554 = vunpack.c.h.b16 %v53
  %v555 = vunpack.c.l.b16 %v54
  %v556 = vunpack.c.h.b16 %v54
  %v557 = vunpack.c.l.b16 %v55
  %v558 = vunpack.c.h.b16 %v55
  %v559 = vunpack.c.l.b16 %v56
  %v560 = vunpack.c.h.b16 %v56
  %v561 = vunpack.c.l.b16 %v57
  %v562 = vunpack.c.h.b16 %v57
  %v563 = vunpack.c.l.b16 %v58
  %v564 = vunpack.c.h.b16 %v58
  %v565 = vunpack.c.l.b16 %v59
  %v566 = vunpack.c.h.b16 %v59
  %v567 = vunpack.c.l.b16 %v60
  %v568 = vunpack.c.h.b16 %v60
  %v569 = vunpack.c.l.b16 %v61
  %v570 = vunpack.c.h.b16 %v61
  %v571 = vunpack.c.l.b16 %v62
  %v572 = vunpack.c.h.b16 %v62
  %v573 = vunpack.c.l.b16 %v63
  %v574 = vunpack.c.h.b16 %v63
  %v575 = vunpack.c.l.b16 %v64
  %v576 = vunpack.c.h.b16 %v64
  %v577 = vunpack.c.l.b16 %v65
  %v578 = vunpack.c.h.b16 %v65
  %v579 = vunpack.c.l.b16 %v66
  %v580 = vunpack.c.h.b16 %v66
  %v581 = vunpack.c.l.b16 %v67
  %v582 = vunpack.c.h.b16 %v67
  %v583 = vunpack.c.l.b16 %v68
  %v584 = vunpack.c.h.b16 %v68
  %v585 = vunpack.c.l.b16 %v69
  %v586 = vunpack.c.h.b16 %v69
  %v587 = vunpack.c.l.b16 %v70
  %v588 = vunpack.c.h.b16 %v70
  %v589 = vunpack.c.l.b16 %v71
  %v590 = vunpack.c.h.b16 %v71
  %v591 = vunpack.c.l.b16 %v72
  %v592 = vunpack.c.h.b16 %v72
  %v593 = vunpack.c.l.b16 %v73
  %v594 = vunpack.c.h.b16 %v73
  %v595 = vunpack.c.l.b16 %v74
  %v596 = vunpack.c.h.b16 %v74
  %v597 = vunpack.c.l.b16 %v75
  %v598 = vunpack.c.h.b16 %v75
  %v599 = vunpack.c.l.b16 %v76
  %v600 = vunpack.c.h.b16 %v76
  %v601 = vunpack.c.l.b16 %v77
  %v602 = vunpack.c.h.b16 %v77
  %v603 = vunpack.c.l.b16 %v78
  %v604 = vunpack.c.h.b16 %v78
  %v605 = vunpack.c.l.b16 %v79
  %v606 = vunpack.c.h.b16 %v79
  %v607 = vunpack.c.l.b16 %v80
  %v608 = vunpack.c.h.b16 %v80
  %v609 = vunpack.c.l.b16 %v81
  %v610 = vunpack.c.h.b16 %v81
  %v611 = vunpack.c.l.b16 %v82
  %v612 = vunpack.c.h.b16 %v82
  %v613 = vunpack.c.l.b16 %v83
  %v614 = vunpack.c.h.b16 %v83
  %v615 = vunpack.c.l.b16 %v84
  %v616 = vunpack.c.h.b16 %v84
  %v617 = vunpack.c.l.b16 %v85
  %v618 = vunpack.c.h.b16 %v85
  %v619 = vunpack.c.l.b16 %v86
  %v620 = vunpack.c.h.b16 %v86
  %v621 = vunpack.c.l.b16 %v87
  %v622 = vunpack.c.h.b16 %v87
  %v623 = vunpack.c.l.b16 %v88
  %v624 = vunpack.c.h.b16 %v88
  %v625 = vunpack.c.l.b16 %v89
  %v626 = vunpack.c.h.b16 %v89
  %v627 = vunpack.c.l.b16 %v90
  %v628 = vunpack.c.h.b16 %v90
  %v629 = vunpack.c.l.b16 %v91
  %v630 = vunpack.c.h.b16 %v91
  %v631 = vunpack.c.l.b16 %v92
  %v632 = vunpack.c.h.b16 %v92
  %v633 = vunpack.c.l.b16 %v93
  %v634 = vunpack.c.h.b16 %v93
  %v635 = vunpack.c.l.b16 %v94
  %v636 = vunpack.c.h.b16 %v94
  %v637 = vunpack.c.l.b16 %v95
  %v638 = vunpack.c.h.b16 %v95
  %v639 = vunpack.c.l.b16 %v96
  %v640 = vunpack.c.h.b16 %v96
  %v641 = vunpack.c.l.b16 %v97
  %v642 = vunpack.c.h.b16 %v97
  %v643 = vunpack.c.l.b16 %v98
  %v644 = vunpack.c.h.b16 %v98
  %v645 = vunpack.c.l.b16 %v99
  %v646 = vunpack.c.h.b16 %v99
  %v647 = vunpack.c.l.b16 %v100
  %v648 = vunpack.c.h.b16 %v100
  %v649 = vunpack.c.l.b16 %v101
  %v650 = vunpack.c.h.b16 %v101
  %v651 = vunpack.c.l.b16 %v102
  %v652 = vunpack.c.h.b16 %v102
  %v653 = vunpack.c.l.b16 %v103
  %v654 = vunpack.c.h.b16 %v103
  %v655 = vunpack.c.l.b16 %v104
  %v656 = vunpack.c.h.b16 %v104
  %v657 = vunpack.c.l.b16 %v105
  %v658 = vunpack.c.h.b16 %v105
  %v659 = vunpack.c.l.b16 %v106
  %v660 = vunpack.c.h.b16 %v106
  %v661 = vunpack.c.l.b16 %v107
  %v662 = vunpack.c.h.b16 %v107
  %v663 = vunpack.c.l.b16 %v108
  %v664 = vunpack.c.h.b16 %v108
  %v665 = vunpack.c.l.b16 %v109
  %v666 = vunpack.c.h.b16 %v109
  %v667 = vunpack.c.l.b16 %v110
  %v668 = vunpack.c.h.b16 %v110
  %v669 = vunpack.c.l.b16 %v111
  %v670 = vunpack.c.h.b16 %v111
  %v671 = vunpack.c.l.b16 %v112
  %v672 = vunpack.c.h.b16 %v112
  %v673 = vunpack.c.l.b16 %v113
  %v674 = vunpack.c.h.b16 %v113
  %v675 = vunpack.c.l.b16 %v114
  %v676 = vunpack.c.h.b16 %v114
  %v677 = vunpack.c.l.b16 %v115
  %v678 = vunpack.c.h.b16 %v115
  %v679 = vunpack.c.l.b16 %v116
  %v680 = vunpack.c.h.b16 %v116
  %v681 = vunpack.c.l.b16 %v117
  %v682 = vunpack.c.h.b16 %v117
  %v683 = vunpack.c.l.b16 %v118
  %v684 = vunpack.c.h.b16 %v118
  %v685 = vunpack.c.l.b16 %v119
  %v686 = vunpack.c.h.b16 %v119
  %v687 = vunpack.c.l.b16 %v120
  %v688 = vunpack.c.h.b16 %v120
  %v689 = vunpack.c.l.b16 %v121
  %v690 = vunpack.c.h.b16 %v121
  %v691 = vunpack.c.l.b16 %v122
  %v692 = vunpack.c.h.b16 %v122
  %v693 = vunpack.c.l.b16 %v123
  %v694 = vunpack.c.h.b16 %v123
  %v695 = vunpack.c.l.b16 %v124
  %v696 = vunpack.c.h.b16 %v124
  %v697 = vunpack.c.l.b16 %v125
  %v698 = vunpack.c.h.b16 %v125
  %v699 = vunpack.c.l.b16 %v126
  %v700 = vunpack.c.h.b16 %v126
  %v701 = vunpack.c.l.b16 %v127
  %v702 = vunpack.c.h.b16 %v127
  %v703 = vunpack.c.l.b16 %v128
  %v704 = vunpack.c.h.b16 %v128
  %v705 = vunpack.c.l.b16 %v129
  %v706 = vunpack.c.h.b16 %v129
  %v707 = vunpack.c.l.b16 %v130
  %v708 = vunpack.c.h.b16 %v130
  %v709 = vunpack.c.l.b16 %v131
  %v710 = vunpack.c.h.b16 %v131
  %v711 = vunpack.c.l.b16 %v132
  %v712 = vunpack.c.h.b16 %v132
  %v713 = vunpack.c.l.b16 %v133
  %v714 = vunpack.c.h.b16 %v133
  %v715 = vunpack.c.l.b16 %v134
  %v716 = vunpack.c.h.b16 %v134
  %v717 = vunpack.c.l.b16 %v135
  %v718 = vunpack.c.h.b16 %v135
  %v719 = vunpack.c.l.b16 %v136
  %v720 = vunpack.c.h.b16 %v136
  %v721 = vunpack.c.l.b16 %v137
  %v722 = vunpack.c.h.b16 %v137
  %v723 = vunpack.c.l.b16 %v138
  %v724 = vunpack.c.h.b16 %v138
  %v725 = vunpack.c.l.b16 %v139
  %v726 = vunpack.c.h.b16 %v139
  %v727 = vunpack.c.l.b16 %v140
  %v728 = vunpack.c.h.b16 %v140
  %v729 = vunpack.c.l.b16 %v141
  %v730 = vunpack.c.h.b16 %v141
  %v731 = vunpack.c.l.b16 %v142
  %v732 = vunpack.c.h.b16 %v142
  %v733 = vunpack.c.l.b16 %v143
  %v734 = vunpack.c.h.b16 %v143
  %v735 = vunpack.c.l.b16 %v144
  %v736 = vunpack.c.h.b16 %v144
  %v737 = vunpack.c.l.b16 %v145
  %v738 = vunpack.c.h.b16 %v145
  %v739 = vunpack.c.l.b16 %v146
  %v740 = vunpack.c.h.b16 %v146
  %v741 = vunpack.c.l.b16 %v147
  %v742 = vunpack.c.h.b16 %v147
  %v743 = vunpack.c.l.b16 %v148
  %v744 = vunpack.c.h.b16 %v148
  %v745 = vunpack.c.l.b16 %v149
  %v746 = vunpack.c.h.b16 %v149
  %v747 = vunpack.c.l.b16 %v150
  %v748 = vunpack.c.h.b16 %v150
  %v749 = vunpack.c.l.b16 %v151
  %v750 = vunpack.c.h.b16 %v151
  %v751 = vunpack.c.l.b16 %v152
  %v752 = vunpack.c.h.b16 %v152
  %v753 = vunpack.c.l.b16 %v153
  %v754 = vunpack.c.h.b16 %v153
  %v755 = vunpack.c.l.b16 %v154
  %v756 = vunpack.c.h.b16 %v154
  %v757 = vunpack.c.l.b16 %v155
  %v758 = vunpack.c.h.b16 %v155
  %v759 = vunpack.c.l.b16 %v156
  %v760 = vunpack.c.h.b16 %v156
  %v761 = vunpack.c.l.b16 %v157
  %v762 = vunpack.c.h.b16 %v157
  %v763 = vunpack.c.l.b16 %v158
  %v764 = vunpack.c.h.b16 %v158
  %v765 = vunpack.c.l.b16 %v159
  %v766 = vunpack.c.h.b16 %v159
  %v767 = vunpack.c.l.b16 %v160
  %v768 = vunpack.c.h.b16 %v160
  %v769 = vunpack.c.l.b16 %v161
  %v770 = vunpack.c.h.b16 %v161
  %v771 = vunpack.c.l.b16 %v162
  %v772 = vunpack.c.h.b16 %v162
  %v773 = vunpack.c.l.b16 %v163
  %v774 = vunpack.c.h.b16 %v163
  %v775 = vunpack.c.l.b16 %v164
  %v776 = vunpack.c.h.b16 %v164
  %v777 = vunpack.c.l.b16 %v165
  %v778 = vunpack.c.h.b16 %v165
  %v779 = vunpack.c.l.b16 %v166
  %v780 = vunpack.c.h.b16 %v166
  %v781 = vunpack.c.l.b16 %v167
  %v782 = vunpack.c.h.b16 %v167
  %v783 = vunpack.c.l.b16 %v168
  %v784 = vunpack.c.h.b16 %v168
  %v785 = vunpack.c.l.b16 %v169
  %v786 = vunpack.c.h.b16 %v169
  %v787 = vunpack.c.l.b16 %v170
  %v788 = vunpack.c.h.b16 %v170
  %v789 = vunpack.c.l.b16 %v171
  %v790 = vunpack.c.h.b16 %v171
  %v791 = vunpack.c.l.b16 %v172
  %v792 = vunpack.c.h.b16 %v172
  %v793 = vunpack.c.l.b16 %v173
  %v794 = vunpack.c.h.b16 %v173
  %v795 = vunpack.c.l.b16 %v174
  %v796 = vunpack.c.h.b16 %v174
  %v797 = vunpack.c.l.b16 %v175
  %v798 = vunpack.c.h.b16 %v175
  %v799 = vunpack.c.l.b16 %v176
  %v800 = vunpack.c.h.b16 %v176
  %v801 = vunpack.c.l.b16 %v177
  %v802 = vunpack.c.h.b16 %v177
  %v803 = vunpack.c.l.b16 %v178
  %v804 = vunpack.c.h.b16 %v178
  %v805 = vunpack.c.l.b16 %v179
  %v806 = vunpack.c.h.b16 %v179
  %v807 = vunpack.c.l.b16 %v180
  %v808 = vunpack.c.h.b16 %v180
  %v809 = vunpack.c.l.b16 %v181
  %v810 = vunpack.c.h.b16 %v181
  %v811 = vunpack.c.l.b16 %v182
  %v812 = vunpack.c.h.b16 %v182
  %v813 = vunpack.c.l.b16 %v183
  %v814 = vunpack.c.h.b16 %v183
  %v815 = vunpack.c.l.b16 %v184
  %v816 = vunpack.c.h.b16 %v184
  %v817 = vunpack.c.l.b16 %v185
  %v818 = vunpack.c.h.b16 %v185
  %v819 = vunpack.c.l.b16 %v186
  %v820 = vunpack.c.h.b16 %v186
  %v821 = vunpack.c.l.b16 %v187
  %v822 = vunpack.c.h.b16 %v187
  %v823 = vunpack.c.l.b16 %v188
  %v824 = vunpack.c.h.b16 %v188
  %v825 = vunpack.c.l.b16 %v189
  %v826 = vunpack.c.h.b16 %v189
  %v827 = vunpack.c.l.b16 %v190
  %v828 = vunpack.c.h.b16 %v190
  %v829 = vunpack.c.l.b16 %v191
  %v830 = vunpack.c.h.b16 %v191
  %v831 = vunpack.c.l.b16 %v192
  %v832 = vunpack.c.h.b16 %v192
  %v833 = vunpack.c.l.b16 %v193
  %v834 = vunpack.c.h.b16 %v193
  %v835 = vunpack.c.l.b16 %v194
  %v836 = vunpack.c.h.b16 %v194
  %v837 = vunpack.c.l.b16 %v195
  %v838 = vunpack.c.h.b16 %v195
  %v839 = vunpack.c.l.b16 %v196
  %v840 = vunpack.c.h.b16 %v196
  %v841 = vunpack.c.l.b16 %v197
  %v842 = vunpack.c.h.b16 %v197
  %v843 = vunpack.c.l.b16 %v198
  %v844 = vunpack.c.h.b16 %v198
  %v845 = vunpack.c.l.b16 %v199
  %v846 = vunpack.c.h.b16 %v199
  %v847 = vunpack.c.l.b16 %v200
  %v848 = vunpack.c.h.b16 %v200
  %v849 = vunpack.c.l.b16 %v201
  %v850 = vunpack.c.h.b16 %v201
  %v851 = vunpack.c.l.b16 %v202
  %v852 = vunpack.c.h.b16 %v202
  %v853 = vunpack.c.l.b16 %v203
  %v854 = vunpack.c.h.b16 %v203
  %v855 = vunpack.c.l.b16 %v204
  %v856 = vunpack.c.h.b16 %v204
  %v857 = vpack.c.b16 %v547, %v537
  %v858 = vpack.c.b16 %v548, %v538
  %v859 = vpack.c.b16 %v549, %v539
  %v860 = vpack.c.b16 %v550, %v540
  %v861 = vpack.c.b16 %v551, %v541
  %v862 = vpack.c.b16 %v552, %v542
  %v863 = vpack.c.b16 %v553, %v543
  %v864 = vpack.c.b16 %v554, %v544
  %v865 = vpack.c.b16 %v555, %v545
  %v866 = vpack.c.b16 %v556, %v546
  %v867 = vpack.c.b16 %v567, %v557
  %v868 = vpack.c.b16 %v568, %v558
  %v869 = vpack.c.b16 %v569, %v559
  %v870 = vpack.c.b16 %v570, %v560
  %v871 = vpack.c.b16 %v571, %v561
  %v872 = vpack.c.b16 %v572, %v562
  %v873 = vpack.c.b16 %v573, %v563
  %v874 = vpack.c.b16 %v574, %v564
  %v875 = vpack.c.b16 %v575, %v565
  %v876 = vpack.c.b16 %v576, %v566
  %v877 = vpack.c.b16 %v587, %v577
  %v878 = vpack.c.b16 %v588, %v578
  %v879 = vpack.c.b16 %v589, %v579
  %v880 = vpack.c.b16 %v590, %v580
  %v881 = vpack.c.b16 %v591, %v581
  %v882 = vpack.c.b16 %v592, %v582
  %v883 = vpack.c.b16 %v593, %v583
  %v884 = vpack.c.b16 %v594, %v584
  %v885 = vpack.c.b16 %v595, %v585
  %v886 = vpack.c.b16 %v596, %v586
  %v887 = vpack.c.b16 %v607, %v597
  %v888 = vpack.c.b16 %v608, %v598
  %v889 = vpack.c.b16 %v609, %v599
  %v890 = vpack.c.b16 %v610, %v600
  %v891 = vpack.c.b16 %v611, %v601
  %v892 = vpack.c.b16 %v612, %v602
  %v893 = vpack.c.b16 %v613, %v603
  %v894 = vpack.c.b16 %v614, %v604
  %v895 = vpack.c.b16 %v615, %v605
  %v896 = vpack.c.b16 %v616, %v606
  %v897 = vpack.c.b16 %v627, %v617
  %v898 = vpack.c.b16 %v628, %v618
  %v899 = vpack.c.b16 %v629, %v619
  %v900 = vpack.c.b16 %v630, %v620
  %v901 = vpack.c.b16 %v631, %v621
  %v902 = vpack.c.b16 %v632, %v622
  %v903 = vpack.c.b16 %v633, %v623
  %v904 = vpack.c.b16 %v634, %v624
  %v905 = vpack.c.b16 %v635, %v625
  %v906 = vpack.c.b16 %v636, %v626
  %v907 = vpack.c.b16 %v647, %v637
  %v908 = vpack.c.b16 %v648, %v638
  %v909 = vpack.c.b16 %v649, %v639
  %v910 = vpack.c.b16 %v650, %v640
  %v911 = vpack.c.b16 %v651, %v641
  %v912 = vpack.c.b16 %v652, %v642
  %v913 = vpack.c.b16 %v653, %v643
  %v914 = vpack.c.b16 %v654, %v644
  %v915 = vpack.c.b16 %v655, %v645
  %v916 = vpack.c.b16 %v656, %v646
  %v917 = vpack.c.b16 %v667, %v657
  %v918 = vpack.c.b16 %v668, %v658
  %v919 = vpack.c.b16 %v669, %v659
  %v920 = vpack.c.b16 %v670, %v660
  %v921 = vpack.c.b16 %v671, %v661
  %v922 = vpack.c.b16 %v672, %v662
  %v923 = vpack.c.b16 %v673, %v663
  %v924 = vpack.c.b16 %v674, %v664
  %v925 = vpack.c.b16 %v675, %v665
  %v926 = vpack.c.b16 %v676, %v666
  %v927 = vpack.c.b16 %v687, %v677
  %v928 = vpack.c.b16 %v688, %v678
  %v929 = vpack.c.b16 %v689, %v679
  %v930 = vpack.c.b16 %v690, %v680
  %v931 = vpack.c.b16 %v691, %v681
  %v932 = vpack.c.b16 %v692, %v682
  %v933 = vpack.c.b16 %v693, %v683
  %v934 = vpack.c.b16 %v694, %v684
  %v935 = vpack.c.b16 %v695, %v685
  %v936 = vpack.c.b16 %v696, %v686
  %v937 = vpack.c.b16 %v707, %v697
  %v938 = vpack.c.b16 %v708, %v698
  %v939 = vpack.c.b16 %v709, %v699
  %v940 = vpack.c.b16 %v710, %v700
  %v941 = vpack.c.b16 %v711, %v701
  %v942 = vpack.c.b16 %v712, %v702
  %v943 = vpack.c.b16 %v713, %v703
  %v944 = vpack.c.b16 %v714, %v704
  %v945 = vpack.c.b16 %v715, %v705
  %v946 = vpack.c.b16 %v716, %v706
  %v947 = vpack.c.b16 %v727, %v717
  %v948 = vpack.c.b16 %v728, %v718
  %v949 = vpack.c.b16 %v729, %v719
  %v950 = vpack.c.b16 %v730, %v720
  %v951 = vpack.c.b16 %v731, %v721
  %v952 = vpack.c.b16 %v732, %v722
  %v953 = vpack.c.b16 %v733, %v723
  %v954 = vpack.c.b16 %v734, %v724
  %v955 = vpack.c.b16 %v735, %v725
  %v956 = vpack.c.b16 %v736, %v726
  %v957 = vpack.c.b16 %v747, %v737
  %v958 = vpack.c.b16 %v748, %v738
  %v959 = vpack.c.b16 %v749, %v739
  %v960 = vpack.c.b16 %v750, %v740
  %v961 = vpack.c.b16 %v751, %v741
  %v962 = vpack.c.b16 %v752, %v742
  %v963 = vpack.c.b16 %v753, %v743
  %v964 = vpack.c.b16 %v754, %v744
  %v965 = vpack.c.b16 %v755, %v745
  %v966 = vpack.c.b16 %v756, %v746
  %v967 = vpack.c.b16 %v767, %v757
  %v968 = vpack.c.b16 %v768, %v758
  %v969 = vpack.c.b16 %v769, %v759
  %v970 = vpack.c.b16 %v770, %v760
  %v971 = vpack.c.b16 %v771, %v761
  %v972 = vpack.c.b16 %v772, %v762
  %v973 = vpack.c.b16 %v773, %v763
  %v974 = vpack.c.b16 %v774, %v764
  %v975 = vpack.c.b16 %v775, %v765
  %v976 = vpack.c.b16 %v776, %v766
  %v977 = vpack.c.b16 %v787, %v777
  %v978 = vpack.c.b16 %v788, %v778
  %v979 = vpack.c.b16 %v789, %v779
  %v980 = vpack.c.b16 %v790, %v780
  %v981 = vpack.c.b16 %v791, %v781
  %v982 = vpack.c.b16 %v792, %v782
  %v983 = vpack.c.b16 %v793, %v783
  %v984 = vpack.c.b16 %v794, %v784
  %v985 = vpack.c.b16 %v795, %v785
  %v986 = vpack.c.b16 %v796, %v786
  %v987 = vpack.c.b16 %v807, %v797
  %v988 = vpack.c.b16 %v808, %v798
  %v989 = vpack.c.b16 %v809, %v799
  %v990 = vpack.c.b16 %v810, %v800
  %v991 = vpack.c.b16 %v811, %v801
  %v992 = vpack.c.b16 %v812, %v802
  %v993 = vpack.c.b16 %v813, %v803
  %v994 = vpack.c.b16 %v814, %v804
  %v995 = vpack.c.b16 %v815, %v805
  %v996 = vpack.c.b16 %v816, %v806
  %v997 = vpack.c.b16 %v827, %v817
  %v998 = vpack.c.b16 %v828, %v818
  %v999 = vpack.c.b16 %v829, %v819
  %v1000 = vpack.c.b16 %v830, %v820
  %v1001 = vpack.c.b16 %v831, %v821
  %v1002 = vpack.c.b16 %v832, %v822
  %v1003 = vpack.c.b16 %v833, %v823
  %v1004 = vpack.c.b16 %v834, %v824
  %v1005 = vpack.c.b16 %v835, %v825
  %v1006 = vpack.c.b16 %v836, %v826
  %v1007 = vpack.c.b16 %v847, %v837
  %v1008 = vpack.c.b16 %v848, %v838
  %v1009 = vpack.c.b16 %v849, %v839
  %v1010 = vpack.c.b16 %v850, %v840
  %v1011 = vpack.c.b16 %v851, %v841
  %v1012 = vpack.c.b16 %v852, %v842
  %v1013 = vpack.c.b16 %v853, %v843
  %v1014 = vpack.c.b16 %v854, %v844
  %v1015 = vpack.c.b16 %v855, %v845
  %v1016 = vpack.c.b16 %v856, %v846
  %v1337 = vunpack.c.l.b16 %v205
  %v1338 = vunpack.c.h.b16 %v205
  %v1339 = vunpack.c.l.b16 %v206
  %v1340 = vunpack.c.h.b16 %v206
  %v1341 = vunpack.c.l.b16 %v207
  %v1342 = vunpack.c.h.b16 %v207
  %v1343 = vunpack.c.l.b16 %v208
  %v1344 = vunpack.c.h.b16 %v208
  %v1345 = vunpack.c.l.b16 %v209
  %v1346 = vunpack.c.h.b16 %v209
  %v1347 = vunpack.c.l.b16 %v210
  %v1348 = vunpack.c.h.b16 %v210
  %v1349 = vunpack.c.l.b16 %v211
  %v1350 = vunpack.c.h.b16 %v211
  %v1351 = vunpack.c.l.b16 %v212
  %v1352 = vunpack.c.h.b16 %v212
  %v1353 = vunpack.c.l.b16 %v213
  %v1354 = vunpack.c.h.b16 %v213
  %v1355 = vunpack.c.l.b16 %v214
  %v1356 = vunpack.c.h.b16 %v214
  %v1357 = vunpack.c.l.b16 %v215
  %v1358 = vunpack.c.h.b16 %v215
  %v1359 = vunpack.c.l.b16 %v216
  %v1360 = vunpack.c.h.b16 %v216
  %v1361 = vunpack.c.l.b16 %v217
  %v1362 = vunpack.c.h.b16 %v217
  %v1363 = vunpack.c.l.b16 %v218
  %v1364 = vunpack.c.h.b16 %v218
  %v1365 = vunpack.c.l.b16 %v219
  %v1366 = vunpack.c.h.b16 %v219
  %v1367 = vunpack.c.l.b16 %v220
  %v1368 = vunpack.c.h.b16 %v220
  %v1369 = vunpack.c.l.b16 %v221
  %v1370 = vunpack.c.h.b16 %v221
  %v1371 = vunpack.c.l.b16 %v222
  %v1372 = vunpack.c.h.b16 %v222
  %v1373 = vunpack.c.l.b16 %v223
  %v1374 = vunpack.c.h.b16 %v223
  %v1375 = vunpack.c.l.b16 %v224
  %v1376 = vunpack.c.h.b16 %v224
  %v1377 = vunpack.c.l.b16 %v225
  %v1378 = vunpack.c.h.b16 %v225
  %v1379 = vunpack.c.l.b16 %v226
  %v1380 = vunpack.c.h.b16 %v226
  %v1381 = vunpack.c.l.b16 %v227
  %v1382 = vunpack.c.h.b16 %v227
  %v1383 = vunpack.c.l.b16 %v228
  %v1384 = vunpack.c.h.b16 %v228
  %v1385 = vunpack.c.l.b16 %v229
  %v1386 = vunpack.c.h.b16 %v229
  %v1387 = vunpack.c.l.b16 %v230
  %v1388 = vunpack.c.h.b16 %v230
  %v1389 = vunpack.c.l.b16 %v231
  %v1390 = vunpack.c.h.b16 %v231
  %v1391 = vunpack.c.l.b16 %v232
  %v1392 = vunpack.c.h.b16 %v232
  %v1393 = vunpack.c.l.b16 %v233
  %v1394 = vunpack.c.h.b16 %v233
  %v1395 = vunpack.c.l.b16 %v234
  %v1396 = vunpack.c.h.b16 %v234
  %v1397 = vunpack.c.l.b16 %v235
  %v1398 = vunpack.c.h.b16 %v235
  %v1399 = vunpack.c.l.b16 %v236
  %v1400 = vunpack.c.h.b16 %v236
  %v1401 = vunpack.c.l.b16 %v237
  %v1402 = vunpack.c.h.b16 %v237
  %v1403 = vunpack.c.l.b16 %v238
  %v1404 = vunpack.c.h.b16 %v238
  %v1405 = vunpack.c.l.b16 %v239
  %v1406 = vunpack.c.h.b16 %v239
  %v1407 = vunpack.c.l.b16 %v240
  %v1408 = vunpack.c.h.b16 %v240
  %v1409 = vunpack.c.l.b16 %v241
  %v1410 = vunpack.c.h.b16 %v241
  %v1411 = vunpack.c.l.b16 %v242
  %v1412 = vunpack.c.h.b16 %v242
  %v1413 = vunpack.c.l.b16 %v243
  %v1414 = vunpack.c.h.b16 %v243
  %v1415 = vunpack.c.l.b16 %v244
  %v1416 = vunpack.c.h.b16 %v244
  %v1417 = vunpack.c.l.b16 %v245
  %v1418 = vunpack.c.h.b16 %v245
  %v1419 = vunpack.c.l.b16 %v246
  %v1420 = vunpack.c.h.b16 %v246
  %v1421 = vunpack.c.l.b16 %v247
  %v1422 = vunpack.c.h.b16 %v247
  %v1423 = vunpack.c.l.b16 %v248
  %v1424 = vunpack.c.h.b16 %v248
  %v1425 = vunpack.c.l.b16 %v249
  %v1426 = vunpack.c.h.b16 %v249
  %v1427 = vunpack.c.l.b16 %v250
  %v1428 = vunpack.c.h.b16 %v250
  %v1429 = vunpack.c.l.b16 %v251
  %v1430 = vunpack.c.h.b16 %v251
  %v1431 = vunpack.c.l.b16 %v252
  %v1432 = vunpack.c.h.b16 %v252
  %v1433 = vunpack.c.l.b16 %v253
  %v1434 = vunpack.c.h.b16 %v253
  %v1435 = vunpack.c.l.b16 %v254
  %v1436 = vunpack.c.h.b16 %v254
  %v1437 = vunpack.c.l.b16 %v255
  %v1438 = vunpack.c.h.b16 %v255
  %v1439 = vunpack.c.l.b16 %v256
  %v1440 = vunpack.c.h.b16 %v256
  %v1441 = vunpack.c.l.b16 %v257
  %v1442 = vunpack.c.h.b16 %v257
  %v1443 = vunpack.c.l.b16 %v258
  %v1444 = vunpack.c.h.b16 %v258
  %v1445 = vunpack.c.l.b16 %v259
  %v1446 = vunpack.c.h.b16 %v259
  %v1447 = vunpack.c.l.b16 %v260
  %v1448 = vunpack.c.h.b16 %v260
  %v1449 = vunpack.c.l.b16 %v261
  %v1450 = vunpack.c.h.b16 %v261
  %v1451 = vunpack.c.l.b16 %v262
  %v1452 = vunpack.c.h.b16 %v262
  %v1453 = vunpack.c.l.b16 %v263
  %v1454 = vunpack.c.h.b16 %v263
  %v1455 = vunpack.c.l.b16 %v264
  %v1456 = vunpack.c.h.b16 %v264
  %v1457 = vunpack.c.l.b16 %v265
  %v1458 = vunpack.c.h.b16 %v265
  %v1459 = vunpack.c.l.b16 %v266
  %v1460 = vunpack.c.h.b16 %v266
  %v1461 = vunpack.c.l.b16 %v267
  %v1462 = vunpack.c.h.b16 %v267
  %v1463 = vunpack.c.l.b16 %v268
  %v1464 = vunpack.c.h.b16 %v268
  %v1465 = vunpack.c.l.b16 %v269
  %v1466 = vunpack.c.h.b16 %v269
  %v1467 = vunpack.c.l.b16 %v270
  %v1468 = vunpack.c.h.b16 %v270
  %v1469 = vunpack.c.l.b16 %v271
  %v1470 = vunpack.c.h.b16 %v271
  %v1471 = vunpack.c.l.b16 %v272
  %v1472 = vunpack.c.h.b16 %v272
  %v1473 = vunpack.c.l.b16 %v273
  %v1474 = vunpack.c.h.b16 %v273
  %v1475 = vunpack.c.l.b16 %v274
  %v1476 = vunpack.c.h.b16 %v274
  %v1477 = vunpack.c.l.b16 %v275
  %v1478 = vunpack.c.h.b16 %v275
  %v1479 = vunpack.c.l.b16 %v276
  %v1480 = vunpack.c.h.b16 %v276
  %v1481 = vunpack.c.l.b16 %v277
  %v1482 = vunpack.c.h.b16 %v277
  %v1483 = vunpack.c.l.b16 %v278
  %v1484 = vunpack.c.h.b16 %v278
  %v1485 = vunpack.c.l.b16 %v279
  %v1486 = vunpack.c.h.b16 %v279
  %v1487 = vunpack.c.l.b16 %v280
  %v1488 = vunpack.c.h.b16 %v280
  %v1489 = vunpack.c.l.b16 %v281
  %v1490 = vunpack.c.h.b16 %v281
  %v1491 = vunpack.c.l.b16 %v282
  %v1492 = vunpack.c.h.b16 %v282
  %v1493 = vunpack.c.l.b16 %v283
  %v1494 = vunpack.c.h.b16 %v283
  %v1495 = vunpack.c.l.b16 %v284
  %v1496 = vunpack.c.h.b16 %v284
  %v1497 = vunpack.c.l.b16 %v285
  %v1498 = vunpack.c.h.b16 %v285
  %v1499 = vunpack.c.l.b16 %v286
  %v1500 = vunpack.c.h.b16 %v286
  %v1501 = vunpack.c.l.b16 %v287
  %v1502 = vunpack.c.h.b16 %v287
  %v1503 = vunpack.c.l.b16 %v288
  %v1504 = vunpack.c.h.b16 %v288
  %v1505 = vunpack.c.l.b16 %v289
  %v1506 = vunpack.c.h.b16 %v289
  %v1507 = vunpack.c.l.b16 %v290
  %v1508 = vunpack.c.h.b16 %v290
  %v1509 = vunpack.c.l.b16 %v291
  %v1510 = vunpack.c.h.b16 %v291
  %v1511 = vunpack.c.l.b16 %v292
  %v1512 = vunpack.c.h.b16 %v292
  %v1513 = vunpack.c.l.b16 %v293
  %v1514 = vunpack.c.h.b16 %v293
  %v1515 = vunpack.c.l.b16 %v294
  %v1516 = vunpack.c.h.b16 %v294
  %v1517 = vunpack.c.l.b16 %v295
  %v1518 = vunpack.c.h.b16 %v295
  %v1519 = vunpack.c.l.b16 %v296
  %v1520 = vunpack.c.h.b16 %v296
  %v1521 = vunpack.c.l.b16 %v297
  %v1522 = vunpack.c.h.b16 %v297
  %v1523 = vunpack.c.l.b16 %v298
  %v1524 = vunpack.c.h.b16 %v298
  %v1525 = vunpack.c.l.b16 %v299
  %v1526 = vunpack.c.h.b16 %v299
  %v1527 = vunpack.c.l.b16 %v300
  %v1528 = vunpack.c.h.b16 %v300
  %v1529 = vunpack.c.l.b16 %v301
  %v1530 = vunpack.c.h.b16 %v301
  %v1531 = vunpack.c.l.b16 %v302
  %v1532 = vunpack.c.h.b16 %v302
  %v1533 = vunpack.c.l.b16 %v303
  %v1534 = vunpack.c.h.b16 %v303
  %v1535 = vunpack.c.l.b16 %v304
  %v1536 = vunpack.c.h.b16 %v304
  %v1537 = vunpack.c.l.b16 %v305
  %v1538 = vunpack.c.h.b16 %v305
  %v1539 = vunpack.c.l.b16 %v306
  %v1540 = vunpack.c.h.b16 %v306
  %v1541 = vunpack.c.l.b16 %v307
  %v1542 = vunpack.c.h.b16 %v307
  %v1543 = vunpack.c.l.b16 %v308
  %v1544 = vunpack.c.h.b16 %v308
  %v1545 = vunpack.c.l.b16 %v309
  %v1546 = vunpack.c.h.b16 %v309
  %v1547 = vunpack.c.l.b16 %v310
  %v1548 = vunpack.c.h.b16 %v310
  %v1549 = vunpack.c.l.b16 %v311
  %v1550 = vunpack.c.h.b16 %v311
  %v1551 = vunpack.c.l.b16 %v312
  %v1552 = vunpack.c.h.b16 %v312
  %v1553 = vunpack.c.l.b16 %v313
  %v1554 = vunpack.c.h.b16 %v313
  %v1555 = vunpack.c.l.b16 %v314
  %v1556 = vunpack.c.h.b16 %v314
  %v1557 = vunpack.c.l.b16 %v315
  %v1558 = vunpack.c.h.b16 %v315
  %v1559 = vunpack.c.l.b16 %v316
  %v1560 = vunpack.c.h.b16 %v316
  %v1561 = vunpack.c.l.b16 %v317
  %v1562 = vunpack.c.h.b16 %v317
  %v1563 = vunpack.c.l.b16 %v318
  %v1564 = vunpack.c.h.b16 %v318
  %v1565 = vunpack.c.l.b16 %v319
  %v1566 = vunpack.c.h.b16 %v319
  %v1567 = vunpack.c.l.b16 %v320
  %v1568 = vunpack.c.h.b16 %v320
  %v1569 = vunpack.c.l.b16 %v321
  %v1570 = vunpack.c.h.b16 %v321
  %v1571 = vunpack.c.l.b16 %v322
  %v1572 = vunpack.c.h.b16 %v322
  %v1573 = vunpack.c.l.b16 %v323
  %v1574 = vunpack.c.h.b16 %v323
  %v1575 = vunpack.c.l.b16 %v324
  %v1576 = vunpack.c.h.b16 %v324
  %v1577 = vunpack.c.l.b16 %v325
  %v1578 = vunpack.c.h.b16 %v325
  %v1579 = vunpack.c.l.b16 %v326
  %v1580 = vunpack.c.h.b16 %v326
  %v1581 = vunpack.c.l.b16 %v327
  %v1582 = vunpack.c.h.b16 %v327
  %v1583 = vunpack.c.l.b16 %v328
  %v1584 = vunpack.c.h.b16 %v328
  %v1585 = vunpack.c.l.b16 %v329
  %v1586 = vunpack.c.h.b16 %v329
  %v1587 = vunpack.c.l.b16 %v330
  %v1588 = vunpack.c.h.b16 %v330
  %v1589 = vunpack.c.l.b16 %v331
  %v1590 = vunpack.c.h.b16 %v331
  %v1591 = vunpack.c.l.b16 %v332
  %v1592 = vunpack.c.h.b16 %v332
  %v1593 = vunpack.c.l.b16 %v333
  %v1594 = vunpack.c.h.b16 %v333
  %v1595 = vunpack.c.l.b16 %v334
  %v1596 = vunpack.c.h.b16 %v334
  %v1597 = vunpack.c.l.b16 %v335
  %v1598 = vunpack.c.h.b16 %v335
  %v1599 = vunpack.c.l.b16 %v336
  %v1600 = vunpack.c.h.b16 %v336
  %v1601 = vunpack.c.l.b16 %v337
  %v1602 = vunpack.c.h.b16 %v337
  %v1603 = vunpack.c.l.b16 %v338
  %v1604 = vunpack.c.h.b16 %v338
  %v1605 = vunpack.c.l.b16 %v339
  %v1606 = vunpack.c.h.b16 %v339
  %v1607 = vunpack.c.l.b16 %v340
  %v1608 = vunpack.c.h.b16 %v340
  %v1609 = vunpack.c.l.b16 %v341
  %v1610 = vunpack.c.h.b16 %v341
  %v1611 = vunpack.c.l.b16 %v342
  %v1612 = vunpack.c.h.b16 %v342
  %v1613 = vunpack.c.l.b16 %v343
  %v1614 = vunpack.c.h.b16 %v343
  %v1615 = vunpack.c.l.b16 %v344
  %v1616 = vunpack.c.h.b16 %v344
  %v1617 = vunpack.c.l.b16 %v345
  %v1618 = vunpack.c.h.b16 %v345
  %v1619 = vunpack.c.l.b16 %v346
  %v1620 = vunpack.c.h.b16 %v346
  %v1621 = vunpack.c.l.b16 %v347
  %v1622 = vunpack.c.h.b16 %v347
  %v1623 = vunpack.c.l.b16 %v348
  %v1624 = vunpack.c.h.b16 %v348
  %v1625 = vunpack.c.l.b16 %v349
  %v1626 = vunpack.c.h.b16 %v349
  %v1627 = vunpack.c.l.b16 %v350
  %v1628 = vunpack.c.h.b16 %v350
  %v1629 = vunpack.c.l.b16 %v351
  %v1630 = vunpack.c.h.b16 %v351
  %v1631 = vunpack.c.l.b16 %v352
  %v1632 = vunpack.c.h.b16 %v352
  %v1633 = vunpack.c.l.b16 %v353
  %v1634 = vunpack.c.h.b16 %v353
  %v1635 = vunpack.c.l.b16 %v354
  %v1636 = vunpack.c.h.b16 %v354
  %v1637 = vunpack.c.l.b16 %v355
  %v1638 = vunpack.c.h.b16 %v355
  %v1639 = vunpack.c.l.b16 %v356
  %v1640 = vunpack.c.h.b16 %v356
  %v1641 = vunpack.c.l.b16 %v357
  %v1642 = vunpack.c.h.b16 %v357
  %v1643 = vunpack.c.l.b16 %v358
  %v1644 = vunpack.c.h.b16 %v358
  %v1645 = vunpack.c.l.b16 %v359
  %v1646 = vunpack.c.h.b16 %v359
  %v1647 = vunpack.c.l.b16 %v360
  %v1648 = vunpack.c.h.b16 %v360
  %v1649 = vunpack.c.l.b16 %v361
  %v1650 = vunpack.c.h.b16 %v361
  %v1651 = vunpack.c.l.b16 %v362
  %v1652 = vunpack.c.h.b16 %v362
  %v1653 = vunpack.c.l.b16 %v363
  %v1654 = vunpack.c.h.b16 %v363
  %v1655 = vunpack.c.l.b16 %v364
  %v1656 = vunpack.c.h.b16 %v364
  %v1657 = vpack.c.b16 %v1339, %v1337
  %v1658 = vpack.c.b16 %v1340, %v1338
  %v1659 = vpack.c.b16 %v1343, %v1341
  %v1660 = vpack.c.b16 %v1344, %v1342
  %v1661 = vpack.c.b16 %v1347, %v1345
  %v1662 = vpack.c.b16 %v1348, %v1346
  %v1663 = vpack.c.b16 %v1351, %v1349
  %v1664 = vpack.c.b16 %v1352, %v1350
  %v1665 = vpack.c.b16 %v1355, %v1353
  %v1666 = vpack.c.b16 %v1356, %v1354
  %v1667 = vpack.c.b16 %v1359, %v1357
  %v1668 = vpack.c.b16 %v1360, %v1358
  %v1669 = vpack.c.b16 %v1363, %v1361
  %v1670 = vpack.c.b16 %v1364, %v1362
  %v1671 = vpack.c.b16 %v1367, %v1365
  %v1672 = vpack.c.b16 %v1368, %v1366
  %v1673 = vpack.c.b16 %v1371, %v1369
  %v1674 = vpack.c.b16 %v1372, %v1370
  %v1675 = vpack.c.b16 %v1375, %v1373
  %v1676 = vpack.c.b16 %v1376, %v1374
  %v1677 = vpack.c.b16 %v1379, %v1377
  %v1678 = vpack.c.b16 %v1380, %v1378
  %v1679 = vpack.c.b16 %v1383, %v1381
  %v1680 = vpack.c.b16 %v1384, %v1382
  %v1681 = vpack.c.b16 %v1387, %v1385
  %v1682 = vpack.c.b16 %v1388, %v1386
  %v1683 = vpack.c.b16 %v1391, %v1389
  %v1684 = vpack.c.b16 %v1392, %v1390
  %v1685 = vpack.c.b16 %v1395, %v1393
  %v1686 = vpack.c.b16 %v1396, %v1394
  %v1687 = vpack.c.b16 %v1399, %v1397
  %v1688 = vpack.c.b16 %v1400, %v1398
  %v1689 = vpack.c.b16 %v1403, %v1401
  %v1690 = vpack.c.b16 %v1404, %v1402
  %v1691 = vpack.c.b16 %v1407, %v1405
  %v1692 = vpack.c.b16 %v1408, %v1406
  %v1693 = vpack.c.b16 %v1411, %v1409
  %v1694 = vpack.c.b16 %v1412, %v1410
  %v1695 = vpack.c.b16 %v1415, %v1413
  %v1696 = vpack.c.b16 %v1416, %v1414
  %v1697 = vpack.c.b16 %v1419, %v1417
  %v1698 = vpack.c.b16 %v1420, %v1418
  %v1699 = vpack.c.b16 %v1423, %v1421
  %v1700 = vpack.c.b16 %v1424, %v1422
  %v1701 = vpack.c.b16 %v1427, %v1425
  %v1702 = vpack.c.b16 %v1428, %v1426
  %v1703 = vpack.c.b16 %v1431, %v1429
  %v1704 = vpack.c.b16 %v1432, %v1430
  %v1705 = vpack.c.b16 %v1435, %v1433
  %v1706 = vpack.c.b16 %v1436, %v1434
  %v1707 = vpack.c.b16 %v1439, %v1437
  %v1708 = vpack.c.b16 %v1440, %v1438
  %v1709 = vpack.c.b16 %v1443, %v1441
  %v1710 = vpack.c.b16 %v1444, %v1442
  %v1711 = vpack.c.b16 %v1447, %v1445
  %v1712 = vpack.c.b16 %v1448, %v1446
  %v1713 = vpack.c.b16 %v1451, %v1449
  %v1714 = vpack.c.b16 %v1452, %v1450
  %v1715 = vpack.c.b16 %v1455, %v1453
  %v1716 = vpack.c.b16 %v1456, %v1454
  %v1717 = vpack.c.b16 %v1459, %v1457
  %v1718 = vpack.c.b16 %v1460, %v1458
  %v1719 = vpack.c.b16 %v1463, %v1461
  %v1720 = vpack.c.b16 %v1464, %v1462
  %v1721 = vpack.c.b16 %v1467, %v1465
  %v1722 = vpack.c.b16 %v1468, %v1466
  %v1723 = vpack.c.b16 %v1471, %v1469
  %v1724 = vpack.c.b16 %v1472, %v1470
  %v1725 = vpack.c.b16 %v1475, %v1473
  %v1726 = vpack.c.b16 %v1476, %v1474
  %v1727 = vpack.c.b16 %v1479, %v1477
  %v1728 = vpack.c.b16 %v1480, %v1478
  %v1729 = vpack.c.b16 %v1483, %v1481
  %v1730 = vpack.c.b16 %v1484, %v1482
  %v1731 = vpack.c.b16 %v1487, %v1485
  %v1732 = vpack.c.b16 %v1488, %v1486
  %v1733 = vpack.c.b16 %v1491, %v1489
  %v1734 = vpack.c.b16 %v1492, %v1490
  %v1735 = vpack.c.b16 %v1495, %v1493
  %v1736 = vpack.c.b16 %v1496, %v1494
  %v1737 = vpack.c.b16 %v1499, %v1497
  %v1738 = vpack.c.b16 %v1500, %v1498
  %v1739 = vpack.c.b16 %v1503, %v1501
  %v1740 = vpack.c.b16 %v1504, %v1502
  %v1741 = vpack.c.b16 %v1507, %v1505
  %v1742 = vpack.c.b16 %v1508, %v1506
  %v1743 = vpack.c.b16 %v1511, %v1509
  %v1744 = vpack.c.b16 %v1512, %v1510
  %v1745 = vpack.c.b16 %v1515, %v1513
  %v1746 = vpack.c.b16 %v1516, %v1514
  %v1747 = vpack.c.b16 %v1519, %v1517
  %v1748 = vpack.c.b16 %v1520, %v1518
  %v1749 = vpack.c.b16 %v1523, %v1521
  %v1750 = vpack.c.b16 %v1524, %v1522
  %v1751 = vpack.c.b16 %v1527, %v1525
  %v1752 = vpack.c.b16 %v1528, %v1526
  %v1753 = vpack.c.b16 %v1531, %v1529
  %v1754 = vpack.c.b16 %v1532, %v1530
  %v1755 = vpack.c.b16 %v1535, %v1533
  %v1756 = vpack.c.b16 %v1536, %v1534
  %v1757 = vpack.c.b16 %v1539, %v1537
  %v1758 = vpack.c.b16 %v1540, %v1538
  %v1759 = vpack.c.b16 %v1543, %v1541
  %v1760 = vpack.c.b16 %v1544, %v1542
  %v1761 = vpack.c.b16 %v1547, %v1545
  %v1762 = vpack.c.b16 %v1548, %v1546
  %v1763 = vpack.c.b16 %v1551, %v1549
  %v1764 = vpack.c.b16 %v1552, %v1550
  %v1765 = vpack.c.b16 %v1555, %v1553
  %v1766 = vpack.c.b16 %v1556, %v1554
  %v1767 = vpack.c.b16 %v1559, %v1557
  %v1768 = vpack.c.b16 %v1560, %v1558
  %v1769 = vpack.c.b16 %v1563, %v1561
  %v1770 = vpack.c.b16 %v1564, %v1562
  %v1771 = vpack.c.b16 %v1567, %v1565
  %v1772 = vpack.c.b16 %v1568, %v1566
  %v1773 = vpack.c.b16 %v1571, %v1569
  %v1774 = vpack.c.b16 %v1572, %v1570
  %v1775 = vpack.c.b16 %v1575, %v1573
  %v1776 = vpack.c.b16 %v1576, %v1574
  %v1777 = vpack.c.b16 %v1579, %v1577
  %v1778 = vpack.c.b16 %v1580, %v1578
  %v1779 = vpack.c.b16 %v1583, %v1581
  %v1780 = vpack.c.b16 %v1584, %v1582
  %v1781 = vpack.c.b16 %v1587, %v1585
  %v1782 = vpack.c.b16 %v1588, %v1586
  %v1783 = vpack.c.b16 %v1591, %v1589
  %v1784 = vpack.c.b16 %v1592, %v1590
  %v1785 = vpack.c.b16 %v1595, %v1593
  %v1786 = vpack.c.b16 %v1596, %v1594
  %v1787 = vpack.c.b16 %v1599, %v1597
  %v1788 = vpack.c.b16 %v1600, %v1598
  %v1789 = vpack.c.b16 %v1603, %v1601
  %v1790 = vpack.c.b16 %v1604, %v1602
  %v1791 = vpack.c.b16 %v1607, %v1605
  %v1792 = vpack.c.b16 %v1608, %v1606
  %v1793 = vpack.c.b16 %v1611, %v1609
  %v1794 = vpack.c.b16 %v1612, %v1610
  %v1795 = vpack.c.b16 %v1615, %v1613
  %v1796 = vpack.c.b16 %v1616, %v1614
  %v1797 = vpack.c.b16 %v1619, %v1617
  %v1798 = vpack.c.b16 %v1620, %v1618
  %v1799 = vpack.c.b16 %v1623, %v1621
  %v1800 = vpack.c.b16 %v1624, %v1622
  %v1801 = vpack.c.b16 %v1627, %v1625
  %v1802 = vpack.c.b16 %v1628, %v1626
  %v1803 = vpack.c.b16 %v1631, %v1629
  %v1804 = vpack.c.b16 %v1632, %v1630
  %v1805 = vpack.c.b16 %v1635, %v1633
  %v1806 = vpack.c.b16 %v1636, %v1634
  %v1807 = vpack.c.b16 %v1639, %v1637
  %v1808 = vpack.c.b16 %v1640, %v1638
  %v1809 = vpack.c.b16 %v1643, %v1641
  %v1810 = vpack.c.b16 %v1644, %v1642
  %v1811 = vpack.c.b16 %v1647, %v1645
  %v1812 = vpack.c.b16 %v1648, %v1646
  %v1813 = vpack.c.b16 %v1651, %v1649
  %v1814 = vpack.c.b16 %v1652, %v1650
  %v1815 = vpack.c.b16 %v1655, %v1653
  %v1816 = vpack.c.b16 %v1656, %v1654
  %1977 = vmatprep.subr.bf16.mxu0 %v1658
  %1978 = vmatpush1.bf16.msra.mxu0 %v1657
  %1979 = vmatprep.subr.bf16.mxu0 %v1660
  %1980 = vmatpush1.bf16.msra.mxu0 %v1659
  %1981 = vmatprep.subr.bf16.mxu0 %v1662
  %1982 = vmatpush1.bf16.msra.mxu0 %v1661
  %1983 = vmatprep.subr.bf16.mxu0 %v1664
  %1984 = vmatpush1.bf16.msra.mxu0 %v1663
  %1985 = vmatprep.subr.bf16.mxu0 %v1666
  %1986 = vmatpush1.bf16.msra.mxu0 %v1665
  %1987 = vmatprep.subr.bf16.mxu0 %v1668
  %1988 = vmatpush1.bf16.msra.mxu0 %v1667
  %1989 = vmatprep.subr.bf16.mxu0 %v1670
  %1990 = vmatpush1.bf16.msra.mxu0 %v1669
  %1991 = vmatprep.subr.bf16.mxu0 %v1672
  %1992 = vmatpush1.bf16.msra.mxu0 %v1671
  %1993 = vmatprep.subr.bf16.mxu0 %v1674
  %1994 = vmatpush1.bf16.msra.mxu0 %v1673
  %1995 = vmatprep.subr.bf16.mxu0 %v1676
  %1996 = vmatpush1.bf16.msra.mxu0 %v1675
  %1997 = vmatprep.subr.bf16.mxu0 %v1678
  %1998 = vmatpush1.bf16.msra.mxu0 %v1677
  %1999 = vmatprep.subr.bf16.mxu0 %v1680
  %2000 = vmatpush1.bf16.msra.mxu0 %v1679
  %2001 = vmatprep.subr.bf16.mxu0 %v1682
  %2002 = vmatpush1.bf16.msra.mxu0 %v1681
  %2003 = vmatprep.subr.bf16.mxu0 %v1684
  %2004 = vmatpush1.bf16.msra.mxu0 %v1683
  %2005 = vmatprep.subr.bf16.mxu0 %v1686
  %2006 = vmatpush1.bf16.msra.mxu0 %v1685
  %2007 = vmatprep.subr.bf16.mxu0 %v1688
  %2008 = vmatpush1.bf16.msra.mxu0 %v1687
  %2009 = vmatprep.mubr.bf16.mxu0 %v858
  %2010 = vmatmul.mubr.bf16.gmra.mrb[0].mxu0 %v857
  %v2011 = vpop.f32.mrb[0].mxu0
  %v2012 = vadd.f32 %v370, %v2011
  %v2013 = vpop.f32.mrb[0].mxu0
  %v2014 = vadd.f32 %v374, %v2013
  %v2015 = vpop.f32.mrb[0].mxu0
  %v2016 = vadd.f32 %v370, %v2015
  %v2017 = vpop.f32.mrb[0].mxu0
  %v2018 = vadd.f32 %v374, %v2017
  %2019 = vmatprep.mubr.bf16.mxu0 %v868
  %2020 = vmatmul.mubr.bf16.gmra.mrb[0].mxu0 %v867
  %v2021 = vpop.f32.mrb[0].mxu0
  %v2022 = vadd.f32 %v370, %v2021
  %v2023 = vpop.f32.mrb[0].mxu0
  %v2024 = vadd.f32 %v374, %v2023
  %v2025 = vpop.f32.mrb[0].mxu0
  %v2026 = vadd.f32 %v370, %v2025
  %v2027 = vpop.f32.mrb[0].mxu0
  %v2028 = vadd.f32 %v374, %v2027
  %2029 = vmatprep.mubr.bf16.mxu0 %v878
  %2030 = vmatmul.mubr.bf16.gmra.mrb[0].mxu0 %v877
  %v2031 = vpop.f32.mrb[0].mxu0
  %v2032 = vadd.f32 %v370, %v2031
  %v2033 = vpop.f32.mrb[0].mxu0
  %v2034 = vadd.f32 %v374, %v2033
  %v2035 = vpop.f32.mrb[0].mxu0
  %v2036 = vadd.f32 %v370, %v2035
  %v2037 = vpop.f32.mrb[0].mxu0
  %v2038 = vadd.f32 %v374, %v2037
  %2039 = vmatprep.mubr.bf16.mxu0 %v888
  %2040 = vmatmul.mubr.bf16.gmra.mrb[0].mxu0 %v887
  %v2041 = vpop.f32.mrb[0].mxu0
  %v2042 = vadd.f32 %v370, %v2041
  %v2043 = vpop.f32.mrb[0].mxu0
  %v2044 = vadd.f32 %v374, %v2043
  %v2045 = vpop.f32.mrb[0].mxu0
  %v2046 = vadd.f32 %v370, %v2045
  %v2047 = vpop.f32.mrb[0].mxu0
  %v2048 = vadd.f32 %v374, %v2047
  %2049 = vmatprep.mubr.bf16.mxu0 %v898
  %2050 = vmatmul.mubr.bf16.gmra.mrb[0].mxu0 %v897
  %v2051 = vpop.f32.mrb[0].mxu0
  %v2052 = vadd.f32 %v370, %v2051
  %v2053 = vpop.f32.mrb[0].mxu0
  %v2054 = vadd.f32 %v374, %v2053
  %v2055 = vpop.f32.mrb[0].mxu0
  %v2056 = vadd.f32 %v370, %v2055
  %v2057 = vpop.f32.mrb[0].mxu0
  %v2058 = vadd.f32 %v374, %v2057
  %2059 = vmatprep.mubr.bf16.mxu0 %v908
  %2060 = vmatmul.mubr.bf16.gmra.mrb[0].mxu0 %v907
  %v2061 = vpop.f32.mrb[0].mxu0
  %v2062 = vadd.f32 %v370, %v2061
  %v2063 = vpop.f32.mrb[0].mxu0
  %v2064 = vadd.f32 %v374, %v2063
  %v2065 = vpop.f32.mrb[0].mxu0
  %v2066 = vadd.f32 %v370, %v2065
  %v2067 = vpop.f32.mrb[0].mxu0
  %v2068 = vadd.f32 %v374, %v2067
  %2069 = vmatprep.mubr.bf16.mxu0 %v918
  %2070 = vmatmul.mubr.bf16.gmra.mrb[0].mxu0 %v917
  %v2071 = vpop.f32.mrb[0].mxu0
  %v2072 = vadd.f32 %v370, %v2071
  %v2073 = vpop.f32.mrb[0].mxu0
  %v2074 = vadd.f32 %v374, %v2073
  %v2075 = vpop.f32.mrb[0].mxu0
  %v2076 = vadd.f32 %v370, %v2075
  %v2077 = vpop.f32.mrb[0].mxu0
  %v2078 = vadd.f32 %v374, %v2077
  %2079 = vmatprep.mubr.bf16.mxu0 %v928
  %2080 = vmatmul.mubr.bf16.gmra.mrb[0].mxu0 %v927
  %v2081 = vpop.f32.mrb[0].mxu0
  %v2082 = vadd.f32 %v370, %v2081
  %v2083 = vpop.f32.mrb[0].mxu0
  %v2084 = vadd.f32 %v374, %v2083
  %v2085 = vpop.f32.mrb[0].mxu0
  %v2086 = vadd.f32 %v370, %v2085
  %v2087 = vpop.f32.mrb[0].mxu0
  %v2088 = vadd.f32 %v374, %v2087
  %2089 = vmatprep.mubr.bf16.mxu0 %v938
  %2090 = vmatmul.mubr.bf16.gmra.mrb[0].mxu0 %v937
  %v2091 = vpop.f32.mrb[0].mxu0
  %v2092 = vadd.f32 %v370, %v2091
  %v2093 = vpop.f32.mrb[0].mxu0
  %v2094 = vadd.f32 %v374, %v2093
  %v2095 = vpop.f32.mrb[0].mxu0
  %v2096 = vadd.f32 %v370, %v2095
  %v2097 = vpop.f32.mrb[0].mxu0
  %v2098 = vadd.f32 %v374, %v2097
  %2099 = vmatprep.mubr.bf16.mxu0 %v948
  %2100 = vmatmul.mubr.bf16.gmra.mrb[0].mxu0 %v947
  %v2101 = vpop.f32.mrb[0].mxu0
  %v2102 = vadd.f32 %v370, %v2101
  %v2103 = vpop.f32.mrb[0].mxu0
  %v2104 = vadd.f32 %v374, %v2103
  %v2105 = vpop.f32.mrb[0].mxu0
  %v2106 = vadd.f32 %v370, %v2105
  %v2107 = vpop.f32.mrb[0].mxu0
  %v2108 = vadd.f32 %v374, %v2107
  %2109 = vmatprep.mubr.bf16.mxu0 %v958
  %2110 = vmatmul.mubr.bf16.gmra.mrb[0].mxu0 %v957
  %v2111 = vpop.f32.mrb[0].mxu0
  %v2112 = vadd.f32 %v370, %v2111
  %v2113 = vpop.f32.mrb[0].mxu0
  %v2114 = vadd.f32 %v374, %v2113
  %v2115 = vpop.f32.mrb[0].mxu0
  %v2116 = vadd.f32 %v370, %v2115
  %v2117 = vpop.f32.mrb[0].mxu0
  %v2118 = vadd.f32 %v374, %v2117
  %2119 = vmatprep.mubr.bf16.mxu0 %v968
  %2120 = vmatmul.mubr.bf16.gmra.mrb[0].mxu0 %v967
  %v2121 = vpop.f32.mrb[0].mxu0
  %v2122 = vadd.f32 %v370, %v2121
  %v2123 = vpop.f32.mrb[0].mxu0
  %v2124 = vadd.f32 %v374, %v2123
  %v2125 = vpop.f32.mrb[0].mxu0
  %v2126 = vadd.f32 %v370, %v2125
  %v2127 = vpop.f32.mrb[0].mxu0
  %v2128 = vadd.f32 %v374, %v2127
  %2129 = vmatprep.mubr.bf16.mxu0 %v978
  %2130 = vmatmul.mubr.bf16.gmra.mrb[0].mxu0 %v977
  %v2131 = vpop.f32.mrb[0].mxu0
  %v2132 = vadd.f32 %v370, %v2131
  %v2133 = vpop.f32.mrb[0].mxu0
  %v2134 = vadd.f32 %v374, %v2133
  %v2135 = vpop.f32.mrb[0].mxu0
  %v2136 = vadd.f32 %v370, %v2135
  %v2137 = vpop.f32.mrb[0].mxu0
  %v2138 = vadd.f32 %v374, %v2137
  %2139 = vmatprep.mubr.bf16.mxu0 %v988
  %2140 = vmatmul.mubr.bf16.gmra.mrb[0].mxu0 %v987
  %v2141 = vpop.f32.mrb[0].mxu0
  %v2142 = vadd.f32 %v370, %v2141
  %v2143 = vpop.f32.mrb[0].mxu0
  %v2144 = vadd.f32 %v374, %v2143
  %v2145 = vpop.f32.mrb[0].mxu0
  %v2146 = vadd.f32 %v370, %v2145
  %v2147 = vpop.f32.mrb[0].mxu0
  %v2148 = vadd.f32 %v374, %v2147
  %2149 = vmatprep.mubr.bf16.mxu0 %v998
  %2150 = vmatmul.mubr.bf16.gmra.mrb[0].mxu0 %v997
  %v2151 = vpop.f32.mrb[0].mxu0
  %v2152 = vadd.f32 %v370, %v2151
  %v2153 = vpop.f32.mrb[0].mxu0
  %v2154 = vadd.f32 %v374, %v2153
  %v2155 = vpop.f32.mrb[0].mxu0
  %v2156 = vadd.f32 %v370, %v2155
  %v2157 = vpop.f32.mrb[0].mxu0
  %v2158 = vadd.f32 %v374, %v2157
  %2159 = vmatprep.mubr.bf16.mxu0 %v1008
  %2160 = vmatmul.mubr.bf16.gmra.mrb[0].mxu0 %v1007
  %v2161 = vpop.f32.mrb[0].mxu0
  %v2162 = vadd.f32 %v370, %v2161
  %v2163 = vpop.f32.mrb[0].mxu0
  %v2164 = vadd.f32 %v374, %v2163
  %v2165 = vpop.f32.mrb[0].mxu0
  %v2166 = vadd.f32 %v370, %v2165
  %v2167 = vpop.f32.mrb[0].mxu0
  %v2168 = vadd.f32 %v374, %v2167
  %2169 = vdwg.mxu0
  %2170 = vmatprep.subr.bf16.mxu0 %v1690
  %2171 = vmatpush1.bf16.msra.mxu0 %v1689
  %2172 = vmatprep.subr.bf16.mxu0 %v1692
  %2173 = vmatpush1.bf16.msra.mxu0 %v1691
  %2174 = vmatprep.subr.bf16.mxu0 %v1694
  %2175 = vmatpush1.bf16.msra.mxu0 %v1693
  %2176 = vmatprep.subr.bf16.mxu0 %v1696
  %2177 = vmatpush1.bf16.msra.mxu0 %v1695
  %2178 = vmatprep.subr.bf16.mxu0 %v1698
  %2179 = vmatpush1.bf16.msra.mxu0 %v1697
  %2180 = vmatprep.subr.bf16.mxu0 %v1700
  %2181 = vmatpush1.bf16.msra.mxu0 %v1699
  %2182 = vmatprep.subr.bf16.mxu0 %v1702
  %2183 = vmatpush1.bf16.msra.mxu0 %v1701
  %2184 = vmatprep.subr.bf16.mxu0 %v1704
  %2185 = vmatpush1.bf16.msra.mxu0 %v1703
  %2186 = vmatprep.subr.bf16.mxu0 %v1706
  %2187 = vmatpush1.bf16.msra.mxu0 %v1705
  %2188 = vmatprep.subr.bf16.mxu0 %v1708
  %2189 = vmatpush1.bf16.msra.mxu0 %v1707
  %2190 = vmatprep.subr.bf16.mxu0 %v1710
  %2191 = vmatpush1.bf16.msra.mxu0 %v1709
  %2192 = vmatprep.subr.bf16.mxu0 %v1712
  %2193 = vmatpush1.bf16.msra.mxu0 %v1711
  %2194 = vmatprep.subr.bf16.mxu0 %v1714
  %2195 = vmatpush1.bf16.msra.mxu0 %v1713
  %2196 = vmatprep.subr.bf16.mxu0 %v1716
  %2197 = vmatpush1.bf16.msra.mxu0 %v1715
  %2198 = vmatprep.subr.bf16.mxu0 %v1718
  %2199 = vmatpush1.bf16.msra.mxu0 %v1717
  %2200 = vmatprep.subr.bf16.mxu0 %v1720
  %2201 = vmatpush1.bf16.msra.mxu0 %v1719
  %2202 = vmatprep.mubr.bf16.mxu0 %v860
  %2203 = vmatmul.mubr.bf16.gmra.mrb[0].mxu0 %v859
  %v2204 = vpop.f32.mrb[0].mxu0
  %v2205 = vadd.f32 %v2012, %v2204
  %v2206 = vpop.f32.mrb[0].mxu0
  %v2207 = vadd.f32 %v2014, %v2206
  %v2208 = vpop.f32.mrb[0].mxu0
  %v2209 = vadd.f32 %v2016, %v2208
  %v2210 = vpop.f32.mrb[0].mxu0
  %v2211 = vadd.f32 %v2018, %v2210
  %2212 = vmatprep.mubr.bf16.mxu0 %v870
  %2213 = vmatmul.mubr.bf16.gmra.mrb[0].mxu0 %v869
  %v2214 = vpop.f32.mrb[0].mxu0
  %v2215 = vadd.f32 %v2022, %v2214
  %v2216 = vpop.f32.mrb[0].mxu0
  %v2217 = vadd.f32 %v2024, %v2216
  %v2218 = vpop.f32.mrb[0].mxu0
  %v2219 = vadd.f32 %v2026, %v2218
  %v2220 = vpop.f32.mrb[0].mxu0
  %v2221 = vadd.f32 %v2028, %v2220
  %2222 = vmatprep.mubr.bf16.mxu0 %v880
  %2223 = vmatmul.mubr.bf16.gmra.mrb[0].mxu0 %v879
  %v2224 = vpop.f32.mrb[0].mxu0
  %v2225 = vadd.f32 %v2032, %v2224
  %v2226 = vpop.f32.mrb[0].mxu0
  %v2227 = vadd.f32 %v2034, %v2226
  %v2228 = vpop.f32.mrb[0].mxu0
  %v2229 = vadd.f32 %v2036, %v2228
  %v2230 = vpop.f32.mrb[0].mxu0
  %v2231 = vadd.f32 %v2038, %v2230
  %2232 = vmatprep.mubr.bf16.mxu0 %v890
  %2233 = vmatmul.mubr.bf16.gmra.mrb[0].mxu0 %v889
  %v2234 = vpop.f32.mrb[0].mxu0
  %v2235 = vadd.f32 %v2042, %v2234
  %v2236 = vpop.f32.mrb[0].mxu0
  %v2237 = vadd.f32 %v2044, %v2236
  %v2238 = vpop.f32.mrb[0].mxu0
  %v2239 = vadd.f32 %v2046, %v2238
  %v2240 = vpop.f32.mrb[0].mxu0
  %v2241 = vadd.f32 %v2048, %v2240
  %2242 = vmatprep.mubr.bf16.mxu0 %v900
  %2243 = vmatmul.mubr.bf16.gmra.mrb[0].mxu0 %v899
  %v2244 = vpop.f32.mrb[0].mxu0
  %v2245 = vadd.f32 %v2052, %v2244
  %v2246 = vpop.f32.mrb[0].mxu0
  %v2247 = vadd.f32 %v2054, %v2246
  %v2248 = vpop.f32.mrb[0].mxu0
  %v2249 = vadd.f32 %v2056, %v2248
  %v2250 = vpop.f32.mrb[0].mxu0
  %v2251 = vadd.f32 %v2058, %v2250
  %2252 = vmatprep.mubr.bf16.mxu0 %v910
  %2253 = vmatmul.mubr.bf16.gmra.mrb[0].mxu0 %v909
  %v2254 = vpop.f32.mrb[0].mxu0
  %v2255 = vadd.f32 %v2062, %v2254
  %v2256 = vpop.f32.mrb[0].mxu0
  %v2257 = vadd.f32 %v2064, %v2256
  %v2258 = vpop.f32.mrb[0].mxu0
  %v2259 = vadd.f32 %v2066, %v2258
  %v2260 = vpop.f32.mrb[0].mxu0
  %v2261 = vadd.f32 %v2068, %v2260
  %2262 = vmatprep.mubr.bf16.mxu0 %v920
  %2263 = vmatmul.mubr.bf16.gmra.mrb[0].mxu0 %v919
  %v2264 = vpop.f32.mrb[0].mxu0
  %v2265 = vadd.f32 %v2072, %v2264
  %v2266 = vpop.f32.mrb[0].mxu0
  %v2267 = vadd.f32 %v2074, %v2266
  %v2268 = vpop.f32.mrb[0].mxu0
  %v2269 = vadd.f32 %v2076, %v2268
  %v2270 = vpop.f32.mrb[0].mxu0
  %v2271 = vadd.f32 %v2078, %v2270
  %2272 = vmatprep.mubr.bf16.mxu0 %v930
  %2273 = vmatmul.mubr.bf16.gmra.mrb[0].mxu0 %v929
  %v2274 = vpop.f32.mrb[0].mxu0
  %v2275 = vadd.f32 %v2082, %v2274
  %v2276 = vpop.f32.mrb[0].mxu0
  %v2277 = vadd.f32 %v2084, %v2276
  %v2278 = vpop.f32.mrb[0].mxu0
  %v2279 = vadd.f32 %v2086, %v2278
  %v2280 = vpop.f32.mrb[0].mxu0
  %v2281 = vadd.f32 %v2088, %v2280
  %2282 = vmatprep.mubr.bf16.mxu0 %v940
  %2283 = vmatmul.mubr.bf16.gmra.mrb[0].mxu0 %v939
  %v2284 = vpop.f32.mrb[0].mxu0
  %v2285 = vadd.f32 %v2092, %v2284
  %v2286 = vpop.f32.mrb[0].mxu0
  %v2287 = vadd.f32 %v2094, %v2286
  %v2288 = vpop.f32.mrb[0].mxu0
  %v2289 = vadd.f32 %v2096, %v2288
  %v2290 = vpop.f32.mrb[0].mxu0
  %v2291 = vadd.f32 %v2098, %v2290
  %2292 = vmatprep.mubr.bf16.mxu0 %v950
  %2293 = vmatmul.mubr.bf16.gmra.mrb[0].mxu0 %v949
  %v2294 = vpop.f32.mrb[0].mxu0
  %v2295 = vadd.f32 %v2102, %v2294
  %v2296 = vpop.f32.mrb[0].mxu0
  %v2297 = vadd.f32 %v2104, %v2296
  %v2298 = vpop.f32.mrb[0].mxu0
  %v2299 = vadd.f32 %v2106, %v2298
  %v2300 = vpop.f32.mrb[0].mxu0
  %v2301 = vadd.f32 %v2108, %v2300
  %2302 = vmatprep.mubr.bf16.mxu0 %v960
  %2303 = vmatmul.mubr.bf16.gmra.mrb[0].mxu0 %v959
  %v2304 = vpop.f32.mrb[0].mxu0
  %v2305 = vadd.f32 %v2112, %v2304
  %v2306 = vpop.f32.mrb[0].mxu0
  %v2307 = vadd.f32 %v2114, %v2306
  %v2308 = vpop.f32.mrb[0].mxu0
  %v2309 = vadd.f32 %v2116, %v2308
  %v2310 = vpop.f32.mrb[0].mxu0
  %v2311 = vadd.f32 %v2118, %v2310
  %2312 = vmatprep.mubr.bf16.mxu0 %v970
  %2313 = vmatmul.mubr.bf16.gmra.mrb[0].mxu0 %v969
  %v2314 = vpop.f32.mrb[0].mxu0
  %v2315 = vadd.f32 %v2122, %v2314
  %v2316 = vpop.f32.mrb[0].mxu0
  %v2317 = vadd.f32 %v2124, %v2316
  %v2318 = vpop.f32.mrb[0].mxu0
  %v2319 = vadd.f32 %v2126, %v2318
  %v2320 = vpop.f32.mrb[0].mxu0
  %v2321 = vadd.f32 %v2128, %v2320
  %2322 = vmatprep.mubr.bf16.mxu0 %v980
  %2323 = vmatmul.mubr.bf16.gmra.mrb[0].mxu0 %v979
  %v2324 = vpop.f32.mrb[0].mxu0
  %v2325 = vadd.f32 %v2132, %v2324
  %v2326 = vpop.f32.mrb[0].mxu0
  %v2327 = vadd.f32 %v2134, %v2326
  %v2328 = vpop.f32.mrb[0].mxu0
  %v2329 = vadd.f32 %v2136, %v2328
  %v2330 = vpop.f32.mrb[0].mxu0
  %v2331 = vadd.f32 %v2138, %v2330
  %2332 = vmatprep.mubr.bf16.mxu0 %v990
  %2333 = vmatmul.mubr.bf16.gmra.mrb[0].mxu0 %v989
  %v2334 = vpop.f32.mrb[0].mxu0
  %v2335 = vadd.f32 %v2142, %v2334
  %v2336 = vpop.f32.mrb[0].mxu0
  %v2337 = vadd.f32 %v2144, %v2336
  %v2338 = vpop.f32.mrb[0].mxu0
  %v2339 = vadd.f32 %v2146, %v2338
  %v2340 = vpop.f32.mrb[0].mxu0
  %v2341 = vadd.f32 %v2148, %v2340
  %2342 = vmatprep.mubr.bf16.mxu0 %v1000
  %2343 = vmatmul.mubr.bf16.gmra.mrb[0].mxu0 %v999
  %v2344 = vpop.f32.mrb[0].mxu0
  %v2345 = vadd.f32 %v2152, %v2344
  %v2346 = vpop.f32.mrb[0].mxu0
  %v2347 = vadd.f32 %v2154, %v2346
  %v2348 = vpop.f32.mrb[0].mxu0
  %v2349 = vadd.f32 %v2156, %v2348
  %v2350 = vpop.f32.mrb[0].mxu0
  %v2351 = vadd.f32 %v2158, %v2350
  %2352 = vmatprep.mubr.bf16.mxu0 %v1010
  %2353 = vmatmul.mubr.bf16.gmra.mrb[0].mxu0 %v1009
  %v2354 = vpop.f32.mrb[0].mxu0
  %v2355 = vadd.f32 %v2162, %v2354
  %v2356 = vpop.f32.mrb[0].mxu0
  %v2357 = vadd.f32 %v2164, %v2356
  %v2358 = vpop.f32.mrb[0].mxu0
  %v2359 = vadd.f32 %v2166, %v2358
  %v2360 = vpop.f32.mrb[0].mxu0
  %v2361 = vadd.f32 %v2168, %v2360
  %2362 = vdwg.mxu0
  %2363 = vmatprep.subr.bf16.mxu0 %v1722
  %2364 = vmatpush1.bf16.msra.mxu0 %v1721
  %2365 = vmatprep.subr.bf16.mxu0 %v1724
  %2366 = vmatpush1.bf16.msra.mxu0 %v1723
  %2367 = vmatprep.subr.bf16.mxu0 %v1726
  %2368 = vmatpush1.bf16.msra.mxu0 %v1725
  %2369 = vmatprep.subr.bf16.mxu0 %v1728
  %2370 = vmatpush1.bf16.msra.mxu0 %v1727
  %2371 = vmatprep.subr.bf16.mxu0 %v1730
  %2372 = vmatpush1.bf16.msra.mxu0 %v1729
  %2373 = vmatprep.subr.bf16.mxu0 %v1732
  %2374 = vmatpush1.bf16.msra.mxu0 %v1731
  %2375 = vmatprep.subr.bf16.mxu0 %v1734
  %2376 = vmatpush1.bf16.msra.mxu0 %v1733
  %2377 = vmatprep.subr.bf16.mxu0 %v1736
  %2378 = vmatpush1.bf16.msra.mxu0 %v1735
  %2379 = vmatprep.subr.bf16.mxu0 %v1738
  %2380 = vmatpush1.bf16.msra.mxu0 %v1737
  %2381 = vmatprep.subr.bf16.mxu0 %v1740
  %2382 = vmatpush1.bf16.msra.mxu0 %v1739
  %2383 = vmatprep.subr.bf16.mxu0 %v1742
  %2384 = vmatpush1.bf16.msra.mxu0 %v1741
  %2385 = vmatprep.subr.bf16.mxu0 %v1744
  %2386 = vmatpush1.bf16.msra.mxu0 %v1743
  %2387 = vmatprep.subr.bf16.mxu0 %v1746
  %2388 = vmatpush1.bf16.msra.mxu0 %v1745
  %2389 = vmatprep.subr.bf16.mxu0 %v1748
  %2390 = vmatpush1.bf16.msra.mxu0 %v1747
  %2391 = vmatprep.subr.bf16.mxu0 %v1750
  %2392 = vmatpush1.bf16.msra.mxu0 %v1749
  %2393 = vmatprep.subr.bf16.mxu0 %v1752
  %2394 = vmatpush1.bf16.msra.mxu0 %v1751
  %2395 = vmatprep.mubr.bf16.mxu0 %v862
  %2396 = vmatmul.mubr.bf16.gmra.mrb[0].mxu0 %v861
  %v2397 = vpop.f32.mrb[0].mxu0
  %v2398 = vadd.f32 %v2205, %v2397
  %v2399 = vpop.f32.mrb[0].mxu0
  %v2400 = vadd.f32 %v2207, %v2399
  %v2401 = vpop.f32.mrb[0].mxu0
  %v2402 = vadd.f32 %v2209, %v2401
  %v2403 = vpop.f32.mrb[0].mxu0
  %v2404 = vadd.f32 %v2211, %v2403
  %2405 = vmatprep.mubr.bf16.mxu0 %v872
  %2406 = vmatmul.mubr.bf16.gmra.mrb[0].mxu0 %v871
  %v2407 = vpop.f32.mrb[0].mxu0
  %v2408 = vadd.f32 %v2215, %v2407
  %v2409 = vpop.f32.mrb[0].mxu0
  %v2410 = vadd.f32 %v2217, %v2409
  %v2411 = vpop.f32.mrb[0].mxu0
  %v2412 = vadd.f32 %v2219, %v2411
  %v2413 = vpop.f32.mrb[0].mxu0
  %v2414 = vadd.f32 %v2221, %v2413
  %2415 = vmatprep.mubr.bf16.mxu0 %v882
  %2416 = vmatmul.mubr.bf16.gmra.mrb[0].mxu0 %v881
  %v2417 = vpop.f32.mrb[0].mxu0
  %v2418 = vadd.f32 %v2225, %v2417
  %v2419 = vpop.f32.mrb[0].mxu0
  %v2420 = vadd.f32 %v2227, %v2419
  %v2421 = vpop.f32.mrb[0].mxu0
  %v2422 = vadd.f32 %v2229, %v2421
  %v2423 = vpop.f32.mrb[0].mxu0
  %v2424 = vadd.f32 %v2231, %v2423
  %2425 = vmatprep.mubr.bf16.mxu0 %v892
  %2426 = vmatmul.mubr.bf16.gmra.mrb[0].mxu0 %v891
  %v2427 = vpop.f32.mrb[0].mxu0
  %v2428 = vadd.f32 %v2235, %v2427
  %v2429 = vpop.f32.mrb[0].mxu0
  %v2430 = vadd.f32 %v2237, %v2429
  %v2431 = vpop.f32.mrb[0].mxu0
  %v2432 = vadd.f32 %v2239, %v2431
  %v2433 = vpop.f32.mrb[0].mxu0
  %v2434 = vadd.f32 %v2241, %v2433
  %2435 = vmatprep.mubr.bf16.mxu0 %v902
  %2436 = vmatmul.mubr.bf16.gmra.mrb[0].mxu0 %v901
  %v2437 = vpop.f32.mrb[0].mxu0
  %v2438 = vadd.f32 %v2245, %v2437
  %v2439 = vpop.f32.mrb[0].mxu0
  %v2440 = vadd.f32 %v2247, %v2439
  %v2441 = vpop.f32.mrb[0].mxu0
  %v2442 = vadd.f32 %v2249, %v2441
  %v2443 = vpop.f32.mrb[0].mxu0
  %v2444 = vadd.f32 %v2251, %v2443
  %2445 = vmatprep.mubr.bf16.mxu0 %v912
  %2446 = vmatmul.mubr.bf16.gmra.mrb[0].mxu0 %v911
  %v2447 = vpop.f32.mrb[0].mxu0
  %v2448 = vadd.f32 %v2255, %v2447
  %v2449 = vpop.f32.mrb[0].mxu0
  %v2450 = vadd.f32 %v2257, %v2449
  %v2451 = vpop.f32.mrb[0].mxu0
  %v2452 = vadd.f32 %v2259, %v2451
  %v2453 = vpop.f32.mrb[0].mxu0
  %v2454 = vadd.f32 %v2261, %v2453
  %2455 = vmatprep.mubr.bf16.mxu0 %v922
  %2456 = vmatmul.mubr.bf16.gmra.mrb[0].mxu0 %v921
  %v2457 = vpop.f32.mrb[0].mxu0
  %v2458 = vadd.f32 %v2265, %v2457
  %v2459 = vpop.f32.mrb[0].mxu0
  %v2460 = vadd.f32 %v2267, %v2459
  %v2461 = vpop.f32.mrb[0].mxu0
  %v2462 = vadd.f32 %v2269, %v2461
  %v2463 = vpop.f32.mrb[0].mxu0
  %v2464 = vadd.f32 %v2271, %v2463
  %2465 = vmatprep.mubr.bf16.mxu0 %v932
  %2466 = vmatmul.mubr.bf16.gmra.mrb[0].mxu0 %v931
  %v2467 = vpop.f32.mrb[0].mxu0
  %v2468 = vadd.f32 %v2275, %v2467
  %v2469 = vpop.f32.mrb[0].mxu0
  %v2470 = vadd.f32 %v2277, %v2469
  %v2471 = vpop.f32.mrb[0].mxu0
  %v2472 = vadd.f32 %v2279, %v2471
  %v2473 = vpop.f32.mrb[0].mxu0
  %v2474 = vadd.f32 %v2281, %v2473
  %2475 = vmatprep.mubr.bf16.mxu0 %v942
  %2476 = vmatmul.mubr.bf16.gmra.mrb[0].mxu0 %v941
  %v2477 = vpop.f32.mrb[0].mxu0
  %v2478 = vadd.f32 %v2285, %v2477
  %v2479 = vpop.f32.mrb[0].mxu0
  %v2480 = vadd.f32 %v2287, %v2479
  %v2481 = vpop.f32.mrb[0].mxu0
  %v2482 = vadd.f32 %v2289, %v2481
  %v2483 = vpop.f32.mrb[0].mxu0
  %v2484 = vadd.f32 %v2291, %v2483
  %2485 = vmatprep.mubr.bf16.mxu0 %v952
  %2486 = vmatmul.mubr.bf16.gmra.mrb[0].mxu0 %v951
  %v2487 = vpop.f32.mrb[0].mxu0
  %v2488 = vadd.f32 %v2295, %v2487
  %v2489 = vpop.f32.mrb[0].mxu0
  %v2490 = vadd.f32 %v2297, %v2489
  %v2491 = vpop.f32.mrb[0].mxu0
  %v2492 = vadd.f32 %v2299, %v2491
  %v2493 = vpop.f32.mrb[0].mxu0
  %v2494 = vadd.f32 %v2301, %v2493
  %2495 = vmatprep.mubr.bf16.mxu0 %v962
  %2496 = vmatmul.mubr.bf16.gmra.mrb[0].mxu0 %v961
  %v2497 = vpop.f32.mrb[0].mxu0
  %v2498 = vadd.f32 %v2305, %v2497
  %v2499 = vpop.f32.mrb[0].mxu0
  %v2500 = vadd.f32 %v2307, %v2499
  %v2501 = vpop.f32.mrb[0].mxu0
  %v2502 = vadd.f32 %v2309, %v2501
  %v2503 = vpop.f32.mrb[0].mxu0
  %v2504 = vadd.f32 %v2311, %v2503
  %2505 = vmatprep.mubr.bf16.mxu0 %v972
  %2506 = vmatmul.mubr.bf16.gmra.mrb[0].mxu0 %v971
  %v2507 = vpop.f32.mrb[0].mxu0
  %v2508 = vadd.f32 %v2315, %v2507
  %v2509 = vpop.f32.mrb[0].mxu0
  %v2510 = vadd.f32 %v2317, %v2509
  %v2511 = vpop.f32.mrb[0].mxu0
  %v2512 = vadd.f32 %v2319, %v2511
  %v2513 = vpop.f32.mrb[0].mxu0
  %v2514 = vadd.f32 %v2321, %v2513
  %2515 = vmatprep.mubr.bf16.mxu0 %v982
  %2516 = vmatmul.mubr.bf16.gmra.mrb[0].mxu0 %v981
  %v2517 = vpop.f32.mrb[0].mxu0
  %v2518 = vadd.f32 %v2325, %v2517
  %v2519 = vpop.f32.mrb[0].mxu0
  %v2520 = vadd.f32 %v2327, %v2519
  %v2521 = vpop.f32.mrb[0].mxu0
  %v2522 = vadd.f32 %v2329, %v2521
  %v2523 = vpop.f32.mrb[0].mxu0
  %v2524 = vadd.f32 %v2331, %v2523
  %2525 = vmatprep.mubr.bf16.mxu0 %v992
  %2526 = vmatmul.mubr.bf16.gmra.mrb[0].mxu0 %v991
  %v2527 = vpop.f32.mrb[0].mxu0
  %v2528 = vadd.f32 %v2335, %v2527
  %v2529 = vpop.f32.mrb[0].mxu0
  %v2530 = vadd.f32 %v2337, %v2529
  %v2531 = vpop.f32.mrb[0].mxu0
  %v2532 = vadd.f32 %v2339, %v2531
  %v2533 = vpop.f32.mrb[0].mxu0
  %v2534 = vadd.f32 %v2341, %v2533
  %2535 = vmatprep.mubr.bf16.mxu0 %v1002
  %2536 = vmatmul.mubr.bf16.gmra.mrb[0].mxu0 %v1001
  %v2537 = vpop.f32.mrb[0].mxu0
  %v2538 = vadd.f32 %v2345, %v2537
  %v2539 = vpop.f32.mrb[0].mxu0
  %v2540 = vadd.f32 %v2347, %v2539
  %v2541 = vpop.f32.mrb[0].mxu0
  %v2542 = vadd.f32 %v2349, %v2541
  %v2543 = vpop.f32.mrb[0].mxu0
  %v2544 = vadd.f32 %v2351, %v2543
  %2545 = vmatprep.mubr.bf16.mxu0 %v1012
  %2546 = vmatmul.mubr.bf16.gmra.mrb[0].mxu0 %v1011
  %v2547 = vpop.f32.mrb[0].mxu0
  %v2548 = vadd.f32 %v2355, %v2547
  %v2549 = vpop.f32.mrb[0].mxu0
  %v2550 = vadd.f32 %v2357, %v2549
  %v2551 = vpop.f32.mrb[0].mxu0
  %v2552 = vadd.f32 %v2359, %v2551
  %v2553 = vpop.f32.mrb[0].mxu0
  %v2554 = vadd.f32 %v2361, %v2553
  %2555 = vdwg.mxu0
  %2556 = vmatprep.subr.bf16.mxu0 %v1754
  %2557 = vmatpush1.bf16.msra.mxu0 %v1753
  %2558 = vmatprep.subr.bf16.mxu0 %v1756
  %2559 = vmatpush1.bf16.msra.mxu0 %v1755
  %2560 = vmatprep.subr.bf16.mxu0 %v1758
  %2561 = vmatpush1.bf16.msra.mxu0 %v1757
  %2562 = vmatprep.subr.bf16.mxu0 %v1760
  %2563 = vmatpush1.bf16.msra.mxu0 %v1759
  %2564 = vmatprep.subr.bf16.mxu0 %v1762
  %2565 = vmatpush1.bf16.msra.mxu0 %v1761
  %2566 = vmatprep.subr.bf16.mxu0 %v1764
  %2567 = vmatpush1.bf16.msra.mxu0 %v1763
  %2568 = vmatprep.subr.bf16.mxu0 %v1766
  %2569 = vmatpush1.bf16.msra.mxu0 %v1765
  %2570 = vmatprep.subr.bf16.mxu0 %v1768
  %2571 = vmatpush1.bf16.msra.mxu0 %v1767
  %2572 = vmatprep.subr.bf16.mxu0 %v1770
  %2573 = vmatpush1.bf16.msra.mxu0 %v1769
  %2574 = vmatprep.subr.bf16.mxu0 %v1772
  %2575 = vmatpush1.bf16.msra.mxu0 %v1771
  %2576 = vmatprep.subr.bf16.mxu0 %v1774
  %2577 = vmatpush1.bf16.msra.mxu0 %v1773
  %2578 = vmatprep.subr.bf16.mxu0 %v1776
  %2579 = vmatpush1.bf16.msra.mxu0 %v1775
  %2580 = vmatprep.subr.bf16.mxu0 %v1778
  %2581 = vmatpush1.bf16.msra.mxu0 %v1777
  %2582 = vmatprep.subr.bf16.mxu0 %v1780
  %2583 = vmatpush1.bf16.msra.mxu0 %v1779
  %2584 = vmatprep.subr.bf16.mxu0 %v1782
  %2585 = vmatpush1.bf16.msra.mxu0 %v1781
  %2586 = vmatprep.subr.bf16.mxu0 %v1784
  %2587 = vmatpush1.bf16.msra.mxu0 %v1783
  %2588 = vmatprep.mubr.bf16.mxu0 %v864
  %2589 = vmatmul.mubr.bf16.gmra.mrb[0].mxu0 %v863
  %v2590 = vpop.f32.mrb[0].mxu0
  %v2591 = vadd.f32 %v2398, %v2590
  %v2592 = vpop.f32.mrb[0].mxu0
  %v2593 = vadd.f32 %v2400, %v2592
  %v2594 = vpop.f32.mrb[0].mxu0
  %v2595 = vadd.f32 %v2402, %v2594
  %v2596 = vpop.f32.mrb[0].mxu0
  %v2597 = vadd.f32 %v2404, %v2596
  %2598 = vmatprep.mubr.bf16.mxu0 %v874
  %2599 = vmatmul.mubr.bf16.gmra.mrb[0].mxu0 %v873
  %v2600 = vpop.f32.mrb[0].mxu0
  %v2601 = vadd.f32 %v2408, %v2600
  %v2602 = vpop.f32.mrb[0].mxu0
  %v2603 = vadd.f32 %v2410, %v2602
  %v2604 = vpop.f32.mrb[0].mxu0
  %v2605 = vadd.f32 %v2412, %v2604
  %v2606 = vpop.f32.mrb[0].mxu0
  %v2607 = vadd.f32 %v2414, %v2606
  %2608 = vmatprep.mubr.bf16.mxu0 %v884
  %2609 = vmatmul.mubr.bf16.gmra.mrb[0].mxu0 %v883
  %v2610 = vpop.f32.mrb[0].mxu0
  %v2611 = vadd.f32 %v2418, %v2610
  %v2612 = vpop.f32.mrb[0].mxu0
  %v2613 = vadd.f32 %v2420, %v2612
  %v2614 = vpop.f32.mrb[0].mxu0
  %v2615 = vadd.f32 %v2422, %v2614
  %v2616 = vpop.f32.mrb[0].mxu0
  %v2617 = vadd.f32 %v2424, %v2616
  %2618 = vmatprep.mubr.bf16.mxu0 %v894
  %2619 = vmatmul.mubr.bf16.gmra.mrb[0].mxu0 %v893
  %v2620 = vpop.f32.mrb[0].mxu0
  %v2621 = vadd.f32 %v2428, %v2620
  %v2622 = vpop.f32.mrb[0].mxu0
  %v2623 = vadd.f32 %v2430, %v2622
  %v2624 = vpop.f32.mrb[0].mxu0
  %v2625 = vadd.f32 %v2432, %v2624
  %v2626 = vpop.f32.mrb[0].mxu0
  %v2627 = vadd.f32 %v2434, %v2626
  %2628 = vmatprep.mubr.bf16.mxu0 %v904
  %2629 = vmatmul.mubr.bf16.gmra.mrb[0].mxu0 %v903
  %v2630 = vpop.f32.mrb[0].mxu0
  %v2631 = vadd.f32 %v2438, %v2630
  %v2632 = vpop.f32.mrb[0].mxu0
  %v2633 = vadd.f32 %v2440, %v2632
  %v2634 = vpop.f32.mrb[0].mxu0
  %v2635 = vadd.f32 %v2442, %v2634
  %v2636 = vpop.f32.mrb[0].mxu0
  %v2637 = vadd.f32 %v2444, %v2636
  %2638 = vmatprep.mubr.bf16.mxu0 %v914
  %2639 = vmatmul.mubr.bf16.gmra.mrb[0].mxu0 %v913
  %v2640 = vpop.f32.mrb[0].mxu0
  %v2641 = vadd.f32 %v2448, %v2640
  %v2642 = vpop.f32.mrb[0].mxu0
  %v2643 = vadd.f32 %v2450, %v2642
  %v2644 = vpop.f32.mrb[0].mxu0
  %v2645 = vadd.f32 %v2452, %v2644
  %v2646 = vpop.f32.mrb[0].mxu0
  %v2647 = vadd.f32 %v2454, %v2646
  %2648 = vmatprep.mubr.bf16.mxu0 %v924
  %2649 = vmatmul.mubr.bf16.gmra.mrb[0].mxu0 %v923
  %v2650 = vpop.f32.mrb[0].mxu0
  %v2651 = vadd.f32 %v2458, %v2650
  %v2652 = vpop.f32.mrb[0].mxu0
  %v2653 = vadd.f32 %v2460, %v2652
  %v2654 = vpop.f32.mrb[0].mxu0
  %v2655 = vadd.f32 %v2462, %v2654
  %v2656 = vpop.f32.mrb[0].mxu0
  %v2657 = vadd.f32 %v2464, %v2656
  %2658 = vmatprep.mubr.bf16.mxu0 %v934
  %2659 = vmatmul.mubr.bf16.gmra.mrb[0].mxu0 %v933
  %v2660 = vpop.f32.mrb[0].mxu0
  %v2661 = vadd.f32 %v2468, %v2660
  %v2662 = vpop.f32.mrb[0].mxu0
  %v2663 = vadd.f32 %v2470, %v2662
  %v2664 = vpop.f32.mrb[0].mxu0
  %v2665 = vadd.f32 %v2472, %v2664
  %v2666 = vpop.f32.mrb[0].mxu0
  %v2667 = vadd.f32 %v2474, %v2666
  %2668 = vmatprep.mubr.bf16.mxu0 %v944
  %2669 = vmatmul.mubr.bf16.gmra.mrb[0].mxu0 %v943
  %v2670 = vpop.f32.mrb[0].mxu0
  %v2671 = vadd.f32 %v2478, %v2670
  %v2672 = vpop.f32.mrb[0].mxu0
  %v2673 = vadd.f32 %v2480, %v2672
  %v2674 = vpop.f32.mrb[0].mxu0
  %v2675 = vadd.f32 %v2482, %v2674
  %v2676 = vpop.f32.mrb[0].mxu0
  %v2677 = vadd.f32 %v2484, %v2676
  %2678 = vmatprep.mubr.bf16.mxu0 %v954
  %2679 = vmatmul.mubr.bf16.gmra.mrb[0].mxu0 %v953
  %v2680 = vpop.f32.mrb[0].mxu0
  %v2681 = vadd.f32 %v2488, %v2680
  %v2682 = vpop.f32.mrb[0].mxu0
  %v2683 = vadd.f32 %v2490, %v2682
  %v2684 = vpop.f32.mrb[0].mxu0
  %v2685 = vadd.f32 %v2492, %v2684
  %v2686 = vpop.f32.mrb[0].mxu0
  %v2687 = vadd.f32 %v2494, %v2686
  %2688 = vmatprep.mubr.bf16.mxu0 %v964
  %2689 = vmatmul.mubr.bf16.gmra.mrb[0].mxu0 %v963
  %v2690 = vpop.f32.mrb[0].mxu0
  %v2691 = vadd.f32 %v2498, %v2690
  %v2692 = vpop.f32.mrb[0].mxu0
  %v2693 = vadd.f32 %v2500, %v2692
  %v2694 = vpop.f32.mrb[0].mxu0
  %v2695 = vadd.f32 %v2502, %v2694
  %v2696 = vpop.f32.mrb[0].mxu0
  %v2697 = vadd.f32 %v2504, %v2696
  %2698 = vmatprep.mubr.bf16.mxu0 %v974
  %2699 = vmatmul.mubr.bf16.gmra.mrb[0].mxu0 %v973
  %v2700 = vpop.f32.mrb[0].mxu0
  %v2701 = vadd.f32 %v2508, %v2700
  %v2702 = vpop.f32.mrb[0].mxu0
  %v2703 = vadd.f32 %v2510, %v2702
  %v2704 = vpop.f32.mrb[0].mxu0
  %v2705 = vadd.f32 %v2512, %v2704
  %v2706 = vpop.f32.mrb[0].mxu0
  %v2707 = vadd.f32 %v2514, %v2706
  %2708 = vmatprep.mubr.bf16.mxu0 %v984
  %2709 = vmatmul.mubr.bf16.gmra.mrb[0].mxu0 %v983
  %v2710 = vpop.f32.mrb[0].mxu0
  %v2711 = vadd.f32 %v2518, %v2710
  %v2712 = vpop.f32.mrb[0].mxu0
  %v2713 = vadd.f32 %v2520, %v2712
  %v2714 = vpop.f32.mrb[0].mxu0
  %v2715 = vadd.f32 %v2522, %v2714
  %v2716 = vpop.f32.mrb[0].mxu0
  %v2717 = vadd.f32 %v2524, %v2716
  %2718 = vmatprep.mubr.bf16.mxu0 %v994
  %2719 = vmatmul.mubr.bf16.gmra.mrb[0].mxu0 %v993
  %v2720 = vpop.f32.mrb[0].mxu0
  %v2721 = vadd.f32 %v2528, %v2720
  %v2722 = vpop.f32.mrb[0].mxu0
  %v2723 = vadd.f32 %v2530, %v2722
  %v2724 = vpop.f32.mrb[0].mxu0
  %v2725 = vadd.f32 %v2532, %v2724
  %v2726 = vpop.f32.mrb[0].mxu0
  %v2727 = vadd.f32 %v2534, %v2726
  %2728 = vmatprep.mubr.bf16.mxu0 %v1004
  %2729 = vmatmul.mubr.bf16.gmra.mrb[0].mxu0 %v1003
  %v2730 = vpop.f32.mrb[0].mxu0
  %v2731 = vadd.f32 %v2538, %v2730
  %v2732 = vpop.f32.mrb[0].mxu0
  %v2733 = vadd.f32 %v2540, %v2732
  %v2734 = vpop.f32.mrb[0].mxu0
  %v2735 = vadd.f32 %v2542, %v2734
  %v2736 = vpop.f32.mrb[0].mxu0
  %v2737 = vadd.f32 %v2544, %v2736
  %2738 = vmatprep.mubr.bf16.mxu0 %v1014
  %2739 = vmatmul.mubr.bf16.gmra.mrb[0].mxu0 %v1013
  %v2740 = vpop.f32.mrb[0].mxu0
  %v2741 = vadd.f32 %v2548, %v2740
  %v2742 = vpop.f32.mrb[0].mxu0
  %v2743 = vadd.f32 %v2550, %v2742
  %v2744 = vpop.f32.mrb[0].mxu0
  %v2745 = vadd.f32 %v2552, %v2744
  %v2746 = vpop.f32.mrb[0].mxu0
  %v2747 = vadd.f32 %v2554, %v2746
  %2748 = vdwg.mxu0
  %2749 = vmatprep.subr.bf16.mxu0 %v1786
  %2750 = vmatpush1.bf16.msra.mxu0 %v1785
  %2751 = vmatprep.subr.bf16.mxu0 %v1788
  %2752 = vmatpush1.bf16.msra.mxu0 %v1787
  %2753 = vmatprep.subr.bf16.mxu0 %v1790
  %2754 = vmatpush1.bf16.msra.mxu0 %v1789
  %2755 = vmatprep.subr.bf16.mxu0 %v1792
  %2756 = vmatpush1.bf16.msra.mxu0 %v1791
  %2757 = vmatprep.subr.bf16.mxu0 %v1794
  %2758 = vmatpush1.bf16.msra.mxu0 %v1793
  %2759 = vmatprep.subr.bf16.mxu0 %v1796
  %2760 = vmatpush1.bf16.msra.mxu0 %v1795
  %2761 = vmatprep.subr.bf16.mxu0 %v1798
  %2762 = vmatpush1.bf16.msra.mxu0 %v1797
  %2763 = vmatprep.subr.bf16.mxu0 %v1800
  %2764 = vmatpush1.bf16.msra.mxu0 %v1799
  %2765 = vmatprep.subr.bf16.mxu0 %v1802
  %2766 = vmatpush1.bf16.msra.mxu0 %v1801
  %2767 = vmatprep.subr.bf16.mxu0 %v1804
  %2768 = vmatpush1.bf16.msra.mxu0 %v1803
  %2769 = vmatprep.subr.bf16.mxu0 %v1806
  %2770 = vmatpush1.bf16.msra.mxu0 %v1805
  %2771 = vmatprep.subr.bf16.mxu0 %v1808
  %2772 = vmatpush1.bf16.msra.mxu0 %v1807
  %2773 = vmatprep.subr.bf16.mxu0 %v1810
  %2774 = vmatpush1.bf16.msra.mxu0 %v1809
  %2775 = vmatprep.subr.bf16.mxu0 %v1812
  %2776 = vmatpush1.bf16.msra.mxu0 %v1811
  %2777 = vmatprep.subr.bf16.mxu0 %v1814
  %2778 = vmatpush1.bf16.msra.mxu0 %v1813
  %2779 = vmatprep.subr.bf16.mxu0 %v1816
  %2780 = vmatpush1.bf16.msra.mxu0 %v1815
  %2781 = vmatprep.mubr.bf16.mxu0 %v866
  %2782 = vmatmul.mubr.bf16.gmra.mrb[0].mxu0 %v865
  %v2783 = vpop.f32.mrb[0].mxu0
  %v2784 = vadd.f32 %v2591, %v2783
  %v2785 = vpop.f32.mrb[0].mxu0
  %v2786 = vadd.f32 %v2593, %v2785
  %v2787 = vpop.f32.mrb[0].mxu0
  %v2788 = vadd.f32 %v2595, %v2787
  %v2789 = vpop.f32.mrb[0].mxu0
  %v2790 = vadd.f32 %v2597, %v2789
  %2791 = vmatprep.mubr.bf16.mxu0 %v876
  %2792 = vmatmul.mubr.bf16.gmra.mrb[0].mxu0 %v875
  %v2793 = vpop.f32.mrb[0].mxu0
  %v2794 = vadd.f32 %v2601, %v2793
  %v2795 = vpop.f32.mrb[0].mxu0
  %v2796 = vadd.f32 %v2603, %v2795
  %v2797 = vpop.f32.mrb[0].mxu0
  %v2798 = vadd.f32 %v2605, %v2797
  %v2799 = vpop.f32.mrb[0].mxu0
  %v2800 = vadd.f32 %v2607, %v2799
  %2801 = vmatprep.mubr.bf16.mxu0 %v886
  %2802 = vmatmul.mubr.bf16.gmra.mrb[0].mxu0 %v885
  %v2803 = vpop.f32.mrb[0].mxu0
  %v2804 = vadd.f32 %v2611, %v2803
  %v2805 = vpop.f32.mrb[0].mxu0
  %v2806 = vadd.f32 %v2613, %v2805
  %v2807 = vpop.f32.mrb[0].mxu0
  %v2808 = vadd.f32 %v2615, %v2807
  %v2809 = vpop.f32.mrb[0].mxu0
  %v2810 = vadd.f32 %v2617, %v2809
  %2811 = vmatprep.mubr.bf16.mxu0 %v896
  %2812 = vmatmul.mubr.bf16.gmra.mrb[0].mxu0 %v895
  %v2813 = vpop.f32.mrb[0].mxu0
  %v2814 = vadd.f32 %v2621, %v2813
  %v2815 = vpop.f32.mrb[0].mxu0
  %v2816 = vadd.f32 %v2623, %v2815
  %v2817 = vpop.f32.mrb[0].mxu0
  %v2818 = vadd.f32 %v2625, %v2817
  %v2819 = vpop.f32.mrb[0].mxu0
  %v2820 = vadd.f32 %v2627, %v2819
  %2821 = vmatprep.mubr.bf16.mxu0 %v906
  %2822 = vmatmul.mubr.bf16.gmra.mrb[0].mxu0 %v905
  %v2823 = vpop.f32.mrb[0].mxu0
  %v2824 = vadd.f32 %v2631, %v2823
  %v2825 = vpop.f32.mrb[0].mxu0
  %v2826 = vadd.f32 %v2633, %v2825
  %v2827 = vpop.f32.mrb[0].mxu0
  %v2828 = vadd.f32 %v2635, %v2827
  %v2829 = vpop.f32.mrb[0].mxu0
  %v2830 = vadd.f32 %v2637, %v2829
  %2831 = vmatprep.mubr.bf16.mxu0 %v916
  %2832 = vmatmul.mubr.bf16.gmra.mrb[0].mxu0 %v915
  %v2833 = vpop.f32.mrb[0].mxu0
  %v2834 = vadd.f32 %v2641, %v2833
  %v2835 = vpop.f32.mrb[0].mxu0
  %v2836 = vadd.f32 %v2643, %v2835
  %v2837 = vpop.f32.mrb[0].mxu0
  %v2838 = vadd.f32 %v2645, %v2837
  %v2839 = vpop.f32.mrb[0].mxu0
  %v2840 = vadd.f32 %v2647, %v2839
  %2841 = vmatprep.mubr.bf16.mxu0 %v926
  %2842 = vmatmul.mubr.bf16.gmra.mrb[0].mxu0 %v925
  %v2843 = vpop.f32.mrb[0].mxu0
  %v2844 = vadd.f32 %v2651, %v2843
  %v2845 = vpop.f32.mrb[0].mxu0
  %v2846 = vadd.f32 %v2653, %v2845
  %v2847 = vpop.f32.mrb[0].mxu0
  %v2848 = vadd.f32 %v2655, %v2847
  %v2849 = vpop.f32.mrb[0].mxu0
  %v2850 = vadd.f32 %v2657, %v2849
  %2851 = vmatprep.mubr.bf16.mxu0 %v936
  %2852 = vmatmul.mubr.bf16.gmra.mrb[0].mxu0 %v935
  %v2853 = vpop.f32.mrb[0].mxu0
  %v2854 = vadd.f32 %v2661, %v2853
  %v2855 = vpop.f32.mrb[0].mxu0
  %v2856 = vadd.f32 %v2663, %v2855
  %v2857 = vpop.f32.mrb[0].mxu0
  %v2858 = vadd.f32 %v2665, %v2857
  %v2859 = vpop.f32.mrb[0].mxu0
  %v2860 = vadd.f32 %v2667, %v2859
  %2861 = vmatprep.mubr.bf16.mxu0 %v946
  %2862 = vmatmul.mubr.bf16.gmra.mrb[0].mxu0 %v945
  %v2863 = vpop.f32.mrb[0].mxu0
  %v2864 = vadd.f32 %v2671, %v2863
  %v2865 = vpop.f32.mrb[0].mxu0
  %v2866 = vadd.f32 %v2673, %v2865
  %v2867 = vpop.f32.mrb[0].mxu0
  %v2868 = vadd.f32 %v2675, %v2867
  %v2869 = vpop.f32.mrb[0].mxu0
  %v2870 = vadd.f32 %v2677, %v2869
  %2871 = vmatprep.mubr.bf16.mxu0 %v956
  %2872 = vmatmul.mubr.bf16.gmra.mrb[0].mxu0 %v955
  %v2873 = vpop.f32.mrb[0].mxu0
  %v2874 = vadd.f32 %v2681, %v2873
  %v2875 = vpop.f32.mrb[0].mxu0
  %v2876 = vadd.f32 %v2683, %v2875
  %v2877 = vpop.f32.mrb[0].mxu0
  %v2878 = vadd.f32 %v2685, %v2877
  %v2879 = vpop.f32.mrb[0].mxu0
  %v2880 = vadd.f32 %v2687, %v2879
  %2881 = vmatprep.mubr.bf16.mxu0 %v966
  %2882 = vmatmul.mubr.bf16.gmra.mrb[0].mxu0 %v965
  %v2883 = vpop.f32.mrb[0].mxu0
  %v2884 = vadd.f32 %v2691, %v2883
  %v2885 = vpop.f32.mrb[0].mxu0
  %v2886 = vadd.f32 %v2693, %v2885
  %v2887 = vpop.f32.mrb[0].mxu0
  %v2888 = vadd.f32 %v2695, %v2887
  %v2889 = vpop.f32.mrb[0].mxu0
  %v2890 = vadd.f32 %v2697, %v2889
  %2891 = vmatprep.mubr.bf16.mxu0 %v976
  %2892 = vmatmul.mubr.bf16.gmra.mrb[0].mxu0 %v975
  %v2893 = vpop.f32.mrb[0].mxu0
  %v2894 = vadd.f32 %v2701, %v2893
  %v2895 = vpop.f32.mrb[0].mxu0
  %v2896 = vadd.f32 %v2703, %v2895
  %v2897 = vpop.f32.mrb[0].mxu0
  %v2898 = vadd.f32 %v2705, %v2897
  %v2899 = vpop.f32.mrb[0].mxu0
  %v2900 = vadd.f32 %v2707, %v2899
  %2901 = vmatprep.mubr.bf16.mxu0 %v986
  %2902 = vmatmul.mubr.bf16.gmra.mrb[0].mxu0 %v985
  %v2903 = vpop.f32.mrb[0].mxu0
  %v2904 = vadd.f32 %v2711, %v2903
  %v2905 = vpop.f32.mrb[0].mxu0
  %v2906 = vadd.f32 %v2713, %v2905
  %v2907 = vpop.f32.mrb[0].mxu0
  %v2908 = vadd.f32 %v2715, %v2907
  %v2909 = vpop.f32.mrb[0].mxu0
  %v2910 = vadd.f32 %v2717, %v2909
  %2911 = vmatprep.mubr.bf16.mxu0 %v996
  %2912 = vmatmul.mubr.bf16.gmra.mrb[0].mxu0 %v995
  %v2913 = vpop.f32.mrb[0].mxu0
  %v2914 = vadd.f32 %v2721, %v2913
  %v2915 = vpop.f32.mrb[0].mxu0
  %v2916 = vadd.f32 %v2723, %v2915
  %v2917 = vpop.f32.mrb[0].mxu0
  %v2918 = vadd.f32 %v2725, %v2917
  %v2919 = vpop.f32.mrb[0].mxu0
  %v2920 = vadd.f32 %v2727, %v2919
  %2921 = vmatprep.mubr.bf16.mxu0 %v1006
  %2922 = vmatmul.mubr.bf16.gmra.mrb[0].mxu0 %v1005
  %v2923 = vpop.f32.mrb[0].mxu0
  %v2924 = vadd.f32 %v2731, %v2923
  %v2925 = vpop.f32.mrb[0].mxu0
  %v2926 = vadd.f32 %v2733, %v2925
  %v2927 = vpop.f32.mrb[0].mxu0
  %v2928 = vadd.f32 %v2735, %v2927
  %v2929 = vpop.f32.mrb[0].mxu0
  %v2930 = vadd.f32 %v2737, %v2929
  %2931 = vmatprep.mubr.bf16.mxu0 %v1016
  %2932 = vmatmul.mubr.bf16.gmra.mrb[0].mxu0 %v1015
  %v2933 = vpop.f32.mrb[0].mxu0
  %v2934 = vadd.f32 %v2741, %v2933
  %v2935 = vpop.f32.mrb[0].mxu0
  %v2936 = vadd.f32 %v2743, %v2935
  %v2937 = vpop.f32.mrb[0].mxu0
  %v2938 = vadd.f32 %v2745, %v2937
  %v2939 = vpop.f32.mrb[0].mxu0
  %v2940 = vadd.f32 %v2747, %v2939
  %2941 = vdwg.mxu0
  %v2942 = vsub.f32 0.0, %v2784
  %v2943 = vsub.f32 0.0, %v2786
  %v2944 = vsub.f32 0.0, %v2788
  %v2945 = vsub.f32 0.0, %v2790
  %v2946 = vsub.f32 0.0, %v2794
  %v2947 = vsub.f32 0.0, %v2796
  %v2948 = vsub.f32 0.0, %v2798
  %v2949 = vsub.f32 0.0, %v2800
  %v2950 = vsub.f32 0.0, %v2804
  %v2951 = vsub.f32 0.0, %v2806
  %v2952 = vsub.f32 0.0, %v2808
  %v2953 = vsub.f32 0.0, %v2810
  %v2954 = vsub.f32 0.0, %v2814
  %v2955 = vsub.f32 0.0, %v2816
  %v2956 = vsub.f32 0.0, %v2818
  %v2957 = vsub.f32 0.0, %v2820
  %v2958 = vsub.f32 0.0, %v2824
  %v2959 = vsub.f32 0.0, %v2826
  %v2960 = vsub.f32 0.0, %v2828
  %v2961 = vsub.f32 0.0, %v2830
  %v2962 = vsub.f32 0.0, %v2834
  %v2963 = vsub.f32 0.0, %v2836
  %v2964 = vsub.f32 0.0, %v2838
  %v2965 = vsub.f32 0.0, %v2840
  %v2966 = vsub.f32 0.0, %v2844
  %v2967 = vsub.f32 0.0, %v2846
  %v2968 = vsub.f32 0.0, %v2848
  %v2969 = vsub.f32 0.0, %v2850
  %v2970 = vsub.f32 0.0, %v2854
  %v2971 = vsub.f32 0.0, %v2856
  %v2972 = vsub.f32 0.0, %v2858
  %v2973 = vsub.f32 0.0, %v2860
  %v2974 = vsub.f32 0.0, %v2864
  %v2975 = vsub.f32 0.0, %v2866
  %v2976 = vsub.f32 0.0, %v2868
  %v2977 = vsub.f32 0.0, %v2870
  %v2978 = vsub.f32 0.0, %v2874
  %v2979 = vsub.f32 0.0, %v2876
  %v2980 = vsub.f32 0.0, %v2878
  %v2981 = vsub.f32 0.0, %v2880
  %v2982 = vsub.f32 0.0, %v2884
  %v2983 = vsub.f32 0.0, %v2886
  %v2984 = vsub.f32 0.0, %v2888
  %v2985 = vsub.f32 0.0, %v2890
  %v2986 = vsub.f32 0.0, %v2894
  %v2987 = vsub.f32 0.0, %v2896
  %v2988 = vsub.f32 0.0, %v2898
  %v2989 = vsub.f32 0.0, %v2900
  %v2990 = vsub.f32 0.0, %v2904
  %v2991 = vsub.f32 0.0, %v2906
  %v2992 = vsub.f32 0.0, %v2908
  %v2993 = vsub.f32 0.0, %v2910
  %v2994 = vsub.f32 0.0, %v2914
  %v2995 = vsub.f32 0.0, %v2916
  %v2996 = vsub.f32 0.0, %v2918
  %v2997 = vsub.f32 0.0, %v2920
  %v2998 = vsub.f32 0.0, %v2924
  %v2999 = vsub.f32 0.0, %v2926
  %v3000 = vsub.f32 0.0, %v2928
  %v3001 = vsub.f32 0.0, %v2930
  %v3002 = vsub.f32 0.0, %v2934
  %v3003 = vsub.f32 0.0, %v2936
  %v3004 = vsub.f32 0.0, %v2938
  %v3005 = vsub.f32 0.0, %v2940
  %v3006 = vmul.f32 %v2942, 1.442695
  %v3007 = vpow.pop %v3006
  %v3008 = vmul.f32 %v2943, 1.442695
  %v3009 = vpow.pop %v3008
  %v3010 = vmul.f32 %v2944, 1.442695
  %v3011 = vpow.pop %v3010
  %v3012 = vmul.f32 %v2945, 1.442695
  %v3013 = vpow.pop %v3012
  %v3014 = vmul.f32 %v2946, 1.442695
  %v3015 = vpow.pop %v3014
  %v3016 = vmul.f32 %v2947, 1.442695
  %v3017 = vpow.pop %v3016
  %v3018 = vmul.f32 %v2948, 1.442695
  %v3019 = vpow.pop %v3018
  %v3020 = vmul.f32 %v2949, 1.442695
  %v3021 = vpow.pop %v3020
  %v3022 = vmul.f32 %v2950, 1.442695
  %v3023 = vpow.pop %v3022
  %v3024 = vmul.f32 %v2951, 1.442695
  %v3025 = vpow.pop %v3024
  %v3026 = vmul.f32 %v2952, 1.442695
  %v3027 = vpow.pop %v3026
  %v3028 = vmul.f32 %v2953, 1.442695
  %v3029 = vpow.pop %v3028
  %v3030 = vmul.f32 %v2954, 1.442695
  %v3031 = vpow.pop %v3030
  %v3032 = vmul.f32 %v2955, 1.442695
  %v3033 = vpow.pop %v3032
  %v3034 = vmul.f32 %v2956, 1.442695
  %v3035 = vpow.pop %v3034
  %v3036 = vmul.f32 %v2957, 1.442695
  %v3037 = vpow.pop %v3036
  %v3038 = vmul.f32 %v2958, 1.442695
  %v3039 = vpow.pop %v3038
  %v3040 = vmul.f32 %v2959, 1.442695
  %v3041 = vpow.pop %v3040
  %v3042 = vmul.f32 %v2960, 1.442695
  %v3043 = vpow.pop %v3042
  %v3044 = vmul.f32 %v2961, 1.442695
  %v3045 = vpow.pop %v3044
  %v3046 = vmul.f32 %v2962, 1.442695
  %v3047 = vpow.pop %v3046
  %v3048 = vmul.f32 %v2963, 1.442695
  %v3049 = vpow.pop %v3048
  %v3050 = vmul.f32 %v2964, 1.442695
  %v3051 = vpow.pop %v3050
  %v3052 = vmul.f32 %v2965, 1.442695
  %v3053 = vpow.pop %v3052
  %v3054 = vmul.f32 %v2966, 1.442695
  %v3055 = vpow.pop %v3054
  %v3056 = vmul.f32 %v2967, 1.442695
  %v3057 = vpow.pop %v3056
  %v3058 = vmul.f32 %v2968, 1.442695
  %v3059 = vpow.pop %v3058
  %v3060 = vmul.f32 %v2969, 1.442695
  %v3061 = vpow.pop %v3060
  %v3062 = vmul.f32 %v2970, 1.442695
  %v3063 = vpow.pop %v3062
  %v3064 = vmul.f32 %v2971, 1.442695
  %v3065 = vpow.pop %v3064
  %v3066 = vmul.f32 %v2972, 1.442695
  %v3067 = vpow.pop %v3066
  %v3068 = vmul.f32 %v2973, 1.442695
  %v3069 = vpow.pop %v3068
  %v3070 = vmul.f32 %v2974, 1.442695
  %v3071 = vpow.pop %v3070
  %v3072 = vmul.f32 %v2975, 1.442695
  %v3073 = vpow.pop %v3072
  %v3074 = vmul.f32 %v2976, 1.442695
  %v3075 = vpow.pop %v3074
  %v3076 = vmul.f32 %v2977, 1.442695
  %v3077 = vpow.pop %v3076
  %v3078 = vmul.f32 %v2978, 1.442695
  %v3079 = vpow.pop %v3078
  %v3080 = vmul.f32 %v2979, 1.442695
  %v3081 = vpow.pop %v3080
  %v3082 = vmul.f32 %v2980, 1.442695
  %v3083 = vpow.pop %v3082
  %v3084 = vmul.f32 %v2981, 1.442695
  %v3085 = vpow.pop %v3084
  %v3086 = vmul.f32 %v2982, 1.442695
  %v3087 = vpow.pop %v3086
  %v3088 = vmul.f32 %v2983, 1.442695
  %v3089 = vpow.pop %v3088
  %v3090 = vmul.f32 %v2984, 1.442695
  %v3091 = vpow.pop %v3090
  %v3092 = vmul.f32 %v2985, 1.442695
  %v3093 = vpow.pop %v3092
  %v3094 = vmul.f32 %v2986, 1.442695
  %v3095 = vpow.pop %v3094
  %v3096 = vmul.f32 %v2987, 1.442695
  %v3097 = vpow.pop %v3096
  %v3098 = vmul.f32 %v2988, 1.442695
  %v3099 = vpow.pop %v3098
  %v3100 = vmul.f32 %v2989, 1.442695
  %v3101 = vpow.pop %v3100
  %v3102 = vmul.f32 %v2990, 1.442695
  %v3103 = vpow.pop %v3102
  %v3104 = vmul.f32 %v2991, 1.442695
  %v3105 = vpow.pop %v3104
  %v3106 = vmul.f32 %v2992, 1.442695
  %v3107 = vpow.pop %v3106
  %v3108 = vmul.f32 %v2993, 1.442695
  %v3109 = vpow.pop %v3108
  %v3110 = vmul.f32 %v2994, 1.442695
  %v3111 = vpow.pop %v3110
  %v3112 = vmul.f32 %v2995, 1.442695
  %v3113 = vpow.pop %v3112
  %v3114 = vmul.f32 %v2996, 1.442695
  %v3115 = vpow.pop %v3114
  %v3116 = vmul.f32 %v2997, 1.442695
  %v3117 = vpow.pop %v3116
  %v3118 = vmul.f32 %v2998, 1.442695
  %v3119 = vpow.pop %v3118
  %v3120 = vmul.f32 %v2999, 1.442695
  %v3121 = vpow.pop %v3120
  %v3122 = vmul.f32 %v3000, 1.442695
  %v3123 = vpow.pop %v3122
  %v3124 = vmul.f32 %v3001, 1.442695
  %v3125 = vpow.pop %v3124
  %v3126 = vmul.f32 %v3002, 1.442695
  %v3127 = vpow.pop %v3126
  %v3128 = vmul.f32 %v3003, 1.442695
  %v3129 = vpow.pop %v3128
  %v3130 = vmul.f32 %v3004, 1.442695
  %v3131 = vpow.pop %v3130
  %v3132 = vmul.f32 %v3005, 1.442695
  %v3133 = vpow.pop %v3132
  %v3134 = vadd.f32 %v3007, 1.0
  %v3135 = vadd.f32 %v3009, 1.0
  %v3136 = vadd.f32 %v3011, 1.0
  %v3137 = vadd.f32 %v3013, 1.0
  %v3138 = vadd.f32 %v3015, 1.0
  %v3139 = vadd.f32 %v3017, 1.0
  %v3140 = vadd.f32 %v3019, 1.0
  %v3141 = vadd.f32 %v3021, 1.0
  %v3142 = vadd.f32 %v3023, 1.0
  %v3143 = vadd.f32 %v3025, 1.0
  %v3144 = vadd.f32 %v3027, 1.0
  %v3145 = vadd.f32 %v3029, 1.0
  %v3146 = vadd.f32 %v3031, 1.0
  %v3147 = vadd.f32 %v3033, 1.0
  %v3148 = vadd.f32 %v3035, 1.0
  %v3149 = vadd.f32 %v3037, 1.0
  %v3150 = vadd.f32 %v3039, 1.0
  %v3151 = vadd.f32 %v3041, 1.0
  %v3152 = vadd.f32 %v3043, 1.0
  %v3153 = vadd.f32 %v3045, 1.0
  %v3154 = vadd.f32 %v3047, 1.0
  %v3155 = vadd.f32 %v3049, 1.0
  %v3156 = vadd.f32 %v3051, 1.0
  %v3157 = vadd.f32 %v3053, 1.0
  %v3158 = vadd.f32 %v3055, 1.0
  %v3159 = vadd.f32 %v3057, 1.0
  %v3160 = vadd.f32 %v3059, 1.0
  %v3161 = vadd.f32 %v3061, 1.0
  %v3162 = vadd.f32 %v3063, 1.0
  %v3163 = vadd.f32 %v3065, 1.0
  %v3164 = vadd.f32 %v3067, 1.0
  %v3165 = vadd.f32 %v3069, 1.0
  %v3166 = vadd.f32 %v3071, 1.0
  %v3167 = vadd.f32 %v3073, 1.0
  %v3168 = vadd.f32 %v3075, 1.0
  %v3169 = vadd.f32 %v3077, 1.0
  %v3170 = vadd.f32 %v3079, 1.0
  %v3171 = vadd.f32 %v3081, 1.0
  %v3172 = vadd.f32 %v3083, 1.0
  %v3173 = vadd.f32 %v3085, 1.0
  %v3174 = vadd.f32 %v3087, 1.0
  %v3175 = vadd.f32 %v3089, 1.0
  %v3176 = vadd.f32 %v3091, 1.0
  %v3177 = vadd.f32 %v3093, 1.0
  %v3178 = vadd.f32 %v3095, 1.0
  %v3179 = vadd.f32 %v3097, 1.0
  %v3180 = vadd.f32 %v3099, 1.0
  %v3181 = vadd.f32 %v3101, 1.0
  %v3182 = vadd.f32 %v3103, 1.0
  %v3183 = vadd.f32 %v3105, 1.0
  %v3184 = vadd.f32 %v3107, 1.0
  %v3185 = vadd.f32 %v3109, 1.0
  %v3186 = vadd.f32 %v3111, 1.0
  %v3187 = vadd.f32 %v3113, 1.0
  %v3188 = vadd.f32 %v3115, 1.0
  %v3189 = vadd.f32 %v3117, 1.0
  %v3190 = vadd.f32 %v3119, 1.0
  %v3191 = vadd.f32 %v3121, 1.0
  %v3192 = vadd.f32 %v3123, 1.0
  %v3193 = vadd.f32 %v3125, 1.0
  %v3194 = vadd.f32 %v3127, 1.0
  %v3195 = vadd.f32 %v3129, 1.0
  %v3196 = vadd.f32 %v3131, 1.0
  %v3197 = vadd.f32 %v3133, 1.0
  %v3198 = vrcp.pop %v3134
  %v3199 = vrcp.pop %v3135
  %v3200 = vrcp.pop %v3136
  %v3201 = vrcp.pop %v3137
  %v3202 = vrcp.pop %v3138
  %v3203 = vrcp.pop %v3139
  %v3204 = vrcp.pop %v3140
  %v3205 = vrcp.pop %v3141
  %v3206 = vrcp.pop %v3142
  %v3207 = vrcp.pop %v3143
  %v3208 = vrcp.pop %v3144
  %v3209 = vrcp.pop %v3145
  %v3210 = vrcp.pop %v3146
  %v3211 = vrcp.pop %v3147
  %v3212 = vrcp.pop %v3148
  %v3213 = vrcp.pop %v3149
  %v3214 = vrcp.pop %v3150
  %v3215 = vrcp.pop %v3151
  %v3216 = vrcp.pop %v3152
  %v3217 = vrcp.pop %v3153
  %v3218 = vrcp.pop %v3154
  %v3219 = vrcp.pop %v3155
  %v3220 = vrcp.pop %v3156
  %v3221 = vrcp.pop %v3157
  %v3222 = vrcp.pop %v3158
  %v3223 = vrcp.pop %v3159
  %v3224 = vrcp.pop %v3160
  %v3225 = vrcp.pop %v3161
  %v3226 = vrcp.pop %v3162
  %v3227 = vrcp.pop %v3163
  %v3228 = vrcp.pop %v3164
  %v3229 = vrcp.pop %v3165
  %v3230 = vrcp.pop %v3166
  %v3231 = vrcp.pop %v3167
  %v3232 = vrcp.pop %v3168
  %v3233 = vrcp.pop %v3169
  %v3234 = vrcp.pop %v3170
  %v3235 = vrcp.pop %v3171
  %v3236 = vrcp.pop %v3172
  %v3237 = vrcp.pop %v3173
  %v3238 = vrcp.pop %v3174
  %v3239 = vrcp.pop %v3175
  %v3240 = vrcp.pop %v3176
  %v3241 = vrcp.pop %v3177
  %v3242 = vrcp.pop %v3178
  %v3243 = vrcp.pop %v3179
  %v3244 = vrcp.pop %v3180
  %v3245 = vrcp.pop %v3181
  %v3246 = vrcp.pop %v3182
  %v3247 = vrcp.pop %v3183
  %v3248 = vrcp.pop %v3184
  %v3249 = vrcp.pop %v3185
  %v3250 = vrcp.pop %v3186
  %v3251 = vrcp.pop %v3187
  %v3252 = vrcp.pop %v3188
  %v3253 = vrcp.pop %v3189
  %v3254 = vrcp.pop %v3190
  %v3255 = vrcp.pop %v3191
  %v3256 = vrcp.pop %v3192
  %v3257 = vrcp.pop %v3193
  %v3258 = vrcp.pop %v3194
  %v3259 = vrcp.pop %v3195
  %v3260 = vrcp.pop %v3196
  %v3261 = vrcp.pop %v3197
  %v3262 = vpack.c.bf16 %v3200, %v3198
  %v3263 = vpack.c.bf16 %v3201, %v3199
  %v3264 = vpack.c.bf16 %v3204, %v3202
  %v3265 = vpack.c.bf16 %v3205, %v3203
  %v3266 = vpack.c.bf16 %v3208, %v3206
  %v3267 = vpack.c.bf16 %v3209, %v3207
  %v3268 = vpack.c.bf16 %v3212, %v3210
  %v3269 = vpack.c.bf16 %v3213, %v3211
  %v3270 = vpack.c.bf16 %v3216, %v3214
  %v3271 = vpack.c.bf16 %v3217, %v3215
  %v3272 = vpack.c.bf16 %v3220, %v3218
  %v3273 = vpack.c.bf16 %v3221, %v3219
  %v3274 = vpack.c.bf16 %v3224, %v3222
  %v3275 = vpack.c.bf16 %v3225, %v3223
  %v3276 = vpack.c.bf16 %v3228, %v3226
  %v3277 = vpack.c.bf16 %v3229, %v3227
  %v3278 = vpack.c.bf16 %v3232, %v3230
  %v3279 = vpack.c.bf16 %v3233, %v3231
  %v3280 = vpack.c.bf16 %v3236, %v3234
  %v3281 = vpack.c.bf16 %v3237, %v3235
  %v3282 = vpack.c.bf16 %v3240, %v3238
  %v3283 = vpack.c.bf16 %v3241, %v3239
  %v3284 = vpack.c.bf16 %v3244, %v3242
  %v3285 = vpack.c.bf16 %v3245, %v3243
  %v3286 = vpack.c.bf16 %v3248, %v3246
  %v3287 = vpack.c.bf16 %v3249, %v3247
  %v3288 = vpack.c.bf16 %v3252, %v3250
  %v3289 = vpack.c.bf16 %v3253, %v3251
  %v3290 = vpack.c.bf16 %v3256, %v3254
  %v3291 = vpack.c.bf16 %v3257, %v3255
  %v3292 = vpack.c.bf16 %v3260, %v3258
  %v3293 = vpack.c.bf16 %v3261, %v3259
  %v3294 = vld [vmem:[%s3] sm:$0xf]
  %v3295 = vld [vmem:[%s3 + $0x4] sm:$0xf]
  %v3296 = vld [vmem:[%s3 + $0x8] sm:$0xf]
  %v3297 = vld [vmem:[%s3 + $0xc] sm:$0xf]
  %v3298 = vld [vmem:[%s3 + $0x10] sm:$0xf]
  %v3299 = vld [vmem:[%s3 + $0x14] sm:$0xf]
  %v3300 = vld [vmem:[%s3 + $0x18] sm:$0xf]
  %v3301 = vld [vmem:[%s3 + $0x1c] sm:$0xf]
  %v3302 = vld [vmem:[%s3 + $0x20] sm:$0xf]
  %v3303 = vld [vmem:[%s3 + $0x24] sm:$0xf]
  %v3304 = vld [vmem:[%s3 + $0x28] sm:$0xf]
  %v3305 = vld [vmem:[%s3 + $0x2c] sm:$0xf]
  %v3306 = vld [vmem:[%s3 + $0x30] sm:$0xf]
  %v3307 = vld [vmem:[%s3 + $0x34] sm:$0xf]
  %v3308 = vld [vmem:[%s3 + $0x38] sm:$0xf]
  %v3309 = vld [vmem:[%s3 + $0x3c] sm:$0xf]
  %v3310 = vld [vmem:[%s3 + $0x40] sm:$0xf]
  %v3311 = vld [vmem:[%s3 + $0x44] sm:$0xf]
  %v3312 = vld [vmem:[%s3 + $0x48] sm:$0xf]
  %v3313 = vld [vmem:[%s3 + $0x4c] sm:$0xf]
  %v3314 = vld [vmem:[%s3 + $0x50] sm:$0xf]
  %v3315 = vld [vmem:[%s3 + $0x54] sm:$0xf]
  %v3316 = vld [vmem:[%s3 + $0x58] sm:$0xf]
  %v3317 = vld [vmem:[%s3 + $0x5c] sm:$0xf]
  %v3318 = vld [vmem:[%s3 + $0x60] sm:$0xf]
  %v3319 = vld [vmem:[%s3 + $0x64] sm:$0xf]
  %v3320 = vld [vmem:[%s3 + $0x68] sm:$0xf]
  %v3321 = vld [vmem:[%s3 + $0x6c] sm:$0xf]
  %v3322 = vld [vmem:[%s3 + $0x70] sm:$0xf]
  %v3323 = vld [vmem:[%s3 + $0x74] sm:$0xf]
  %v3324 = vld [vmem:[%s3 + $0x78] sm:$0xf]
  %v3325 = vld [vmem:[%s3 + $0x7c] sm:$0xf]
  %v3358 = vunpack.c.l.b16 %v3294
  %v3359 = vunpack.c.l.b16 %v3295
  %v3360 = vunpack.c.l.b16 %v3296
  %v3361 = vunpack.c.l.b16 %v3297
  %v3362 = vunpack.c.l.b16 %v3298
  %v3363 = vunpack.c.l.b16 %v3299
  %v3364 = vunpack.c.l.b16 %v3300
  %v3365 = vunpack.c.l.b16 %v3301
  %v3366 = vunpack.c.l.b16 %v3302
  %v3367 = vunpack.c.l.b16 %v3303
  %v3368 = vunpack.c.l.b16 %v3304
  %v3369 = vunpack.c.l.b16 %v3305
  %v3370 = vunpack.c.l.b16 %v3306
  %v3371 = vunpack.c.l.b16 %v3307
  %v3372 = vunpack.c.l.b16 %v3308
  %v3373 = vunpack.c.l.b16 %v3309
  %v3374 = vunpack.c.l.b16 %v3310
  %v3375 = vunpack.c.l.b16 %v3311
  %v3376 = vunpack.c.l.b16 %v3312
  %v3377 = vunpack.c.l.b16 %v3313
  %v3378 = vunpack.c.l.b16 %v3314
  %v3379 = vunpack.c.l.b16 %v3315
  %v3380 = vunpack.c.l.b16 %v3316
  %v3381 = vunpack.c.l.b16 %v3317
  %v3382 = vunpack.c.l.b16 %v3318
  %v3383 = vunpack.c.l.b16 %v3319
  %v3384 = vunpack.c.l.b16 %v3320
  %v3385 = vunpack.c.l.b16 %v3321
  %v3386 = vunpack.c.l.b16 %v3322
  %v3387 = vunpack.c.l.b16 %v3323
  %v3388 = vunpack.c.l.b16 %v3324
  %v3389 = vunpack.c.l.b16 %v3325
  %v3390 = vpack.c.b16 %v3359, %v3358
  %v3391 = vpack.c.b16 %v3361, %v3360
  %v3392 = vpack.c.b16 %v3363, %v3362
  %v3393 = vpack.c.b16 %v3365, %v3364
  %v3394 = vpack.c.b16 %v3367, %v3366
  %v3395 = vpack.c.b16 %v3369, %v3368
  %v3396 = vpack.c.b16 %v3371, %v3370
  %v3397 = vpack.c.b16 %v3373, %v3372
  %v3398 = vpack.c.b16 %v3375, %v3374
  %v3399 = vpack.c.b16 %v3377, %v3376
  %v3400 = vpack.c.b16 %v3379, %v3378
  %v3401 = vpack.c.b16 %v3381, %v3380
  %v3402 = vpack.c.b16 %v3383, %v3382
  %v3403 = vpack.c.b16 %v3385, %v3384
  %v3404 = vpack.c.b16 %v3387, %v3386
  %v3405 = vpack.c.b16 %v3389, %v3388
  %3422 = vmatprep.subr.bf16.mxu0 0
  %3423 = vmatpush1.bf16.msra.mxu0 %v3390
  %3424 = vmatprep.subr.bf16.mxu0 0
  %3425 = vmatpush1.bf16.msra.mxu0 %v3391
  %3426 = vmatprep.subr.bf16.mxu0 0
  %3427 = vmatpush1.bf16.msra.mxu0 %v3392
  %3428 = vmatprep.subr.bf16.mxu0 0
  %3429 = vmatpush1.bf16.msra.mxu0 %v3393
  %3430 = vmatprep.subr.bf16.mxu0 0
  %3431 = vmatpush1.bf16.msra.mxu0 %v3394
  %3432 = vmatprep.subr.bf16.mxu0 0
  %3433 = vmatpush1.bf16.msra.mxu0 %v3395
  %3434 = vmatprep.subr.bf16.mxu0 0
  %3435 = vmatpush1.bf16.msra.mxu0 %v3396
  %3436 = vmatprep.subr.bf16.mxu0 0
  %3437 = vmatpush1.bf16.msra.mxu0 %v3397
  %3438 = vmatprep.subr.bf16.mxu0 0
  %3439 = vmatpush1.bf16.msra.mxu0 %v3398
  %3440 = vmatprep.subr.bf16.mxu0 0
  %3441 = vmatpush1.bf16.msra.mxu0 %v3399
  %3442 = vmatprep.subr.bf16.mxu0 0
  %3443 = vmatpush1.bf16.msra.mxu0 %v3400
  %3444 = vmatprep.subr.bf16.mxu0 0
  %3445 = vmatpush1.bf16.msra.mxu0 %v3401
  %3446 = vmatprep.subr.bf16.mxu0 0
  %3447 = vmatpush1.bf16.msra.mxu0 %v3402
  %3448 = vmatprep.subr.bf16.mxu0 0
  %3449 = vmatpush1.bf16.msra.mxu0 %v3403
  %3450 = vmatprep.subr.bf16.mxu0 0
  %3451 = vmatpush1.bf16.msra.mxu0 %v3404
  %3452 = vmatprep.subr.bf16.mxu0 0
  %3453 = vmatpush1.bf16.msra.mxu0 %v3405
  %3454 = vmatprep.mubr.bf16.mxu0 %v3263
  %3455 = vmatmul.mubr.bf16.gmra.mrb[0].mxu0 %v3262
  %v3456 = vpop.f32.mrb[0].mxu0
  %v3457 = vadd.f32 0.0, %v3456
  %v3458 = vpop.f32.mrb[0].mxu0
  %v3459 = vpop.f32.mrb[0].mxu0
  %v3460 = vadd.f32 0.0, %v3459
  %v3461 = vpop.f32.mrb[0].mxu0
  %3462 = vmatprep.mubr.bf16.mxu0 %v3265
  %3463 = vmatmul.mubr.bf16.gmra.mrb[0].mxu0 %v3264
  %v3464 = vpop.f32.mrb[0].mxu0
  %v3465 = vadd.f32 0.0, %v3464
  %v3466 = vpop.f32.mrb[0].mxu0
  %v3467 = vpop.f32.mrb[0].mxu0
  %v3468 = vadd.f32 0.0, %v3467
  %v3469 = vpop.f32.mrb[0].mxu0
  %3470 = vmatprep.mubr.bf16.mxu0 %v3267
  %3471 = vmatmul.mubr.bf16.gmra.mrb[0].mxu0 %v3266
  %v3472 = vpop.f32.mrb[0].mxu0
  %v3473 = vadd.f32 0.0, %v3472
  %v3474 = vpop.f32.mrb[0].mxu0
  %v3475 = vpop.f32.mrb[0].mxu0
  %v3476 = vadd.f32 0.0, %v3475
  %v3477 = vpop.f32.mrb[0].mxu0
  %3478 = vmatprep.mubr.bf16.mxu0 %v3269
  %3479 = vmatmul.mubr.bf16.gmra.mrb[0].mxu0 %v3268
  %v3480 = vpop.f32.mrb[0].mxu0
  %v3481 = vadd.f32 0.0, %v3480
  %v3482 = vpop.f32.mrb[0].mxu0
  %v3483 = vpop.f32.mrb[0].mxu0
  %v3484 = vadd.f32 0.0, %v3483
  %v3485 = vpop.f32.mrb[0].mxu0
  %3486 = vmatprep.mubr.bf16.mxu0 %v3271
  %3487 = vmatmul.mubr.bf16.gmra.mrb[0].mxu0 %v3270
  %v3488 = vpop.f32.mrb[0].mxu0
  %v3489 = vadd.f32 0.0, %v3488
  %v3490 = vpop.f32.mrb[0].mxu0
  %v3491 = vpop.f32.mrb[0].mxu0
  %v3492 = vadd.f32 0.0, %v3491
  %v3493 = vpop.f32.mrb[0].mxu0
  %3494 = vmatprep.mubr.bf16.mxu0 %v3273
  %3495 = vmatmul.mubr.bf16.gmra.mrb[0].mxu0 %v3272
  %v3496 = vpop.f32.mrb[0].mxu0
  %v3497 = vadd.f32 0.0, %v3496
  %v3498 = vpop.f32.mrb[0].mxu0
  %v3499 = vpop.f32.mrb[0].mxu0
  %v3500 = vadd.f32 0.0, %v3499
  %v3501 = vpop.f32.mrb[0].mxu0
  %3502 = vmatprep.mubr.bf16.mxu0 %v3275
  %3503 = vmatmul.mubr.bf16.gmra.mrb[0].mxu0 %v3274
  %v3504 = vpop.f32.mrb[0].mxu0
  %v3505 = vadd.f32 0.0, %v3504
  %v3506 = vpop.f32.mrb[0].mxu0
  %v3507 = vpop.f32.mrb[0].mxu0
  %v3508 = vadd.f32 0.0, %v3507
  %v3509 = vpop.f32.mrb[0].mxu0
  %3510 = vmatprep.mubr.bf16.mxu0 %v3277
  %3511 = vmatmul.mubr.bf16.gmra.mrb[0].mxu0 %v3276
  %v3512 = vpop.f32.mrb[0].mxu0
  %v3513 = vadd.f32 0.0, %v3512
  %v3514 = vpop.f32.mrb[0].mxu0
  %v3515 = vpop.f32.mrb[0].mxu0
  %v3516 = vadd.f32 0.0, %v3515
  %v3517 = vpop.f32.mrb[0].mxu0
  %3518 = vmatprep.mubr.bf16.mxu0 %v3279
  %3519 = vmatmul.mubr.bf16.gmra.mrb[0].mxu0 %v3278
  %v3520 = vpop.f32.mrb[0].mxu0
  %v3521 = vadd.f32 0.0, %v3520
  %v3522 = vpop.f32.mrb[0].mxu0
  %v3523 = vpop.f32.mrb[0].mxu0
  %v3524 = vadd.f32 0.0, %v3523
  %v3525 = vpop.f32.mrb[0].mxu0
  %3526 = vmatprep.mubr.bf16.mxu0 %v3281
  %3527 = vmatmul.mubr.bf16.gmra.mrb[0].mxu0 %v3280
  %v3528 = vpop.f32.mrb[0].mxu0
  %v3529 = vadd.f32 0.0, %v3528
  %v3530 = vpop.f32.mrb[0].mxu0
  %v3531 = vpop.f32.mrb[0].mxu0
  %v3532 = vadd.f32 0.0, %v3531
  %v3533 = vpop.f32.mrb[0].mxu0
  %3534 = vmatprep.mubr.bf16.mxu0 %v3283
  %3535 = vmatmul.mubr.bf16.gmra.mrb[0].mxu0 %v3282
  %v3536 = vpop.f32.mrb[0].mxu0
  %v3537 = vadd.f32 0.0, %v3536
  %v3538 = vpop.f32.mrb[0].mxu0
  %v3539 = vpop.f32.mrb[0].mxu0
  %v3540 = vadd.f32 0.0, %v3539
  %v3541 = vpop.f32.mrb[0].mxu0
  %3542 = vmatprep.mubr.bf16.mxu0 %v3285
  %3543 = vmatmul.mubr.bf16.gmra.mrb[0].mxu0 %v3284
  %v3544 = vpop.f32.mrb[0].mxu0
  %v3545 = vadd.f32 0.0, %v3544
  %v3546 = vpop.f32.mrb[0].mxu0
  %v3547 = vpop.f32.mrb[0].mxu0
  %v3548 = vadd.f32 0.0, %v3547
  %v3549 = vpop.f32.mrb[0].mxu0
  %3550 = vmatprep.mubr.bf16.mxu0 %v3287
  %3551 = vmatmul.mubr.bf16.gmra.mrb[0].mxu0 %v3286
  %v3552 = vpop.f32.mrb[0].mxu0
  %v3553 = vadd.f32 0.0, %v3552
  %v3554 = vpop.f32.mrb[0].mxu0
  %v3555 = vpop.f32.mrb[0].mxu0
  %v3556 = vadd.f32 0.0, %v3555
  %v3557 = vpop.f32.mrb[0].mxu0
  %3558 = vmatprep.mubr.bf16.mxu0 %v3289
  %3559 = vmatmul.mubr.bf16.gmra.mrb[0].mxu0 %v3288
  %v3560 = vpop.f32.mrb[0].mxu0
  %v3561 = vadd.f32 0.0, %v3560
  %v3562 = vpop.f32.mrb[0].mxu0
  %v3563 = vpop.f32.mrb[0].mxu0
  %v3564 = vadd.f32 0.0, %v3563
  %v3565 = vpop.f32.mrb[0].mxu0
  %3566 = vmatprep.mubr.bf16.mxu0 %v3291
  %3567 = vmatmul.mubr.bf16.gmra.mrb[0].mxu0 %v3290
  %v3568 = vpop.f32.mrb[0].mxu0
  %v3569 = vadd.f32 0.0, %v3568
  %v3570 = vpop.f32.mrb[0].mxu0
  %v3571 = vpop.f32.mrb[0].mxu0
  %v3572 = vadd.f32 0.0, %v3571
  %v3573 = vpop.f32.mrb[0].mxu0
  %3574 = vmatprep.mubr.bf16.mxu0 %v3293
  %3575 = vmatmul.mubr.bf16.gmra.mrb[0].mxu0 %v3292
  %v3576 = vpop.f32.mrb[0].mxu0
  %v3577 = vadd.f32 0.0, %v3576
  %v3578 = vpop.f32.mrb[0].mxu0
  %v3579 = vpop.f32.mrb[0].mxu0
  %v3580 = vadd.f32 0.0, %v3579
  %v3581 = vpop.f32.mrb[0].mxu0
  %3582 = vdwg.mxu0
  %v3583 = vld [vmem:[%s4] sm:$0xff]
  %v3584 = vld [vmem:[%s4 + $0x8] sm:$0xff]
  %v3585 = vld [vmem:[%s4 + $0x10] sm:$0xff]
  %v3586 = vld [vmem:[%s4 + $0x18] sm:$0xff]
  %v3587 = vld [vmem:[%s4 + $0x20] sm:$0xff]
  %v3588 = vld [vmem:[%s4 + $0x28] sm:$0xff]
  %v3589 = vld [vmem:[%s4 + $0x30] sm:$0xff]
  %v3590 = vld [vmem:[%s4 + $0x38] sm:$0xff]
  %v3591 = vld [vmem:[%s4 + $0x40] sm:$0xff]
  %v3592 = vld [vmem:[%s4 + $0x48] sm:$0xff]
  %v3593 = vld [vmem:[%s4 + $0x50] sm:$0xff]
  %v3594 = vld [vmem:[%s4 + $0x58] sm:$0xff]
  %v3595 = vld [vmem:[%s4 + $0x60] sm:$0xff]
  %v3596 = vld [vmem:[%s4 + $0x68] sm:$0xff]
  %v3597 = vld [vmem:[%s4 + $0x70] sm:$0xff]
  %v3598 = vld [vmem:[%s4 + $0x78] sm:$0xff]
  %v3599 = vld [vmem:[%s4 + $0x80] sm:$0xff]
  %v3600 = vld [vmem:[%s4 + $0x88] sm:$0xff]
  %v3601 = vld [vmem:[%s4 + $0x90] sm:$0xff]
  %v3602 = vld [vmem:[%s4 + $0x98] sm:$0xff]
  %v3603 = vld [vmem:[%s4 + $0xa0] sm:$0xff]
  %v3604 = vld [vmem:[%s4 + $0xa8] sm:$0xff]
  %v3605 = vld [vmem:[%s4 + $0xb0] sm:$0xff]
  %v3606 = vld [vmem:[%s4 + $0xb8] sm:$0xff]
  %v3607 = vld [vmem:[%s4 + $0xc0] sm:$0xff]
  %v3608 = vld [vmem:[%s4 + $0xc8] sm:$0xff]
  %v3609 = vld [vmem:[%s4 + $0xd0] sm:$0xff]
  %v3610 = vld [vmem:[%s4 + $0xd8] sm:$0xff]
  %v3611 = vld [vmem:[%s4 + $0xe0] sm:$0xff]
  %v3612 = vld [vmem:[%s4 + $0xe8] sm:$0xff]
  %v3613 = vld [vmem:[%s4 + $0xf0] sm:$0xff]
  %v3614 = vld [vmem:[%s4 + $0xf8] sm:$0xff]
  %v3615 = vld [vmem:[%s4 + $0x100] sm:$0xff]
  %v3616 = vld [vmem:[%s4 + $0x108] sm:$0xff]
  %v3617 = vld [vmem:[%s4 + $0x110] sm:$0xff]
  %v3618 = vld [vmem:[%s4 + $0x118] sm:$0xff]
  %v3619 = vld [vmem:[%s4 + $0x120] sm:$0xff]
  %v3620 = vld [vmem:[%s4 + $0x128] sm:$0xff]
  %v3621 = vld [vmem:[%s4 + $0x130] sm:$0xff]
  %v3622 = vld [vmem:[%s4 + $0x138] sm:$0xff]
  %v3623 = vld [vmem:[%s4 + $0x140] sm:$0xff]
  %v3624 = vld [vmem:[%s4 + $0x148] sm:$0xff]
  %v3625 = vld [vmem:[%s4 + $0x150] sm:$0xff]
  %v3626 = vld [vmem:[%s4 + $0x158] sm:$0xff]
  %v3627 = vld [vmem:[%s4 + $0x160] sm:$0xff]
  %v3628 = vld [vmem:[%s4 + $0x168] sm:$0xff]
  %v3629 = vld [vmem:[%s4 + $0x170] sm:$0xff]
  %v3630 = vld [vmem:[%s4 + $0x178] sm:$0xff]
  %v3631 = vld [vmem:[%s4 + $0x180] sm:$0xff]
  %v3632 = vld [vmem:[%s4 + $0x188] sm:$0xff]
  %v3633 = vld [vmem:[%s4 + $0x190] sm:$0xff]
  %v3634 = vld [vmem:[%s4 + $0x198] sm:$0xff]
  %v3635 = vld [vmem:[%s4 + $0x1a0] sm:$0xff]
  %v3636 = vld [vmem:[%s4 + $0x1a8] sm:$0xff]
  %v3637 = vld [vmem:[%s4 + $0x1b0] sm:$0xff]
  %v3638 = vld [vmem:[%s4 + $0x1b8] sm:$0xff]
  %v3639 = vld [vmem:[%s4 + $0x1c0] sm:$0xff]
  %v3640 = vld [vmem:[%s4 + $0x1c8] sm:$0xff]
  %v3641 = vld [vmem:[%s4 + $0x1d0] sm:$0xff]
  %v3642 = vld [vmem:[%s4 + $0x1d8] sm:$0xff]
  %v3643 = vpack.c.bf16 %v3460, %v3457
  %v3644 = vpack.c.bf16 %v3468, %v3465
  %v3645 = vpack.c.bf16 %v3476, %v3473
  %v3646 = vpack.c.bf16 %v3484, %v3481
  %v3647 = vpack.c.bf16 %v3492, %v3489
  %v3648 = vpack.c.bf16 %v3500, %v3497
  %v3649 = vpack.c.bf16 %v3508, %v3505
  %v3650 = vpack.c.bf16 %v3516, %v3513
  %v3651 = vpack.c.bf16 %v3524, %v3521
  %v3652 = vpack.c.bf16 %v3532, %v3529
  %v3653 = vpack.c.bf16 %v3540, %v3537
  %v3654 = vpack.c.bf16 %v3548, %v3545
  %v3655 = vpack.c.bf16 %v3556, %v3553
  %v3656 = vpack.c.bf16 %v3564, %v3561
  %v3657 = vpack.c.bf16 %v3572, %v3569
  %v3658 = vpack.c.bf16 %v3580, %v3577
  %v3719 = vunpack.c.l.b16 %v3583
  %v3720 = vunpack.c.h.b16 %v3583
  %v3721 = vunpack.c.l.b16 %v3584
  %v3722 = vunpack.c.h.b16 %v3584
  %v3723 = vunpack.c.l.b16 %v3585
  %v3724 = vunpack.c.h.b16 %v3585
  %v3725 = vunpack.c.l.b16 %v3586
  %v3726 = vunpack.c.h.b16 %v3586
  %v3727 = vunpack.c.l.b16 %v3587
  %v3728 = vunpack.c.h.b16 %v3587
  %v3729 = vunpack.c.l.b16 %v3588
  %v3730 = vunpack.c.h.b16 %v3588
  %v3731 = vunpack.c.l.b16 %v3589
  %v3732 = vunpack.c.h.b16 %v3589
  %v3733 = vunpack.c.l.b16 %v3590
  %v3734 = vunpack.c.h.b16 %v3590
  %v3735 = vunpack.c.l.b16 %v3591
  %v3736 = vunpack.c.h.b16 %v3591
  %v3737 = vunpack.c.l.b16 %v3592
  %v3738 = vunpack.c.h.b16 %v3592
  %v3739 = vunpack.c.l.b16 %v3593
  %v3740 = vunpack.c.h.b16 %v3593
  %v3741 = vunpack.c.l.b16 %v3594
  %v3742 = vunpack.c.h.b16 %v3594
  %v3743 = vunpack.c.l.b16 %v3595
  %v3744 = vunpack.c.h.b16 %v3595
  %v3745 = vunpack.c.l.b16 %v3596
  %v3746 = vunpack.c.h.b16 %v3596
  %v3747 = vunpack.c.l.b16 %v3597
  %v3748 = vunpack.c.h.b16 %v3597
  %v3749 = vunpack.c.l.b16 %v3598
  %v3750 = vunpack.c.h.b16 %v3598
  %v3751 = vunpack.c.l.b16 %v3599
  %v3752 = vunpack.c.h.b16 %v3599
  %v3753 = vunpack.c.l.b16 %v3600
  %v3754 = vunpack.c.h.b16 %v3600
  %v3755 = vunpack.c.l.b16 %v3601
  %v3756 = vunpack.c.h.b16 %v3601
  %v3757 = vunpack.c.l.b16 %v3602
  %v3758 = vunpack.c.h.b16 %v3602
  %v3759 = vunpack.c.l.b16 %v3603
  %v3760 = vunpack.c.h.b16 %v3603
  %v3761 = vunpack.c.l.b16 %v3604
  %v3762 = vunpack.c.h.b16 %v3604
  %v3763 = vunpack.c.l.b16 %v3605
  %v3764 = vunpack.c.h.b16 %v3605
  %v3765 = vunpack.c.l.b16 %v3606
  %v3766 = vunpack.c.h.b16 %v3606
  %v3767 = vunpack.c.l.b16 %v3607
  %v3768 = vunpack.c.h.b16 %v3607
  %v3769 = vunpack.c.l.b16 %v3608
  %v3770 = vunpack.c.h.b16 %v3608
  %v3771 = vunpack.c.l.b16 %v3609
  %v3772 = vunpack.c.h.b16 %v3609
  %v3773 = vunpack.c.l.b16 %v3610
  %v3774 = vunpack.c.h.b16 %v3610
  %v3775 = vunpack.c.l.b16 %v3611
  %v3776 = vunpack.c.h.b16 %v3611
  %v3777 = vunpack.c.l.b16 %v3612
  %v3778 = vunpack.c.h.b16 %v3612
  %v3779 = vunpack.c.l.b16 %v3613
  %v3780 = vunpack.c.h.b16 %v3613
  %v3781 = vunpack.c.l.b16 %v3614
  %v3782 = vunpack.c.h.b16 %v3614
  %v3783 = vunpack.c.l.b16 %v3615
  %v3784 = vunpack.c.h.b16 %v3615
  %v3785 = vunpack.c.l.b16 %v3616
  %v3786 = vunpack.c.h.b16 %v3616
  %v3787 = vunpack.c.l.b16 %v3617
  %v3788 = vunpack.c.h.b16 %v3617
  %v3789 = vunpack.c.l.b16 %v3618
  %v3790 = vunpack.c.h.b16 %v3618
  %v3791 = vunpack.c.l.b16 %v3619
  %v3792 = vunpack.c.h.b16 %v3619
  %v3793 = vunpack.c.l.b16 %v3620
  %v3794 = vunpack.c.h.b16 %v3620
  %v3795 = vunpack.c.l.b16 %v3621
  %v3796 = vunpack.c.h.b16 %v3621
  %v3797 = vunpack.c.l.b16 %v3622
  %v3798 = vunpack.c.h.b16 %v3622
  %v3799 = vunpack.c.l.b16 %v3623
  %v3800 = vunpack.c.h.b16 %v3623
  %v3801 = vunpack.c.l.b16 %v3624
  %v3802 = vunpack.c.h.b16 %v3624
  %v3803 = vunpack.c.l.b16 %v3625
  %v3804 = vunpack.c.h.b16 %v3625
  %v3805 = vunpack.c.l.b16 %v3626
  %v3806 = vunpack.c.h.b16 %v3626
  %v3807 = vunpack.c.l.b16 %v3627
  %v3808 = vunpack.c.h.b16 %v3627
  %v3809 = vunpack.c.l.b16 %v3628
  %v3810 = vunpack.c.h.b16 %v3628
  %v3811 = vunpack.c.l.b16 %v3629
  %v3812 = vunpack.c.h.b16 %v3629
  %v3813 = vunpack.c.l.b16 %v3630
  %v3814 = vunpack.c.h.b16 %v3630
  %v3815 = vunpack.c.l.b16 %v3631
  %v3816 = vunpack.c.h.b16 %v3631
  %v3817 = vunpack.c.l.b16 %v3632
  %v3818 = vunpack.c.h.b16 %v3632
  %v3819 = vunpack.c.l.b16 %v3633
  %v3820 = vunpack.c.h.b16 %v3633
  %v3821 = vunpack.c.l.b16 %v3634
  %v3822 = vunpack.c.h.b16 %v3634
  %v3823 = vunpack.c.l.b16 %v3635
  %v3824 = vunpack.c.h.b16 %v3635
  %v3825 = vunpack.c.l.b16 %v3636
  %v3826 = vunpack.c.h.b16 %v3636
  %v3827 = vunpack.c.l.b16 %v3637
  %v3828 = vunpack.c.h.b16 %v3637
  %v3829 = vunpack.c.l.b16 %v3638
  %v3830 = vunpack.c.h.b16 %v3638
  %v3831 = vunpack.c.l.b16 %v3639
  %v3832 = vunpack.c.h.b16 %v3639
  %v3833 = vunpack.c.l.b16 %v3640
  %v3834 = vunpack.c.h.b16 %v3640
  %v3835 = vunpack.c.l.b16 %v3641
  %v3836 = vunpack.c.h.b16 %v3641
  %v3837 = vunpack.c.l.b16 %v3642
  %v3838 = vunpack.c.h.b16 %v3642
  %v3839 = vpack.c.b16 %v3721, %v3719
  %v3840 = vpack.c.b16 %v3722, %v3720
  %v3841 = vpack.c.b16 %v3725, %v3723
  %v3842 = vpack.c.b16 %v3726, %v3724
  %v3843 = vpack.c.b16 %v3729, %v3727
  %v3844 = vpack.c.b16 %v3730, %v3728
  %v3845 = vpack.c.b16 %v3733, %v3731
  %v3846 = vpack.c.b16 %v3734, %v3732
  %v3847 = vpack.c.b16 %v3737, %v3735
  %v3848 = vpack.c.b16 %v3738, %v3736
  %v3849 = vpack.c.b16 %v3741, %v3739
  %v3850 = vpack.c.b16 %v3742, %v3740
  %v3851 = vpack.c.b16 %v3745, %v3743
  %v3852 = vpack.c.b16 %v3746, %v3744
  %v3853 = vpack.c.b16 %v3749, %v3747
  %v3854 = vpack.c.b16 %v3750, %v3748
  %v3855 = vpack.c.b16 %v3753, %v3751
  %v3856 = vpack.c.b16 %v3754, %v3752
  %v3857 = vpack.c.b16 %v3757, %v3755
  %v3858 = vpack.c.b16 %v3758, %v3756
  %v3859 = vpack.c.b16 %v3761, %v3759
  %v3860 = vpack.c.b16 %v3762, %v3760
  %v3861 = vpack.c.b16 %v3765, %v3763
  %v3862 = vpack.c.b16 %v3766, %v3764
  %v3863 = vpack.c.b16 %v3769, %v3767
  %v3864 = vpack.c.b16 %v3770, %v3768
  %v3865 = vpack.c.b16 %v3773, %v3771
  %v3866 = vpack.c.b16 %v3774, %v3772
  %v3867 = vpack.c.b16 %v3777, %v3775
  %v3868 = vpack.c.b16 %v3778, %v3776
  %v3869 = vpack.c.b16 %v3781, %v3779
  %v3870 = vpack.c.b16 %v3782, %v3780
  %v3871 = vpack.c.b16 %v3785, %v3783
  %v3872 = vpack.c.b16 %v3786, %v3784
  %v3873 = vpack.c.b16 %v3789, %v3787
  %v3874 = vpack.c.b16 %v3790, %v3788
  %v3875 = vpack.c.b16 %v3793, %v3791
  %v3876 = vpack.c.b16 %v3794, %v3792
  %v3877 = vpack.c.b16 %v3797, %v3795
  %v3878 = vpack.c.b16 %v3798, %v3796
  %v3879 = vpack.c.b16 %v3801, %v3799
  %v3880 = vpack.c.b16 %v3802, %v3800
  %v3881 = vpack.c.b16 %v3805, %v3803
  %v3882 = vpack.c.b16 %v3806, %v3804
  %v3883 = vpack.c.b16 %v3809, %v3807
  %v3884 = vpack.c.b16 %v3810, %v3808
  %v3885 = vpack.c.b16 %v3813, %v3811
  %v3886 = vpack.c.b16 %v3814, %v3812
  %v3887 = vpack.c.b16 %v3817, %v3815
  %v3888 = vpack.c.b16 %v3818, %v3816
  %v3889 = vpack.c.b16 %v3821, %v3819
  %v3890 = vpack.c.b16 %v3822, %v3820
  %v3891 = vpack.c.b16 %v3825, %v3823
  %v3892 = vpack.c.b16 %v3826, %v3824
  %v3893 = vpack.c.b16 %v3829, %v3827
  %v3894 = vpack.c.b16 %v3830, %v3828
  %v3895 = vpack.c.b16 %v3833, %v3831
  %v3896 = vpack.c.b16 %v3834, %v3832
  %v3897 = vpack.c.b16 %v3837, %v3835
  %v3898 = vpack.c.b16 %v3838, %v3836
  %3959 = vmatprep.subr.bf16.mxu0 0
  %3960 = vmatpush1.bf16.msra.mxu0 %v3643
  %3961 = vmatprep.subr.bf16.mxu0 0
  %3962 = vmatpush1.bf16.msra.mxu0 %v3644
  %3963 = vmatprep.subr.bf16.mxu0 0
  %3964 = vmatpush1.bf16.msra.mxu0 %v3645
  %3965 = vmatprep.subr.bf16.mxu0 0
  %3966 = vmatpush1.bf16.msra.mxu0 %v3646
  %3967 = vmatprep.subr.bf16.mxu0 0
  %3968 = vmatpush1.bf16.msra.mxu0 %v3647
  %3969 = vmatprep.subr.bf16.mxu0 0
  %3970 = vmatpush1.bf16.msra.mxu0 %v3648
  %3971 = vmatprep.subr.bf16.mxu0 0
  %3972 = vmatpush1.bf16.msra.mxu0 %v3649
  %3973 = vmatprep.subr.bf16.mxu0 0
  %3974 = vmatpush1.bf16.msra.mxu0 %v3650
  %3975 = vmatprep.subr.bf16.mxu0 0
  %3976 = vmatpush1.bf16.msra.mxu0 %v3651
  %3977 = vmatprep.subr.bf16.mxu0 0
  %3978 = vmatpush1.bf16.msra.mxu0 %v3652
  %3979 = vmatprep.subr.bf16.mxu0 0
  %3980 = vmatpush1.bf16.msra.mxu0 %v3653
  %3981 = vmatprep.subr.bf16.mxu0 0
  %3982 = vmatpush1.bf16.msra.mxu0 %v3654
  %3983 = vmatprep.subr.bf16.mxu0 0
  %3984 = vmatpush1.bf16.msra.mxu0 %v3655
  %3985 = vmatprep.subr.bf16.mxu0 0
  %3986 = vmatpush1.bf16.msra.mxu0 %v3656
  %3987 = vmatprep.subr.bf16.mxu0 0
  %3988 = vmatpush1.bf16.msra.mxu0 %v3657
  %3989 = vmatprep.subr.bf16.mxu0 0
  %3990 = vmatpush1.bf16.msra.mxu0 %v3658
  %3991 = vmatprep.mubr.bf16.mxu0 %v3840
  %3992 = vmatmul.mubr.bf16.gmra.mrb[0].mxu0 %v3839
  %v3993 = vpop.f32.mrb[0].mxu0
  %v3994 = vadd.f32 0.0, %v3993
  %v3995 = vpop.f32.mrb[0].mxu0
  %v3996 = vpop.f32.mrb[0].mxu0
  %v3997 = vadd.f32 0.0, %v3996
  %v3998 = vpop.f32.mrb[0].mxu0
  %3999 = vmatprep.mubr.bf16.mxu0 %v3842
  %4000 = vmatmul.mubr.bf16.gmra.mrb[0].mxu0 %v3841
  %v4001 = vpop.f32.mrb[0].mxu0
  %v4002 = vadd.f32 0.0, %v4001
  %v4003 = vpop.f32.mrb[0].mxu0
  %v4004 = vpop.f32.mrb[0].mxu0
  %v4005 = vadd.f32 0.0, %v4004
  %v4006 = vpop.f32.mrb[0].mxu0
  %4007 = vmatprep.mubr.bf16.mxu0 %v3844
  %4008 = vmatmul.mubr.bf16.gmra.mrb[0].mxu0 %v3843
  %v4009 = vpop.f32.mrb[0].mxu0
  %v4010 = vadd.f32 0.0, %v4009
  %v4011 = vpop.f32.mrb[0].mxu0
  %v4012 = vpop.f32.mrb[0].mxu0
  %v4013 = vadd.f32 0.0, %v4012
  %v4014 = vpop.f32.mrb[0].mxu0
  %4015 = vmatprep.mubr.bf16.mxu0 %v3846
  %4016 = vmatmul.mubr.bf16.gmra.mrb[0].mxu0 %v3845
  %v4017 = vpop.f32.mrb[0].mxu0
  %v4018 = vadd.f32 0.0, %v4017
  %v4019 = vpop.f32.mrb[0].mxu0
  %v4020 = vpop.f32.mrb[0].mxu0
  %v4021 = vadd.f32 0.0, %v4020
  %v4022 = vpop.f32.mrb[0].mxu0
  %4023 = vmatprep.mubr.bf16.mxu0 %v3848
  %4024 = vmatmul.mubr.bf16.gmra.mrb[0].mxu0 %v3847
  %v4025 = vpop.f32.mrb[0].mxu0
  %v4026 = vadd.f32 0.0, %v4025
  %v4027 = vpop.f32.mrb[0].mxu0
  %v4028 = vpop.f32.mrb[0].mxu0
  %v4029 = vadd.f32 0.0, %v4028
  %v4030 = vpop.f32.mrb[0].mxu0
  %4031 = vmatprep.mubr.bf16.mxu0 %v3850
  %4032 = vmatmul.mubr.bf16.gmra.mrb[0].mxu0 %v3849
  %v4033 = vpop.f32.mrb[0].mxu0
  %v4034 = vadd.f32 0.0, %v4033
  %v4035 = vpop.f32.mrb[0].mxu0
  %v4036 = vpop.f32.mrb[0].mxu0
  %v4037 = vadd.f32 0.0, %v4036
  %v4038 = vpop.f32.mrb[0].mxu0
  %4039 = vmatprep.mubr.bf16.mxu0 %v3852
  %4040 = vmatmul.mubr.bf16.gmra.mrb[0].mxu0 %v3851
  %v4041 = vpop.f32.mrb[0].mxu0
  %v4042 = vadd.f32 0.0, %v4041
  %v4043 = vpop.f32.mrb[0].mxu0
  %v4044 = vpop.f32.mrb[0].mxu0
  %v4045 = vadd.f32 0.0, %v4044
  %v4046 = vpop.f32.mrb[0].mxu0
  %4047 = vmatprep.mubr.bf16.mxu0 %v3854
  %4048 = vmatmul.mubr.bf16.gmra.mrb[0].mxu0 %v3853
  %v4049 = vpop.f32.mrb[0].mxu0
  %v4050 = vadd.f32 0.0, %v4049
  %v4051 = vpop.f32.mrb[0].mxu0
  %v4052 = vpop.f32.mrb[0].mxu0
  %v4053 = vadd.f32 0.0, %v4052
  %v4054 = vpop.f32.mrb[0].mxu0
  %4055 = vmatprep.mubr.bf16.mxu0 %v3856
  %4056 = vmatmul.mubr.bf16.gmra.mrb[0].mxu0 %v3855
  %v4057 = vpop.f32.mrb[0].mxu0
  %v4058 = vadd.f32 0.0, %v4057
  %v4059 = vpop.f32.mrb[0].mxu0
  %v4060 = vpop.f32.mrb[0].mxu0
  %v4061 = vadd.f32 0.0, %v4060
  %v4062 = vpop.f32.mrb[0].mxu0
  %4063 = vmatprep.mubr.bf16.mxu0 %v3858
  %4064 = vmatmul.mubr.bf16.gmra.mrb[0].mxu0 %v3857
  %v4065 = vpop.f32.mrb[0].mxu0
  %v4066 = vadd.f32 0.0, %v4065
  %v4067 = vpop.f32.mrb[0].mxu0
  %v4068 = vpop.f32.mrb[0].mxu0
  %v4069 = vadd.f32 0.0, %v4068
  %v4070 = vpop.f32.mrb[0].mxu0
  %4071 = vmatprep.mubr.bf16.mxu0 %v3860
  %4072 = vmatmul.mubr.bf16.gmra.mrb[0].mxu0 %v3859
  %v4073 = vpop.f32.mrb[0].mxu0
  %v4074 = vadd.f32 0.0, %v4073
  %v4075 = vpop.f32.mrb[0].mxu0
  %v4076 = vpop.f32.mrb[0].mxu0
  %v4077 = vadd.f32 0.0, %v4076
  %v4078 = vpop.f32.mrb[0].mxu0
  %4079 = vmatprep.mubr.bf16.mxu0 %v3862
  %4080 = vmatmul.mubr.bf16.gmra.mrb[0].mxu0 %v3861
  %v4081 = vpop.f32.mrb[0].mxu0
  %v4082 = vadd.f32 0.0, %v4081
  %v4083 = vpop.f32.mrb[0].mxu0
  %v4084 = vpop.f32.mrb[0].mxu0
  %v4085 = vadd.f32 0.0, %v4084
  %v4086 = vpop.f32.mrb[0].mxu0
  %4087 = vmatprep.mubr.bf16.mxu0 %v3864
  %4088 = vmatmul.mubr.bf16.gmra.mrb[0].mxu0 %v3863
  %v4089 = vpop.f32.mrb[0].mxu0
  %v4090 = vadd.f32 0.0, %v4089
  %v4091 = vpop.f32.mrb[0].mxu0
  %v4092 = vpop.f32.mrb[0].mxu0
  %v4093 = vadd.f32 0.0, %v4092
  %v4094 = vpop.f32.mrb[0].mxu0
  %4095 = vmatprep.mubr.bf16.mxu0 %v3866
  %4096 = vmatmul.mubr.bf16.gmra.mrb[0].mxu0 %v3865
  %v4097 = vpop.f32.mrb[0].mxu0
  %v4098 = vadd.f32 0.0, %v4097
  %v4099 = vpop.f32.mrb[0].mxu0
  %v4100 = vpop.f32.mrb[0].mxu0
  %v4101 = vadd.f32 0.0, %v4100
  %v4102 = vpop.f32.mrb[0].mxu0
  %4103 = vmatprep.mubr.bf16.mxu0 %v3868
  %4104 = vmatmul.mubr.bf16.gmra.mrb[0].mxu0 %v3867
  %v4105 = vpop.f32.mrb[0].mxu0
  %v4106 = vadd.f32 0.0, %v4105
  %v4107 = vpop.f32.mrb[0].mxu0
  %v4108 = vpop.f32.mrb[0].mxu0
  %v4109 = vadd.f32 0.0, %v4108
  %v4110 = vpop.f32.mrb[0].mxu0
  %4111 = vmatprep.mubr.bf16.mxu0 %v3870
  %4112 = vmatmul.mubr.bf16.gmra.mrb[0].mxu0 %v3869
  %v4113 = vpop.f32.mrb[0].mxu0
  %v4114 = vadd.f32 0.0, %v4113
  %v4115 = vpop.f32.mrb[0].mxu0
  %v4116 = vpop.f32.mrb[0].mxu0
  %v4117 = vadd.f32 0.0, %v4116
  %v4118 = vpop.f32.mrb[0].mxu0
  %4119 = vmatprep.mubr.bf16.mxu0 %v3872
  %4120 = vmatmul.mubr.bf16.gmra.mrb[0].mxu0 %v3871
  %v4121 = vpop.f32.mrb[0].mxu0
  %v4122 = vadd.f32 0.0, %v4121
  %v4123 = vpop.f32.mrb[0].mxu0
  %v4124 = vpop.f32.mrb[0].mxu0
  %v4125 = vadd.f32 0.0, %v4124
  %v4126 = vpop.f32.mrb[0].mxu0
  %4127 = vmatprep.mubr.bf16.mxu0 %v3874
  %4128 = vmatmul.mubr.bf16.gmra.mrb[0].mxu0 %v3873
  %v4129 = vpop.f32.mrb[0].mxu0
  %v4130 = vadd.f32 0.0, %v4129
  %v4131 = vpop.f32.mrb[0].mxu0
  %v4132 = vpop.f32.mrb[0].mxu0
  %v4133 = vadd.f32 0.0, %v4132
  %v4134 = vpop.f32.mrb[0].mxu0
  %4135 = vmatprep.mubr.bf16.mxu0 %v3876
  %4136 = vmatmul.mubr.bf16.gmra.mrb[0].mxu0 %v3875
  %v4137 = vpop.f32.mrb[0].mxu0
  %v4138 = vadd.f32 0.0, %v4137
  %v4139 = vpop.f32.mrb[0].mxu0
  %v4140 = vpop.f32.mrb[0].mxu0
  %v4141 = vadd.f32 0.0, %v4140
  %v4142 = vpop.f32.mrb[0].mxu0
  %4143 = vmatprep.mubr.bf16.mxu0 %v3878
  %4144 = vmatmul.mubr.bf16.gmra.mrb[0].mxu0 %v3877
  %v4145 = vpop.f32.mrb[0].mxu0
  %v4146 = vadd.f32 0.0, %v4145
  %v4147 = vpop.f32.mrb[0].mxu0
  %v4148 = vpop.f32.mrb[0].mxu0
  %v4149 = vadd.f32 0.0, %v4148
  %v4150 = vpop.f32.mrb[0].mxu0
  %4151 = vmatprep.mubr.bf16.mxu0 %v3880
  %4152 = vmatmul.mubr.bf16.gmra.mrb[0].mxu0 %v3879
  %v4153 = vpop.f32.mrb[0].mxu0
  %v4154 = vadd.f32 0.0, %v4153
  %v4155 = vpop.f32.mrb[0].mxu0
  %v4156 = vpop.f32.mrb[0].mxu0
  %v4157 = vadd.f32 0.0, %v4156
  %v4158 = vpop.f32.mrb[0].mxu0
  %4159 = vmatprep.mubr.bf16.mxu0 %v3882
  %4160 = vmatmul.mubr.bf16.gmra.mrb[0].mxu0 %v3881
  %v4161 = vpop.f32.mrb[0].mxu0
  %v4162 = vadd.f32 0.0, %v4161
  %v4163 = vpop.f32.mrb[0].mxu0
  %v4164 = vpop.f32.mrb[0].mxu0
  %v4165 = vadd.f32 0.0, %v4164
  %v4166 = vpop.f32.mrb[0].mxu0
  %4167 = vmatprep.mubr.bf16.mxu0 %v3884
  %4168 = vmatmul.mubr.bf16.gmra.mrb[0].mxu0 %v3883
  %v4169 = vpop.f32.mrb[0].mxu0
  %v4170 = vadd.f32 0.0, %v4169
  %v4171 = vpop.f32.mrb[0].mxu0
  %v4172 = vpop.f32.mrb[0].mxu0
  %v4173 = vadd.f32 0.0, %v4172
  %v4174 = vpop.f32.mrb[0].mxu0
  %4175 = vmatprep.mubr.bf16.mxu0 %v3886
  %4176 = vmatmul.mubr.bf16.gmra.mrb[0].mxu0 %v3885
  %v4177 = vpop.f32.mrb[0].mxu0
  %v4178 = vadd.f32 0.0, %v4177
  %v4179 = vpop.f32.mrb[0].mxu0
  %v4180 = vpop.f32.mrb[0].mxu0
  %v4181 = vadd.f32 0.0, %v4180
  %v4182 = vpop.f32.mrb[0].mxu0
  %4183 = vmatprep.mubr.bf16.mxu0 %v3888
  %4184 = vmatmul.mubr.bf16.gmra.mrb[0].mxu0 %v3887
  %v4185 = vpop.f32.mrb[0].mxu0
  %v4186 = vadd.f32 0.0, %v4185
  %v4187 = vpop.f32.mrb[0].mxu0
  %v4188 = vpop.f32.mrb[0].mxu0
  %v4189 = vadd.f32 0.0, %v4188
  %v4190 = vpop.f32.mrb[0].mxu0
  %4191 = vmatprep.mubr.bf16.mxu0 %v3890
  %4192 = vmatmul.mubr.bf16.gmra.mrb[0].mxu0 %v3889
  %v4193 = vpop.f32.mrb[0].mxu0
  %v4194 = vadd.f32 0.0, %v4193
  %v4195 = vpop.f32.mrb[0].mxu0
  %v4196 = vpop.f32.mrb[0].mxu0
  %v4197 = vadd.f32 0.0, %v4196
  %v4198 = vpop.f32.mrb[0].mxu0
  %4199 = vmatprep.mubr.bf16.mxu0 %v3892
  %4200 = vmatmul.mubr.bf16.gmra.mrb[0].mxu0 %v3891
  %v4201 = vpop.f32.mrb[0].mxu0
  %v4202 = vadd.f32 0.0, %v4201
  %v4203 = vpop.f32.mrb[0].mxu0
  %v4204 = vpop.f32.mrb[0].mxu0
  %v4205 = vadd.f32 0.0, %v4204
  %v4206 = vpop.f32.mrb[0].mxu0
  %4207 = vmatprep.mubr.bf16.mxu0 %v3894
  %4208 = vmatmul.mubr.bf16.gmra.mrb[0].mxu0 %v3893
  %v4209 = vpop.f32.mrb[0].mxu0
  %v4210 = vadd.f32 0.0, %v4209
  %v4211 = vpop.f32.mrb[0].mxu0
  %v4212 = vpop.f32.mrb[0].mxu0
  %v4213 = vadd.f32 0.0, %v4212
  %v4214 = vpop.f32.mrb[0].mxu0
  %4215 = vmatprep.mubr.bf16.mxu0 %v3896
  %4216 = vmatmul.mubr.bf16.gmra.mrb[0].mxu0 %v3895
  %v4217 = vpop.f32.mrb[0].mxu0
  %v4218 = vadd.f32 0.0, %v4217
  %v4219 = vpop.f32.mrb[0].mxu0
  %v4220 = vpop.f32.mrb[0].mxu0
  %v4221 = vadd.f32 0.0, %v4220
  %v4222 = vpop.f32.mrb[0].mxu0
  %4223 = vmatprep.mubr.bf16.mxu0 %v3898
  %4224 = vmatmul.mubr.bf16.gmra.mrb[0].mxu0 %v3897
  %v4225 = vpop.f32.mrb[0].mxu0
  %v4226 = vadd.f32 0.0, %v4225
  %v4227 = vpop.f32.mrb[0].mxu0
  %v4228 = vpop.f32.mrb[0].mxu0
  %v4229 = vadd.f32 0.0, %v4228
  %v4230 = vpop.f32.mrb[0].mxu0
  %4231 = vdwg.mxu0
  %v4232 = vpack.c.bf16 %v3997, %v3994
  %v4233 = vpack.c.bf16 %v4005, %v4002
  %v4234 = vpack.c.bf16 %v4013, %v4010
  %v4235 = vpack.c.bf16 %v4021, %v4018
  %v4236 = vpack.c.bf16 %v4029, %v4026
  %v4237 = vpack.c.bf16 %v4037, %v4034
  %v4238 = vpack.c.bf16 %v4045, %v4042
  %v4239 = vpack.c.bf16 %v4053, %v4050
  %v4240 = vpack.c.bf16 %v4061, %v4058
  %v4241 = vpack.c.bf16 %v4069, %v4066
  %v4242 = vpack.c.bf16 %v4077, %v4074
  %v4243 = vpack.c.bf16 %v4085, %v4082
  %v4244 = vpack.c.bf16 %v4093, %v4090
  %v4245 = vpack.c.bf16 %v4101, %v4098
  %v4246 = vpack.c.bf16 %v4109, %v4106
  %v4247 = vpack.c.bf16 %v4117, %v4114
  %v4248 = vpack.c.bf16 %v4125, %v4122
  %v4249 = vpack.c.bf16 %v4133, %v4130
  %v4250 = vpack.c.bf16 %v4141, %v4138
  %v4251 = vpack.c.bf16 %v4149, %v4146
  %v4252 = vpack.c.bf16 %v4157, %v4154
  %v4253 = vpack.c.bf16 %v4165, %v4162
  %v4254 = vpack.c.bf16 %v4173, %v4170
  %v4255 = vpack.c.bf16 %v4181, %v4178
  %v4256 = vpack.c.bf16 %v4189, %v4186
  %v4257 = vpack.c.bf16 %v4197, %v4194
  %v4258 = vpack.c.bf16 %v4205, %v4202
  %v4259 = vpack.c.bf16 %v4213, %v4210
  %v4260 = vpack.c.bf16 %v4221, %v4218
  %v4261 = vpack.c.bf16 %v4229, %v4226
  %v4262 = vld [vmem:[%s5] sm:$0xff]
  %v4263 = vld [vmem:[%s5 + $0x8] sm:$0xff]
  %v4264 = vld [vmem:[%s5 + $0x10] sm:$0xff]
  %v4265 = vld [vmem:[%s5 + $0x18] sm:$0xff]
  %v4266 = vld [vmem:[%s5 + $0x20] sm:$0xff]
  %v4267 = vld [vmem:[%s5 + $0x28] sm:$0xff]
  %v4268 = vld [vmem:[%s5 + $0x30] sm:$0xff]
  %v4269 = vld [vmem:[%s5 + $0x38] sm:$0xff]
  %v4270 = vld [vmem:[%s5 + $0x40] sm:$0xff]
  %v4271 = vld [vmem:[%s5 + $0x48] sm:$0xff]
  %v4272 = vld [vmem:[%s5 + $0x50] sm:$0xff]
  %v4273 = vld [vmem:[%s5 + $0x58] sm:$0xff]
  %v4274 = vld [vmem:[%s5 + $0x60] sm:$0xff]
  %v4275 = vld [vmem:[%s5 + $0x68] sm:$0xff]
  %v4276 = vld [vmem:[%s5 + $0x70] sm:$0xff]
  %v4277 = vld [vmem:[%s5 + $0x78] sm:$0xff]
  %s4278 = scalar_lea.vmem %s5, 128
  %v4279 = vld [vmem:[%s4278] sm:$0xff]
  %v4280 = vld [vmem:[%s4278 + $0x8] sm:$0xff]
  %v4281 = vld [vmem:[%s4278 + $0x10] sm:$0xff]
  %v4282 = vld [vmem:[%s4278 + $0x18] sm:$0xff]
  %v4283 = vld [vmem:[%s4278 + $0x20] sm:$0xff]
  %v4284 = vld [vmem:[%s4278 + $0x28] sm:$0xff]
  %v4285 = vld [vmem:[%s4278 + $0x30] sm:$0xff]
  %v4286 = vld [vmem:[%s4278 + $0x38] sm:$0xff]
  %v4287 = vld [vmem:[%s4278 + $0x40] sm:$0xff]
  %v4288 = vld [vmem:[%s4278 + $0x48] sm:$0xff]
  %v4289 = vld [vmem:[%s4278 + $0x50] sm:$0xff]
  %v4290 = vld [vmem:[%s4278 + $0x58] sm:$0xff]
  %v4291 = vld [vmem:[%s4278 + $0x60] sm:$0xff]
  %v4292 = vld [vmem:[%s4278 + $0x68] sm:$0xff]
  %v4293 = vld [vmem:[%s4278 + $0x70] sm:$0xff]
  %v4294 = vld [vmem:[%s4278 + $0x78] sm:$0xff]
  %v4311 = vunpack.c.l.b16 %v4279
  %v4312 = vunpack.c.h.b16 %v4279
  %v4313 = vunpack.c.l.b16 %v4280
  %v4314 = vunpack.c.h.b16 %v4280
  %v4315 = vunpack.c.l.b16 %v4281
  %v4316 = vunpack.c.h.b16 %v4281
  %v4317 = vunpack.c.l.b16 %v4282
  %v4318 = vunpack.c.h.b16 %v4282
  %v4319 = vunpack.c.l.b16 %v4283
  %v4320 = vunpack.c.h.b16 %v4283
  %v4321 = vunpack.c.l.b16 %v4284
  %v4322 = vunpack.c.h.b16 %v4284
  %v4323 = vunpack.c.l.b16 %v4285
  %v4324 = vunpack.c.h.b16 %v4285
  %v4325 = vunpack.c.l.b16 %v4286
  %v4326 = vunpack.c.h.b16 %v4286
  %v4327 = vunpack.c.l.b16 %v4287
  %v4328 = vunpack.c.h.b16 %v4287
  %v4329 = vunpack.c.l.b16 %v4288
  %v4330 = vunpack.c.h.b16 %v4288
  %v4331 = vunpack.c.l.b16 %v4289
  %v4332 = vunpack.c.h.b16 %v4289
  %v4333 = vunpack.c.l.b16 %v4290
  %v4334 = vunpack.c.h.b16 %v4290
  %v4335 = vunpack.c.l.b16 %v4291
  %v4336 = vunpack.c.h.b16 %v4291
  %v4337 = vunpack.c.l.b16 %v4292
  %v4338 = vunpack.c.h.b16 %v4292
  %v4339 = vunpack.c.l.b16 %v4293
  %v4340 = vunpack.c.h.b16 %v4293
  %v4341 = vunpack.c.l.b16 %v4294
  %v4342 = vunpack.c.h.b16 %v4294
  %v4343 = vpack.c.b16 %v4313, %v4311
  %v4344 = vpack.c.b16 %v4314, %v4312
  %v4345 = vpack.c.b16 %v4317, %v4315
  %v4346 = vpack.c.b16 %v4318, %v4316
  %v4347 = vpack.c.b16 %v4321, %v4319
  %v4348 = vpack.c.b16 %v4322, %v4320
  %v4349 = vpack.c.b16 %v4325, %v4323
  %v4350 = vpack.c.b16 %v4326, %v4324
  %v4351 = vpack.c.b16 %v4329, %v4327
  %v4352 = vpack.c.b16 %v4330, %v4328
  %v4353 = vpack.c.b16 %v4333, %v4331
  %v4354 = vpack.c.b16 %v4334, %v4332
  %v4355 = vpack.c.b16 %v4337, %v4335
  %v4356 = vpack.c.b16 %v4338, %v4336
  %v4357 = vpack.c.b16 %v4341, %v4339
  %v4358 = vpack.c.b16 %v4342, %v4340
  %4375 = vmatprep.subr.bf16.mxu0 %v4344
  %4376 = vmatpush1.bf16.msra.mxu0 %v4343
  %4377 = vmatprep.subr.bf16.mxu0 %v4346
  %4378 = vmatpush1.bf16.msra.mxu0 %v4345
  %4379 = vmatprep.subr.bf16.mxu0 %v4348
  %4380 = vmatpush1.bf16.msra.mxu0 %v4347
  %4381 = vmatprep.subr.bf16.mxu0 %v4350
  %4382 = vmatpush1.bf16.msra.mxu0 %v4349
  %4383 = vmatprep.subr.bf16.mxu0 %v4352
  %4384 = vmatpush1.bf16.msra.mxu0 %v4351
  %4385 = vmatprep.subr.bf16.mxu0 %v4354
  %4386 = vmatpush1.bf16.msra.mxu0 %v4353
  %4387 = vmatprep.subr.bf16.mxu0 %v4356
  %4388 = vmatpush1.bf16.msra.mxu0 %v4355
  %4389 = vmatprep.subr.bf16.mxu0 %v4358
  %4390 = vmatpush1.bf16.msra.mxu0 %v4357
  %4391 = vmatprep.subr.bf16.mxu0 0
  %4392 = vmatpush1.bf16.msra.mxu0 0
  %4393 = vmatprep.subr.bf16.mxu0 0
  %4394 = vmatpush1.bf16.msra.mxu0 0
  %4395 = vmatprep.subr.bf16.mxu0 0
  %4396 = vmatpush1.bf16.msra.mxu0 0
  %4397 = vmatprep.subr.bf16.mxu0 0
  %4398 = vmatpush1.bf16.msra.mxu0 0
  %4399 = vmatprep.subr.bf16.mxu0 0
  %4400 = vmatpush1.bf16.msra.mxu0 0
  %4401 = vmatprep.subr.bf16.mxu0 0
  %4402 = vmatpush1.bf16.msra.mxu0 0
  %4403 = vmatprep.subr.bf16.mxu0 0
  %4404 = vmatpush1.bf16.msra.mxu0 0
  %4405 = vmatprep.subr.bf16.mxu0 0
  %4406 = vmatpush1.bf16.msra.mxu0 0
  %4407 = vmatprep.mubr.bf16.mxu0 0
  %4408 = vmatmul.mubr.bf16.gmra.mrb[0].mxu0 %v4238
  %v4409 = vpop.f32.mrb[0].mxu0
  %v4410 = vadd.f32 0.0, %v4409
  %v4411 = vpop.f32.mrb[0].mxu0
  %v4412 = vadd.f32 0.0, %v4411
  %v4413 = vpop.f32.mrb[0].mxu0
  %v4414 = vadd.f32 0.0, %v4413
  %v4415 = vpop.f32.mrb[0].mxu0
  %v4416 = vadd.f32 0.0, %v4415
  %4417 = vmatprep.mubr.bf16.mxu0 0
  %4418 = vmatmul.mubr.bf16.gmra.mrb[0].mxu0 %v4239
  %v4419 = vpop.f32.mrb[0].mxu0
  %v4420 = vadd.f32 0.0, %v4419
  %v4421 = vpop.f32.mrb[0].mxu0
  %v4422 = vadd.f32 0.0, %v4421
  %v4423 = vpop.f32.mrb[0].mxu0
  %v4424 = vadd.f32 0.0, %v4423
  %v4425 = vpop.f32.mrb[0].mxu0
  %v4426 = vadd.f32 0.0, %v4425
  %4427 = vmatprep.mubr.bf16.mxu0 0
  %4428 = vmatmul.mubr.bf16.gmra.mrb[0].mxu0 %v4240
  %v4429 = vpop.f32.mrb[0].mxu0
  %v4430 = vadd.f32 0.0, %v4429
  %v4431 = vpop.f32.mrb[0].mxu0
  %v4432 = vadd.f32 0.0, %v4431
  %v4433 = vpop.f32.mrb[0].mxu0
  %v4434 = vadd.f32 0.0, %v4433
  %v4435 = vpop.f32.mrb[0].mxu0
  %v4436 = vadd.f32 0.0, %v4435
  %4437 = vmatprep.mubr.bf16.mxu0 0
  %4438 = vmatmul.mubr.bf16.gmra.mrb[0].mxu0 %v4241
  %v4439 = vpop.f32.mrb[0].mxu0
  %v4440 = vadd.f32 0.0, %v4439
  %v4441 = vpop.f32.mrb[0].mxu0
  %v4442 = vadd.f32 0.0, %v4441
  %v4443 = vpop.f32.mrb[0].mxu0
  %v4444 = vadd.f32 0.0, %v4443
  %v4445 = vpop.f32.mrb[0].mxu0
  %v4446 = vadd.f32 0.0, %v4445
  %4447 = vmatprep.mubr.bf16.mxu0 0
  %4448 = vmatmul.mubr.bf16.gmra.mrb[0].mxu0 %v4242
  %v4449 = vpop.f32.mrb[0].mxu0
  %v4450 = vadd.f32 0.0, %v4449
  %v4451 = vpop.f32.mrb[0].mxu0
  %v4452 = vadd.f32 0.0, %v4451
  %v4453 = vpop.f32.mrb[0].mxu0
  %v4454 = vadd.f32 0.0, %v4453
  %v4455 = vpop.f32.mrb[0].mxu0
  %v4456 = vadd.f32 0.0, %v4455
  %4457 = vmatprep.mubr.bf16.mxu0 0
  %4458 = vmatmul.mubr.bf16.gmra.mrb[0].mxu0 %v4243
  %v4459 = vpop.f32.mrb[0].mxu0
  %v4460 = vadd.f32 0.0, %v4459
  %v4461 = vpop.f32.mrb[0].mxu0
  %v4462 = vadd.f32 0.0, %v4461
  %v4463 = vpop.f32.mrb[0].mxu0
  %v4464 = vadd.f32 0.0, %v4463
  %v4465 = vpop.f32.mrb[0].mxu0
  %v4466 = vadd.f32 0.0, %v4465
  %4467 = vdwg.mxu0
  %v4484 = vunpack.c.l.b16 %v4262
  %v4485 = vunpack.c.h.b16 %v4262
  %v4486 = vunpack.c.l.b16 %v4263
  %v4487 = vunpack.c.h.b16 %v4263
  %v4488 = vunpack.c.l.b16 %v4264
  %v4489 = vunpack.c.h.b16 %v4264
  %v4490 = vunpack.c.l.b16 %v4265
  %v4491 = vunpack.c.h.b16 %v4265
  %v4492 = vunpack.c.l.b16 %v4266
  %v4493 = vunpack.c.h.b16 %v4266
  %v4494 = vunpack.c.l.b16 %v4267
  %v4495 = vunpack.c.h.b16 %v4267
  %v4496 = vunpack.c.l.b16 %v4268
  %v4497 = vunpack.c.h.b16 %v4268
  %v4498 = vunpack.c.l.b16 %v4269
  %v4499 = vunpack.c.h.b16 %v4269
  %v4500 = vunpack.c.l.b16 %v4270
  %v4501 = vunpack.c.h.b16 %v4270
  %v4502 = vunpack.c.l.b16 %v4271
  %v4503 = vunpack.c.h.b16 %v4271
  %v4504 = vunpack.c.l.b16 %v4272
  %v4505 = vunpack.c.h.b16 %v4272
  %v4506 = vunpack.c.l.b16 %v4273
  %v4507 = vunpack.c.h.b16 %v4273
  %v4508 = vunpack.c.l.b16 %v4274
  %v4509 = vunpack.c.h.b16 %v4274
  %v4510 = vunpack.c.l.b16 %v4275
  %v4511 = vunpack.c.h.b16 %v4275
  %v4512 = vunpack.c.l.b16 %v4276
  %v4513 = vunpack.c.h.b16 %v4276
  %v4514 = vunpack.c.l.b16 %v4277
  %v4515 = vunpack.c.h.b16 %v4277
  %v4516 = vpack.c.b16 %v4486, %v4484
  %v4517 = vpack.c.b16 %v4487, %v4485
  %v4518 = vpack.c.b16 %v4490, %v4488
  %v4519 = vpack.c.b16 %v4491, %v4489
  %v4520 = vpack.c.b16 %v4494, %v4492
  %v4521 = vpack.c.b16 %v4495, %v4493
  %v4522 = vpack.c.b16 %v4498, %v4496
  %v4523 = vpack.c.b16 %v4499, %v4497
  %v4524 = vpack.c.b16 %v4502, %v4500
  %v4525 = vpack.c.b16 %v4503, %v4501
  %v4526 = vpack.c.b16 %v4506, %v4504
  %v4527 = vpack.c.b16 %v4507, %v4505
  %v4528 = vpack.c.b16 %v4510, %v4508
  %v4529 = vpack.c.b16 %v4511, %v4509
  %v4530 = vpack.c.b16 %v4514, %v4512
  %v4531 = vpack.c.b16 %v4515, %v4513
  %4548 = vmatprep.subr.bf16.mxu0 %v4517
  %4549 = vmatpush1.bf16.msra.mxu0 %v4516
  %4550 = vmatprep.subr.bf16.mxu0 %v4519
  %4551 = vmatpush1.bf16.msra.mxu0 %v4518
  %4552 = vmatprep.subr.bf16.mxu0 %v4521
  %4553 = vmatpush1.bf16.msra.mxu0 %v4520
  %4554 = vmatprep.subr.bf16.mxu0 %v4523
  %4555 = vmatpush1.bf16.msra.mxu0 %v4522
  %4556 = vmatprep.subr.bf16.mxu0 %v4525
  %4557 = vmatpush1.bf16.msra.mxu0 %v4524
  %4558 = vmatprep.subr.bf16.mxu0 %v4527
  %4559 = vmatpush1.bf16.msra.mxu0 %v4526
  %4560 = vmatprep.subr.bf16.mxu0 %v4529
  %4561 = vmatpush1.bf16.msra.mxu0 %v4528
  %4562 = vmatprep.subr.bf16.mxu0 %v4531
  %4563 = vmatpush1.bf16.msra.mxu0 %v4530
  %4564 = vmatprep.subr.bf16.mxu0 0
  %4565 = vmatpush1.bf16.msra.mxu0 0
  %4566 = vmatprep.subr.bf16.mxu0 0
  %4567 = vmatpush1.bf16.msra.mxu0 0
  %4568 = vmatprep.subr.bf16.mxu0 0
  %4569 = vmatpush1.bf16.msra.mxu0 0
  %4570 = vmatprep.subr.bf16.mxu0 0
  %4571 = vmatpush1.bf16.msra.mxu0 0
  %4572 = vmatprep.subr.bf16.mxu0 0
  %4573 = vmatpush1.bf16.msra.mxu0 0
  %4574 = vmatprep.subr.bf16.mxu0 0
  %4575 = vmatpush1.bf16.msra.mxu0 0
  %4576 = vmatprep.subr.bf16.mxu0 0
  %4577 = vmatpush1.bf16.msra.mxu0 0
  %4578 = vmatprep.subr.bf16.mxu0 0
  %4579 = vmatpush1.bf16.msra.mxu0 0
  %4580 = vmatprep.mubr.bf16.mxu0 0
  %4581 = vmatmul.mubr.bf16.gmra.mrb[0].mxu0 %v4232
  %v4582 = vpop.f32.mrb[0].mxu0
  %v4583 = vadd.f32 %v4410, %v4582
  %v4584 = vpop.f32.mrb[0].mxu0
  %v4585 = vadd.f32 %v4412, %v4584
  %v4586 = vpop.f32.mrb[0].mxu0
  %v4587 = vadd.f32 %v4414, %v4586
  %v4588 = vpop.f32.mrb[0].mxu0
  %v4589 = vadd.f32 %v4416, %v4588
  %4590 = vmatprep.mubr.bf16.mxu0 0
  %4591 = vmatmul.mubr.bf16.gmra.mrb[0].mxu0 %v4233
  %v4592 = vpop.f32.mrb[0].mxu0
  %v4593 = vadd.f32 %v4420, %v4592
  %v4594 = vpop.f32.mrb[0].mxu0
  %v4595 = vadd.f32 %v4422, %v4594
  %v4596 = vpop.f32.mrb[0].mxu0
  %v4597 = vadd.f32 %v4424, %v4596
  %v4598 = vpop.f32.mrb[0].mxu0
  %v4599 = vadd.f32 %v4426, %v4598
  %4600 = vmatprep.mubr.bf16.mxu0 0
  %4601 = vmatmul.mubr.bf16.gmra.mrb[0].mxu0 %v4234
  %v4602 = vpop.f32.mrb[0].mxu0
  %v4603 = vadd.f32 %v4430, %v4602
  %v4604 = vpop.f32.mrb[0].mxu0
  %v4605 = vadd.f32 %v4432, %v4604
  %v4606 = vpop.f32.mrb[0].mxu0
  %v4607 = vadd.f32 %v4434, %v4606
  %v4608 = vpop.f32.mrb[0].mxu0
  %v4609 = vadd.f32 %v4436, %v4608
  %4610 = vmatprep.mubr.bf16.mxu0 0
  %4611 = vmatmul.mubr.bf16.gmra.mrb[0].mxu0 %v4235
  %v4612 = vpop.f32.mrb[0].mxu0
  %v4613 = vadd.f32 %v4440, %v4612
  %v4614 = vpop.f32.mrb[0].mxu0
  %v4615 = vadd.f32 %v4442, %v4614
  %v4616 = vpop.f32.mrb[0].mxu0
  %v4617 = vadd.f32 %v4444, %v4616
  %v4618 = vpop.f32.mrb[0].mxu0
  %v4619 = vadd.f32 %v4446, %v4618
  %4620 = vmatprep.mubr.bf16.mxu0 0
  %4621 = vmatmul.mubr.bf16.gmra.mrb[0].mxu0 %v4236
  %v4622 = vpop.f32.mrb[0].mxu0
  %v4623 = vadd.f32 %v4450, %v4622
  %v4624 = vpop.f32.mrb[0].mxu0
  %v4625 = vadd.f32 %v4452, %v4624
  %v4626 = vpop.f32.mrb[0].mxu0
  %v4627 = vadd.f32 %v4454, %v4626
  %v4628 = vpop.f32.mrb[0].mxu0
  %v4629 = vadd.f32 %v4456, %v4628
  %4630 = vmatprep.mubr.bf16.mxu0 0
  %4631 = vmatmul.mubr.bf16.gmra.mrb[0].mxu0 %v4237
  %v4632 = vpop.f32.mrb[0].mxu0
  %v4633 = vadd.f32 %v4460, %v4632
  %v4634 = vpop.f32.mrb[0].mxu0
  %v4635 = vadd.f32 %v4462, %v4634
  %v4636 = vpop.f32.mrb[0].mxu0
  %v4637 = vadd.f32 %v4464, %v4636
  %v4638 = vpop.f32.mrb[0].mxu0
  %v4639 = vadd.f32 %v4466, %v4638
  %4640 = vdwg.mxu0
  %s4641 = scalar_lea.vmem %s5, 256
  %v4642 = vld [vmem:[%s4641] sm:$0xff]
  %v4643 = vld [vmem:[%s4641 + $0x8] sm:$0xff]
  %v4644 = vld [vmem:[%s4641 + $0x10] sm:$0xff]
  %v4645 = vld [vmem:[%s4641 + $0x18] sm:$0xff]
  %v4646 = vld [vmem:[%s4641 + $0x20] sm:$0xff]
  %v4647 = vld [vmem:[%s4641 + $0x28] sm:$0xff]
  %v4648 = vld [vmem:[%s4641 + $0x30] sm:$0xff]
  %v4649 = vld [vmem:[%s4641 + $0x38] sm:$0xff]
  %v4650 = vld [vmem:[%s4641 + $0x40] sm:$0xff]
  %v4651 = vld [vmem:[%s4641 + $0x48] sm:$0xff]
  %v4652 = vld [vmem:[%s4641 + $0x50] sm:$0xff]
  %v4653 = vld [vmem:[%s4641 + $0x58] sm:$0xff]
  %v4654 = vld [vmem:[%s4641 + $0x60] sm:$0xff]
  %v4655 = vld [vmem:[%s4641 + $0x68] sm:$0xff]
  %v4656 = vld [vmem:[%s4641 + $0x70] sm:$0xff]
  %v4657 = vld [vmem:[%s4641 + $0x78] sm:$0xff]
  %v4674 = vunpack.c.l.b16 %v4642
  %v4675 = vunpack.c.h.b16 %v4642
  %v4676 = vunpack.c.l.b16 %v4643
  %v4677 = vunpack.c.h.b16 %v4643
  %v4678 = vunpack.c.l.b16 %v4644
  %v4679 = vunpack.c.h.b16 %v4644
  %v4680 = vunpack.c.l.b16 %v4645
  %v4681 = vunpack.c.h.b16 %v4645
  %v4682 = vunpack.c.l.b16 %v4646
  %v4683 = vunpack.c.h.b16 %v4646
  %v4684 = vunpack.c.l.b16 %v4647
  %v4685 = vunpack.c.h.b16 %v4647
  %v4686 = vunpack.c.l.b16 %v4648
  %v4687 = vunpack.c.h.b16 %v4648
  %v4688 = vunpack.c.l.b16 %v4649
  %v4689 = vunpack.c.h.b16 %v4649
  %v4690 = vunpack.c.l.b16 %v4650
  %v4691 = vunpack.c.h.b16 %v4650
  %v4692 = vunpack.c.l.b16 %v4651
  %v4693 = vunpack.c.h.b16 %v4651
  %v4694 = vunpack.c.l.b16 %v4652
  %v4695 = vunpack.c.h.b16 %v4652
  %v4696 = vunpack.c.l.b16 %v4653
  %v4697 = vunpack.c.h.b16 %v4653
  %v4698 = vunpack.c.l.b16 %v4654
  %v4699 = vunpack.c.h.b16 %v4654
  %v4700 = vunpack.c.l.b16 %v4655
  %v4701 = vunpack.c.h.b16 %v4655
  %v4702 = vunpack.c.l.b16 %v4656
  %v4703 = vunpack.c.h.b16 %v4656
  %v4704 = vunpack.c.l.b16 %v4657
  %v4705 = vunpack.c.h.b16 %v4657
  %v4706 = vpack.c.b16 %v4676, %v4674
  %v4707 = vpack.c.b16 %v4677, %v4675
  %v4708 = vpack.c.b16 %v4680, %v4678
  %v4709 = vpack.c.b16 %v4681, %v4679
  %v4710 = vpack.c.b16 %v4684, %v4682
  %v4711 = vpack.c.b16 %v4685, %v4683
  %v4712 = vpack.c.b16 %v4688, %v4686
  %v4713 = vpack.c.b16 %v4689, %v4687
  %v4714 = vpack.c.b16 %v4692, %v4690
  %v4715 = vpack.c.b16 %v4693, %v4691
  %v4716 = vpack.c.b16 %v4696, %v4694
  %v4717 = vpack.c.b16 %v4697, %v4695
  %v4718 = vpack.c.b16 %v4700, %v4698
  %v4719 = vpack.c.b16 %v4701, %v4699
  %v4720 = vpack.c.b16 %v4704, %v4702
  %v4721 = vpack.c.b16 %v4705, %v4703
  %4738 = vmatprep.subr.bf16.mxu0 %v4707
  %4739 = vmatpush1.bf16.msra.mxu0 %v4706
  %4740 = vmatprep.subr.bf16.mxu0 %v4709
  %4741 = vmatpush1.bf16.msra.mxu0 %v4708
  %4742 = vmatprep.subr.bf16.mxu0 %v4711
  %4743 = vmatpush1.bf16.msra.mxu0 %v4710
  %4744 = vmatprep.subr.bf16.mxu0 %v4713
  %4745 = vmatpush1.bf16.msra.mxu0 %v4712
  %4746 = vmatprep.subr.bf16.mxu0 %v4715
  %4747 = vmatpush1.bf16.msra.mxu0 %v4714
  %4748 = vmatprep.subr.bf16.mxu0 %v4717
  %4749 = vmatpush1.bf16.msra.mxu0 %v4716
  %4750 = vmatprep.subr.bf16.mxu0 %v4719
  %4751 = vmatpush1.bf16.msra.mxu0 %v4718
  %4752 = vmatprep.subr.bf16.mxu0 %v4721
  %4753 = vmatpush1.bf16.msra.mxu0 %v4720
  %4754 = vmatprep.subr.bf16.mxu0 0
  %4755 = vmatpush1.bf16.msra.mxu0 0
  %4756 = vmatprep.subr.bf16.mxu0 0
  %4757 = vmatpush1.bf16.msra.mxu0 0
  %4758 = vmatprep.subr.bf16.mxu0 0
  %4759 = vmatpush1.bf16.msra.mxu0 0
  %4760 = vmatprep.subr.bf16.mxu0 0
  %4761 = vmatpush1.bf16.msra.mxu0 0
  %4762 = vmatprep.subr.bf16.mxu0 0
  %4763 = vmatpush1.bf16.msra.mxu0 0
  %4764 = vmatprep.subr.bf16.mxu0 0
  %4765 = vmatpush1.bf16.msra.mxu0 0
  %4766 = vmatprep.subr.bf16.mxu0 0
  %4767 = vmatpush1.bf16.msra.mxu0 0
  %4768 = vmatprep.subr.bf16.mxu0 0
  %4769 = vmatpush1.bf16.msra.mxu0 0
  %4770 = vmatprep.mubr.bf16.mxu0 0
  %4771 = vmatmul.mubr.bf16.gmra.mrb[0].mxu0 %v4244
  %v4772 = vpop.f32.mrb[0].mxu0
  %v4773 = vadd.f32 0.0, %v4772
  %v4774 = vpop.f32.mrb[0].mxu0
  %v4775 = vadd.f32 0.0, %v4774
  %v4776 = vpop.f32.mrb[0].mxu0
  %v4777 = vadd.f32 0.0, %v4776
  %v4778 = vpop.f32.mrb[0].mxu0
  %v4779 = vadd.f32 0.0, %v4778
  %4780 = vmatprep.mubr.bf16.mxu0 0
  %4781 = vmatmul.mubr.bf16.gmra.mrb[0].mxu0 %v4245
  %v4782 = vpop.f32.mrb[0].mxu0
  %v4783 = vadd.f32 0.0, %v4782
  %v4784 = vpop.f32.mrb[0].mxu0
  %v4785 = vadd.f32 0.0, %v4784
  %v4786 = vpop.f32.mrb[0].mxu0
  %v4787 = vadd.f32 0.0, %v4786
  %v4788 = vpop.f32.mrb[0].mxu0
  %v4789 = vadd.f32 0.0, %v4788
  %4790 = vmatprep.mubr.bf16.mxu0 0
  %4791 = vmatmul.mubr.bf16.gmra.mrb[0].mxu0 %v4246
  %v4792 = vpop.f32.mrb[0].mxu0
  %v4793 = vadd.f32 0.0, %v4792
  %v4794 = vpop.f32.mrb[0].mxu0
  %v4795 = vadd.f32 0.0, %v4794
  %v4796 = vpop.f32.mrb[0].mxu0
  %v4797 = vadd.f32 0.0, %v4796
  %v4798 = vpop.f32.mrb[0].mxu0
  %v4799 = vadd.f32 0.0, %v4798
  %4800 = vmatprep.mubr.bf16.mxu0 0
  %4801 = vmatmul.mubr.bf16.gmra.mrb[0].mxu0 %v4247
  %v4802 = vpop.f32.mrb[0].mxu0
  %v4803 = vadd.f32 0.0, %v4802
  %v4804 = vpop.f32.mrb[0].mxu0
  %v4805 = vadd.f32 0.0, %v4804
  %v4806 = vpop.f32.mrb[0].mxu0
  %v4807 = vadd.f32 0.0, %v4806
  %v4808 = vpop.f32.mrb[0].mxu0
  %v4809 = vadd.f32 0.0, %v4808
  %4810 = vmatprep.mubr.bf16.mxu0 0
  %4811 = vmatmul.mubr.bf16.gmra.mrb[0].mxu0 %v4248
  %v4812 = vpop.f32.mrb[0].mxu0
  %v4813 = vadd.f32 0.0, %v4812
  %v4814 = vpop.f32.mrb[0].mxu0
  %v4815 = vadd.f32 0.0, %v4814
  %v4816 = vpop.f32.mrb[0].mxu0
  %v4817 = vadd.f32 0.0, %v4816
  %v4818 = vpop.f32.mrb[0].mxu0
  %v4819 = vadd.f32 0.0, %v4818
  %4820 = vmatprep.mubr.bf16.mxu0 0
  %4821 = vmatmul.mubr.bf16.gmra.mrb[0].mxu0 %v4249
  %v4822 = vpop.f32.mrb[0].mxu0
  %v4823 = vadd.f32 0.0, %v4822
  %v4824 = vpop.f32.mrb[0].mxu0
  %v4825 = vadd.f32 0.0, %v4824
  %v4826 = vpop.f32.mrb[0].mxu0
  %v4827 = vadd.f32 0.0, %v4826
  %v4828 = vpop.f32.mrb[0].mxu0
  %v4829 = vadd.f32 0.0, %v4828
  %4830 = vdwg.mxu0
  %v4831 = vadd.f32 %v4583, %v4773
  %v4832 = vadd.f32 %v4585, %v4775
  %v4833 = vadd.f32 %v4587, %v4777
  %v4834 = vadd.f32 %v4589, %v4779
  %v4835 = vadd.f32 %v4593, %v4783
  %v4836 = vadd.f32 %v4595, %v4785
  %v4837 = vadd.f32 %v4597, %v4787
  %v4838 = vadd.f32 %v4599, %v4789
  %v4839 = vadd.f32 %v4603, %v4793
  %v4840 = vadd.f32 %v4605, %v4795
  %v4841 = vadd.f32 %v4607, %v4797
  %v4842 = vadd.f32 %v4609, %v4799
  %v4843 = vadd.f32 %v4613, %v4803
  %v4844 = vadd.f32 %v4615, %v4805
  %v4845 = vadd.f32 %v4617, %v4807
  %v4846 = vadd.f32 %v4619, %v4809
  %v4847 = vadd.f32 %v4623, %v4813
  %v4848 = vadd.f32 %v4625, %v4815
  %v4849 = vadd.f32 %v4627, %v4817
  %v4850 = vadd.f32 %v4629, %v4819
  %v4851 = vadd.f32 %v4633, %v4823
  %v4852 = vadd.f32 %v4635, %v4825
  %v4853 = vadd.f32 %v4637, %v4827
  %v4854 = vadd.f32 %v4639, %v4829
  %s4855 = scalar_lea.vmem %s5, 384
  %v4856 = vld [vmem:[%s4855] sm:$0xff]
  %v4857 = vld [vmem:[%s4855 + $0x8] sm:$0xff]
  %v4858 = vld [vmem:[%s4855 + $0x10] sm:$0xff]
  %v4859 = vld [vmem:[%s4855 + $0x18] sm:$0xff]
  %v4860 = vld [vmem:[%s4855 + $0x20] sm:$0xff]
  %v4861 = vld [vmem:[%s4855 + $0x28] sm:$0xff]
  %v4862 = vld [vmem:[%s4855 + $0x30] sm:$0xff]
  %v4863 = vld [vmem:[%s4855 + $0x38] sm:$0xff]
  %v4864 = vld [vmem:[%s4855 + $0x40] sm:$0xff]
  %v4865 = vld [vmem:[%s4855 + $0x48] sm:$0xff]
  %v4866 = vld [vmem:[%s4855 + $0x50] sm:$0xff]
  %v4867 = vld [vmem:[%s4855 + $0x58] sm:$0xff]
  %v4868 = vld [vmem:[%s4855 + $0x60] sm:$0xff]
  %v4869 = vld [vmem:[%s4855 + $0x68] sm:$0xff]
  %v4870 = vld [vmem:[%s4855 + $0x70] sm:$0xff]
  %v4871 = vld [vmem:[%s4855 + $0x78] sm:$0xff]
  %v4888 = vunpack.c.l.b16 %v4856
  %v4889 = vunpack.c.h.b16 %v4856
  %v4890 = vunpack.c.l.b16 %v4857
  %v4891 = vunpack.c.h.b16 %v4857
  %v4892 = vunpack.c.l.b16 %v4858
  %v4893 = vunpack.c.h.b16 %v4858
  %v4894 = vunpack.c.l.b16 %v4859
  %v4895 = vunpack.c.h.b16 %v4859
  %v4896 = vunpack.c.l.b16 %v4860
  %v4897 = vunpack.c.h.b16 %v4860
  %v4898 = vunpack.c.l.b16 %v4861
  %v4899 = vunpack.c.h.b16 %v4861
  %v4900 = vunpack.c.l.b16 %v4862
  %v4901 = vunpack.c.h.b16 %v4862
  %v4902 = vunpack.c.l.b16 %v4863
  %v4903 = vunpack.c.h.b16 %v4863
  %v4904 = vunpack.c.l.b16 %v4864
  %v4905 = vunpack.c.h.b16 %v4864
  %v4906 = vunpack.c.l.b16 %v4865
  %v4907 = vunpack.c.h.b16 %v4865
  %v4908 = vunpack.c.l.b16 %v4866
  %v4909 = vunpack.c.h.b16 %v4866
  %v4910 = vunpack.c.l.b16 %v4867
  %v4911 = vunpack.c.h.b16 %v4867
  %v4912 = vunpack.c.l.b16 %v4868
  %v4913 = vunpack.c.h.b16 %v4868
  %v4914 = vunpack.c.l.b16 %v4869
  %v4915 = vunpack.c.h.b16 %v4869
  %v4916 = vunpack.c.l.b16 %v4870
  %v4917 = vunpack.c.h.b16 %v4870
  %v4918 = vunpack.c.l.b16 %v4871
  %v4919 = vunpack.c.h.b16 %v4871
  %v4920 = vpack.c.b16 %v4890, %v4888
  %v4921 = vpack.c.b16 %v4891, %v4889
  %v4922 = vpack.c.b16 %v4894, %v4892
  %v4923 = vpack.c.b16 %v4895, %v4893
  %v4924 = vpack.c.b16 %v4898, %v4896
  %v4925 = vpack.c.b16 %v4899, %v4897
  %v4926 = vpack.c.b16 %v4902, %v4900
  %v4927 = vpack.c.b16 %v4903, %v4901
  %v4928 = vpack.c.b16 %v4906, %v4904
  %v4929 = vpack.c.b16 %v4907, %v4905
  %v4930 = vpack.c.b16 %v4910, %v4908
  %v4931 = vpack.c.b16 %v4911, %v4909
  %v4932 = vpack.c.b16 %v4914, %v4912
  %v4933 = vpack.c.b16 %v4915, %v4913
  %v4934 = vpack.c.b16 %v4918, %v4916
  %v4935 = vpack.c.b16 %v4919, %v4917
  %4952 = vmatprep.subr.bf16.mxu0 %v4921
  %4953 = vmatpush1.bf16.msra.mxu0 %v4920
  %4954 = vmatprep.subr.bf16.mxu0 %v4923
  %4955 = vmatpush1.bf16.msra.mxu0 %v4922
  %4956 = vmatprep.subr.bf16.mxu0 %v4925
  %4957 = vmatpush1.bf16.msra.mxu0 %v4924
  %4958 = vmatprep.subr.bf16.mxu0 %v4927
  %4959 = vmatpush1.bf16.msra.mxu0 %v4926
  %4960 = vmatprep.subr.bf16.mxu0 %v4929
  %4961 = vmatpush1.bf16.msra.mxu0 %v4928
  %4962 = vmatprep.subr.bf16.mxu0 %v4931
  %4963 = vmatpush1.bf16.msra.mxu0 %v4930
  %4964 = vmatprep.subr.bf16.mxu0 %v4933
  %4965 = vmatpush1.bf16.msra.mxu0 %v4932
  %4966 = vmatprep.subr.bf16.mxu0 %v4935
  %4967 = vmatpush1.bf16.msra.mxu0 %v4934
  %4968 = vmatprep.subr.bf16.mxu0 0
  %4969 = vmatpush1.bf16.msra.mxu0 0
  %4970 = vmatprep.subr.bf16.mxu0 0
  %4971 = vmatpush1.bf16.msra.mxu0 0
  %4972 = vmatprep.subr.bf16.mxu0 0
  %4973 = vmatpush1.bf16.msra.mxu0 0
  %4974 = vmatprep.subr.bf16.mxu0 0
  %4975 = vmatpush1.bf16.msra.mxu0 0
  %4976 = vmatprep.subr.bf16.mxu0 0
  %4977 = vmatpush1.bf16.msra.mxu0 0
  %4978 = vmatprep.subr.bf16.mxu0 0
  %4979 = vmatpush1.bf16.msra.mxu0 0
  %4980 = vmatprep.subr.bf16.mxu0 0
  %4981 = vmatpush1.bf16.msra.mxu0 0
  %4982 = vmatprep.subr.bf16.mxu0 0
  %4983 = vmatpush1.bf16.msra.mxu0 0
  %4984 = vmatprep.mubr.bf16.mxu0 0
  %4985 = vmatmul.mubr.bf16.gmra.mrb[0].mxu0 %v4250
  %v4986 = vpop.f32.mrb[0].mxu0
  %v4987 = vadd.f32 0.0, %v4986
  %v4988 = vpop.f32.mrb[0].mxu0
  %v4989 = vadd.f32 0.0, %v4988
  %v4990 = vpop.f32.mrb[0].mxu0
  %v4991 = vadd.f32 0.0, %v4990
  %v4992 = vpop.f32.mrb[0].mxu0
  %v4993 = vadd.f32 0.0, %v4992
  %4994 = vmatprep.mubr.bf16.mxu0 0
  %4995 = vmatmul.mubr.bf16.gmra.mrb[0].mxu0 %v4251
  %v4996 = vpop.f32.mrb[0].mxu0
  %v4997 = vadd.f32 0.0, %v4996
  %v4998 = vpop.f32.mrb[0].mxu0
  %v4999 = vadd.f32 0.0, %v4998
  %v5000 = vpop.f32.mrb[0].mxu0
  %v5001 = vadd.f32 0.0, %v5000
  %v5002 = vpop.f32.mrb[0].mxu0
  %v5003 = vadd.f32 0.0, %v5002
  %5004 = vmatprep.mubr.bf16.mxu0 0
  %5005 = vmatmul.mubr.bf16.gmra.mrb[0].mxu0 %v4252
  %v5006 = vpop.f32.mrb[0].mxu0
  %v5007 = vadd.f32 0.0, %v5006
  %v5008 = vpop.f32.mrb[0].mxu0
  %v5009 = vadd.f32 0.0, %v5008
  %v5010 = vpop.f32.mrb[0].mxu0
  %v5011 = vadd.f32 0.0, %v5010
  %v5012 = vpop.f32.mrb[0].mxu0
  %v5013 = vadd.f32 0.0, %v5012
  %5014 = vmatprep.mubr.bf16.mxu0 0
  %5015 = vmatmul.mubr.bf16.gmra.mrb[0].mxu0 %v4253
  %v5016 = vpop.f32.mrb[0].mxu0
  %v5017 = vadd.f32 0.0, %v5016
  %v5018 = vpop.f32.mrb[0].mxu0
  %v5019 = vadd.f32 0.0, %v5018
  %v5020 = vpop.f32.mrb[0].mxu0
  %v5021 = vadd.f32 0.0, %v5020
  %v5022 = vpop.f32.mrb[0].mxu0
  %v5023 = vadd.f32 0.0, %v5022
  %5024 = vmatprep.mubr.bf16.mxu0 0
  %5025 = vmatmul.mubr.bf16.gmra.mrb[0].mxu0 %v4254
  %v5026 = vpop.f32.mrb[0].mxu0
  %v5027 = vadd.f32 0.0, %v5026
  %v5028 = vpop.f32.mrb[0].mxu0
  %v5029 = vadd.f32 0.0, %v5028
  %v5030 = vpop.f32.mrb[0].mxu0
  %v5031 = vadd.f32 0.0, %v5030
  %v5032 = vpop.f32.mrb[0].mxu0
  %v5033 = vadd.f32 0.0, %v5032
  %5034 = vmatprep.mubr.bf16.mxu0 0
  %5035 = vmatmul.mubr.bf16.gmra.mrb[0].mxu0 %v4255
  %v5036 = vpop.f32.mrb[0].mxu0
  %v5037 = vadd.f32 0.0, %v5036
  %v5038 = vpop.f32.mrb[0].mxu0
  %v5039 = vadd.f32 0.0, %v5038
  %v5040 = vpop.f32.mrb[0].mxu0
  %v5041 = vadd.f32 0.0, %v5040
  %v5042 = vpop.f32.mrb[0].mxu0
  %v5043 = vadd.f32 0.0, %v5042
  %5044 = vdwg.mxu0
  %v5045 = vadd.f32 %v4831, %v4987
  %v5046 = vadd.f32 %v4832, %v4989
  %v5047 = vadd.f32 %v4833, %v4991
  %v5048 = vadd.f32 %v4834, %v4993
  %v5049 = vadd.f32 %v4835, %v4997
  %v5050 = vadd.f32 %v4836, %v4999
  %v5051 = vadd.f32 %v4837, %v5001
  %v5052 = vadd.f32 %v4838, %v5003
  %v5053 = vadd.f32 %v4839, %v5007
  %v5054 = vadd.f32 %v4840, %v5009
  %v5055 = vadd.f32 %v4841, %v5011
  %v5056 = vadd.f32 %v4842, %v5013
  %v5057 = vadd.f32 %v4843, %v5017
  %v5058 = vadd.f32 %v4844, %v5019
  %v5059 = vadd.f32 %v4845, %v5021
  %v5060 = vadd.f32 %v4846, %v5023
  %v5061 = vadd.f32 %v4847, %v5027
  %v5062 = vadd.f32 %v4848, %v5029
  %v5063 = vadd.f32 %v4849, %v5031
  %v5064 = vadd.f32 %v4850, %v5033
  %v5065 = vadd.f32 %v4851, %v5037
  %v5066 = vadd.f32 %v4852, %v5039
  %v5067 = vadd.f32 %v4853, %v5041
  %v5068 = vadd.f32 %v4854, %v5043
  %s5069 = scalar_lea.vmem %s5, 512
  %v5070 = vld [vmem:[%s5069] sm:$0xff]
  %v5071 = vld [vmem:[%s5069 + $0x8] sm:$0xff]
  %v5072 = vld [vmem:[%s5069 + $0x10] sm:$0xff]
  %v5073 = vld [vmem:[%s5069 + $0x18] sm:$0xff]
  %v5074 = vld [vmem:[%s5069 + $0x20] sm:$0xff]
  %v5075 = vld [vmem:[%s5069 + $0x28] sm:$0xff]
  %v5076 = vld [vmem:[%s5069 + $0x30] sm:$0xff]
  %v5077 = vld [vmem:[%s5069 + $0x38] sm:$0xff]
  %v5078 = vld [vmem:[%s5069 + $0x40] sm:$0xff]
  %v5079 = vld [vmem:[%s5069 + $0x48] sm:$0xff]
  %v5080 = vld [vmem:[%s5069 + $0x50] sm:$0xff]
  %v5081 = vld [vmem:[%s5069 + $0x58] sm:$0xff]
  %v5082 = vld [vmem:[%s5069 + $0x60] sm:$0xff]
  %v5083 = vld [vmem:[%s5069 + $0x68] sm:$0xff]
  %v5084 = vld [vmem:[%s5069 + $0x70] sm:$0xff]
  %v5085 = vld [vmem:[%s5069 + $0x78] sm:$0xff]
  %v5102 = vunpack.c.l.b16 %v5070
  %v5103 = vunpack.c.h.b16 %v5070
  %v5104 = vunpack.c.l.b16 %v5071
  %v5105 = vunpack.c.h.b16 %v5071
  %v5106 = vunpack.c.l.b16 %v5072
  %v5107 = vunpack.c.h.b16 %v5072
  %v5108 = vunpack.c.l.b16 %v5073
  %v5109 = vunpack.c.h.b16 %v5073
  %v5110 = vunpack.c.l.b16 %v5074
  %v5111 = vunpack.c.h.b16 %v5074
  %v5112 = vunpack.c.l.b16 %v5075
  %v5113 = vunpack.c.h.b16 %v5075
  %v5114 = vunpack.c.l.b16 %v5076
  %v5115 = vunpack.c.h.b16 %v5076
  %v5116 = vunpack.c.l.b16 %v5077
  %v5117 = vunpack.c.h.b16 %v5077
  %v5118 = vunpack.c.l.b16 %v5078
  %v5119 = vunpack.c.h.b16 %v5078
  %v5120 = vunpack.c.l.b16 %v5079
  %v5121 = vunpack.c.h.b16 %v5079
  %v5122 = vunpack.c.l.b16 %v5080
  %v5123 = vunpack.c.h.b16 %v5080
  %v5124 = vunpack.c.l.b16 %v5081
  %v5125 = vunpack.c.h.b16 %v5081
  %v5126 = vunpack.c.l.b16 %v5082
  %v5127 = vunpack.c.h.b16 %v5082
  %v5128 = vunpack.c.l.b16 %v5083
  %v5129 = vunpack.c.h.b16 %v5083
  %v5130 = vunpack.c.l.b16 %v5084
  %v5131 = vunpack.c.h.b16 %v5084
  %v5132 = vunpack.c.l.b16 %v5085
  %v5133 = vunpack.c.h.b16 %v5085
  %v5134 = vpack.c.b16 %v5104, %v5102
  %v5135 = vpack.c.b16 %v5105, %v5103
  %v5136 = vpack.c.b16 %v5108, %v5106
  %v5137 = vpack.c.b16 %v5109, %v5107
  %v5138 = vpack.c.b16 %v5112, %v5110
  %v5139 = vpack.c.b16 %v5113, %v5111
  %v5140 = vpack.c.b16 %v5116, %v5114
  %v5141 = vpack.c.b16 %v5117, %v5115
  %v5142 = vpack.c.b16 %v5120, %v5118
  %v5143 = vpack.c.b16 %v5121, %v5119
  %v5144 = vpack.c.b16 %v5124, %v5122
  %v5145 = vpack.c.b16 %v5125, %v5123
  %v5146 = vpack.c.b16 %v5128, %v5126
  %v5147 = vpack.c.b16 %v5129, %v5127
  %v5148 = vpack.c.b16 %v5132, %v5130
  %v5149 = vpack.c.b16 %v5133, %v5131
  %5166 = vmatprep.subr.bf16.mxu0 %v5135
  %5167 = vmatpush1.bf16.msra.mxu0 %v5134
  %5168 = vmatprep.subr.bf16.mxu0 %v5137
  %5169 = vmatpush1.bf16.msra.mxu0 %v5136
  %5170 = vmatprep.subr.bf16.mxu0 %v5139
  %5171 = vmatpush1.bf16.msra.mxu0 %v5138
  %5172 = vmatprep.subr.bf16.mxu0 %v5141
  %5173 = vmatpush1.bf16.msra.mxu0 %v5140
  %5174 = vmatprep.subr.bf16.mxu0 %v5143
  %5175 = vmatpush1.bf16.msra.mxu0 %v5142
  %5176 = vmatprep.subr.bf16.mxu0 %v5145
  %5177 = vmatpush1.bf16.msra.mxu0 %v5144
  %5178 = vmatprep.subr.bf16.mxu0 %v5147
  %5179 = vmatpush1.bf16.msra.mxu0 %v5146
  %5180 = vmatprep.subr.bf16.mxu0 %v5149
  %5181 = vmatpush1.bf16.msra.mxu0 %v5148
  %5182 = vmatprep.subr.bf16.mxu0 0
  %5183 = vmatpush1.bf16.msra.mxu0 0
  %5184 = vmatprep.subr.bf16.mxu0 0
  %5185 = vmatpush1.bf16.msra.mxu0 0
  %5186 = vmatprep.subr.bf16.mxu0 0
  %5187 = vmatpush1.bf16.msra.mxu0 0
  %5188 = vmatprep.subr.bf16.mxu0 0
  %5189 = vmatpush1.bf16.msra.mxu0 0
  %5190 = vmatprep.subr.bf16.mxu0 0
  %5191 = vmatpush1.bf16.msra.mxu0 0
  %5192 = vmatprep.subr.bf16.mxu0 0
  %5193 = vmatpush1.bf16.msra.mxu0 0
  %5194 = vmatprep.subr.bf16.mxu0 0
  %5195 = vmatpush1.bf16.msra.mxu0 0
  %5196 = vmatprep.subr.bf16.mxu0 0
  %5197 = vmatpush1.bf16.msra.mxu0 0
  %5198 = vmatprep.mubr.bf16.mxu0 0
  %5199 = vmatmul.mubr.bf16.gmra.mrb[0].mxu0 %v4256
  %v5200 = vpop.f32.mrb[0].mxu0
  %v5201 = vadd.f32 0.0, %v5200
  %v5202 = vpop.f32.mrb[0].mxu0
  %v5203 = vadd.f32 0.0, %v5202
  %v5204 = vpop.f32.mrb[0].mxu0
  %v5205 = vadd.f32 0.0, %v5204
  %v5206 = vpop.f32.mrb[0].mxu0
  %v5207 = vadd.f32 0.0, %v5206
  %5208 = vmatprep.mubr.bf16.mxu0 0
  %5209 = vmatmul.mubr.bf16.gmra.mrb[0].mxu0 %v4257
  %v5210 = vpop.f32.mrb[0].mxu0
  %v5211 = vadd.f32 0.0, %v5210
  %v5212 = vpop.f32.mrb[0].mxu0
  %v5213 = vadd.f32 0.0, %v5212
  %v5214 = vpop.f32.mrb[0].mxu0
  %v5215 = vadd.f32 0.0, %v5214
  %v5216 = vpop.f32.mrb[0].mxu0
  %v5217 = vadd.f32 0.0, %v5216
  %5218 = vmatprep.mubr.bf16.mxu0 0
  %5219 = vmatmul.mubr.bf16.gmra.mrb[0].mxu0 %v4258
  %v5220 = vpop.f32.mrb[0].mxu0
  %v5221 = vadd.f32 0.0, %v5220
  %v5222 = vpop.f32.mrb[0].mxu0
  %v5223 = vadd.f32 0.0, %v5222
  %v5224 = vpop.f32.mrb[0].mxu0
  %v5225 = vadd.f32 0.0, %v5224
  %v5226 = vpop.f32.mrb[0].mxu0
  %v5227 = vadd.f32 0.0, %v5226
  %5228 = vmatprep.mubr.bf16.mxu0 0
  %5229 = vmatmul.mubr.bf16.gmra.mrb[0].mxu0 %v4259
  %v5230 = vpop.f32.mrb[0].mxu0
  %v5231 = vadd.f32 0.0, %v5230
  %v5232 = vpop.f32.mrb[0].mxu0
  %v5233 = vadd.f32 0.0, %v5232
  %v5234 = vpop.f32.mrb[0].mxu0
  %v5235 = vadd.f32 0.0, %v5234
  %v5236 = vpop.f32.mrb[0].mxu0
  %v5237 = vadd.f32 0.0, %v5236
  %5238 = vmatprep.mubr.bf16.mxu0 0
  %5239 = vmatmul.mubr.bf16.gmra.mrb[0].mxu0 %v4260
  %v5240 = vpop.f32.mrb[0].mxu0
  %v5241 = vadd.f32 0.0, %v5240
  %v5242 = vpop.f32.mrb[0].mxu0
  %v5243 = vadd.f32 0.0, %v5242
  %v5244 = vpop.f32.mrb[0].mxu0
  %v5245 = vadd.f32 0.0, %v5244
  %v5246 = vpop.f32.mrb[0].mxu0
  %v5247 = vadd.f32 0.0, %v5246
  %5248 = vmatprep.mubr.bf16.mxu0 0
  %5249 = vmatmul.mubr.bf16.gmra.mrb[0].mxu0 %v4261
  %v5250 = vpop.f32.mrb[0].mxu0
  %v5251 = vadd.f32 0.0, %v5250
  %v5252 = vpop.f32.mrb[0].mxu0
  %v5253 = vadd.f32 0.0, %v5252
  %v5254 = vpop.f32.mrb[0].mxu0
  %v5255 = vadd.f32 0.0, %v5254
  %v5256 = vpop.f32.mrb[0].mxu0
  %v5257 = vadd.f32 0.0, %v5256
  %5258 = vdwg.mxu0
  %v5259 = vadd.f32 %v5045, %v5201
  %v5260 = vadd.f32 %v5046, %v5203
  %v5261 = vadd.f32 %v5047, %v5205
  %v5262 = vadd.f32 %v5048, %v5207
  %v5263 = vadd.f32 %v5049, %v5211
  %v5264 = vadd.f32 %v5050, %v5213
  %v5265 = vadd.f32 %v5051, %v5215
  %v5266 = vadd.f32 %v5052, %v5217
  %v5267 = vadd.f32 %v5053, %v5221
  %v5268 = vadd.f32 %v5054, %v5223
  %v5269 = vadd.f32 %v5055, %v5225
  %v5270 = vadd.f32 %v5056, %v5227
  %v5271 = vadd.f32 %v5057, %v5231
  %v5272 = vadd.f32 %v5058, %v5233
  %v5273 = vadd.f32 %v5059, %v5235
  %v5274 = vadd.f32 %v5060, %v5237
  %v5275 = vadd.f32 %v5061, %v5241
  %v5276 = vadd.f32 %v5062, %v5243
  %v5277 = vadd.f32 %v5063, %v5245
  %v5278 = vadd.f32 %v5064, %v5247
  %v5279 = vadd.f32 %v5065, %v5251
  %v5280 = vadd.f32 %v5066, %v5253
  %v5281 = vadd.f32 %v5067, %v5255
  %v5282 = vadd.f32 %v5068, %v5257
  %v5283 = vld [vmem:[%s6] sm:$0x3]
  %v5285 = vlaneseq
  %v5286 = vshrl.u32 %v5285, 7
  %v5287 = vsub.s32 0, %v5286
  %v5288 = vrot.slane %v5283, %v5287
  %v5289 = vlaneseq
  %v5290 = vshrl.u32 %v5289, 7
  %v5291 = vsub.s32 1, %v5290
  %v5292 = vrot.slane %v5283, %v5291
  %v5295 = vadd.f32 %v5259, %v5288
  %v5296 = vadd.f32 %v5260, %v5292
  %v5297 = vadd.f32 %v5261, %v5288
  %v5298 = vadd.f32 %v5262, %v5292
  %v5299 = vadd.f32 %v5263, %v5288
  %v5300 = vadd.f32 %v5264, %v5292
  %v5301 = vadd.f32 %v5265, %v5288
  %v5302 = vadd.f32 %v5266, %v5292
  %v5303 = vadd.f32 %v5267, %v5288
  %v5304 = vadd.f32 %v5268, %v5292
  %v5305 = vadd.f32 %v5269, %v5288
  %v5306 = vadd.f32 %v5270, %v5292
  %v5307 = vadd.f32 %v5271, %v5288
  %v5308 = vadd.f32 %v5272, %v5292
  %v5309 = vadd.f32 %v5273, %v5288
  %v5310 = vadd.f32 %v5274, %v5292
  %v5311 = vadd.f32 %v5275, %v5288
  %v5312 = vadd.f32 %v5276, %v5292
  %v5313 = vadd.f32 %v5277, %v5288
  %v5314 = vadd.f32 %v5278, %v5292
  %v5315 = vadd.f32 %v5279, %v5288
  %v5316 = vadd.f32 %v5280, %v5292
  %v5317 = vadd.f32 %v5281, %v5288
  %v5318 = vadd.f32 %v5282, %v5292
  %v5319 = vsub.f32 0.0, %v5295
  %v5320 = vsub.f32 0.0, %v5296
  %v5321 = vsub.f32 0.0, %v5297
  %v5322 = vsub.f32 0.0, %v5298
  %v5323 = vsub.f32 0.0, %v5299
  %v5324 = vsub.f32 0.0, %v5300
  %v5325 = vsub.f32 0.0, %v5301
  %v5326 = vsub.f32 0.0, %v5302
  %v5327 = vsub.f32 0.0, %v5303
  %v5328 = vsub.f32 0.0, %v5304
  %v5329 = vsub.f32 0.0, %v5305
  %v5330 = vsub.f32 0.0, %v5306
  %v5331 = vsub.f32 0.0, %v5307
  %v5332 = vsub.f32 0.0, %v5308
  %v5333 = vsub.f32 0.0, %v5309
  %v5334 = vsub.f32 0.0, %v5310
  %v5335 = vsub.f32 0.0, %v5311
  %v5336 = vsub.f32 0.0, %v5312
  %v5337 = vsub.f32 0.0, %v5313
  %v5338 = vsub.f32 0.0, %v5314
  %v5339 = vsub.f32 0.0, %v5315
  %v5340 = vsub.f32 0.0, %v5316
  %v5341 = vsub.f32 0.0, %v5317
  %v5342 = vsub.f32 0.0, %v5318
  %v5343 = vmul.f32 %v5319, 1.442695
  %v5344 = vpow.pop %v5343
  %v5345 = vmul.f32 %v5320, 1.442695
  %v5346 = vpow.pop %v5345
  %v5347 = vmul.f32 %v5321, 1.442695
  %v5348 = vpow.pop %v5347
  %v5349 = vmul.f32 %v5322, 1.442695
  %v5350 = vpow.pop %v5349
  %v5351 = vmul.f32 %v5323, 1.442695
  %v5352 = vpow.pop %v5351
  %v5353 = vmul.f32 %v5324, 1.442695
  %v5354 = vpow.pop %v5353
  %v5355 = vmul.f32 %v5325, 1.442695
  %v5356 = vpow.pop %v5355
  %v5357 = vmul.f32 %v5326, 1.442695
  %v5358 = vpow.pop %v5357
  %v5359 = vmul.f32 %v5327, 1.442695
  %v5360 = vpow.pop %v5359
  %v5361 = vmul.f32 %v5328, 1.442695
  %v5362 = vpow.pop %v5361
  %v5363 = vmul.f32 %v5329, 1.442695
  %v5364 = vpow.pop %v5363
  %v5365 = vmul.f32 %v5330, 1.442695
  %v5366 = vpow.pop %v5365
  %v5367 = vmul.f32 %v5331, 1.442695
  %v5368 = vpow.pop %v5367
  %v5369 = vmul.f32 %v5332, 1.442695
  %v5370 = vpow.pop %v5369
  %v5371 = vmul.f32 %v5333, 1.442695
  %v5372 = vpow.pop %v5371
  %v5373 = vmul.f32 %v5334, 1.442695
  %v5374 = vpow.pop %v5373
  %v5375 = vmul.f32 %v5335, 1.442695
  %v5376 = vpow.pop %v5375
  %v5377 = vmul.f32 %v5336, 1.442695
  %v5378 = vpow.pop %v5377
  %v5379 = vmul.f32 %v5337, 1.442695
  %v5380 = vpow.pop %v5379
  %v5381 = vmul.f32 %v5338, 1.442695
  %v5382 = vpow.pop %v5381
  %v5383 = vmul.f32 %v5339, 1.442695
  %v5384 = vpow.pop %v5383
  %v5385 = vmul.f32 %v5340, 1.442695
  %v5386 = vpow.pop %v5385
  %v5387 = vmul.f32 %v5341, 1.442695
  %v5388 = vpow.pop %v5387
  %v5389 = vmul.f32 %v5342, 1.442695
  %v5390 = vpow.pop %v5389
  %v5391 = vadd.f32 %v5344, 1.0
  %v5392 = vadd.f32 %v5346, 1.0
  %v5393 = vadd.f32 %v5348, 1.0
  %v5394 = vadd.f32 %v5350, 1.0
  %v5395 = vadd.f32 %v5352, 1.0
  %v5396 = vadd.f32 %v5354, 1.0
  %v5397 = vadd.f32 %v5356, 1.0
  %v5398 = vadd.f32 %v5358, 1.0
  %v5399 = vadd.f32 %v5360, 1.0
  %v5400 = vadd.f32 %v5362, 1.0
  %v5401 = vadd.f32 %v5364, 1.0
  %v5402 = vadd.f32 %v5366, 1.0
  %v5403 = vadd.f32 %v5368, 1.0
  %v5404 = vadd.f32 %v5370, 1.0
  %v5405 = vadd.f32 %v5372, 1.0
  %v5406 = vadd.f32 %v5374, 1.0
  %v5407 = vadd.f32 %v5376, 1.0
  %v5408 = vadd.f32 %v5378, 1.0
  %v5409 = vadd.f32 %v5380, 1.0
  %v5410 = vadd.f32 %v5382, 1.0
  %v5411 = vadd.f32 %v5384, 1.0
  %v5412 = vadd.f32 %v5386, 1.0
  %v5413 = vadd.f32 %v5388, 1.0
  %v5414 = vadd.f32 %v5390, 1.0
  %v5415 = vrcp.pop %v5391
  %v5416 = vrcp.pop %v5392
  %v5417 = vrcp.pop %v5393
  %v5418 = vrcp.pop %v5394
  %v5419 = vrcp.pop %v5395
  %v5420 = vrcp.pop %v5396
  %v5421 = vrcp.pop %v5397
  %v5422 = vrcp.pop %v5398
  %v5423 = vrcp.pop %v5399
  %v5424 = vrcp.pop %v5400
  %v5425 = vrcp.pop %v5401
  %v5426 = vrcp.pop %v5402
  %v5427 = vrcp.pop %v5403
  %v5428 = vrcp.pop %v5404
  %v5429 = vrcp.pop %v5405
  %v5430 = vrcp.pop %v5406
  %v5431 = vrcp.pop %v5407
  %v5432 = vrcp.pop %v5408
  %v5433 = vrcp.pop %v5409
  %v5434 = vrcp.pop %v5410
  %v5435 = vrcp.pop %v5411
  %v5436 = vrcp.pop %v5412
  %v5437 = vrcp.pop %v5413
  %v5438 = vrcp.pop %v5414
  %v5439 = vpack.c.bf16 %v5415, %v5415
  %v5440 = vpack.c.bf16 %v5416, %v5416
  %v5441 = vld [vmem:[%s7] sm:$0xf]
  %v5442 = vld [vmem:[%s7 + $0x4] sm:$0xf]
  %v5443 = vld [vmem:[%s7 + $0x8] sm:$0xf]
  %v5444 = vld [vmem:[%s7 + $0xc] sm:$0xf]
  %v5445 = vld [vmem:[%s7 + $0x10] sm:$0xf]
  %v5446 = vld [vmem:[%s7 + $0x14] sm:$0xf]
  %v5447 = vld [vmem:[%s7 + $0x18] sm:$0xf]
  %v5448 = vld [vmem:[%s7 + $0x1c] sm:$0xf]
  %v5449 = vld [vmem:[%s7 + $0x20] sm:$0xf]
  %v5450 = vld [vmem:[%s7 + $0x24] sm:$0xf]
  %v5451 = vld [vmem:[%s7 + $0x28] sm:$0xf]
  %v5452 = vld [vmem:[%s7 + $0x2c] sm:$0xf]
  %v5453 = vld [vmem:[%s7 + $0x30] sm:$0xf]
  %v5454 = vld [vmem:[%s7 + $0x34] sm:$0xf]
  %v5455 = vld [vmem:[%s7 + $0x38] sm:$0xf]
  %v5456 = vld [vmem:[%s7 + $0x3c] sm:$0xf]
  %v5457 = vld [vmem:[%s7 + $0x40] sm:$0xf]
  %v5458 = vld [vmem:[%s7 + $0x44] sm:$0xf]
  %v5459 = vld [vmem:[%s7 + $0x48] sm:$0xf]
  %v5460 = vld [vmem:[%s7 + $0x4c] sm:$0xf]
  %v5461 = vld [vmem:[%s7 + $0x50] sm:$0xf]
  %v5462 = vld [vmem:[%s7 + $0x54] sm:$0xf]
  %v5463 = vld [vmem:[%s7 + $0x58] sm:$0xf]
  %v5464 = vld [vmem:[%s7 + $0x5c] sm:$0xf]
  %v5465 = vld [vmem:[%s7 + $0x60] sm:$0xf]
  %v5466 = vld [vmem:[%s7 + $0x64] sm:$0xf]
  %v5467 = vld [vmem:[%s7 + $0x68] sm:$0xf]
  %v5468 = vld [vmem:[%s7 + $0x6c] sm:$0xf]
  %v5469 = vld [vmem:[%s7 + $0x70] sm:$0xf]
  %v5470 = vld [vmem:[%s7 + $0x74] sm:$0xf]
  %v5471 = vld [vmem:[%s7 + $0x78] sm:$0xf]
  %v5472 = vld [vmem:[%s7 + $0x7c] sm:$0xf]
  %v5473 = vpack.c.bf16 %v5417, %v5417
  %v5474 = vpack.c.bf16 %v5418, %v5418
  %s5475 = scalar_lea.vmem %s7, 128
  %v5476 = vld [vmem:[%s5475] sm:$0xf]
  %v5477 = vld [vmem:[%s5475 + $0x4] sm:$0xf]
  %v5478 = vld [vmem:[%s5475 + $0x8] sm:$0xf]
  %v5479 = vld [vmem:[%s5475 + $0xc] sm:$0xf]
  %v5480 = vld [vmem:[%s5475 + $0x10] sm:$0xf]
  %v5481 = vld [vmem:[%s5475 + $0x14] sm:$0xf]
  %v5482 = vld [vmem:[%s5475 + $0x18] sm:$0xf]
  %v5483 = vld [vmem:[%s5475 + $0x1c] sm:$0xf]
  %v5484 = vld [vmem:[%s5475 + $0x20] sm:$0xf]
  %v5485 = vld [vmem:[%s5475 + $0x24] sm:$0xf]
  %v5486 = vld [vmem:[%s5475 + $0x28] sm:$0xf]
  %v5487 = vld [vmem:[%s5475 + $0x2c] sm:$0xf]
  %v5488 = vld [vmem:[%s5475 + $0x30] sm:$0xf]
  %v5489 = vld [vmem:[%s5475 + $0x34] sm:$0xf]
  %v5490 = vld [vmem:[%s5475 + $0x38] sm:$0xf]
  %v5491 = vld [vmem:[%s5475 + $0x3c] sm:$0xf]
  %v5492 = vld [vmem:[%s5475 + $0x40] sm:$0xf]
  %v5493 = vld [vmem:[%s5475 + $0x44] sm:$0xf]
  %v5494 = vld [vmem:[%s5475 + $0x48] sm:$0xf]
  %v5495 = vld [vmem:[%s5475 + $0x4c] sm:$0xf]
  %v5496 = vld [vmem:[%s5475 + $0x50] sm:$0xf]
  %v5497 = vld [vmem:[%s5475 + $0x54] sm:$0xf]
  %v5498 = vld [vmem:[%s5475 + $0x58] sm:$0xf]
  %v5499 = vld [vmem:[%s5475 + $0x5c] sm:$0xf]
  %v5500 = vld [vmem:[%s5475 + $0x60] sm:$0xf]
  %v5501 = vld [vmem:[%s5475 + $0x64] sm:$0xf]
  %v5502 = vld [vmem:[%s5475 + $0x68] sm:$0xf]
  %v5503 = vld [vmem:[%s5475 + $0x6c] sm:$0xf]
  %v5504 = vld [vmem:[%s5475 + $0x70] sm:$0xf]
  %v5505 = vld [vmem:[%s5475 + $0x74] sm:$0xf]
  %v5506 = vld [vmem:[%s5475 + $0x78] sm:$0xf]
  %v5507 = vld [vmem:[%s5475 + $0x7c] sm:$0xf]
  %v5540 = vunpack.c.l.b16 %v5476
  %v5541 = vunpack.c.l.b16 %v5477
  %v5542 = vunpack.c.l.b16 %v5478
  %v5543 = vunpack.c.l.b16 %v5479
  %v5544 = vunpack.c.l.b16 %v5480
  %v5545 = vunpack.c.l.b16 %v5481
  %v5546 = vunpack.c.l.b16 %v5482
  %v5547 = vunpack.c.l.b16 %v5483
  %v5548 = vunpack.c.l.b16 %v5484
  %v5549 = vunpack.c.l.b16 %v5485
  %v5550 = vunpack.c.l.b16 %v5486
  %v5551 = vunpack.c.l.b16 %v5487
  %v5552 = vunpack.c.l.b16 %v5488
  %v5553 = vunpack.c.l.b16 %v5489
  %v5554 = vunpack.c.l.b16 %v5490
  %v5555 = vunpack.c.l.b16 %v5491
  %v5556 = vunpack.c.l.b16 %v5492
  %v5557 = vunpack.c.l.b16 %v5493
  %v5558 = vunpack.c.l.b16 %v5494
  %v5559 = vunpack.c.l.b16 %v5495
  %v5560 = vunpack.c.l.b16 %v5496
  %v5561 = vunpack.c.l.b16 %v5497
  %v5562 = vunpack.c.l.b16 %v5498
  %v5563 = vunpack.c.l.b16 %v5499
  %v5564 = vunpack.c.l.b16 %v5500
  %v5565 = vunpack.c.l.b16 %v5501
  %v5566 = vunpack.c.l.b16 %v5502
  %v5567 = vunpack.c.l.b16 %v5503
  %v5568 = vunpack.c.l.b16 %v5504
  %v5569 = vunpack.c.l.b16 %v5505
  %v5570 = vunpack.c.l.b16 %v5506
  %v5571 = vunpack.c.l.b16 %v5507
  %v5572 = vpack.c.b16 %v5541, %v5540
  %v5573 = vpack.c.b16 %v5543, %v5542
  %v5574 = vpack.c.b16 %v5545, %v5544
  %v5575 = vpack.c.b16 %v5547, %v5546
  %v5576 = vpack.c.b16 %v5549, %v5548
  %v5577 = vpack.c.b16 %v5551, %v5550
  %v5578 = vpack.c.b16 %v5553, %v5552
  %v5579 = vpack.c.b16 %v5555, %v5554
  %v5580 = vpack.c.b16 %v5557, %v5556
  %v5581 = vpack.c.b16 %v5559, %v5558
  %v5582 = vpack.c.b16 %v5561, %v5560
  %v5583 = vpack.c.b16 %v5563, %v5562
  %v5584 = vpack.c.b16 %v5565, %v5564
  %v5585 = vpack.c.b16 %v5567, %v5566
  %v5586 = vpack.c.b16 %v5569, %v5568
  %v5587 = vpack.c.b16 %v5571, %v5570
  %5604 = vmatprep.subr.bf16.mxu0 0
  %5605 = vmatpush1.bf16.msra.mxu0 %v5572
  %5606 = vmatprep.subr.bf16.mxu0 0
  %5607 = vmatpush1.bf16.msra.mxu0 %v5573
  %5608 = vmatprep.subr.bf16.mxu0 0
  %5609 = vmatpush1.bf16.msra.mxu0 %v5574
  %5610 = vmatprep.subr.bf16.mxu0 0
  %5611 = vmatpush1.bf16.msra.mxu0 %v5575
  %5612 = vmatprep.subr.bf16.mxu0 0
  %5613 = vmatpush1.bf16.msra.mxu0 %v5576
  %5614 = vmatprep.subr.bf16.mxu0 0
  %5615 = vmatpush1.bf16.msra.mxu0 %v5577
  %5616 = vmatprep.subr.bf16.mxu0 0
  %5617 = vmatpush1.bf16.msra.mxu0 %v5578
  %5618 = vmatprep.subr.bf16.mxu0 0
  %5619 = vmatpush1.bf16.msra.mxu0 %v5579
  %5620 = vmatprep.subr.bf16.mxu0 0
  %5621 = vmatpush1.bf16.msra.mxu0 %v5580
  %5622 = vmatprep.subr.bf16.mxu0 0
  %5623 = vmatpush1.bf16.msra.mxu0 %v5581
  %5624 = vmatprep.subr.bf16.mxu0 0
  %5625 = vmatpush1.bf16.msra.mxu0 %v5582
  %5626 = vmatprep.subr.bf16.mxu0 0
  %5627 = vmatpush1.bf16.msra.mxu0 %v5583
  %5628 = vmatprep.subr.bf16.mxu0 0
  %5629 = vmatpush1.bf16.msra.mxu0 %v5584
  %5630 = vmatprep.subr.bf16.mxu0 0
  %5631 = vmatpush1.bf16.msra.mxu0 %v5585
  %5632 = vmatprep.subr.bf16.mxu0 0
  %5633 = vmatpush1.bf16.msra.mxu0 %v5586
  %5634 = vmatprep.subr.bf16.mxu0 0
  %5635 = vmatpush1.bf16.msra.mxu0 %v5587
  %5636 = vmatprep.mubr.bf16.mxu0 %v5474
  %5637 = vmatmul.mubr.bf16.gmra.mrb[0].mxu0 %v5473
  %v5638 = vpop.f32.mrb[0].mxu0
  %v5639 = vadd.f32 0.0, %v5638
  %v5640 = vpop.f32.mrb[0].mxu0
  %v5641 = vpop.f32.mrb[0].mxu0
  %v5642 = vpop.f32.mrb[0].mxu0
  %5643 = vdwg.mxu0
  %v5676 = vunpack.c.l.b16 %v5441
  %v5677 = vunpack.c.l.b16 %v5442
  %v5678 = vunpack.c.l.b16 %v5443
  %v5679 = vunpack.c.l.b16 %v5444
  %v5680 = vunpack.c.l.b16 %v5445
  %v5681 = vunpack.c.l.b16 %v5446
  %v5682 = vunpack.c.l.b16 %v5447
  %v5683 = vunpack.c.l.b16 %v5448
  %v5684 = vunpack.c.l.b16 %v5449
  %v5685 = vunpack.c.l.b16 %v5450
  %v5686 = vunpack.c.l.b16 %v5451
  %v5687 = vunpack.c.l.b16 %v5452
  %v5688 = vunpack.c.l.b16 %v5453
  %v5689 = vunpack.c.l.b16 %v5454
  %v5690 = vunpack.c.l.b16 %v5455
  %v5691 = vunpack.c.l.b16 %v5456
  %v5692 = vunpack.c.l.b16 %v5457
  %v5693 = vunpack.c.l.b16 %v5458
  %v5694 = vunpack.c.l.b16 %v5459
  %v5695 = vunpack.c.l.b16 %v5460
  %v5696 = vunpack.c.l.b16 %v5461
  %v5697 = vunpack.c.l.b16 %v5462
  %v5698 = vunpack.c.l.b16 %v5463
  %v5699 = vunpack.c.l.b16 %v5464
  %v5700 = vunpack.c.l.b16 %v5465
  %v5701 = vunpack.c.l.b16 %v5466
  %v5702 = vunpack.c.l.b16 %v5467
  %v5703 = vunpack.c.l.b16 %v5468
  %v5704 = vunpack.c.l.b16 %v5469
  %v5705 = vunpack.c.l.b16 %v5470
  %v5706 = vunpack.c.l.b16 %v5471
  %v5707 = vunpack.c.l.b16 %v5472
  %v5708 = vpack.c.b16 %v5677, %v5676
  %v5709 = vpack.c.b16 %v5679, %v5678
  %v5710 = vpack.c.b16 %v5681, %v5680
  %v5711 = vpack.c.b16 %v5683, %v5682
  %v5712 = vpack.c.b16 %v5685, %v5684
  %v5713 = vpack.c.b16 %v5687, %v5686
  %v5714 = vpack.c.b16 %v5689, %v5688
  %v5715 = vpack.c.b16 %v5691, %v5690
  %v5716 = vpack.c.b16 %v5693, %v5692
  %v5717 = vpack.c.b16 %v5695, %v5694
  %v5718 = vpack.c.b16 %v5697, %v5696
  %v5719 = vpack.c.b16 %v5699, %v5698
  %v5720 = vpack.c.b16 %v5701, %v5700
  %v5721 = vpack.c.b16 %v5703, %v5702
  %v5722 = vpack.c.b16 %v5705, %v5704
  %v5723 = vpack.c.b16 %v5707, %v5706
  %5740 = vmatprep.subr.bf16.mxu0 0
  %5741 = vmatpush1.bf16.msra.mxu0 %v5708
  %5742 = vmatprep.subr.bf16.mxu0 0
  %5743 = vmatpush1.bf16.msra.mxu0 %v5709
  %5744 = vmatprep.subr.bf16.mxu0 0
  %5745 = vmatpush1.bf16.msra.mxu0 %v5710
  %5746 = vmatprep.subr.bf16.mxu0 0
  %5747 = vmatpush1.bf16.msra.mxu0 %v5711
  %5748 = vmatprep.subr.bf16.mxu0 0
  %5749 = vmatpush1.bf16.msra.mxu0 %v5712
  %5750 = vmatprep.subr.bf16.mxu0 0
  %5751 = vmatpush1.bf16.msra.mxu0 %v5713
  %5752 = vmatprep.subr.bf16.mxu0 0
  %5753 = vmatpush1.bf16.msra.mxu0 %v5714
  %5754 = vmatprep.subr.bf16.mxu0 0
  %5755 = vmatpush1.bf16.msra.mxu0 %v5715
  %5756 = vmatprep.subr.bf16.mxu0 0
  %5757 = vmatpush1.bf16.msra.mxu0 %v5716
  %5758 = vmatprep.subr.bf16.mxu0 0
  %5759 = vmatpush1.bf16.msra.mxu0 %v5717
  %5760 = vmatprep.subr.bf16.mxu0 0
  %5761 = vmatpush1.bf16.msra.mxu0 %v5718
  %5762 = vmatprep.subr.bf16.mxu0 0
  %5763 = vmatpush1.bf16.msra.mxu0 %v5719
  %5764 = vmatprep.subr.bf16.mxu0 0
  %5765 = vmatpush1.bf16.msra.mxu0 %v5720
  %5766 = vmatprep.subr.bf16.mxu0 0
  %5767 = vmatpush1.bf16.msra.mxu0 %v5721
  %5768 = vmatprep.subr.bf16.mxu0 0
  %5769 = vmatpush1.bf16.msra.mxu0 %v5722
  %5770 = vmatprep.subr.bf16.mxu0 0
  %5771 = vmatpush1.bf16.msra.mxu0 %v5723
  %5772 = vmatprep.mubr.bf16.mxu0 %v5440
  %5773 = vmatmul.mubr.bf16.gmra.mrb[0].mxu0 %v5439
  %v5774 = vpop.f32.mrb[0].mxu0
  %v5775 = vadd.f32 %v5639, %v5774
  %v5776 = vpop.f32.mrb[0].mxu0
  %v5777 = vpop.f32.mrb[0].mxu0
  %v5778 = vpop.f32.mrb[0].mxu0
  %5779 = vdwg.mxu0
  %v5780 = vpack.c.bf16 %v5419, %v5419
  %v5781 = vpack.c.bf16 %v5420, %v5420
  %s5782 = scalar_lea.vmem %s7, 256
  %v5783 = vld [vmem:[%s5782] sm:$0xf]
  %v5784 = vld [vmem:[%s5782 + $0x4] sm:$0xf]
  %v5785 = vld [vmem:[%s5782 + $0x8] sm:$0xf]
  %v5786 = vld [vmem:[%s5782 + $0xc] sm:$0xf]
  %v5787 = vld [vmem:[%s5782 + $0x10] sm:$0xf]
  %v5788 = vld [vmem:[%s5782 + $0x14] sm:$0xf]
  %v5789 = vld [vmem:[%s5782 + $0x18] sm:$0xf]
  %v5790 = vld [vmem:[%s5782 + $0x1c] sm:$0xf]
  %v5791 = vld [vmem:[%s5782 + $0x20] sm:$0xf]
  %v5792 = vld [vmem:[%s5782 + $0x24] sm:$0xf]
  %v5793 = vld [vmem:[%s5782 + $0x28] sm:$0xf]
  %v5794 = vld [vmem:[%s5782 + $0x2c] sm:$0xf]
  %v5795 = vld [vmem:[%s5782 + $0x30] sm:$0xf]
  %v5796 = vld [vmem:[%s5782 + $0x34] sm:$0xf]
  %v5797 = vld [vmem:[%s5782 + $0x38] sm:$0xf]
  %v5798 = vld [vmem:[%s5782 + $0x3c] sm:$0xf]
  %v5799 = vld [vmem:[%s5782 + $0x40] sm:$0xf]
  %v5800 = vld [vmem:[%s5782 + $0x44] sm:$0xf]
  %v5801 = vld [vmem:[%s5782 + $0x48] sm:$0xf]
  %v5802 = vld [vmem:[%s5782 + $0x4c] sm:$0xf]
  %v5803 = vld [vmem:[%s5782 + $0x50] sm:$0xf]
  %v5804 = vld [vmem:[%s5782 + $0x54] sm:$0xf]
  %v5805 = vld [vmem:[%s5782 + $0x58] sm:$0xf]
  %v5806 = vld [vmem:[%s5782 + $0x5c] sm:$0xf]
  %v5807 = vld [vmem:[%s5782 + $0x60] sm:$0xf]
  %v5808 = vld [vmem:[%s5782 + $0x64] sm:$0xf]
  %v5809 = vld [vmem:[%s5782 + $0x68] sm:$0xf]
  %v5810 = vld [vmem:[%s5782 + $0x6c] sm:$0xf]
  %v5811 = vld [vmem:[%s5782 + $0x70] sm:$0xf]
  %v5812 = vld [vmem:[%s5782 + $0x74] sm:$0xf]
  %v5813 = vld [vmem:[%s5782 + $0x78] sm:$0xf]
  %v5814 = vld [vmem:[%s5782 + $0x7c] sm:$0xf]
  %v5847 = vunpack.c.l.b16 %v5783
  %v5848 = vunpack.c.l.b16 %v5784
  %v5849 = vunpack.c.l.b16 %v5785
  %v5850 = vunpack.c.l.b16 %v5786
  %v5851 = vunpack.c.l.b16 %v5787
  %v5852 = vunpack.c.l.b16 %v5788
  %v5853 = vunpack.c.l.b16 %v5789
  %v5854 = vunpack.c.l.b16 %v5790
  %v5855 = vunpack.c.l.b16 %v5791
  %v5856 = vunpack.c.l.b16 %v5792
  %v5857 = vunpack.c.l.b16 %v5793
  %v5858 = vunpack.c.l.b16 %v5794
  %v5859 = vunpack.c.l.b16 %v5795
  %v5860 = vunpack.c.l.b16 %v5796
  %v5861 = vunpack.c.l.b16 %v5797
  %v5862 = vunpack.c.l.b16 %v5798
  %v5863 = vunpack.c.l.b16 %v5799
  %v5864 = vunpack.c.l.b16 %v5800
  %v5865 = vunpack.c.l.b16 %v5801
  %v5866 = vunpack.c.l.b16 %v5802
  %v5867 = vunpack.c.l.b16 %v5803
  %v5868 = vunpack.c.l.b16 %v5804
  %v5869 = vunpack.c.l.b16 %v5805
  %v5870 = vunpack.c.l.b16 %v5806
  %v5871 = vunpack.c.l.b16 %v5807
  %v5872 = vunpack.c.l.b16 %v5808
  %v5873 = vunpack.c.l.b16 %v5809
  %v5874 = vunpack.c.l.b16 %v5810
  %v5875 = vunpack.c.l.b16 %v5811
  %v5876 = vunpack.c.l.b16 %v5812
  %v5877 = vunpack.c.l.b16 %v5813
  %v5878 = vunpack.c.l.b16 %v5814
  %v5879 = vpack.c.b16 %v5848, %v5847
  %v5880 = vpack.c.b16 %v5850, %v5849
  %v5881 = vpack.c.b16 %v5852, %v5851
  %v5882 = vpack.c.b16 %v5854, %v5853
  %v5883 = vpack.c.b16 %v5856, %v5855
  %v5884 = vpack.c.b16 %v5858, %v5857
  %v5885 = vpack.c.b16 %v5860, %v5859
  %v5886 = vpack.c.b16 %v5862, %v5861
  %v5887 = vpack.c.b16 %v5864, %v5863
  %v5888 = vpack.c.b16 %v5866, %v5865
  %v5889 = vpack.c.b16 %v5868, %v5867
  %v5890 = vpack.c.b16 %v5870, %v5869
  %v5891 = vpack.c.b16 %v5872, %v5871
  %v5892 = vpack.c.b16 %v5874, %v5873
  %v5893 = vpack.c.b16 %v5876, %v5875
  %v5894 = vpack.c.b16 %v5878, %v5877
  %5911 = vmatprep.subr.bf16.mxu0 0
  %5912 = vmatpush1.bf16.msra.mxu0 %v5879
  %5913 = vmatprep.subr.bf16.mxu0 0
  %5914 = vmatpush1.bf16.msra.mxu0 %v5880
  %5915 = vmatprep.subr.bf16.mxu0 0
  %5916 = vmatpush1.bf16.msra.mxu0 %v5881
  %5917 = vmatprep.subr.bf16.mxu0 0
  %5918 = vmatpush1.bf16.msra.mxu0 %v5882
  %5919 = vmatprep.subr.bf16.mxu0 0
  %5920 = vmatpush1.bf16.msra.mxu0 %v5883
  %5921 = vmatprep.subr.bf16.mxu0 0
  %5922 = vmatpush1.bf16.msra.mxu0 %v5884
  %5923 = vmatprep.subr.bf16.mxu0 0
  %5924 = vmatpush1.bf16.msra.mxu0 %v5885
  %5925 = vmatprep.subr.bf16.mxu0 0
  %5926 = vmatpush1.bf16.msra.mxu0 %v5886
  %5927 = vmatprep.subr.bf16.mxu0 0
  %5928 = vmatpush1.bf16.msra.mxu0 %v5887
  %5929 = vmatprep.subr.bf16.mxu0 0
  %5930 = vmatpush1.bf16.msra.mxu0 %v5888
  %5931 = vmatprep.subr.bf16.mxu0 0
  %5932 = vmatpush1.bf16.msra.mxu0 %v5889
  %5933 = vmatprep.subr.bf16.mxu0 0
  %5934 = vmatpush1.bf16.msra.mxu0 %v5890
  %5935 = vmatprep.subr.bf16.mxu0 0
  %5936 = vmatpush1.bf16.msra.mxu0 %v5891
  %5937 = vmatprep.subr.bf16.mxu0 0
  %5938 = vmatpush1.bf16.msra.mxu0 %v5892
  %5939 = vmatprep.subr.bf16.mxu0 0
  %5940 = vmatpush1.bf16.msra.mxu0 %v5893
  %5941 = vmatprep.subr.bf16.mxu0 0
  %5942 = vmatpush1.bf16.msra.mxu0 %v5894
  %5943 = vmatprep.mubr.bf16.mxu0 %v5781
  %5944 = vmatmul.mubr.bf16.gmra.mrb[0].mxu0 %v5780
  %v5945 = vpop.f32.mrb[0].mxu0
  %v5946 = vadd.f32 0.0, %v5945
  %v5947 = vpop.f32.mrb[0].mxu0
  %v5948 = vpop.f32.mrb[0].mxu0
  %v5949 = vpop.f32.mrb[0].mxu0
  %5950 = vdwg.mxu0
  %v5951 = vadd.f32 %v5775, %v5946
  %v5952 = vpack.c.bf16 %v5421, %v5421
  %v5953 = vpack.c.bf16 %v5422, %v5422
  %s5954 = scalar_lea.vmem %s7, 384
  %v5955 = vld [vmem:[%s5954] sm:$0xf]
  %v5956 = vld [vmem:[%s5954 + $0x4] sm:$0xf]
  %v5957 = vld [vmem:[%s5954 + $0x8] sm:$0xf]
  %v5958 = vld [vmem:[%s5954 + $0xc] sm:$0xf]
  %v5959 = vld [vmem:[%s5954 + $0x10] sm:$0xf]
  %v5960 = vld [vmem:[%s5954 + $0x14] sm:$0xf]
  %v5961 = vld [vmem:[%s5954 + $0x18] sm:$0xf]
  %v5962 = vld [vmem:[%s5954 + $0x1c] sm:$0xf]
  %v5963 = vld [vmem:[%s5954 + $0x20] sm:$0xf]
  %v5964 = vld [vmem:[%s5954 + $0x24] sm:$0xf]
  %v5965 = vld [vmem:[%s5954 + $0x28] sm:$0xf]
  %v5966 = vld [vmem:[%s5954 + $0x2c] sm:$0xf]
  %v5967 = vld [vmem:[%s5954 + $0x30] sm:$0xf]
  %v5968 = vld [vmem:[%s5954 + $0x34] sm:$0xf]
  %v5969 = vld [vmem:[%s5954 + $0x38] sm:$0xf]
  %v5970 = vld [vmem:[%s5954 + $0x3c] sm:$0xf]
  %v5971 = vld [vmem:[%s5954 + $0x40] sm:$0xf]
  %v5972 = vld [vmem:[%s5954 + $0x44] sm:$0xf]
  %v5973 = vld [vmem:[%s5954 + $0x48] sm:$0xf]
  %v5974 = vld [vmem:[%s5954 + $0x4c] sm:$0xf]
  %v5975 = vld [vmem:[%s5954 + $0x50] sm:$0xf]
  %v5976 = vld [vmem:[%s5954 + $0x54] sm:$0xf]
  %v5977 = vld [vmem:[%s5954 + $0x58] sm:$0xf]
  %v5978 = vld [vmem:[%s5954 + $0x5c] sm:$0xf]
  %v5979 = vld [vmem:[%s5954 + $0x60] sm:$0xf]
  %v5980 = vld [vmem:[%s5954 + $0x64] sm:$0xf]
  %v5981 = vld [vmem:[%s5954 + $0x68] sm:$0xf]
  %v5982 = vld [vmem:[%s5954 + $0x6c] sm:$0xf]
  %v5983 = vld [vmem:[%s5954 + $0x70] sm:$0xf]
  %v5984 = vld [vmem:[%s5954 + $0x74] sm:$0xf]
  %v5985 = vld [vmem:[%s5954 + $0x78] sm:$0xf]
  %v5986 = vld [vmem:[%s5954 + $0x7c] sm:$0xf]
  %v6019 = vunpack.c.l.b16 %v5955
  %v6020 = vunpack.c.l.b16 %v5956
  %v6021 = vunpack.c.l.b16 %v5957
  %v6022 = vunpack.c.l.b16 %v5958
  %v6023 = vunpack.c.l.b16 %v5959
  %v6024 = vunpack.c.l.b16 %v5960
  %v6025 = vunpack.c.l.b16 %v5961
  %v6026 = vunpack.c.l.b16 %v5962
  %v6027 = vunpack.c.l.b16 %v5963
  %v6028 = vunpack.c.l.b16 %v5964
  %v6029 = vunpack.c.l.b16 %v5965
  %v6030 = vunpack.c.l.b16 %v5966
  %v6031 = vunpack.c.l.b16 %v5967
  %v6032 = vunpack.c.l.b16 %v5968
  %v6033 = vunpack.c.l.b16 %v5969
  %v6034 = vunpack.c.l.b16 %v5970
  %v6035 = vunpack.c.l.b16 %v5971
  %v6036 = vunpack.c.l.b16 %v5972
  %v6037 = vunpack.c.l.b16 %v5973
  %v6038 = vunpack.c.l.b16 %v5974
  %v6039 = vunpack.c.l.b16 %v5975
  %v6040 = vunpack.c.l.b16 %v5976
  %v6041 = vunpack.c.l.b16 %v5977
  %v6042 = vunpack.c.l.b16 %v5978
  %v6043 = vunpack.c.l.b16 %v5979
  %v6044 = vunpack.c.l.b16 %v5980
  %v6045 = vunpack.c.l.b16 %v5981
  %v6046 = vunpack.c.l.b16 %v5982
  %v6047 = vunpack.c.l.b16 %v5983
  %v6048 = vunpack.c.l.b16 %v5984
  %v6049 = vunpack.c.l.b16 %v5985
  %v6050 = vunpack.c.l.b16 %v5986
  %v6051 = vpack.c.b16 %v6020, %v6019
  %v6052 = vpack.c.b16 %v6022, %v6021
  %v6053 = vpack.c.b16 %v6024, %v6023
  %v6054 = vpack.c.b16 %v6026, %v6025
  %v6055 = vpack.c.b16 %v6028, %v6027
  %v6056 = vpack.c.b16 %v6030, %v6029
  %v6057 = vpack.c.b16 %v6032, %v6031
  %v6058 = vpack.c.b16 %v6034, %v6033
  %v6059 = vpack.c.b16 %v6036, %v6035
  %v6060 = vpack.c.b16 %v6038, %v6037
  %v6061 = vpack.c.b16 %v6040, %v6039
  %v6062 = vpack.c.b16 %v6042, %v6041
  %v6063 = vpack.c.b16 %v6044, %v6043
  %v6064 = vpack.c.b16 %v6046, %v6045
  %v6065 = vpack.c.b16 %v6048, %v6047
  %v6066 = vpack.c.b16 %v6050, %v6049
  %6083 = vmatprep.subr.bf16.mxu0 0
  %6084 = vmatpush1.bf16.msra.mxu0 %v6051
  %6085 = vmatprep.subr.bf16.mxu0 0
  %6086 = vmatpush1.bf16.msra.mxu0 %v6052
  %6087 = vmatprep.subr.bf16.mxu0 0
  %6088 = vmatpush1.bf16.msra.mxu0 %v6053
  %6089 = vmatprep.subr.bf16.mxu0 0
  %6090 = vmatpush1.bf16.msra.mxu0 %v6054
  %6091 = vmatprep.subr.bf16.mxu0 0
  %6092 = vmatpush1.bf16.msra.mxu0 %v6055
  %6093 = vmatprep.subr.bf16.mxu0 0
  %6094 = vmatpush1.bf16.msra.mxu0 %v6056
  %6095 = vmatprep.subr.bf16.mxu0 0
  %6096 = vmatpush1.bf16.msra.mxu0 %v6057
  %6097 = vmatprep.subr.bf16.mxu0 0
  %6098 = vmatpush1.bf16.msra.mxu0 %v6058
  %6099 = vmatprep.subr.bf16.mxu0 0
  %6100 = vmatpush1.bf16.msra.mxu0 %v6059
  %6101 = vmatprep.subr.bf16.mxu0 0
  %6102 = vmatpush1.bf16.msra.mxu0 %v6060
  %6103 = vmatprep.subr.bf16.mxu0 0
  %6104 = vmatpush1.bf16.msra.mxu0 %v6061
  %6105 = vmatprep.subr.bf16.mxu0 0
  %6106 = vmatpush1.bf16.msra.mxu0 %v6062
  %6107 = vmatprep.subr.bf16.mxu0 0
  %6108 = vmatpush1.bf16.msra.mxu0 %v6063
  %6109 = vmatprep.subr.bf16.mxu0 0
  %6110 = vmatpush1.bf16.msra.mxu0 %v6064
  %6111 = vmatprep.subr.bf16.mxu0 0
  %6112 = vmatpush1.bf16.msra.mxu0 %v6065
  %6113 = vmatprep.subr.bf16.mxu0 0
  %6114 = vmatpush1.bf16.msra.mxu0 %v6066
  %6115 = vmatprep.mubr.bf16.mxu0 %v5953
  %6116 = vmatmul.mubr.bf16.gmra.mrb[0].mxu0 %v5952
  %v6117 = vpop.f32.mrb[0].mxu0
  %v6118 = vadd.f32 0.0, %v6117
  %v6119 = vpop.f32.mrb[0].mxu0
  %v6120 = vpop.f32.mrb[0].mxu0
  %v6121 = vpop.f32.mrb[0].mxu0
  %6122 = vdwg.mxu0
  %v6123 = vadd.f32 %v5951, %v6118
  %v6124 = vpack.c.bf16 %v5423, %v5423
  %v6125 = vpack.c.bf16 %v5424, %v5424
  %s6126 = scalar_lea.vmem %s7, 512
  %v6127 = vld [vmem:[%s6126] sm:$0xf]
  %v6128 = vld [vmem:[%s6126 + $0x4] sm:$0xf]
  %v6129 = vld [vmem:[%s6126 + $0x8] sm:$0xf]
  %v6130 = vld [vmem:[%s6126 + $0xc] sm:$0xf]
  %v6131 = vld [vmem:[%s6126 + $0x10] sm:$0xf]
  %v6132 = vld [vmem:[%s6126 + $0x14] sm:$0xf]
  %v6133 = vld [vmem:[%s6126 + $0x18] sm:$0xf]
  %v6134 = vld [vmem:[%s6126 + $0x1c] sm:$0xf]
  %v6135 = vld [vmem:[%s6126 + $0x20] sm:$0xf]
  %v6136 = vld [vmem:[%s6126 + $0x24] sm:$0xf]
  %v6137 = vld [vmem:[%s6126 + $0x28] sm:$0xf]
  %v6138 = vld [vmem:[%s6126 + $0x2c] sm:$0xf]
  %v6139 = vld [vmem:[%s6126 + $0x30] sm:$0xf]
  %v6140 = vld [vmem:[%s6126 + $0x34] sm:$0xf]
  %v6141 = vld [vmem:[%s6126 + $0x38] sm:$0xf]
  %v6142 = vld [vmem:[%s6126 + $0x3c] sm:$0xf]
  %v6143 = vld [vmem:[%s6126 + $0x40] sm:$0xf]
  %v6144 = vld [vmem:[%s6126 + $0x44] sm:$0xf]
  %v6145 = vld [vmem:[%s6126 + $0x48] sm:$0xf]
  %v6146 = vld [vmem:[%s6126 + $0x4c] sm:$0xf]
  %v6147 = vld [vmem:[%s6126 + $0x50] sm:$0xf]
  %v6148 = vld [vmem:[%s6126 + $0x54] sm:$0xf]
  %v6149 = vld [vmem:[%s6126 + $0x58] sm:$0xf]
  %v6150 = vld [vmem:[%s6126 + $0x5c] sm:$0xf]
  %v6151 = vld [vmem:[%s6126 + $0x60] sm:$0xf]
  %v6152 = vld [vmem:[%s6126 + $0x64] sm:$0xf]
  %v6153 = vld [vmem:[%s6126 + $0x68] sm:$0xf]
  %v6154 = vld [vmem:[%s6126 + $0x6c] sm:$0xf]
  %v6155 = vld [vmem:[%s6126 + $0x70] sm:$0xf]
  %v6156 = vld [vmem:[%s6126 + $0x74] sm:$0xf]
  %v6157 = vld [vmem:[%s6126 + $0x78] sm:$0xf]
  %v6158 = vld [vmem:[%s6126 + $0x7c] sm:$0xf]
  %v6191 = vunpack.c.l.b16 %v6127
  %v6192 = vunpack.c.l.b16 %v6128
  %v6193 = vunpack.c.l.b16 %v6129
  %v6194 = vunpack.c.l.b16 %v6130
  %v6195 = vunpack.c.l.b16 %v6131
  %v6196 = vunpack.c.l.b16 %v6132
  %v6197 = vunpack.c.l.b16 %v6133
  %v6198 = vunpack.c.l.b16 %v6134
  %v6199 = vunpack.c.l.b16 %v6135
  %v6200 = vunpack.c.l.b16 %v6136
  %v6201 = vunpack.c.l.b16 %v6137
  %v6202 = vunpack.c.l.b16 %v6138
  %v6203 = vunpack.c.l.b16 %v6139
  %v6204 = vunpack.c.l.b16 %v6140
  %v6205 = vunpack.c.l.b16 %v6141
  %v6206 = vunpack.c.l.b16 %v6142
  %v6207 = vunpack.c.l.b16 %v6143
  %v6208 = vunpack.c.l.b16 %v6144
  %v6209 = vunpack.c.l.b16 %v6145
  %v6210 = vunpack.c.l.b16 %v6146
  %v6211 = vunpack.c.l.b16 %v6147
  %v6212 = vunpack.c.l.b16 %v6148
  %v6213 = vunpack.c.l.b16 %v6149
  %v6214 = vunpack.c.l.b16 %v6150
  %v6215 = vunpack.c.l.b16 %v6151
  %v6216 = vunpack.c.l.b16 %v6152
  %v6217 = vunpack.c.l.b16 %v6153
  %v6218 = vunpack.c.l.b16 %v6154
  %v6219 = vunpack.c.l.b16 %v6155
  %v6220 = vunpack.c.l.b16 %v6156
  %v6221 = vunpack.c.l.b16 %v6157
  %v6222 = vunpack.c.l.b16 %v6158
  %v6223 = vpack.c.b16 %v6192, %v6191
  %v6224 = vpack.c.b16 %v6194, %v6193
  %v6225 = vpack.c.b16 %v6196, %v6195
  %v6226 = vpack.c.b16 %v6198, %v6197
  %v6227 = vpack.c.b16 %v6200, %v6199
  %v6228 = vpack.c.b16 %v6202, %v6201
  %v6229 = vpack.c.b16 %v6204, %v6203
  %v6230 = vpack.c.b16 %v6206, %v6205
  %v6231 = vpack.c.b16 %v6208, %v6207
  %v6232 = vpack.c.b16 %v6210, %v6209
  %v6233 = vpack.c.b16 %v6212, %v6211
  %v6234 = vpack.c.b16 %v6214, %v6213
  %v6235 = vpack.c.b16 %v6216, %v6215
  %v6236 = vpack.c.b16 %v6218, %v6217
  %v6237 = vpack.c.b16 %v6220, %v6219
  %v6238 = vpack.c.b16 %v6222, %v6221
  %6255 = vmatprep.subr.bf16.mxu0 0
  %6256 = vmatpush1.bf16.msra.mxu0 %v6223
  %6257 = vmatprep.subr.bf16.mxu0 0
  %6258 = vmatpush1.bf16.msra.mxu0 %v6224
  %6259 = vmatprep.subr.bf16.mxu0 0
  %6260 = vmatpush1.bf16.msra.mxu0 %v6225
  %6261 = vmatprep.subr.bf16.mxu0 0
  %6262 = vmatpush1.bf16.msra.mxu0 %v6226
  %6263 = vmatprep.subr.bf16.mxu0 0
  %6264 = vmatpush1.bf16.msra.mxu0 %v6227
  %6265 = vmatprep.subr.bf16.mxu0 0
  %6266 = vmatpush1.bf16.msra.mxu0 %v6228
  %6267 = vmatprep.subr.bf16.mxu0 0
  %6268 = vmatpush1.bf16.msra.mxu0 %v6229
  %6269 = vmatprep.subr.bf16.mxu0 0
  %6270 = vmatpush1.bf16.msra.mxu0 %v6230
  %6271 = vmatprep.subr.bf16.mxu0 0
  %6272 = vmatpush1.bf16.msra.mxu0 %v6231
  %6273 = vmatprep.subr.bf16.mxu0 0
  %6274 = vmatpush1.bf16.msra.mxu0 %v6232
  %6275 = vmatprep.subr.bf16.mxu0 0
  %6276 = vmatpush1.bf16.msra.mxu0 %v6233
  %6277 = vmatprep.subr.bf16.mxu0 0
  %6278 = vmatpush1.bf16.msra.mxu0 %v6234
  %6279 = vmatprep.subr.bf16.mxu0 0
  %6280 = vmatpush1.bf16.msra.mxu0 %v6235
  %6281 = vmatprep.subr.bf16.mxu0 0
  %6282 = vmatpush1.bf16.msra.mxu0 %v6236
  %6283 = vmatprep.subr.bf16.mxu0 0
  %6284 = vmatpush1.bf16.msra.mxu0 %v6237
  %6285 = vmatprep.subr.bf16.mxu0 0
  %6286 = vmatpush1.bf16.msra.mxu0 %v6238
  %6287 = vmatprep.mubr.bf16.mxu0 %v6125
  %6288 = vmatmul.mubr.bf16.gmra.mrb[0].mxu0 %v6124
  %v6289 = vpop.f32.mrb[0].mxu0
  %v6290 = vadd.f32 0.0, %v6289
  %v6291 = vpop.f32.mrb[0].mxu0
  %v6292 = vpop.f32.mrb[0].mxu0
  %v6293 = vpop.f32.mrb[0].mxu0
  %6294 = vdwg.mxu0
  %v6295 = vadd.f32 %v6123, %v6290
  %v6296 = vpack.c.bf16 %v5425, %v5425
  %v6297 = vpack.c.bf16 %v5426, %v5426
  %s6298 = scalar_lea.vmem %s7, 640
  %v6299 = vld [vmem:[%s6298] sm:$0xf]
  %v6300 = vld [vmem:[%s6298 + $0x4] sm:$0xf]
  %v6301 = vld [vmem:[%s6298 + $0x8] sm:$0xf]
  %v6302 = vld [vmem:[%s6298 + $0xc] sm:$0xf]
  %v6303 = vld [vmem:[%s6298 + $0x10] sm:$0xf]
  %v6304 = vld [vmem:[%s6298 + $0x14] sm:$0xf]
  %v6305 = vld [vmem:[%s6298 + $0x18] sm:$0xf]
  %v6306 = vld [vmem:[%s6298 + $0x1c] sm:$0xf]
  %v6307 = vld [vmem:[%s6298 + $0x20] sm:$0xf]
  %v6308 = vld [vmem:[%s6298 + $0x24] sm:$0xf]
  %v6309 = vld [vmem:[%s6298 + $0x28] sm:$0xf]
  %v6310 = vld [vmem:[%s6298 + $0x2c] sm:$0xf]
  %v6311 = vld [vmem:[%s6298 + $0x30] sm:$0xf]
  %v6312 = vld [vmem:[%s6298 + $0x34] sm:$0xf]
  %v6313 = vld [vmem:[%s6298 + $0x38] sm:$0xf]
  %v6314 = vld [vmem:[%s6298 + $0x3c] sm:$0xf]
  %v6315 = vld [vmem:[%s6298 + $0x40] sm:$0xf]
  %v6316 = vld [vmem:[%s6298 + $0x44] sm:$0xf]
  %v6317 = vld [vmem:[%s6298 + $0x48] sm:$0xf]
  %v6318 = vld [vmem:[%s6298 + $0x4c] sm:$0xf]
  %v6319 = vld [vmem:[%s6298 + $0x50] sm:$0xf]
  %v6320 = vld [vmem:[%s6298 + $0x54] sm:$0xf]
  %v6321 = vld [vmem:[%s6298 + $0x58] sm:$0xf]
  %v6322 = vld [vmem:[%s6298 + $0x5c] sm:$0xf]
  %v6323 = vld [vmem:[%s6298 + $0x60] sm:$0xf]
  %v6324 = vld [vmem:[%s6298 + $0x64] sm:$0xf]
  %v6325 = vld [vmem:[%s6298 + $0x68] sm:$0xf]
  %v6326 = vld [vmem:[%s6298 + $0x6c] sm:$0xf]
  %v6327 = vld [vmem:[%s6298 + $0x70] sm:$0xf]
  %v6328 = vld [vmem:[%s6298 + $0x74] sm:$0xf]
  %v6329 = vld [vmem:[%s6298 + $0x78] sm:$0xf]
  %v6330 = vld [vmem:[%s6298 + $0x7c] sm:$0xf]
  %v6363 = vunpack.c.l.b16 %v6299
  %v6364 = vunpack.c.l.b16 %v6300
  %v6365 = vunpack.c.l.b16 %v6301
  %v6366 = vunpack.c.l.b16 %v6302
  %v6367 = vunpack.c.l.b16 %v6303
  %v6368 = vunpack.c.l.b16 %v6304
  %v6369 = vunpack.c.l.b16 %v6305
  %v6370 = vunpack.c.l.b16 %v6306
  %v6371 = vunpack.c.l.b16 %v6307
  %v6372 = vunpack.c.l.b16 %v6308
  %v6373 = vunpack.c.l.b16 %v6309
  %v6374 = vunpack.c.l.b16 %v6310
  %v6375 = vunpack.c.l.b16 %v6311
  %v6376 = vunpack.c.l.b16 %v6312
  %v6377 = vunpack.c.l.b16 %v6313
  %v6378 = vunpack.c.l.b16 %v6314
  %v6379 = vunpack.c.l.b16 %v6315
  %v6380 = vunpack.c.l.b16 %v6316
  %v6381 = vunpack.c.l.b16 %v6317
  %v6382 = vunpack.c.l.b16 %v6318
  %v6383 = vunpack.c.l.b16 %v6319
  %v6384 = vunpack.c.l.b16 %v6320
  %v6385 = vunpack.c.l.b16 %v6321
  %v6386 = vunpack.c.l.b16 %v6322
  %v6387 = vunpack.c.l.b16 %v6323
  %v6388 = vunpack.c.l.b16 %v6324
  %v6389 = vunpack.c.l.b16 %v6325
  %v6390 = vunpack.c.l.b16 %v6326
  %v6391 = vunpack.c.l.b16 %v6327
  %v6392 = vunpack.c.l.b16 %v6328
  %v6393 = vunpack.c.l.b16 %v6329
  %v6394 = vunpack.c.l.b16 %v6330
  %v6395 = vpack.c.b16 %v6364, %v6363
  %v6396 = vpack.c.b16 %v6366, %v6365
  %v6397 = vpack.c.b16 %v6368, %v6367
  %v6398 = vpack.c.b16 %v6370, %v6369
  %v6399 = vpack.c.b16 %v6372, %v6371
  %v6400 = vpack.c.b16 %v6374, %v6373
  %v6401 = vpack.c.b16 %v6376, %v6375
  %v6402 = vpack.c.b16 %v6378, %v6377
  %v6403 = vpack.c.b16 %v6380, %v6379
  %v6404 = vpack.c.b16 %v6382, %v6381
  %v6405 = vpack.c.b16 %v6384, %v6383
  %v6406 = vpack.c.b16 %v6386, %v6385
  %v6407 = vpack.c.b16 %v6388, %v6387
  %v6408 = vpack.c.b16 %v6390, %v6389
  %v6409 = vpack.c.b16 %v6392, %v6391
  %v6410 = vpack.c.b16 %v6394, %v6393
  %6427 = vmatprep.subr.bf16.mxu0 0
  %6428 = vmatpush1.bf16.msra.mxu0 %v6395
  %6429 = vmatprep.subr.bf16.mxu0 0
  %6430 = vmatpush1.bf16.msra.mxu0 %v6396
  %6431 = vmatprep.subr.bf16.mxu0 0
  %6432 = vmatpush1.bf16.msra.mxu0 %v6397
  %6433 = vmatprep.subr.bf16.mxu0 0
  %6434 = vmatpush1.bf16.msra.mxu0 %v6398
  %6435 = vmatprep.subr.bf16.mxu0 0
  %6436 = vmatpush1.bf16.msra.mxu0 %v6399
  %6437 = vmatprep.subr.bf16.mxu0 0
  %6438 = vmatpush1.bf16.msra.mxu0 %v6400
  %6439 = vmatprep.subr.bf16.mxu0 0
  %6440 = vmatpush1.bf16.msra.mxu0 %v6401
  %6441 = vmatprep.subr.bf16.mxu0 0
  %6442 = vmatpush1.bf16.msra.mxu0 %v6402
  %6443 = vmatprep.subr.bf16.mxu0 0
  %6444 = vmatpush1.bf16.msra.mxu0 %v6403
  %6445 = vmatprep.subr.bf16.mxu0 0
  %6446 = vmatpush1.bf16.msra.mxu0 %v6404
  %6447 = vmatprep.subr.bf16.mxu0 0
  %6448 = vmatpush1.bf16.msra.mxu0 %v6405
  %6449 = vmatprep.subr.bf16.mxu0 0
  %6450 = vmatpush1.bf16.msra.mxu0 %v6406
  %6451 = vmatprep.subr.bf16.mxu0 0
  %6452 = vmatpush1.bf16.msra.mxu0 %v6407
  %6453 = vmatprep.subr.bf16.mxu0 0
  %6454 = vmatpush1.bf16.msra.mxu0 %v6408
  %6455 = vmatprep.subr.bf16.mxu0 0
  %6456 = vmatpush1.bf16.msra.mxu0 %v6409
  %6457 = vmatprep.subr.bf16.mxu0 0
  %6458 = vmatpush1.bf16.msra.mxu0 %v6410
  %6459 = vmatprep.mubr.bf16.mxu0 %v6297
  %6460 = vmatmul.mubr.bf16.gmra.mrb[0].mxu0 %v6296
  %v6461 = vpop.f32.mrb[0].mxu0
  %v6462 = vadd.f32 0.0, %v6461
  %v6463 = vpop.f32.mrb[0].mxu0
  %v6464 = vpop.f32.mrb[0].mxu0
  %v6465 = vpop.f32.mrb[0].mxu0
  %6466 = vdwg.mxu0
  %v6467 = vadd.f32 %v6295, %v6462
  %v6468 = vpack.c.bf16 %v5427, %v5427
  %v6469 = vpack.c.bf16 %v5428, %v5428
  %s6470 = scalar_lea.vmem %s7, 768
  %v6471 = vld [vmem:[%s6470] sm:$0xf]
  %v6472 = vld [vmem:[%s6470 + $0x4] sm:$0xf]
  %v6473 = vld [vmem:[%s6470 + $0x8] sm:$0xf]
  %v6474 = vld [vmem:[%s6470 + $0xc] sm:$0xf]
  %v6475 = vld [vmem:[%s6470 + $0x10] sm:$0xf]
  %v6476 = vld [vmem:[%s6470 + $0x14] sm:$0xf]
  %v6477 = vld [vmem:[%s6470 + $0x18] sm:$0xf]
  %v6478 = vld [vmem:[%s6470 + $0x1c] sm:$0xf]
  %v6479 = vld [vmem:[%s6470 + $0x20] sm:$0xf]
  %v6480 = vld [vmem:[%s6470 + $0x24] sm:$0xf]
  %v6481 = vld [vmem:[%s6470 + $0x28] sm:$0xf]
  %v6482 = vld [vmem:[%s6470 + $0x2c] sm:$0xf]
  %v6483 = vld [vmem:[%s6470 + $0x30] sm:$0xf]
  %v6484 = vld [vmem:[%s6470 + $0x34] sm:$0xf]
  %v6485 = vld [vmem:[%s6470 + $0x38] sm:$0xf]
  %v6486 = vld [vmem:[%s6470 + $0x3c] sm:$0xf]
  %v6487 = vld [vmem:[%s6470 + $0x40] sm:$0xf]
  %v6488 = vld [vmem:[%s6470 + $0x44] sm:$0xf]
  %v6489 = vld [vmem:[%s6470 + $0x48] sm:$0xf]
  %v6490 = vld [vmem:[%s6470 + $0x4c] sm:$0xf]
  %v6491 = vld [vmem:[%s6470 + $0x50] sm:$0xf]
  %v6492 = vld [vmem:[%s6470 + $0x54] sm:$0xf]
  %v6493 = vld [vmem:[%s6470 + $0x58] sm:$0xf]
  %v6494 = vld [vmem:[%s6470 + $0x5c] sm:$0xf]
  %v6495 = vld [vmem:[%s6470 + $0x60] sm:$0xf]
  %v6496 = vld [vmem:[%s6470 + $0x64] sm:$0xf]
  %v6497 = vld [vmem:[%s6470 + $0x68] sm:$0xf]
  %v6498 = vld [vmem:[%s6470 + $0x6c] sm:$0xf]
  %v6499 = vld [vmem:[%s6470 + $0x70] sm:$0xf]
  %v6500 = vld [vmem:[%s6470 + $0x74] sm:$0xf]
  %v6501 = vld [vmem:[%s6470 + $0x78] sm:$0xf]
  %v6502 = vld [vmem:[%s6470 + $0x7c] sm:$0xf]
  %v6535 = vunpack.c.l.b16 %v6471
  %v6536 = vunpack.c.l.b16 %v6472
  %v6537 = vunpack.c.l.b16 %v6473
  %v6538 = vunpack.c.l.b16 %v6474
  %v6539 = vunpack.c.l.b16 %v6475
  %v6540 = vunpack.c.l.b16 %v6476
  %v6541 = vunpack.c.l.b16 %v6477
  %v6542 = vunpack.c.l.b16 %v6478
  %v6543 = vunpack.c.l.b16 %v6479
  %v6544 = vunpack.c.l.b16 %v6480
  %v6545 = vunpack.c.l.b16 %v6481
  %v6546 = vunpack.c.l.b16 %v6482
  %v6547 = vunpack.c.l.b16 %v6483
  %v6548 = vunpack.c.l.b16 %v6484
  %v6549 = vunpack.c.l.b16 %v6485
  %v6550 = vunpack.c.l.b16 %v6486
  %v6551 = vunpack.c.l.b16 %v6487
  %v6552 = vunpack.c.l.b16 %v6488
  %v6553 = vunpack.c.l.b16 %v6489
  %v6554 = vunpack.c.l.b16 %v6490
  %v6555 = vunpack.c.l.b16 %v6491
  %v6556 = vunpack.c.l.b16 %v6492
  %v6557 = vunpack.c.l.b16 %v6493
  %v6558 = vunpack.c.l.b16 %v6494
  %v6559 = vunpack.c.l.b16 %v6495
  %v6560 = vunpack.c.l.b16 %v6496
  %v6561 = vunpack.c.l.b16 %v6497
  %v6562 = vunpack.c.l.b16 %v6498
  %v6563 = vunpack.c.l.b16 %v6499
  %v6564 = vunpack.c.l.b16 %v6500
  %v6565 = vunpack.c.l.b16 %v6501
  %v6566 = vunpack.c.l.b16 %v6502
  %v6567 = vpack.c.b16 %v6536, %v6535
  %v6568 = vpack.c.b16 %v6538, %v6537
  %v6569 = vpack.c.b16 %v6540, %v6539
  %v6570 = vpack.c.b16 %v6542, %v6541
  %v6571 = vpack.c.b16 %v6544, %v6543
  %v6572 = vpack.c.b16 %v6546, %v6545
  %v6573 = vpack.c.b16 %v6548, %v6547
  %v6574 = vpack.c.b16 %v6550, %v6549
  %v6575 = vpack.c.b16 %v6552, %v6551
  %v6576 = vpack.c.b16 %v6554, %v6553
  %v6577 = vpack.c.b16 %v6556, %v6555
  %v6578 = vpack.c.b16 %v6558, %v6557
  %v6579 = vpack.c.b16 %v6560, %v6559
  %v6580 = vpack.c.b16 %v6562, %v6561
  %v6581 = vpack.c.b16 %v6564, %v6563
  %v6582 = vpack.c.b16 %v6566, %v6565
  %6599 = vmatprep.subr.bf16.mxu0 0
  %6600 = vmatpush1.bf16.msra.mxu0 %v6567
  %6601 = vmatprep.subr.bf16.mxu0 0
  %6602 = vmatpush1.bf16.msra.mxu0 %v6568
  %6603 = vmatprep.subr.bf16.mxu0 0
  %6604 = vmatpush1.bf16.msra.mxu0 %v6569
  %6605 = vmatprep.subr.bf16.mxu0 0
  %6606 = vmatpush1.bf16.msra.mxu0 %v6570
  %6607 = vmatprep.subr.bf16.mxu0 0
  %6608 = vmatpush1.bf16.msra.mxu0 %v6571
  %6609 = vmatprep.subr.bf16.mxu0 0
  %6610 = vmatpush1.bf16.msra.mxu0 %v6572
  %6611 = vmatprep.subr.bf16.mxu0 0
  %6612 = vmatpush1.bf16.msra.mxu0 %v6573
  %6613 = vmatprep.subr.bf16.mxu0 0
  %6614 = vmatpush1.bf16.msra.mxu0 %v6574
  %6615 = vmatprep.subr.bf16.mxu0 0
  %6616 = vmatpush1.bf16.msra.mxu0 %v6575
  %6617 = vmatprep.subr.bf16.mxu0 0
  %6618 = vmatpush1.bf16.msra.mxu0 %v6576
  %6619 = vmatprep.subr.bf16.mxu0 0
  %6620 = vmatpush1.bf16.msra.mxu0 %v6577
  %6621 = vmatprep.subr.bf16.mxu0 0
  %6622 = vmatpush1.bf16.msra.mxu0 %v6578
  %6623 = vmatprep.subr.bf16.mxu0 0
  %6624 = vmatpush1.bf16.msra.mxu0 %v6579
  %6625 = vmatprep.subr.bf16.mxu0 0
  %6626 = vmatpush1.bf16.msra.mxu0 %v6580
  %6627 = vmatprep.subr.bf16.mxu0 0
  %6628 = vmatpush1.bf16.msra.mxu0 %v6581
  %6629 = vmatprep.subr.bf16.mxu0 0
  %6630 = vmatpush1.bf16.msra.mxu0 %v6582
  %6631 = vmatprep.mubr.bf16.mxu0 %v6469
  %6632 = vmatmul.mubr.bf16.gmra.mrb[0].mxu0 %v6468
  %v6633 = vpop.f32.mrb[0].mxu0
  %v6634 = vadd.f32 0.0, %v6633
  %v6635 = vpop.f32.mrb[0].mxu0
  %v6636 = vpop.f32.mrb[0].mxu0
  %v6637 = vpop.f32.mrb[0].mxu0
  %6638 = vdwg.mxu0
  %v6639 = vadd.f32 %v6467, %v6634
  %v6640 = vpack.c.bf16 %v5429, %v5429
  %v6641 = vpack.c.bf16 %v5430, %v5430
  %s6642 = scalar_lea.vmem %s7, 896
  %v6643 = vld [vmem:[%s6642] sm:$0xf]
  %v6644 = vld [vmem:[%s6642 + $0x4] sm:$0xf]
  %v6645 = vld [vmem:[%s6642 + $0x8] sm:$0xf]
  %v6646 = vld [vmem:[%s6642 + $0xc] sm:$0xf]
  %v6647 = vld [vmem:[%s6642 + $0x10] sm:$0xf]
  %v6648 = vld [vmem:[%s6642 + $0x14] sm:$0xf]
  %v6649 = vld [vmem:[%s6642 + $0x18] sm:$0xf]
  %v6650 = vld [vmem:[%s6642 + $0x1c] sm:$0xf]
  %v6651 = vld [vmem:[%s6642 + $0x20] sm:$0xf]
  %v6652 = vld [vmem:[%s6642 + $0x24] sm:$0xf]
  %v6653 = vld [vmem:[%s6642 + $0x28] sm:$0xf]
  %v6654 = vld [vmem:[%s6642 + $0x2c] sm:$0xf]
  %v6655 = vld [vmem:[%s6642 + $0x30] sm:$0xf]
  %v6656 = vld [vmem:[%s6642 + $0x34] sm:$0xf]
  %v6657 = vld [vmem:[%s6642 + $0x38] sm:$0xf]
  %v6658 = vld [vmem:[%s6642 + $0x3c] sm:$0xf]
  %v6659 = vld [vmem:[%s6642 + $0x40] sm:$0xf]
  %v6660 = vld [vmem:[%s6642 + $0x44] sm:$0xf]
  %v6661 = vld [vmem:[%s6642 + $0x48] sm:$0xf]
  %v6662 = vld [vmem:[%s6642 + $0x4c] sm:$0xf]
  %v6663 = vld [vmem:[%s6642 + $0x50] sm:$0xf]
  %v6664 = vld [vmem:[%s6642 + $0x54] sm:$0xf]
  %v6665 = vld [vmem:[%s6642 + $0x58] sm:$0xf]
  %v6666 = vld [vmem:[%s6642 + $0x5c] sm:$0xf]
  %v6667 = vld [vmem:[%s6642 + $0x60] sm:$0xf]
  %v6668 = vld [vmem:[%s6642 + $0x64] sm:$0xf]
  %v6669 = vld [vmem:[%s6642 + $0x68] sm:$0xf]
  %v6670 = vld [vmem:[%s6642 + $0x6c] sm:$0xf]
  %v6671 = vld [vmem:[%s6642 + $0x70] sm:$0xf]
  %v6672 = vld [vmem:[%s6642 + $0x74] sm:$0xf]
  %v6673 = vld [vmem:[%s6642 + $0x78] sm:$0xf]
  %v6674 = vld [vmem:[%s6642 + $0x7c] sm:$0xf]
  %v6707 = vunpack.c.l.b16 %v6643
  %v6708 = vunpack.c.l.b16 %v6644
  %v6709 = vunpack.c.l.b16 %v6645
  %v6710 = vunpack.c.l.b16 %v6646
  %v6711 = vunpack.c.l.b16 %v6647
  %v6712 = vunpack.c.l.b16 %v6648
  %v6713 = vunpack.c.l.b16 %v6649
  %v6714 = vunpack.c.l.b16 %v6650
  %v6715 = vunpack.c.l.b16 %v6651
  %v6716 = vunpack.c.l.b16 %v6652
  %v6717 = vunpack.c.l.b16 %v6653
  %v6718 = vunpack.c.l.b16 %v6654
  %v6719 = vunpack.c.l.b16 %v6655
  %v6720 = vunpack.c.l.b16 %v6656
  %v6721 = vunpack.c.l.b16 %v6657
  %v6722 = vunpack.c.l.b16 %v6658
  %v6723 = vunpack.c.l.b16 %v6659
  %v6724 = vunpack.c.l.b16 %v6660
  %v6725 = vunpack.c.l.b16 %v6661
  %v6726 = vunpack.c.l.b16 %v6662
  %v6727 = vunpack.c.l.b16 %v6663
  %v6728 = vunpack.c.l.b16 %v6664
  %v6729 = vunpack.c.l.b16 %v6665
  %v6730 = vunpack.c.l.b16 %v6666
  %v6731 = vunpack.c.l.b16 %v6667
  %v6732 = vunpack.c.l.b16 %v6668
  %v6733 = vunpack.c.l.b16 %v6669
  %v6734 = vunpack.c.l.b16 %v6670
  %v6735 = vunpack.c.l.b16 %v6671
  %v6736 = vunpack.c.l.b16 %v6672
  %v6737 = vunpack.c.l.b16 %v6673
  %v6738 = vunpack.c.l.b16 %v6674
  %v6739 = vpack.c.b16 %v6708, %v6707
  %v6740 = vpack.c.b16 %v6710, %v6709
  %v6741 = vpack.c.b16 %v6712, %v6711
  %v6742 = vpack.c.b16 %v6714, %v6713
  %v6743 = vpack.c.b16 %v6716, %v6715
  %v6744 = vpack.c.b16 %v6718, %v6717
  %v6745 = vpack.c.b16 %v6720, %v6719
  %v6746 = vpack.c.b16 %v6722, %v6721
  %v6747 = vpack.c.b16 %v6724, %v6723
  %v6748 = vpack.c.b16 %v6726, %v6725
  %v6749 = vpack.c.b16 %v6728, %v6727
  %v6750 = vpack.c.b16 %v6730, %v6729
  %v6751 = vpack.c.b16 %v6732, %v6731
  %v6752 = vpack.c.b16 %v6734, %v6733
  %v6753 = vpack.c.b16 %v6736, %v6735
  %v6754 = vpack.c.b16 %v6738, %v6737
  %6771 = vmatprep.subr.bf16.mxu0 0
  %6772 = vmatpush1.bf16.msra.mxu0 %v6739
  %6773 = vmatprep.subr.bf16.mxu0 0
  %6774 = vmatpush1.bf16.msra.mxu0 %v6740
  %6775 = vmatprep.subr.bf16.mxu0 0
  %6776 = vmatpush1.bf16.msra.mxu0 %v6741
  %6777 = vmatprep.subr.bf16.mxu0 0
  %6778 = vmatpush1.bf16.msra.mxu0 %v6742
  %6779 = vmatprep.subr.bf16.mxu0 0
  %6780 = vmatpush1.bf16.msra.mxu0 %v6743
  %6781 = vmatprep.subr.bf16.mxu0 0
  %6782 = vmatpush1.bf16.msra.mxu0 %v6744
  %6783 = vmatprep.subr.bf16.mxu0 0
  %6784 = vmatpush1.bf16.msra.mxu0 %v6745
  %6785 = vmatprep.subr.bf16.mxu0 0
  %6786 = vmatpush1.bf16.msra.mxu0 %v6746
  %6787 = vmatprep.subr.bf16.mxu0 0
  %6788 = vmatpush1.bf16.msra.mxu0 %v6747
  %6789 = vmatprep.subr.bf16.mxu0 0
  %6790 = vmatpush1.bf16.msra.mxu0 %v6748
  %6791 = vmatprep.subr.bf16.mxu0 0
  %6792 = vmatpush1.bf16.msra.mxu0 %v6749
  %6793 = vmatprep.subr.bf16.mxu0 0
  %6794 = vmatpush1.bf16.msra.mxu0 %v6750
  %6795 = vmatprep.subr.bf16.mxu0 0
  %6796 = vmatpush1.bf16.msra.mxu0 %v6751
  %6797 = vmatprep.subr.bf16.mxu0 0
  %6798 = vmatpush1.bf16.msra.mxu0 %v6752
  %6799 = vmatprep.subr.bf16.mxu0 0
  %6800 = vmatpush1.bf16.msra.mxu0 %v6753
  %6801 = vmatprep.subr.bf16.mxu0 0
  %6802 = vmatpush1.bf16.msra.mxu0 %v6754
  %6803 = vmatprep.mubr.bf16.mxu0 %v6641
  %6804 = vmatmul.mubr.bf16.gmra.mrb[0].mxu0 %v6640
  %v6805 = vpop.f32.mrb[0].mxu0
  %v6806 = vadd.f32 0.0, %v6805
  %v6807 = vpop.f32.mrb[0].mxu0
  %v6808 = vpop.f32.mrb[0].mxu0
  %v6809 = vpop.f32.mrb[0].mxu0
  %6810 = vdwg.mxu0
  %v6811 = vadd.f32 %v6639, %v6806
  %v6812 = vpack.c.bf16 %v5431, %v5431
  %v6813 = vpack.c.bf16 %v5432, %v5432
  %s6814 = scalar_lea.vmem %s7, 1024
  %v6815 = vld [vmem:[%s6814] sm:$0xf]
  %v6816 = vld [vmem:[%s6814 + $0x4] sm:$0xf]
  %v6817 = vld [vmem:[%s6814 + $0x8] sm:$0xf]
  %v6818 = vld [vmem:[%s6814 + $0xc] sm:$0xf]
  %v6819 = vld [vmem:[%s6814 + $0x10] sm:$0xf]
  %v6820 = vld [vmem:[%s6814 + $0x14] sm:$0xf]
  %v6821 = vld [vmem:[%s6814 + $0x18] sm:$0xf]
  %v6822 = vld [vmem:[%s6814 + $0x1c] sm:$0xf]
  %v6823 = vld [vmem:[%s6814 + $0x20] sm:$0xf]
  %v6824 = vld [vmem:[%s6814 + $0x24] sm:$0xf]
  %v6825 = vld [vmem:[%s6814 + $0x28] sm:$0xf]
  %v6826 = vld [vmem:[%s6814 + $0x2c] sm:$0xf]
  %v6827 = vld [vmem:[%s6814 + $0x30] sm:$0xf]
  %v6828 = vld [vmem:[%s6814 + $0x34] sm:$0xf]
  %v6829 = vld [vmem:[%s6814 + $0x38] sm:$0xf]
  %v6830 = vld [vmem:[%s6814 + $0x3c] sm:$0xf]
  %v6831 = vld [vmem:[%s6814 + $0x40] sm:$0xf]
  %v6832 = vld [vmem:[%s6814 + $0x44] sm:$0xf]
  %v6833 = vld [vmem:[%s6814 + $0x48] sm:$0xf]
  %v6834 = vld [vmem:[%s6814 + $0x4c] sm:$0xf]
  %v6835 = vld [vmem:[%s6814 + $0x50] sm:$0xf]
  %v6836 = vld [vmem:[%s6814 + $0x54] sm:$0xf]
  %v6837 = vld [vmem:[%s6814 + $0x58] sm:$0xf]
  %v6838 = vld [vmem:[%s6814 + $0x5c] sm:$0xf]
  %v6839 = vld [vmem:[%s6814 + $0x60] sm:$0xf]
  %v6840 = vld [vmem:[%s6814 + $0x64] sm:$0xf]
  %v6841 = vld [vmem:[%s6814 + $0x68] sm:$0xf]
  %v6842 = vld [vmem:[%s6814 + $0x6c] sm:$0xf]
  %v6843 = vld [vmem:[%s6814 + $0x70] sm:$0xf]
  %v6844 = vld [vmem:[%s6814 + $0x74] sm:$0xf]
  %v6845 = vld [vmem:[%s6814 + $0x78] sm:$0xf]
  %v6846 = vld [vmem:[%s6814 + $0x7c] sm:$0xf]
  %v6879 = vunpack.c.l.b16 %v6815
  %v6880 = vunpack.c.l.b16 %v6816
  %v6881 = vunpack.c.l.b16 %v6817
  %v6882 = vunpack.c.l.b16 %v6818
  %v6883 = vunpack.c.l.b16 %v6819
  %v6884 = vunpack.c.l.b16 %v6820
  %v6885 = vunpack.c.l.b16 %v6821
  %v6886 = vunpack.c.l.b16 %v6822
  %v6887 = vunpack.c.l.b16 %v6823
  %v6888 = vunpack.c.l.b16 %v6824
  %v6889 = vunpack.c.l.b16 %v6825
  %v6890 = vunpack.c.l.b16 %v6826
  %v6891 = vunpack.c.l.b16 %v6827
  %v6892 = vunpack.c.l.b16 %v6828
  %v6893 = vunpack.c.l.b16 %v6829
  %v6894 = vunpack.c.l.b16 %v6830
  %v6895 = vunpack.c.l.b16 %v6831
  %v6896 = vunpack.c.l.b16 %v6832
  %v6897 = vunpack.c.l.b16 %v6833
  %v6898 = vunpack.c.l.b16 %v6834
  %v6899 = vunpack.c.l.b16 %v6835
  %v6900 = vunpack.c.l.b16 %v6836
  %v6901 = vunpack.c.l.b16 %v6837
  %v6902 = vunpack.c.l.b16 %v6838
  %v6903 = vunpack.c.l.b16 %v6839
  %v6904 = vunpack.c.l.b16 %v6840
  %v6905 = vunpack.c.l.b16 %v6841
  %v6906 = vunpack.c.l.b16 %v6842
  %v6907 = vunpack.c.l.b16 %v6843
  %v6908 = vunpack.c.l.b16 %v6844
  %v6909 = vunpack.c.l.b16 %v6845
  %v6910 = vunpack.c.l.b16 %v6846
  %v6911 = vpack.c.b16 %v6880, %v6879
  %v6912 = vpack.c.b16 %v6882, %v6881
  %v6913 = vpack.c.b16 %v6884, %v6883
  %v6914 = vpack.c.b16 %v6886, %v6885
  %v6915 = vpack.c.b16 %v6888, %v6887
  %v6916 = vpack.c.b16 %v6890, %v6889
  %v6917 = vpack.c.b16 %v6892, %v6891
  %v6918 = vpack.c.b16 %v6894, %v6893
  %v6919 = vpack.c.b16 %v6896, %v6895
  %v6920 = vpack.c.b16 %v6898, %v6897
  %v6921 = vpack.c.b16 %v6900, %v6899
  %v6922 = vpack.c.b16 %v6902, %v6901
  %v6923 = vpack.c.b16 %v6904, %v6903
  %v6924 = vpack.c.b16 %v6906, %v6905
  %v6925 = vpack.c.b16 %v6908, %v6907
  %v6926 = vpack.c.b16 %v6910, %v6909
  %6943 = vmatprep.subr.bf16.mxu0 0
  %6944 = vmatpush1.bf16.msra.mxu0 %v6911
  %6945 = vmatprep.subr.bf16.mxu0 0
  %6946 = vmatpush1.bf16.msra.mxu0 %v6912
  %6947 = vmatprep.subr.bf16.mxu0 0
  %6948 = vmatpush1.bf16.msra.mxu0 %v6913
  %6949 = vmatprep.subr.bf16.mxu0 0
  %6950 = vmatpush1.bf16.msra.mxu0 %v6914
  %6951 = vmatprep.subr.bf16.mxu0 0
  %6952 = vmatpush1.bf16.msra.mxu0 %v6915
  %6953 = vmatprep.subr.bf16.mxu0 0
  %6954 = vmatpush1.bf16.msra.mxu0 %v6916
  %6955 = vmatprep.subr.bf16.mxu0 0
  %6956 = vmatpush1.bf16.msra.mxu0 %v6917
  %6957 = vmatprep.subr.bf16.mxu0 0
  %6958 = vmatpush1.bf16.msra.mxu0 %v6918
  %6959 = vmatprep.subr.bf16.mxu0 0
  %6960 = vmatpush1.bf16.msra.mxu0 %v6919
  %6961 = vmatprep.subr.bf16.mxu0 0
  %6962 = vmatpush1.bf16.msra.mxu0 %v6920
  %6963 = vmatprep.subr.bf16.mxu0 0
  %6964 = vmatpush1.bf16.msra.mxu0 %v6921
  %6965 = vmatprep.subr.bf16.mxu0 0
  %6966 = vmatpush1.bf16.msra.mxu0 %v6922
  %6967 = vmatprep.subr.bf16.mxu0 0
  %6968 = vmatpush1.bf16.msra.mxu0 %v6923
  %6969 = vmatprep.subr.bf16.mxu0 0
  %6970 = vmatpush1.bf16.msra.mxu0 %v6924
  %6971 = vmatprep.subr.bf16.mxu0 0
  %6972 = vmatpush1.bf16.msra.mxu0 %v6925
  %6973 = vmatprep.subr.bf16.mxu0 0
  %6974 = vmatpush1.bf16.msra.mxu0 %v6926
  %6975 = vmatprep.mubr.bf16.mxu0 %v6813
  %6976 = vmatmul.mubr.bf16.gmra.mrb[0].mxu0 %v6812
  %v6977 = vpop.f32.mrb[0].mxu0
  %v6978 = vadd.f32 0.0, %v6977
  %v6979 = vpop.f32.mrb[0].mxu0
  %v6980 = vpop.f32.mrb[0].mxu0
  %v6981 = vpop.f32.mrb[0].mxu0
  %6982 = vdwg.mxu0
  %v6983 = vadd.f32 %v6811, %v6978
  %v6984 = vpack.c.bf16 %v5433, %v5433
  %v6985 = vpack.c.bf16 %v5434, %v5434
  %s6986 = scalar_lea.vmem %s7, 1152
  %v6987 = vld [vmem:[%s6986] sm:$0xf]
  %v6988 = vld [vmem:[%s6986 + $0x4] sm:$0xf]
  %v6989 = vld [vmem:[%s6986 + $0x8] sm:$0xf]
  %v6990 = vld [vmem:[%s6986 + $0xc] sm:$0xf]
  %v6991 = vld [vmem:[%s6986 + $0x10] sm:$0xf]
  %v6992 = vld [vmem:[%s6986 + $0x14] sm:$0xf]
  %v6993 = vld [vmem:[%s6986 + $0x18] sm:$0xf]
  %v6994 = vld [vmem:[%s6986 + $0x1c] sm:$0xf]
  %v6995 = vld [vmem:[%s6986 + $0x20] sm:$0xf]
  %v6996 = vld [vmem:[%s6986 + $0x24] sm:$0xf]
  %v6997 = vld [vmem:[%s6986 + $0x28] sm:$0xf]
  %v6998 = vld [vmem:[%s6986 + $0x2c] sm:$0xf]
  %v6999 = vld [vmem:[%s6986 + $0x30] sm:$0xf]
  %v7000 = vld [vmem:[%s6986 + $0x34] sm:$0xf]
  %v7001 = vld [vmem:[%s6986 + $0x38] sm:$0xf]
  %v7002 = vld [vmem:[%s6986 + $0x3c] sm:$0xf]
  %v7003 = vld [vmem:[%s6986 + $0x40] sm:$0xf]
  %v7004 = vld [vmem:[%s6986 + $0x44] sm:$0xf]
  %v7005 = vld [vmem:[%s6986 + $0x48] sm:$0xf]
  %v7006 = vld [vmem:[%s6986 + $0x4c] sm:$0xf]
  %v7007 = vld [vmem:[%s6986 + $0x50] sm:$0xf]
  %v7008 = vld [vmem:[%s6986 + $0x54] sm:$0xf]
  %v7009 = vld [vmem:[%s6986 + $0x58] sm:$0xf]
  %v7010 = vld [vmem:[%s6986 + $0x5c] sm:$0xf]
  %v7011 = vld [vmem:[%s6986 + $0x60] sm:$0xf]
  %v7012 = vld [vmem:[%s6986 + $0x64] sm:$0xf]
  %v7013 = vld [vmem:[%s6986 + $0x68] sm:$0xf]
  %v7014 = vld [vmem:[%s6986 + $0x6c] sm:$0xf]
  %v7015 = vld [vmem:[%s6986 + $0x70] sm:$0xf]
  %v7016 = vld [vmem:[%s6986 + $0x74] sm:$0xf]
  %v7017 = vld [vmem:[%s6986 + $0x78] sm:$0xf]
  %v7018 = vld [vmem:[%s6986 + $0x7c] sm:$0xf]
  %v7051 = vunpack.c.l.b16 %v6987
  %v7052 = vunpack.c.l.b16 %v6988
  %v7053 = vunpack.c.l.b16 %v6989
  %v7054 = vunpack.c.l.b16 %v6990
  %v7055 = vunpack.c.l.b16 %v6991
  %v7056 = vunpack.c.l.b16 %v6992
  %v7057 = vunpack.c.l.b16 %v6993
  %v7058 = vunpack.c.l.b16 %v6994
  %v7059 = vunpack.c.l.b16 %v6995
  %v7060 = vunpack.c.l.b16 %v6996
  %v7061 = vunpack.c.l.b16 %v6997
  %v7062 = vunpack.c.l.b16 %v6998
  %v7063 = vunpack.c.l.b16 %v6999
  %v7064 = vunpack.c.l.b16 %v7000
  %v7065 = vunpack.c.l.b16 %v7001
  %v7066 = vunpack.c.l.b16 %v7002
  %v7067 = vunpack.c.l.b16 %v7003
  %v7068 = vunpack.c.l.b16 %v7004
  %v7069 = vunpack.c.l.b16 %v7005
  %v7070 = vunpack.c.l.b16 %v7006
  %v7071 = vunpack.c.l.b16 %v7007
  %v7072 = vunpack.c.l.b16 %v7008
  %v7073 = vunpack.c.l.b16 %v7009
  %v7074 = vunpack.c.l.b16 %v7010
  %v7075 = vunpack.c.l.b16 %v7011
  %v7076 = vunpack.c.l.b16 %v7012
  %v7077 = vunpack.c.l.b16 %v7013
  %v7078 = vunpack.c.l.b16 %v7014
  %v7079 = vunpack.c.l.b16 %v7015
  %v7080 = vunpack.c.l.b16 %v7016
  %v7081 = vunpack.c.l.b16 %v7017
  %v7082 = vunpack.c.l.b16 %v7018
  %v7083 = vpack.c.b16 %v7052, %v7051
  %v7084 = vpack.c.b16 %v7054, %v7053
  %v7085 = vpack.c.b16 %v7056, %v7055
  %v7086 = vpack.c.b16 %v7058, %v7057
  %v7087 = vpack.c.b16 %v7060, %v7059
  %v7088 = vpack.c.b16 %v7062, %v7061
  %v7089 = vpack.c.b16 %v7064, %v7063
  %v7090 = vpack.c.b16 %v7066, %v7065
  %v7091 = vpack.c.b16 %v7068, %v7067
  %v7092 = vpack.c.b16 %v7070, %v7069
  %v7093 = vpack.c.b16 %v7072, %v7071
  %v7094 = vpack.c.b16 %v7074, %v7073
  %v7095 = vpack.c.b16 %v7076, %v7075
  %v7096 = vpack.c.b16 %v7078, %v7077
  %v7097 = vpack.c.b16 %v7080, %v7079
  %v7098 = vpack.c.b16 %v7082, %v7081
  %7115 = vmatprep.subr.bf16.mxu0 0
  %7116 = vmatpush1.bf16.msra.mxu0 %v7083
  %7117 = vmatprep.subr.bf16.mxu0 0
  %7118 = vmatpush1.bf16.msra.mxu0 %v7084
  %7119 = vmatprep.subr.bf16.mxu0 0
  %7120 = vmatpush1.bf16.msra.mxu0 %v7085
  %7121 = vmatprep.subr.bf16.mxu0 0
  %7122 = vmatpush1.bf16.msra.mxu0 %v7086
  %7123 = vmatprep.subr.bf16.mxu0 0
  %7124 = vmatpush1.bf16.msra.mxu0 %v7087
  %7125 = vmatprep.subr.bf16.mxu0 0
  %7126 = vmatpush1.bf16.msra.mxu0 %v7088
  %7127 = vmatprep.subr.bf16.mxu0 0
  %7128 = vmatpush1.bf16.msra.mxu0 %v7089
  %7129 = vmatprep.subr.bf16.mxu0 0
  %7130 = vmatpush1.bf16.msra.mxu0 %v7090
  %7131 = vmatprep.subr.bf16.mxu0 0
  %7132 = vmatpush1.bf16.msra.mxu0 %v7091
  %7133 = vmatprep.subr.bf16.mxu0 0
  %7134 = vmatpush1.bf16.msra.mxu0 %v7092
  %7135 = vmatprep.subr.bf16.mxu0 0
  %7136 = vmatpush1.bf16.msra.mxu0 %v7093
  %7137 = vmatprep.subr.bf16.mxu0 0
  %7138 = vmatpush1.bf16.msra.mxu0 %v7094
  %7139 = vmatprep.subr.bf16.mxu0 0
  %7140 = vmatpush1.bf16.msra.mxu0 %v7095
  %7141 = vmatprep.subr.bf16.mxu0 0
  %7142 = vmatpush1.bf16.msra.mxu0 %v7096
  %7143 = vmatprep.subr.bf16.mxu0 0
  %7144 = vmatpush1.bf16.msra.mxu0 %v7097
  %7145 = vmatprep.subr.bf16.mxu0 0
  %7146 = vmatpush1.bf16.msra.mxu0 %v7098
  %7147 = vmatprep.mubr.bf16.mxu0 %v6985
  %7148 = vmatmul.mubr.bf16.gmra.mrb[0].mxu0 %v6984
  %v7149 = vpop.f32.mrb[0].mxu0
  %v7150 = vadd.f32 0.0, %v7149
  %v7151 = vpop.f32.mrb[0].mxu0
  %v7152 = vpop.f32.mrb[0].mxu0
  %v7153 = vpop.f32.mrb[0].mxu0
  %7154 = vdwg.mxu0
  %v7155 = vadd.f32 %v6983, %v7150
  %v7156 = vpack.c.bf16 %v5435, %v5435
  %v7157 = vpack.c.bf16 %v5436, %v5436
  %s7158 = scalar_lea.vmem %s7, 1280
  %v7159 = vld [vmem:[%s7158] sm:$0xf]
  %v7160 = vld [vmem:[%s7158 + $0x4] sm:$0xf]
  %v7161 = vld [vmem:[%s7158 + $0x8] sm:$0xf]
  %v7162 = vld [vmem:[%s7158 + $0xc] sm:$0xf]
  %v7163 = vld [vmem:[%s7158 + $0x10] sm:$0xf]
  %v7164 = vld [vmem:[%s7158 + $0x14] sm:$0xf]
  %v7165 = vld [vmem:[%s7158 + $0x18] sm:$0xf]
  %v7166 = vld [vmem:[%s7158 + $0x1c] sm:$0xf]
  %v7167 = vld [vmem:[%s7158 + $0x20] sm:$0xf]
  %v7168 = vld [vmem:[%s7158 + $0x24] sm:$0xf]
  %v7169 = vld [vmem:[%s7158 + $0x28] sm:$0xf]
  %v7170 = vld [vmem:[%s7158 + $0x2c] sm:$0xf]
  %v7171 = vld [vmem:[%s7158 + $0x30] sm:$0xf]
  %v7172 = vld [vmem:[%s7158 + $0x34] sm:$0xf]
  %v7173 = vld [vmem:[%s7158 + $0x38] sm:$0xf]
  %v7174 = vld [vmem:[%s7158 + $0x3c] sm:$0xf]
  %v7175 = vld [vmem:[%s7158 + $0x40] sm:$0xf]
  %v7176 = vld [vmem:[%s7158 + $0x44] sm:$0xf]
  %v7177 = vld [vmem:[%s7158 + $0x48] sm:$0xf]
  %v7178 = vld [vmem:[%s7158 + $0x4c] sm:$0xf]
  %v7179 = vld [vmem:[%s7158 + $0x50] sm:$0xf]
  %v7180 = vld [vmem:[%s7158 + $0x54] sm:$0xf]
  %v7181 = vld [vmem:[%s7158 + $0x58] sm:$0xf]
  %v7182 = vld [vmem:[%s7158 + $0x5c] sm:$0xf]
  %v7183 = vld [vmem:[%s7158 + $0x60] sm:$0xf]
  %v7184 = vld [vmem:[%s7158 + $0x64] sm:$0xf]
  %v7185 = vld [vmem:[%s7158 + $0x68] sm:$0xf]
  %v7186 = vld [vmem:[%s7158 + $0x6c] sm:$0xf]
  %v7187 = vld [vmem:[%s7158 + $0x70] sm:$0xf]
  %v7188 = vld [vmem:[%s7158 + $0x74] sm:$0xf]
  %v7189 = vld [vmem:[%s7158 + $0x78] sm:$0xf]
  %v7190 = vld [vmem:[%s7158 + $0x7c] sm:$0xf]
  %v7223 = vunpack.c.l.b16 %v7159
  %v7224 = vunpack.c.l.b16 %v7160
  %v7225 = vunpack.c.l.b16 %v7161
  %v7226 = vunpack.c.l.b16 %v7162
  %v7227 = vunpack.c.l.b16 %v7163
  %v7228 = vunpack.c.l.b16 %v7164
  %v7229 = vunpack.c.l.b16 %v7165
  %v7230 = vunpack.c.l.b16 %v7166
  %v7231 = vunpack.c.l.b16 %v7167
  %v7232 = vunpack.c.l.b16 %v7168
  %v7233 = vunpack.c.l.b16 %v7169
  %v7234 = vunpack.c.l.b16 %v7170
  %v7235 = vunpack.c.l.b16 %v7171
  %v7236 = vunpack.c.l.b16 %v7172
  %v7237 = vunpack.c.l.b16 %v7173
  %v7238 = vunpack.c.l.b16 %v7174
  %v7239 = vunpack.c.l.b16 %v7175
  %v7240 = vunpack.c.l.b16 %v7176
  %v7241 = vunpack.c.l.b16 %v7177
  %v7242 = vunpack.c.l.b16 %v7178
  %v7243 = vunpack.c.l.b16 %v7179
  %v7244 = vunpack.c.l.b16 %v7180
  %v7245 = vunpack.c.l.b16 %v7181
  %v7246 = vunpack.c.l.b16 %v7182
  %v7247 = vunpack.c.l.b16 %v7183
  %v7248 = vunpack.c.l.b16 %v7184
  %v7249 = vunpack.c.l.b16 %v7185
  %v7250 = vunpack.c.l.b16 %v7186
  %v7251 = vunpack.c.l.b16 %v7187
  %v7252 = vunpack.c.l.b16 %v7188
  %v7253 = vunpack.c.l.b16 %v7189
  %v7254 = vunpack.c.l.b16 %v7190
  %v7255 = vpack.c.b16 %v7224, %v7223
  %v7256 = vpack.c.b16 %v7226, %v7225
  %v7257 = vpack.c.b16 %v7228, %v7227
  %v7258 = vpack.c.b16 %v7230, %v7229
  %v7259 = vpack.c.b16 %v7232, %v7231
  %v7260 = vpack.c.b16 %v7234, %v7233
  %v7261 = vpack.c.b16 %v7236, %v7235
  %v7262 = vpack.c.b16 %v7238, %v7237
  %v7263 = vpack.c.b16 %v7240, %v7239
  %v7264 = vpack.c.b16 %v7242, %v7241
  %v7265 = vpack.c.b16 %v7244, %v7243
  %v7266 = vpack.c.b16 %v7246, %v7245
  %v7267 = vpack.c.b16 %v7248, %v7247
  %v7268 = vpack.c.b16 %v7250, %v7249
  %v7269 = vpack.c.b16 %v7252, %v7251
  %v7270 = vpack.c.b16 %v7254, %v7253
  %7287 = vmatprep.subr.bf16.mxu0 0
  %7288 = vmatpush1.bf16.msra.mxu0 %v7255
  %7289 = vmatprep.subr.bf16.mxu0 0
  %7290 = vmatpush1.bf16.msra.mxu0 %v7256
  %7291 = vmatprep.subr.bf16.mxu0 0
  %7292 = vmatpush1.bf16.msra.mxu0 %v7257
  %7293 = vmatprep.subr.bf16.mxu0 0
  %7294 = vmatpush1.bf16.msra.mxu0 %v7258
  %7295 = vmatprep.subr.bf16.mxu0 0
  %7296 = vmatpush1.bf16.msra.mxu0 %v7259
  %7297 = vmatprep.subr.bf16.mxu0 0
  %7298 = vmatpush1.bf16.msra.mxu0 %v7260
  %7299 = vmatprep.subr.bf16.mxu0 0
  %7300 = vmatpush1.bf16.msra.mxu0 %v7261
  %7301 = vmatprep.subr.bf16.mxu0 0
  %7302 = vmatpush1.bf16.msra.mxu0 %v7262
  %7303 = vmatprep.subr.bf16.mxu0 0
  %7304 = vmatpush1.bf16.msra.mxu0 %v7263
  %7305 = vmatprep.subr.bf16.mxu0 0
  %7306 = vmatpush1.bf16.msra.mxu0 %v7264
  %7307 = vmatprep.subr.bf16.mxu0 0
  %7308 = vmatpush1.bf16.msra.mxu0 %v7265
  %7309 = vmatprep.subr.bf16.mxu0 0
  %7310 = vmatpush1.bf16.msra.mxu0 %v7266
  %7311 = vmatprep.subr.bf16.mxu0 0
  %7312 = vmatpush1.bf16.msra.mxu0 %v7267
  %7313 = vmatprep.subr.bf16.mxu0 0
  %7314 = vmatpush1.bf16.msra.mxu0 %v7268
  %7315 = vmatprep.subr.bf16.mxu0 0
  %7316 = vmatpush1.bf16.msra.mxu0 %v7269
  %7317 = vmatprep.subr.bf16.mxu0 0
  %7318 = vmatpush1.bf16.msra.mxu0 %v7270
  %7319 = vmatprep.mubr.bf16.mxu0 %v7157
  %7320 = vmatmul.mubr.bf16.gmra.mrb[0].mxu0 %v7156
  %v7321 = vpop.f32.mrb[0].mxu0
  %v7322 = vadd.f32 0.0, %v7321
  %v7323 = vpop.f32.mrb[0].mxu0
  %v7324 = vpop.f32.mrb[0].mxu0
  %v7325 = vpop.f32.mrb[0].mxu0
  %7326 = vdwg.mxu0
  %v7327 = vadd.f32 %v7155, %v7322
  %v7328 = vpack.c.bf16 %v5437, %v5437
  %v7329 = vpack.c.bf16 %v5438, %v5438
  %s7330 = scalar_lea.vmem %s7, 1408
  %v7331 = vld [vmem:[%s7330] sm:$0xf]
  %v7332 = vld [vmem:[%s7330 + $0x4] sm:$0xf]
  %v7333 = vld [vmem:[%s7330 + $0x8] sm:$0xf]
  %v7334 = vld [vmem:[%s7330 + $0xc] sm:$0xf]
  %v7335 = vld [vmem:[%s7330 + $0x10] sm:$0xf]
  %v7336 = vld [vmem:[%s7330 + $0x14] sm:$0xf]
  %v7337 = vld [vmem:[%s7330 + $0x18] sm:$0xf]
  %v7338 = vld [vmem:[%s7330 + $0x1c] sm:$0xf]
  %v7339 = vld [vmem:[%s7330 + $0x20] sm:$0xf]
  %v7340 = vld [vmem:[%s7330 + $0x24] sm:$0xf]
  %v7341 = vld [vmem:[%s7330 + $0x28] sm:$0xf]
  %v7342 = vld [vmem:[%s7330 + $0x2c] sm:$0xf]
  %v7343 = vld [vmem:[%s7330 + $0x30] sm:$0xf]
  %v7344 = vld [vmem:[%s7330 + $0x34] sm:$0xf]
  %v7345 = vld [vmem:[%s7330 + $0x38] sm:$0xf]
  %v7346 = vld [vmem:[%s7330 + $0x3c] sm:$0xf]
  %v7347 = vld [vmem:[%s7330 + $0x40] sm:$0xf]
  %v7348 = vld [vmem:[%s7330 + $0x44] sm:$0xf]
  %v7349 = vld [vmem:[%s7330 + $0x48] sm:$0xf]
  %v7350 = vld [vmem:[%s7330 + $0x4c] sm:$0xf]
  %v7351 = vld [vmem:[%s7330 + $0x50] sm:$0xf]
  %v7352 = vld [vmem:[%s7330 + $0x54] sm:$0xf]
  %v7353 = vld [vmem:[%s7330 + $0x58] sm:$0xf]
  %v7354 = vld [vmem:[%s7330 + $0x5c] sm:$0xf]
  %v7355 = vld [vmem:[%s7330 + $0x60] sm:$0xf]
  %v7356 = vld [vmem:[%s7330 + $0x64] sm:$0xf]
  %v7357 = vld [vmem:[%s7330 + $0x68] sm:$0xf]
  %v7358 = vld [vmem:[%s7330 + $0x6c] sm:$0xf]
  %v7359 = vld [vmem:[%s7330 + $0x70] sm:$0xf]
  %v7360 = vld [vmem:[%s7330 + $0x74] sm:$0xf]
  %v7361 = vld [vmem:[%s7330 + $0x78] sm:$0xf]
  %v7362 = vld [vmem:[%s7330 + $0x7c] sm:$0xf]
  %v7395 = vunpack.c.l.b16 %v7331
  %v7396 = vunpack.c.l.b16 %v7332
  %v7397 = vunpack.c.l.b16 %v7333
  %v7398 = vunpack.c.l.b16 %v7334
  %v7399 = vunpack.c.l.b16 %v7335
  %v7400 = vunpack.c.l.b16 %v7336
  %v7401 = vunpack.c.l.b16 %v7337
  %v7402 = vunpack.c.l.b16 %v7338
  %v7403 = vunpack.c.l.b16 %v7339
  %v7404 = vunpack.c.l.b16 %v7340
  %v7405 = vunpack.c.l.b16 %v7341
  %v7406 = vunpack.c.l.b16 %v7342
  %v7407 = vunpack.c.l.b16 %v7343
  %v7408 = vunpack.c.l.b16 %v7344
  %v7409 = vunpack.c.l.b16 %v7345
  %v7410 = vunpack.c.l.b16 %v7346
  %v7411 = vunpack.c.l.b16 %v7347
  %v7412 = vunpack.c.l.b16 %v7348
  %v7413 = vunpack.c.l.b16 %v7349
  %v7414 = vunpack.c.l.b16 %v7350
  %v7415 = vunpack.c.l.b16 %v7351
  %v7416 = vunpack.c.l.b16 %v7352
  %v7417 = vunpack.c.l.b16 %v7353
  %v7418 = vunpack.c.l.b16 %v7354
  %v7419 = vunpack.c.l.b16 %v7355
  %v7420 = vunpack.c.l.b16 %v7356
  %v7421 = vunpack.c.l.b16 %v7357
  %v7422 = vunpack.c.l.b16 %v7358
  %v7423 = vunpack.c.l.b16 %v7359
  %v7424 = vunpack.c.l.b16 %v7360
  %v7425 = vunpack.c.l.b16 %v7361
  %v7426 = vunpack.c.l.b16 %v7362
  %v7427 = vpack.c.b16 %v7396, %v7395
  %v7428 = vpack.c.b16 %v7398, %v7397
  %v7429 = vpack.c.b16 %v7400, %v7399
  %v7430 = vpack.c.b16 %v7402, %v7401
  %v7431 = vpack.c.b16 %v7404, %v7403
  %v7432 = vpack.c.b16 %v7406, %v7405
  %v7433 = vpack.c.b16 %v7408, %v7407
  %v7434 = vpack.c.b16 %v7410, %v7409
  %v7435 = vpack.c.b16 %v7412, %v7411
  %v7436 = vpack.c.b16 %v7414, %v7413
  %v7437 = vpack.c.b16 %v7416, %v7415
  %v7438 = vpack.c.b16 %v7418, %v7417
  %v7439 = vpack.c.b16 %v7420, %v7419
  %v7440 = vpack.c.b16 %v7422, %v7421
  %v7441 = vpack.c.b16 %v7424, %v7423
  %v7442 = vpack.c.b16 %v7426, %v7425
  %7459 = vmatprep.subr.bf16.mxu0 0
  %7460 = vmatpush1.bf16.msra.mxu0 %v7427
  %7461 = vmatprep.subr.bf16.mxu0 0
  %7462 = vmatpush1.bf16.msra.mxu0 %v7428
  %7463 = vmatprep.subr.bf16.mxu0 0
  %7464 = vmatpush1.bf16.msra.mxu0 %v7429
  %7465 = vmatprep.subr.bf16.mxu0 0
  %7466 = vmatpush1.bf16.msra.mxu0 %v7430
  %7467 = vmatprep.subr.bf16.mxu0 0
  %7468 = vmatpush1.bf16.msra.mxu0 %v7431
  %7469 = vmatprep.subr.bf16.mxu0 0
  %7470 = vmatpush1.bf16.msra.mxu0 %v7432
  %7471 = vmatprep.subr.bf16.mxu0 0
  %7472 = vmatpush1.bf16.msra.mxu0 %v7433
  %7473 = vmatprep.subr.bf16.mxu0 0
  %7474 = vmatpush1.bf16.msra.mxu0 %v7434
  %7475 = vmatprep.subr.bf16.mxu0 0
  %7476 = vmatpush1.bf16.msra.mxu0 %v7435
  %7477 = vmatprep.subr.bf16.mxu0 0
  %7478 = vmatpush1.bf16.msra.mxu0 %v7436
  %7479 = vmatprep.subr.bf16.mxu0 0
  %7480 = vmatpush1.bf16.msra.mxu0 %v7437
  %7481 = vmatprep.subr.bf16.mxu0 0
  %7482 = vmatpush1.bf16.msra.mxu0 %v7438
  %7483 = vmatprep.subr.bf16.mxu0 0
  %7484 = vmatpush1.bf16.msra.mxu0 %v7439
  %7485 = vmatprep.subr.bf16.mxu0 0
  %7486 = vmatpush1.bf16.msra.mxu0 %v7440
  %7487 = vmatprep.subr.bf16.mxu0 0
  %7488 = vmatpush1.bf16.msra.mxu0 %v7441
  %7489 = vmatprep.subr.bf16.mxu0 0
  %7490 = vmatpush1.bf16.msra.mxu0 %v7442
  %7491 = vmatprep.mubr.bf16.mxu0 %v7329
  %7492 = vmatmul.mubr.bf16.gmra.mrb[0].mxu0 %v7328
  %v7493 = vpop.f32.mrb[0].mxu0
  %v7494 = vadd.f32 0.0, %v7493
  %v7495 = vpop.f32.mrb[0].mxu0
  %v7496 = vpop.f32.mrb[0].mxu0
  %v7497 = vpop.f32.mrb[0].mxu0
  %7498 = vdwg.mxu0
  %v7499 = vadd.f32 %v7327, %v7494
  %v7500 = vld [vmem:[%s8] sm:$0x1]
  %v7502 = vlaneseq
  %v7503 = vshrl.u32 %v7502, 7
  %v7504 = vsub.s32 0, %v7503
  %v7505 = vrot.slane %v7500, %v7504
  %v7507 = vadd.f32 %v7499, %v7505
  %v7508 = vsub.f32 0.0, %v7507
  %v7509 = vmul.f32 %v7508, 1.442695
  %v7510 = vpow.pop %v7509
  %v7511 = vadd.f32 %v7510, 1.0
  %v7512 = vrcp.pop %v7511
  %v7513 = vpack.c.bf16 %v7512, %v7512
  %v7514 = vld [vmem:[%s9] sm:$0xf]
  %v7515 = vld [vmem:[%s9 + $0x4] sm:$0xf]
  %v7516 = vld [vmem:[%s9 + $0x8] sm:$0xf]
  %v7517 = vld [vmem:[%s9 + $0xc] sm:$0xf]
  %v7518 = vld [vmem:[%s9 + $0x10] sm:$0xf]
  %v7519 = vld [vmem:[%s9 + $0x14] sm:$0xf]
  %v7520 = vld [vmem:[%s9 + $0x18] sm:$0xf]
  %v7521 = vld [vmem:[%s9 + $0x1c] sm:$0xf]
  %v7522 = vld [vmem:[%s9 + $0x20] sm:$0xf]
  %v7523 = vld [vmem:[%s9 + $0x24] sm:$0xf]
  %v7524 = vld [vmem:[%s9 + $0x28] sm:$0xf]
  %v7525 = vld [vmem:[%s9 + $0x2c] sm:$0xf]
  %v7526 = vld [vmem:[%s9 + $0x30] sm:$0xf]
  %v7527 = vld [vmem:[%s9 + $0x34] sm:$0xf]
  %v7528 = vld [vmem:[%s9 + $0x38] sm:$0xf]
  %v7529 = vld [vmem:[%s9 + $0x3c] sm:$0xf]
  %v7530 = vld [vmem:[%s10] sm:$0x1]
  %v7532 = vlaneseq
  %v7533 = vshrl.u32 %v7532, 7
  %v7534 = vsub.s32 0, %v7533
  %v7535 = vrot.slane %v7530, %v7534
  %v7553 = vunpack.c.l.b16 %v7514
  %v7554 = vunpack.c.l.b16 %v7515
  %v7555 = vunpack.c.l.b16 %v7516
  %v7556 = vunpack.c.l.b16 %v7517
  %v7557 = vunpack.c.l.b16 %v7518
  %v7558 = vunpack.c.l.b16 %v7519
  %v7559 = vunpack.c.l.b16 %v7520
  %v7560 = vunpack.c.l.b16 %v7521
  %v7561 = vunpack.c.l.b16 %v7522
  %v7562 = vunpack.c.l.b16 %v7523
  %v7563 = vunpack.c.l.b16 %v7524
  %v7564 = vunpack.c.l.b16 %v7525
  %v7565 = vunpack.c.l.b16 %v7526
  %v7566 = vunpack.c.l.b16 %v7527
  %v7567 = vunpack.c.l.b16 %v7528
  %v7568 = vunpack.c.l.b16 %v7529
  %v7569 = vpack.c.b16 %v7554, %v7553
  %v7570 = vpack.c.b16 %v7556, %v7555
  %v7571 = vpack.c.b16 %v7558, %v7557
  %v7572 = vpack.c.b16 %v7560, %v7559
  %v7573 = vpack.c.b16 %v7562, %v7561
  %v7574 = vpack.c.b16 %v7564, %v7563
  %v7575 = vpack.c.b16 %v7566, %v7565
  %v7576 = vpack.c.b16 %v7568, %v7567
  %7585 = vmatprep.subr.bf16.mxu0 0
  %7586 = vmatpush1.bf16.msra.mxu0 %v7569
  %7587 = vmatprep.subr.bf16.mxu0 0
  %7588 = vmatpush1.bf16.msra.mxu0 %v7570
  %7589 = vmatprep.subr.bf16.mxu0 0
  %7590 = vmatpush1.bf16.msra.mxu0 %v7571
  %7591 = vmatprep.subr.bf16.mxu0 0
  %7592 = vmatpush1.bf16.msra.mxu0 %v7572
  %7593 = vmatprep.subr.bf16.mxu0 0
  %7594 = vmatpush1.bf16.msra.mxu0 %v7573
  %7595 = vmatprep.subr.bf16.mxu0 0
  %7596 = vmatpush1.bf16.msra.mxu0 %v7574
  %7597 = vmatprep.subr.bf16.mxu0 0
  %7598 = vmatpush1.bf16.msra.mxu0 %v7575
  %7599 = vmatprep.subr.bf16.mxu0 0
  %7600 = vmatpush1.bf16.msra.mxu0 %v7576
  %7601 = vmatprep.subr.bf16.mxu0 0
  %7602 = vmatpush1.bf16.msra.mxu0 0
  %7603 = vmatprep.subr.bf16.mxu0 0
  %7604 = vmatpush1.bf16.msra.mxu0 0
  %7605 = vmatprep.subr.bf16.mxu0 0
  %7606 = vmatpush1.bf16.msra.mxu0 0
  %7607 = vmatprep.subr.bf16.mxu0 0
  %7608 = vmatpush1.bf16.msra.mxu0 0
  %7609 = vmatprep.subr.bf16.mxu0 0
  %7610 = vmatpush1.bf16.msra.mxu0 0
  %7611 = vmatprep.subr.bf16.mxu0 0
  %7612 = vmatpush1.bf16.msra.mxu0 0
  %7613 = vmatprep.subr.bf16.mxu0 0
  %7614 = vmatpush1.bf16.msra.mxu0 0
  %7615 = vmatprep.subr.bf16.mxu0 0
  %7616 = vmatpush1.bf16.msra.mxu0 0
  %7617 = vmatprep.mubr.bf16.mxu0 0
  %7618 = vmatmul.mubr.bf16.gmra.mrb[0].mxu0 %v7513
  %v7619 = vpop.f32.mrb[0].mxu0
  %v7620 = vadd.f32 %v7535, %v7619
  %v7621 = vpop.f32.mrb[0].mxu0
  %v7622 = vpop.f32.mrb[0].mxu0
  %v7623 = vpop.f32.mrb[0].mxu0
  %7624 = vdwg.mxu0
  %v7625 = vsub.f32 0.0, %v7620
  %v7626 = vmul.f32 %v7625, 1.442695
  %v7627 = vpow.pop %v7626
  %v7628 = vadd.f32 %v7627, 1.0
  %v7629 = vrcp.pop %v7628
  %v7630 = vpack.c.bf16 %v7629, %v7629
  %v7631 = vld [vmem:[%s11] sm:$0xff]
  %v7632 = vld [vmem:[%s11 + $0x8] sm:$0xff]
  %v7633 = vld [vmem:[%s11 + $0x10] sm:$0xff]
  %v7634 = vld [vmem:[%s11 + $0x18] sm:$0xff]
  %v7635 = vld [vmem:[%s11 + $0x20] sm:$0xff]
  %v7636 = vld [vmem:[%s11 + $0x28] sm:$0xff]
  %v7637 = vld [vmem:[%s11 + $0x30] sm:$0xff]
  %v7638 = vld [vmem:[%s11 + $0x38] sm:$0xff]
  %v7639 = vld [vmem:[%s11 + $0x40] sm:$0xff]
  %v7640 = vld [vmem:[%s11 + $0x48] sm:$0xff]
  %v7641 = vld [vmem:[%s11 + $0x50] sm:$0xff]
  %v7642 = vld [vmem:[%s11 + $0x58] sm:$0xff]
  %v7643 = vld [vmem:[%s11 + $0x60] sm:$0xff]
  %v7644 = vld [vmem:[%s11 + $0x68] sm:$0xff]
  %v7645 = vld [vmem:[%s11 + $0x70] sm:$0xff]
  %v7646 = vld [vmem:[%s11 + $0x78] sm:$0xff]
  %v7647 = vld [vmem:[%s12] sm:$0x3]
  %v7649 = vlaneseq
  %v7650 = vshrl.u32 %v7649, 7
  %v7651 = vsub.s32 0, %v7650
  %v7652 = vrot.slane %v7647, %v7651
  %v7653 = vlaneseq
  %v7654 = vshrl.u32 %v7653, 7
  %v7655 = vsub.s32 1, %v7654
  %v7656 = vrot.slane %v7647, %v7655
  %v7675 = vunpack.c.l.b16 %v7631
  %v7676 = vunpack.c.h.b16 %v7631
  %v7677 = vunpack.c.l.b16 %v7632
  %v7678 = vunpack.c.h.b16 %v7632
  %v7679 = vunpack.c.l.b16 %v7633
  %v7680 = vunpack.c.h.b16 %v7633
  %v7681 = vunpack.c.l.b16 %v7634
  %v7682 = vunpack.c.h.b16 %v7634
  %v7683 = vunpack.c.l.b16 %v7635
  %v7684 = vunpack.c.h.b16 %v7635
  %v7685 = vunpack.c.l.b16 %v7636
  %v7686 = vunpack.c.h.b16 %v7636
  %v7687 = vunpack.c.l.b16 %v7637
  %v7688 = vunpack.c.h.b16 %v7637
  %v7689 = vunpack.c.l.b16 %v7638
  %v7690 = vunpack.c.h.b16 %v7638
  %v7691 = vunpack.c.l.b16 %v7639
  %v7692 = vunpack.c.h.b16 %v7639
  %v7693 = vunpack.c.l.b16 %v7640
  %v7694 = vunpack.c.h.b16 %v7640
  %v7695 = vunpack.c.l.b16 %v7641
  %v7696 = vunpack.c.h.b16 %v7641
  %v7697 = vunpack.c.l.b16 %v7642
  %v7698 = vunpack.c.h.b16 %v7642
  %v7699 = vunpack.c.l.b16 %v7643
  %v7700 = vunpack.c.h.b16 %v7643
  %v7701 = vunpack.c.l.b16 %v7644
  %v7702 = vunpack.c.h.b16 %v7644
  %v7703 = vunpack.c.l.b16 %v7645
  %v7704 = vunpack.c.h.b16 %v7645
  %v7705 = vunpack.c.l.b16 %v7646
  %v7706 = vunpack.c.h.b16 %v7646
  %v7707 = vpack.c.b16 %v7677, %v7675
  %v7708 = vpack.c.b16 %v7678, %v7676
  %v7709 = vpack.c.b16 %v7681, %v7679
  %v7710 = vpack.c.b16 %v7682, %v7680
  %v7711 = vpack.c.b16 %v7685, %v7683
  %v7712 = vpack.c.b16 %v7686, %v7684
  %v7713 = vpack.c.b16 %v7689, %v7687
  %v7714 = vpack.c.b16 %v7690, %v7688
  %v7715 = vpack.c.b16 %v7693, %v7691
  %v7716 = vpack.c.b16 %v7694, %v7692
  %v7717 = vpack.c.b16 %v7697, %v7695
  %v7718 = vpack.c.b16 %v7698, %v7696
  %v7719 = vpack.c.b16 %v7701, %v7699
  %v7720 = vpack.c.b16 %v7702, %v7700
  %v7721 = vpack.c.b16 %v7705, %v7703
  %v7722 = vpack.c.b16 %v7706, %v7704
  %7739 = vmatprep.subr.bf16.mxu0 %v7708
  %7740 = vmatpush1.bf16.msra.mxu0 %v7707
  %7741 = vmatprep.subr.bf16.mxu0 %v7710
  %7742 = vmatpush1.bf16.msra.mxu0 %v7709
  %7743 = vmatprep.subr.bf16.mxu0 %v7712
  %7744 = vmatpush1.bf16.msra.mxu0 %v7711
  %7745 = vmatprep.subr.bf16.mxu0 %v7714
  %7746 = vmatpush1.bf16.msra.mxu0 %v7713
  %7747 = vmatprep.subr.bf16.mxu0 %v7716
  %7748 = vmatpush1.bf16.msra.mxu0 %v7715
  %7749 = vmatprep.subr.bf16.mxu0 %v7718
  %7750 = vmatpush1.bf16.msra.mxu0 %v7717
  %7751 = vmatprep.subr.bf16.mxu0 %v7720
  %7752 = vmatpush1.bf16.msra.mxu0 %v7719
  %7753 = vmatprep.subr.bf16.mxu0 %v7722
  %7754 = vmatpush1.bf16.msra.mxu0 %v7721
  %7755 = vmatprep.subr.bf16.mxu0 0
  %7756 = vmatpush1.bf16.msra.mxu0 0
  %7757 = vmatprep.subr.bf16.mxu0 0
  %7758 = vmatpush1.bf16.msra.mxu0 0
  %7759 = vmatprep.subr.bf16.mxu0 0
  %7760 = vmatpush1.bf16.msra.mxu0 0
  %7761 = vmatprep.subr.bf16.mxu0 0
  %7762 = vmatpush1.bf16.msra.mxu0 0
  %7763 = vmatprep.subr.bf16.mxu0 0
  %7764 = vmatpush1.bf16.msra.mxu0 0
  %7765 = vmatprep.subr.bf16.mxu0 0
  %7766 = vmatpush1.bf16.msra.mxu0 0
  %7767 = vmatprep.subr.bf16.mxu0 0
  %7768 = vmatpush1.bf16.msra.mxu0 0
  %7769 = vmatprep.subr.bf16.mxu0 0
  %7770 = vmatpush1.bf16.msra.mxu0 0
  %7771 = vmatprep.mubr.bf16.mxu0 0
  %7772 = vmatmul.mubr.bf16.gmra.mrb[0].mxu0 %v7630
  %v7773 = vpop.f32.mrb[0].mxu0
  %v7774 = vadd.f32 %v7652, %v7773
  %v7775 = vpop.f32.mrb[0].mxu0
  %v7776 = vadd.f32 %v7656, %v7775
  %v7777 = vpop.f32.mrb[0].mxu0
  %v7778 = vpop.f32.mrb[0].mxu0
  %7779 = vdwg.mxu0
  %7780 = vst [vmem:[%s13] sm:$0xff] %v7774
  %7781 = vst [vmem:[%s13 + $0x8] sm:$0xff] %v7776
  // Predicated region
  $region54: #{lenet_forward.1} parent=0 // pred_check
    _
  $region55: #{lenet_forward.1} parent=0 // pred_check_branch
    %7783 = sbr.rel (0) target = $region57
  $region56: #{lenet_forward.1} parent=0 // pred_region
    _
  $region57: #{lenet_forward.1} parent=0 // pred_fallthru
    _
  // Predicated region
  $region58: #{lenet_forward.1} parent=0 // pred_check
    _
  $region59: #{lenet_forward.1} parent=0 // pred_check_branch
    %7785 = sbr.rel (0) target = $region61
  $region60: #{lenet_forward.1} parent=0 // pred_region
    _
  $region61: #{lenet_forward.1} parent=0 // pred_fallthru
    _

</llo_original>
